<compile_context>
chip_gen: v5e
topology: v5e:2x2
jax: 0.10.0
libtpu: 0.0.40
codegen_flags: <defaults>
</compile_context>

<pallas_src>
import functools

import numpy as np
import jax
import jax.numpy as jnp
from jax import lax
from jax.experimental import pallas as pl
from jax.experimental.pallas import tpu as pltpu


# --------------------------- architecture constants -------------------------
C0, C1, C2 = 3, 6, 16            # channels
KK = 5                           # conv kernel size
H0 = 32                          # input spatial (32x32 -> fc_in 400)
H1 = H0 - KK + 1                 # 28 (conv1 out)
HP1 = H1 // 2                    # 14 (pool1 out)
H2 = HP1 - KK + 1                # 10 (conv2 out)
HP2 = H2 // 2                    # 5  (pool2 out)
L1 = H1 * C1                     # 168 lanes: (wo, co) of conv1
L2 = H2 * C2                     # 160 lanes: (wo2, co2) of conv2
FEAT = HP2 * L2                  # 800 (5 pooled rows x 160 lanes)

N_TILE = 8                       # images per grid step (M = 256 rows per matmul)
ROW_PAD = 8                      # staging-buffer row padding (>= max row shift)
STG_LANES = L1 + 8               # staging-buffer lane padding (>= L1+6, >= L2+16)


# ------------------------------- fused kernel -------------------------------
def fused_lenet_kernel(x_ref, m1_ref, b1_ref, m2_ref, b2_ref, wfc_ref, bfc_ref,
                       out_ref, acc_ref, stg_ref, p1_ref, feat_ref):
    n_img = out_ref.shape[0]                 # N_TILE
    rows = n_img * H0                        # unified row space (n, h)

    # zero the staging buffer so shifted reads into the pad region stay finite
    stg_ref[...] = jnp.zeros_like(stg_ref)

    # ---- conv1: 5 row-Toeplitz matmuls with row-shifted accumulation --------
    # acc[r, wo*6+co] = sum_kh (X2 @ M1[kh])[r + kh, wo*6+co]
    for kh in range(KK):
        p = jnp.dot(x_ref[...], m1_ref[kh], preferred_element_type=jnp.float32)
        if kh == 0:
            acc_ref[...] = p
        else:
            acc_ref[pl.ds(0, rows - kh), :] += p[kh:, :]
    a1 = jnp.maximum(acc_ref[...] + b1_ref[...], 0.0)           # relu(conv1 + b1)

    # ---- maxpool1 (2x2/2): stage once, 4 shifted reads, elementwise max -----
    # valid pooled values end up at even rows and lanes 12*wp + co
    stg_ref[pl.ds(0, rows), pl.ds(0, L1)] = a1
    p1 = jnp.maximum(
        jnp.maximum(stg_ref[pl.ds(0, rows), pl.ds(0, L1)],
                    stg_ref[pl.ds(1, rows), pl.ds(0, L1)]),
        jnp.maximum(stg_ref[pl.ds(0, rows), pl.ds(C1, L1)],
                    stg_ref[pl.ds(1, rows), pl.ds(C1, L1)]))
    p1_ref[...] = p1

    # ---- conv2: same scheme, row shift is 2*kh (pooled rows are even) -------
    for kh in range(KK):
        q = jnp.dot(p1_ref[...], m2_ref[kh], preferred_element_type=jnp.float32)
        s = 2 * kh
        if kh == 0:
            acc_ref[pl.ds(0, rows), pl.ds(0, L2)] = q
        else:
            acc_ref[pl.ds(0, rows - s), pl.ds(0, L2)] += q[s:, :]
    a2 = jnp.maximum(acc_ref[pl.ds(0, rows), pl.ds(0, L2)] + b2_ref[...], 0.0)

    # ---- maxpool2: partners at +2 rows / +16 lanes ---------------------------
    # valid pooled values at rows 4*hq and lanes 32*wq + co2
    stg_ref[pl.ds(0, rows), pl.ds(0, L2)] = a2
    p2 = jnp.maximum(
        jnp.maximum(stg_ref[pl.ds(0, rows), pl.ds(0, L2)],
                    stg_ref[pl.ds(2, rows), pl.ds(0, L2)]),
        jnp.maximum(stg_ref[pl.ds(0, rows), pl.ds(C2, L2)],
                    stg_ref[pl.ds(2, rows), pl.ds(C2, L2)]))

    # ---- flatten (NCHW order folded into wfc) + fc ---------------------------
    stg_ref[pl.ds(0, rows), pl.ds(0, L2)] = p2
    for n in range(n_img):
        base = n * H0
        pieces = [stg_ref[pl.ds(base + 4 * hq, 1), pl.ds(0, L2)]
                  for hq in range(HP2)]
        feat_ref[pl.ds(n, 1), :] = jnp.concatenate(pieces, axis=1)   # (1, 800)
    out_ref[...] = (jnp.dot(feat_ref[...], wfc_ref[...],
                            preferred_element_type=jnp.float32) + bfc_ref[...])


# ----------------------------- host-side weight prep ------------------------
def prepare_params(W1, b1, W2, b2, Wfc, bfc):
    """Torch-layout params -> row-Toeplitz matrices + permuted FC weight."""
    W1 = np.asarray(W1, np.float32)
    W2 = np.asarray(W2, np.float32)
    Wfc = np.asarray(Wfc, np.float32)

    # conv1: M1[kh, w*3 + c, wo*6 + co] = W1[co, c, kh, w - wo]  (0 <= w-wo < 5)
    W1t = np.transpose(W1, (2, 3, 1, 0))                 # (kh, kw, c, co)
    M1 = np.zeros((KK, H0 * C0, L1), np.float32)
    for kh in range(KK):
        for kw in range(KK):
            for wo in range(H1):
                w = wo + kw
                M1[kh, w * C0:(w + 1) * C0, wo * C1:(wo + 1) * C1] = W1t[kh, kw]
    b1row = np.tile(np.asarray(b1, np.float32), H1)[None, :]            # (1, 168)

    # conv2 consumes pooled1 whose valid lanes are 12*wp + c (wp even cols only):
    # M2[kh, 12*wp + c, wo2*16 + co2] = W2[co2, c, kh, wp - wo2]; other rows zero
    W2t = np.transpose(W2, (2, 3, 1, 0))                 # (kh, kw, c, co2)
    M2 = np.zeros((KK, L1, L2), np.float32)
    for kh in range(KK):
        for kw in range(KK):
            for wo2 in range(H2):
                wp = wo2 + kw
                M2[kh, (2 * wp) * C1:(2 * wp) * C1 + C1,
                   wo2 * C2:(wo2 + 1) * C2] = W2t[kh, kw]
    b2row = np.tile(np.asarray(b2, np.float32), H2)[None, :]            # (1, 160)

    # FC: kernel feature index g = 160*hq + 32*wq + co2  <->  torch flatten
    # index co2*25 + hq*5 + wq.  Unused lanes get zero rows.
    WfcT = Wfc.T                                          # (400, num_class)
    ncls = WfcT.shape[1]
    WfcM = np.zeros((FEAT, ncls), np.float32)
    for hq in range(HP2):
        for wq in range(HP2):
            blk = WfcT[hq * HP2 + wq::HP2 * HP2, :]       # co2 = 0..15 -> (16, C)
            base = hq * L2 + (2 * wq) * C2
            WfcM[base:base + C2, :] = blk
    bfc_row = np.asarray(bfc, np.float32)[None, :]

    return tuple(jnp.asarray(a) for a in (M1, b1row, M2, b2row, WfcM, bfc_row))


# --------------------------------- wrapper -----------------------------------
@jax.jit
def cnn_forward(x_nchw, prep):
    M1, b1row, M2, b2row, WfcM, bfc_row = prep
    N = x_nchw.shape[0]
    n_pad = ((N + N_TILE - 1) // N_TILE) * N_TILE
    ncls = WfcM.shape[1]

    x = jnp.transpose(x_nchw, (0, 2, 3, 1)).astype(jnp.float32)      # NHWC
    if n_pad != N:
        x = jnp.pad(x, ((0, n_pad - N), (0, 0), (0, 0), (0, 0)))
    x2 = x.reshape(n_pad * H0, H0 * C0)                              # rows=(n,h)

    rows_t = N_TILE * H0
    out = pl.pallas_call(
        fused_lenet_kernel,
        out_shape=jax.ShapeDtypeStruct((n_pad, ncls), jnp.float32),
        grid=(n_pad // N_TILE,),
        in_specs=[
            pl.BlockSpec((rows_t, H0 * C0), lambda i: (i, 0)),        # input rows
            pl.BlockSpec((KK, H0 * C0, L1), lambda i: (0, 0, 0)),     # M1
            pl.BlockSpec((1, L1), lambda i: (0, 0)),                  # b1
            pl.BlockSpec((KK, L1, L2), lambda i: (0, 0, 0)),          # M2
            pl.BlockSpec((1, L2), lambda i: (0, 0)),                  # b2
            pl.BlockSpec((FEAT, ncls), lambda i: (0, 0)),             # fc weight
            pl.BlockSpec((1, ncls), lambda i: (0, 0)),                # fc bias
        ],
        out_specs=pl.BlockSpec((N_TILE, ncls), lambda i: (i, 0)),
        scratch_shapes=[
            pltpu.VMEM((rows_t, L1), jnp.float32),                    # matmul acc
            pltpu.VMEM((rows_t + ROW_PAD, STG_LANES), jnp.float32),   # shift stage
            pltpu.VMEM((rows_t, L1), jnp.float32),                    # pooled1
            pltpu.VMEM((N_TILE, FEAT), jnp.float32),                  # fc features
        ],
        compiler_params=pltpu.CompilerParams(
            dimension_semantics=("parallel",)),
    )(x2, M1, b1row, M2, b2row, WfcM, bfc_row)
    return out[:N]


# -------------------------------- reference ----------------------------------
def reference_forward(x_nchw, raw_params):
    """Pure-JAX NCHW reference mirroring the PyTorch forward exactly."""
    W1, b1, W2, b2, Wfc, bfc = raw_params
    dn = ('NCHW', 'OIHW', 'NCHW')

    def conv_relu_pool(x, w, b):
        y = lax.conv_general_dilated(x, w, (1, 1), 'VALID', dimension_numbers=dn,
                                     precision=lax.Precision.HIGHEST)
        y = jnp.maximum(y + b[None, :, None, None], 0.0)
        return lax.reduce_window(y, -jnp.inf, lax.max,
                                 (1, 1, 2, 2), (1, 1, 2, 2), 'VALID')

    y = conv_relu_pool(x_nchw, W1, b1)
    y = conv_relu_pool(y, W2, b2)
    y = y.reshape(y.shape[0], -1)
    return jnp.dot(y, Wfc.T, precision=lax.Precision.HIGHEST) + bfc


# ----------------------------------- main -------------------------------------
if __name__ == "__main__":
    num_class = 10
    N = 2

    key = jax.random.PRNGKey(0)
    kx, k1, k2, k3, k4, k5, k6 = jax.random.split(key, 7)

    # input: NCHW, matching PyTorch conv input convention (32x32 -> fc_in 400)
    x = jax.random.normal(kx, (N, 3, 32, 32), dtype=jnp.float32)

    # deterministic synthetic parameters (PyTorch tensor layouts)
    W1 = 0.1 * jax.random.normal(k1, (6, 3, 5, 5), dtype=jnp.float32)
    b1 = 0.1 * jax.random.normal(k2, (6,), dtype=jnp.float32)
    W2 = 0.1 * jax.random.normal(k3, (16, 6, 5, 5), dtype=jnp.float32)
    b2 = 0.1 * jax.random.normal(k4, (16,), dtype=jnp.float32)
    Wfc = 0.1 * jax.random.normal(k5, (num_class, 400), dtype=jnp.float32)
    bfc = 0.1 * jax.random.normal(k6, (num_class,), dtype=jnp.float32)

    prep = prepare_params(W1, b1, W2, b2, Wfc, bfc)
    raw = (W1, b1, W2, b2, Wfc, bfc)

    out = jax.block_until_ready(cnn_forward(x, prep))
    assert out.shape == (N, num_class), out.shape
    ref = reference_forward(x, raw)
    if not jnp.allclose(out, ref, atol=2e-3, rtol=2e-3):
        err = float(jnp.max(jnp.abs(out - ref)))
        raise AssertionError(f"Pallas CNN output mismatch vs reference "
                             f"(max abs err {err:.3e})")

    # second check: batch spanning several grid tiles (exercises batch tiling)
    x_big = jax.random.normal(jax.random.PRNGKey(1), (19, 3, 32, 32),
                              dtype=jnp.float32)
    out_big = jax.block_until_ready(cnn_forward(x_big, prep))
    ref_big = reference_forward(x_big, raw)
    if not jnp.allclose(out_big, ref_big, atol=2e-3, rtol=2e-3):
        raise AssertionError("Pallas CNN mismatch on multi-tile batch")

    print("KERNEL_OK")
</pallas_src>

<mosaic_0001>
module attributes {stable_mosaic.version = 11 : i64} {
  func.func @fused_lenet_kernel(%arg0: i32, %arg1: memref<256x96xf32, #tpu.memory_space<vmem>>, %arg2: memref<5x96x168xf32, #tpu.memory_space<vmem>>, %arg3: memref<1x168xf32, #tpu.memory_space<vmem>>, %arg4: memref<5x168x160xf32, #tpu.memory_space<vmem>>, %arg5: memref<1x160xf32, #tpu.memory_space<vmem>>, %arg6: memref<800x10xf32, #tpu.memory_space<vmem>>, %arg7: memref<1x10xf32, #tpu.memory_space<vmem>>, %arg8: memref<8x10xf32, #tpu.memory_space<vmem>>, %arg9: memref<256x168xf32, #tpu.memory_space<vmem>>, %arg10: memref<264x176xf32, #tpu.memory_space<vmem>>, %arg11: memref<256x168xf32, #tpu.memory_space<vmem>>, %arg12: memref<8x800xf32, #tpu.memory_space<vmem>>) attributes {dimension_semantics = [#tpu.dimension_semantics<parallel>], iteration_bounds = array<i64: 1>, scalar_prefetch = 0 : i64, scratch_operands = 4 : i64, tpu.core_type = #tpu.core_type<tc>, window_params = [{transform_indices = @transform_0, window_bounds = array<i64: 256, 96>}, {pipeline_mode = #tpu.pipeline_mode<synchronous>, transform_indices = @transform_1, window_bounds = array<i64: 5, 96, 168>}, {pipeline_mode = #tpu.pipeline_mode<synchronous>, transform_indices = @transform_2, window_bounds = array<i64: 1, 168>}, {pipeline_mode = #tpu.pipeline_mode<synchronous>, transform_indices = @transform_3, window_bounds = array<i64: 5, 168, 160>}, {pipeline_mode = #tpu.pipeline_mode<synchronous>, transform_indices = @transform_4, window_bounds = array<i64: 1, 160>}, {pipeline_mode = #tpu.pipeline_mode<synchronous>, transform_indices = @transform_5, window_bounds = array<i64: 800, 10>}, {pipeline_mode = #tpu.pipeline_mode<synchronous>, transform_indices = @transform_6, window_bounds = array<i64: 1, 10>}, {transform_indices = @transform_7, window_bounds = array<i64: 8, 10>}]} {
    %cst = arith.constant 0.000000e+00 : f32
    %0 = vector.broadcast %cst : f32 to vector<264x176xf32>
    %c0 = arith.constant 0 : index
    %c0_0 = arith.constant 0 : index
    %1 = vector.load %arg10[%c0, %c0_0] : memref<264x176xf32, #tpu.memory_space<vmem>>, vector<264x176xf32>
    tpu.vector_store %arg10[%c0, %c0_0], %0 {strides = array<i32>} : memref<264x176xf32, #tpu.memory_space<vmem>>, vector<264x176xf32>,
    %c0_1 = arith.constant 0 : index
    %c0_2 = arith.constant 0 : index
    %2 = vector.load %arg1[%c0_1, %c0_2] : memref<256x96xf32, #tpu.memory_space<vmem>>, vector<256x96xf32>
    %c0_3 = arith.constant 0 : index
    %c0_4 = arith.constant 0 : index
    %c0_5 = arith.constant 0 : index
    %3 = vector.load %arg2[%c0_3, %c0_4, %c0_5] : memref<5x96x168xf32, #tpu.memory_space<vmem>>, vector<1x96x168xf32>
    %4 = vector.shape_cast %3 : vector<1x96x168xf32> to vector<96x168xf32>
    %cst_6 = arith.constant dense<0.000000e+00> : vector<256x168xf32>
    %5 = tpu.matmul %2, %4, %cst_6 {dimension_numbers = #tpu.dot_dimension_numbers<[1], [0], [0], [1], [0, 0, 1, 1], [], []>} : vector<256x96xf32>, vector<96x168xf32>, vector<256x168xf32> -> vector<256x168xf32>
    %c0_7 = arith.constant 0 : index
    %c0_8 = arith.constant 0 : index
    %6 = vector.load %arg9[%c0_7, %c0_8] : memref<256x168xf32, #tpu.memory_space<vmem>>, vector<256x168xf32>
    tpu.vector_store %arg9[%c0_7, %c0_8], %5 {strides = array<i32>} : memref<256x168xf32, #tpu.memory_space<vmem>>, vector<256x168xf32>,
    %c0_9 = arith.constant 0 : index
    %c0_10 = arith.constant 0 : index
    %7 = vector.load %arg1[%c0_9, %c0_10] : memref<256x96xf32, #tpu.memory_space<vmem>>, vector<256x96xf32>
    %c1 = arith.constant 1 : index
    %c0_11 = arith.constant 0 : index
    %c0_12 = arith.constant 0 : index
    %8 = vector.load %arg2[%c1, %c0_11, %c0_12] : memref<5x96x168xf32, #tpu.memory_space<vmem>>, vector<1x96x168xf32>
    %9 = vector.shape_cast %8 : vector<1x96x168xf32> to vector<96x168xf32>
    %cst_13 = arith.constant dense<0.000000e+00> : vector<256x168xf32>
    %10 = tpu.matmul %7, %9, %cst_13 {dimension_numbers = #tpu.dot_dimension_numbers<[1], [0], [0], [1], [0, 0, 1, 1], [], []>} : vector<256x96xf32>, vector<96x168xf32>, vector<256x168xf32> -> vector<256x168xf32>
    %c0_14 = arith.constant 0 : index
    %c0_15 = arith.constant 0 : index
    %11 = vector.load %arg9[%c0_14, %c0_15] : memref<256x168xf32, #tpu.memory_space<vmem>>, vector<255x168xf32>
    %12 = vector.extract_strided_slice %10 {offsets = [1, 0], sizes = [255, 168], strides = [1, 1]} : vector<256x168xf32> to vector<255x168xf32>
    %13 = arith.addf %11, %12 : vector<255x168xf32>
    %c0_16 = arith.constant 0 : index
    %c0_17 = arith.constant 0 : index
    %14 = vector.load %arg9[%c0_16, %c0_17] : memref<256x168xf32, #tpu.memory_space<vmem>>, vector<255x168xf32>
    tpu.vector_store %arg9[%c0_16, %c0_17], %13 {strides = array<i32>} : memref<256x168xf32, #tpu.memory_space<vmem>>, vector<255x168xf32>,
    %c0_18 = arith.constant 0 : index
    %c0_19 = arith.constant 0 : index
    %15 = vector.load %arg1[%c0_18, %c0_19] : memref<256x96xf32, #tpu.memory_space<vmem>>, vector<256x96xf32>
    %c2 = arith.constant 2 : index
    %c0_20 = arith.constant 0 : index
    %c0_21 = arith.constant 0 : index
    %16 = vector.load %arg2[%c2, %c0_20, %c0_21] : memref<5x96x168xf32, #tpu.memory_space<vmem>>, vector<1x96x168xf32>
    %17 = vector.shape_cast %16 : vector<1x96x168xf32> to vector<96x168xf32>
    %cst_22 = arith.constant dense<0.000000e+00> : vector<256x168xf32>
    %18 = tpu.matmul %15, %17, %cst_22 {dimension_numbers = #tpu.dot_dimension_numbers<[1], [0], [0], [1], [0, 0, 1, 1], [], []>} : vector<256x96xf32>, vector<96x168xf32>, vector<256x168xf32> -> vector<256x168xf32>
    %c0_23 = arith.constant 0 : index
    %c0_24 = arith.constant 0 : index
    %19 = vector.load %arg9[%c0_23, %c0_24] : memref<256x168xf32, #tpu.memory_space<vmem>>, vector<254x168xf32>
    %20 = vector.extract_strided_slice %18 {offsets = [2, 0], sizes = [254, 168], strides = [1, 1]} : vector<256x168xf32> to vector<254x168xf32>
    %21 = arith.addf %19, %20 : vector<254x168xf32>
    %c0_25 = arith.constant 0 : index
    %c0_26 = arith.constant 0 : index
    %22 = vector.load %arg9[%c0_25, %c0_26] : memref<256x168xf32, #tpu.memory_space<vmem>>, vector<254x168xf32>
    tpu.vector_store %arg9[%c0_25, %c0_26], %21 {strides = array<i32>} : memref<256x168xf32, #tpu.memory_space<vmem>>, vector<254x168xf32>,
    %c0_27 = arith.constant 0 : index
    %c0_28 = arith.constant 0 : index
    %23 = vector.load %arg1[%c0_27, %c0_28] : memref<256x96xf32, #tpu.memory_space<vmem>>, vector<256x96xf32>
    %c3 = arith.constant 3 : index
    %c0_29 = arith.constant 0 : index
    %c0_30 = arith.constant 0 : index
    %24 = vector.load %arg2[%c3, %c0_29, %c0_30] : memref<5x96x168xf32, #tpu.memory_space<vmem>>, vector<1x96x168xf32>
    %25 = vector.shape_cast %24 : vector<1x96x168xf32> to vector<96x168xf32>
    %cst_31 = arith.constant dense<0.000000e+00> : vector<256x168xf32>
    %26 = tpu.matmul %23, %25, %cst_31 {dimension_numbers = #tpu.dot_dimension_numbers<[1], [0], [0], [1], [0, 0, 1, 1], [], []>} : vector<256x96xf32>, vector<96x168xf32>, vector<256x168xf32> -> vector<256x168xf32>
    %c0_32 = arith.constant 0 : index
    %c0_33 = arith.constant 0 : index
    %27 = vector.load %arg9[%c0_32, %c0_33] : memref<256x168xf32, #tpu.memory_space<vmem>>, vector<253x168xf32>
    %28 = vector.extract_strided_slice %26 {offsets = [3, 0], sizes = [253, 168], strides = [1, 1]} : vector<256x168xf32> to vector<253x168xf32>
    %29 = arith.addf %27, %28 : vector<253x168xf32>
    %c0_34 = arith.constant 0 : index
    %c0_35 = arith.constant 0 : index
    %30 = vector.load %arg9[%c0_34, %c0_35] : memref<256x168xf32, #tpu.memory_space<vmem>>, vector<253x168xf32>
    tpu.vector_store %arg9[%c0_34, %c0_35], %29 {strides = array<i32>} : memref<256x168xf32, #tpu.memory_space<vmem>>, vector<253x168xf32>,
    %c0_36 = arith.constant 0 : index
    %c0_37 = arith.constant 0 : index
    %31 = vector.load %arg1[%c0_36, %c0_37] : memref<256x96xf32, #tpu.memory_space<vmem>>, vector<256x96xf32>
    %c4 = arith.constant 4 : index
    %c0_38 = arith.constant 0 : index
    %c0_39 = arith.constant 0 : index
    %32 = vector.load %arg2[%c4, %c0_38, %c0_39] : memref<5x96x168xf32, #tpu.memory_space<vmem>>, vector<1x96x168xf32>
    %33 = vector.shape_cast %32 : vector<1x96x168xf32> to vector<96x168xf32>
    %cst_40 = arith.constant dense<0.000000e+00> : vector<256x168xf32>
    %34 = tpu.matmul %31, %33, %cst_40 {dimension_numbers = #tpu.dot_dimension_numbers<[1], [0], [0], [1], [0, 0, 1, 1], [], []>} : vector<256x96xf32>, vector<96x168xf32>, vector<256x168xf32> -> vector<256x168xf32>
    %c0_41 = arith.constant 0 : index
    %c0_42 = arith.constant 0 : index
    %35 = vector.load %arg9[%c0_41, %c0_42] : memref<256x168xf32, #tpu.memory_space<vmem>>, vector<252x168xf32>
    %36 = vector.extract_strided_slice %34 {offsets = [4, 0], sizes = [252, 168], strides = [1, 1]} : vector<256x168xf32> to vector<252x168xf32>
    %37 = arith.addf %35, %36 : vector<252x168xf32>
    %c0_43 = arith.constant 0 : index
    %c0_44 = arith.constant 0 : index
    %38 = vector.load %arg9[%c0_43, %c0_44] : memref<256x168xf32, #tpu.memory_space<vmem>>, vector<252x168xf32>
    tpu.vector_store %arg9[%c0_43, %c0_44], %37 {strides = array<i32>} : memref<256x168xf32, #tpu.memory_space<vmem>>, vector<252x168xf32>,
    %c0_45 = arith.constant 0 : index
    %c0_46 = arith.constant 0 : index
    %39 = vector.load %arg9[%c0_45, %c0_46] : memref<256x168xf32, #tpu.memory_space<vmem>>, vector<256x168xf32>
    %c0_47 = arith.constant 0 : index
    %c0_48 = arith.constant 0 : index
    %40 = vector.load %arg3[%c0_47, %c0_48] : memref<1x168xf32, #tpu.memory_space<vmem>>, vector<1x168xf32>
    %41 = vector.broadcast %40 : vector<1x168xf32> to vector<256x168xf32>
    %42 = arith.addf %39, %41 : vector<256x168xf32>
    %cst_49 = arith.constant 0.000000e+00 : f32
    %43 = vector.broadcast %cst_49 : f32 to vector<256x168xf32>
    %44 = arith.maximumf %42, %43 : vector<256x168xf32>
    %c0_50 = arith.constant 0 : index
    %c0_51 = arith.constant 0 : index
    %45 = vector.load %arg10[%c0_50, %c0_51] : memref<264x176xf32, #tpu.memory_space<vmem>>, vector<256x168xf32>
    tpu.vector_store %arg10[%c0_50, %c0_51], %44 {strides = array<i32>} : memref<264x176xf32, #tpu.memory_space<vmem>>, vector<256x168xf32>,
    %c0_52 = arith.constant 0 : index
    %c0_53 = arith.constant 0 : index
    %46 = vector.load %arg10[%c0_52, %c0_53] : memref<264x176xf32, #tpu.memory_space<vmem>>, vector<256x168xf32>
    %c1_54 = arith.constant 1 : index
    %c0_55 = arith.constant 0 : index
    %47 = vector.load %arg10[%c1_54, %c0_55] : memref<264x176xf32, #tpu.memory_space<vmem>>, vector<256x168xf32>
    %48 = arith.maximumf %46, %47 : vector<256x168xf32>
    %c0_56 = arith.constant 0 : index
    %c6 = arith.constant 6 : index
    %49 = vector.load %arg10[%c0_56, %c6] : memref<264x176xf32, #tpu.memory_space<vmem>>, vector<256x168xf32>
    %c1_57 = arith.constant 1 : index
    %c6_58 = arith.constant 6 : index
    %50 = vector.load %arg10[%c1_57, %c6_58] : memref<264x176xf32, #tpu.memory_space<vmem>>, vector<256x168xf32>
    %51 = arith.maximumf %49, %50 : vector<256x168xf32>
    %52 = arith.maximumf %48, %51 : vector<256x168xf32>
    %c0_59 = arith.constant 0 : index
    %c0_60 = arith.constant 0 : index
    %53 = vector.load %arg11[%c0_59, %c0_60] : memref<256x168xf32, #tpu.memory_space<vmem>>, vector<256x168xf32>
    tpu.vector_store %arg11[%c0_59, %c0_60], %52 {strides = array<i32>} : memref<256x168xf32, #tpu.memory_space<vmem>>, vector<256x168xf32>,
    %c0_61 = arith.constant 0 : index
    %c0_62 = arith.constant 0 : index
    %54 = vector.load %arg11[%c0_61, %c0_62] : memref<256x168xf32, #tpu.memory_space<vmem>>, vector<256x168xf32>
    %c0_63 = arith.constant 0 : index
    %c0_64 = arith.constant 0 : index
    %c0_65 = arith.constant 0 : index
    %55 = vector.load %arg4[%c0_63, %c0_64, %c0_65] : memref<5x168x160xf32, #tpu.memory_space<vmem>>, vector<1x168x160xf32>
    %56 = vector.shape_cast %55 : vector<1x168x160xf32> to vector<168x160xf32>
    %cst_66 = arith.constant dense<0.000000e+00> : vector<256x160xf32>
    %57 = tpu.matmul %54, %56, %cst_66 {dimension_numbers = #tpu.dot_dimension_numbers<[1], [0], [0], [1], [0, 0, 1, 1], [], []>} : vector<256x168xf32>, vector<168x160xf32>, vector<256x160xf32> -> vector<256x160xf32>
    %c0_67 = arith.constant 0 : index
    %c0_68 = arith.constant 0 : index
    %58 = vector.load %arg9[%c0_67, %c0_68] : memref<256x168xf32, #tpu.memory_space<vmem>>, vector<256x160xf32>
    tpu.vector_store %arg9[%c0_67, %c0_68], %57 {strides = array<i32>} : memref<256x168xf32, #tpu.memory_space<vmem>>, vector<256x160xf32>,
    %c0_69 = arith.constant 0 : index
    %c0_70 = arith.constant 0 : index
    %59 = vector.load %arg11[%c0_69, %c0_70] : memref<256x168xf32, #tpu.memory_space<vmem>>, vector<256x168xf32>
    %c1_71 = arith.constant 1 : index
    %c0_72 = arith.constant 0 : index
    %c0_73 = arith.constant 0 : index
    %60 = vector.load %arg4[%c1_71, %c0_72, %c0_73] : memref<5x168x160xf32, #tpu.memory_space<vmem>>, vector<1x168x160xf32>
    %61 = vector.shape_cast %60 : vector<1x168x160xf32> to vector<168x160xf32>
    %cst_74 = arith.constant dense<0.000000e+00> : vector<256x160xf32>
    %62 = tpu.matmul %59, %61, %cst_74 {dimension_numbers = #tpu.dot_dimension_numbers<[1], [0], [0], [1], [0, 0, 1, 1], [], []>} : vector<256x168xf32>, vector<168x160xf32>, vector<256x160xf32> -> vector<256x160xf32>
    %c0_75 = arith.constant 0 : index
    %c0_76 = arith.constant 0 : index
    %63 = vector.load %arg9[%c0_75, %c0_76] : memref<256x168xf32, #tpu.memory_space<vmem>>, vector<254x160xf32>
    %64 = vector.extract_strided_slice %62 {offsets = [2, 0], sizes = [254, 160], strides = [1, 1]} : vector<256x160xf32> to vector<254x160xf32>
    %65 = arith.addf %63, %64 : vector<254x160xf32>
    %c0_77 = arith.constant 0 : index
    %c0_78 = arith.constant 0 : index
    %66 = vector.load %arg9[%c0_77, %c0_78] : memref<256x168xf32, #tpu.memory_space<vmem>>, vector<254x160xf32>
    tpu.vector_store %arg9[%c0_77, %c0_78], %65 {strides = array<i32>} : memref<256x168xf32, #tpu.memory_space<vmem>>, vector<254x160xf32>,
    %c0_79 = arith.constant 0 : index
    %c0_80 = arith.constant 0 : index
    %67 = vector.load %arg11[%c0_79, %c0_80] : memref<256x168xf32, #tpu.memory_space<vmem>>, vector<256x168xf32>
    %c2_81 = arith.constant 2 : index
    %c0_82 = arith.constant 0 : index
    %c0_83 = arith.constant 0 : index
    %68 = vector.load %arg4[%c2_81, %c0_82, %c0_83] : memref<5x168x160xf32, #tpu.memory_space<vmem>>, vector<1x168x160xf32>
    %69 = vector.shape_cast %68 : vector<1x168x160xf32> to vector<168x160xf32>
    %cst_84 = arith.constant dense<0.000000e+00> : vector<256x160xf32>
    %70 = tpu.matmul %67, %69, %cst_84 {dimension_numbers = #tpu.dot_dimension_numbers<[1], [0], [0], [1], [0, 0, 1, 1], [], []>} : vector<256x168xf32>, vector<168x160xf32>, vector<256x160xf32> -> vector<256x160xf32>
    %c0_85 = arith.constant 0 : index
    %c0_86 = arith.constant 0 : index
    %71 = vector.load %arg9[%c0_85, %c0_86] : memref<256x168xf32, #tpu.memory_space<vmem>>, vector<252x160xf32>
    %72 = vector.extract_strided_slice %70 {offsets = [4, 0], sizes = [252, 160], strides = [1, 1]} : vector<256x160xf32> to vector<252x160xf32>
    %73 = arith.addf %71, %72 : vector<252x160xf32>
    %c0_87 = arith.constant 0 : index
    %c0_88 = arith.constant 0 : index
    %74 = vector.load %arg9[%c0_87, %c0_88] : memref<256x168xf32, #tpu.memory_space<vmem>>, vector<252x160xf32>
    tpu.vector_store %arg9[%c0_87, %c0_88], %73 {strides = array<i32>} : memref<256x168xf32, #tpu.memory_space<vmem>>, vector<252x160xf32>,
    %c0_89 = arith.constant 0 : index
    %c0_90 = arith.constant 0 : index
    %75 = vector.load %arg11[%c0_89, %c0_90] : memref<256x168xf32, #tpu.memory_space<vmem>>, vector<256x168xf32>
    %c3_91 = arith.constant 3 : index
    %c0_92 = arith.constant 0 : index
    %c0_93 = arith.constant 0 : index
    %76 = vector.load %arg4[%c3_91, %c0_92, %c0_93] : memref<5x168x160xf32, #tpu.memory_space<vmem>>, vector<1x168x160xf32>
    %77 = vector.shape_cast %76 : vector<1x168x160xf32> to vector<168x160xf32>
    %cst_94 = arith.constant dense<0.000000e+00> : vector<256x160xf32>
    %78 = tpu.matmul %75, %77, %cst_94 {dimension_numbers = #tpu.dot_dimension_numbers<[1], [0], [0], [1], [0, 0, 1, 1], [], []>} : vector<256x168xf32>, vector<168x160xf32>, vector<256x160xf32> -> vector<256x160xf32>
    %c0_95 = arith.constant 0 : index
    %c0_96 = arith.constant 0 : index
    %79 = vector.load %arg9[%c0_95, %c0_96] : memref<256x168xf32, #tpu.memory_space<vmem>>, vector<250x160xf32>
    %80 = vector.extract_strided_slice %78 {offsets = [6, 0], sizes = [250, 160], strides = [1, 1]} : vector<256x160xf32> to vector<250x160xf32>
    %81 = arith.addf %79, %80 : vector<250x160xf32>
    %c0_97 = arith.constant 0 : index
    %c0_98 = arith.constant 0 : index
    %82 = vector.load %arg9[%c0_97, %c0_98] : memref<256x168xf32, #tpu.memory_space<vmem>>, vector<250x160xf32>
    tpu.vector_store %arg9[%c0_97, %c0_98], %81 {strides = array<i32>} : memref<256x168xf32, #tpu.memory_space<vmem>>, vector<250x160xf32>,
    %c0_99 = arith.constant 0 : index
    %c0_100 = arith.constant 0 : index
    %83 = vector.load %arg11[%c0_99, %c0_100] : memref<256x168xf32, #tpu.memory_space<vmem>>, vector<256x168xf32>
    %c4_101 = arith.constant 4 : index
    %c0_102 = arith.constant 0 : index
    %c0_103 = arith.constant 0 : index
    %84 = vector.load %arg4[%c4_101, %c0_102, %c0_103] : memref<5x168x160xf32, #tpu.memory_space<vmem>>, vector<1x168x160xf32>
    %85 = vector.shape_cast %84 : vector<1x168x160xf32> to vector<168x160xf32>
    %cst_104 = arith.constant dense<0.000000e+00> : vector<256x160xf32>
    %86 = tpu.matmul %83, %85, %cst_104 {dimension_numbers = #tpu.dot_dimension_numbers<[1], [0], [0], [1], [0, 0, 1, 1], [], []>} : vector<256x168xf32>, vector<168x160xf32>, vector<256x160xf32> -> vector<256x160xf32>
    %c0_105 = arith.constant 0 : index
    %c0_106 = arith.constant 0 : index
    %87 = vector.load %arg9[%c0_105, %c0_106] : memref<256x168xf32, #tpu.memory_space<vmem>>, vector<248x160xf32>
    %88 = vector.extract_strided_slice %86 {offsets = [8, 0], sizes = [248, 160], strides = [1, 1]} : vector<256x160xf32> to vector<248x160xf32>
    %89 = arith.addf %87, %88 : vector<248x160xf32>
    %c0_107 = arith.constant 0 : index
    %c0_108 = arith.constant 0 : index
    %90 = vector.load %arg9[%c0_107, %c0_108] : memref<256x168xf32, #tpu.memory_space<vmem>>, vector<248x160xf32>
    tpu.vector_store %arg9[%c0_107, %c0_108], %89 {strides = array<i32>} : memref<256x168xf32, #tpu.memory_space<vmem>>, vector<248x160xf32>,
    %c0_109 = arith.constant 0 : index
    %c0_110 = arith.constant 0 : index
    %91 = vector.load %arg9[%c0_109, %c0_110] : memref<256x168xf32, #tpu.memory_space<vmem>>, vector<256x160xf32>
    %c0_111 = arith.constant 0 : index
    %c0_112 = arith.constant 0 : index
    %92 = vector.load %arg5[%c0_111, %c0_112] : memref<1x160xf32, #tpu.memory_space<vmem>>, vector<1x160xf32>
    %93 = vector.broadcast %92 : vector<1x160xf32> to vector<256x160xf32>
    %94 = arith.addf %91, %93 : vector<256x160xf32>
    %cst_113 = arith.constant 0.000000e+00 : f32
    %95 = vector.broadcast %cst_113 : f32 to vector<256x160xf32>
    %96 = arith.maximumf %94, %95 : vector<256x160xf32>
    %c0_114 = arith.constant 0 : index
    %c0_115 = arith.constant 0 : index
    %97 = vector.load %arg10[%c0_114, %c0_115] : memref<264x176xf32, #tpu.memory_space<vmem>>, vector<256x160xf32>
    tpu.vector_store %arg10[%c0_114, %c0_115], %96 {strides = array<i32>} : memref<264x176xf32, #tpu.memory_space<vmem>>, vector<256x160xf32>,
    %c0_116 = arith.constant 0 : index
    %c0_117 = arith.constant 0 : index
    %98 = vector.load %arg10[%c0_116, %c0_117] : memref<264x176xf32, #tpu.memory_space<vmem>>, vector<256x160xf32>
    %c2_118 = arith.constant 2 : index
    %c0_119 = arith.constant 0 : index
    %99 = vector.load %arg10[%c2_118, %c0_119] : memref<264x176xf32, #tpu.memory_space<vmem>>, vector<256x160xf32>
    %100 = arith.maximumf %98, %99 : vector<256x160xf32>
    %c0_120 = arith.constant 0 : index
    %c16 = arith.constant 16 : index
    %101 = vector.load %arg10[%c0_120, %c16] : memref<264x176xf32, #tpu.memory_space<vmem>>, vector<256x160xf32>
    %c2_121 = arith.constant 2 : index
    %c16_122 = arith.constant 16 : index
    %102 = vector.load %arg10[%c2_121, %c16_122] : memref<264x176xf32, #tpu.memory_space<vmem>>, vector<256x160xf32>
    %103 = arith.maximumf %101, %102 : vector<256x160xf32>
    %104 = arith.maximumf %100, %103 : vector<256x160xf32>
    %c0_123 = arith.constant 0 : index
    %c0_124 = arith.constant 0 : index
    %105 = vector.load %arg10[%c0_123, %c0_124] : memref<264x176xf32, #tpu.memory_space<vmem>>, vector<256x160xf32>
    tpu.vector_store %arg10[%c0_123, %c0_124], %104 {strides = array<i32>} : memref<264x176xf32, #tpu.memory_space<vmem>>, vector<256x160xf32>,
    %c0_125 = arith.constant 0 : index
    %c0_126 = arith.constant 0 : index
    %106 = vector.load %arg10[%c0_125, %c0_126] : memref<264x176xf32, #tpu.memory_space<vmem>>, vector<1x160xf32>
    %c4_127 = arith.constant 4 : index
    %c0_128 = arith.constant 0 : index
    %107 = vector.load %arg10[%c4_127, %c0_128] : memref<264x176xf32, #tpu.memory_space<vmem>>, vector<1x160xf32>
    %c8 = arith.constant 8 : index
    %c0_129 = arith.constant 0 : index
    %108 = vector.load %arg10[%c8, %c0_129] : memref<264x176xf32, #tpu.memory_space<vmem>>, vector<1x160xf32>
    %c12 = arith.constant 12 : index
    %c0_130 = arith.constant 0 : index
    %109 = vector.load %arg10[%c12, %c0_130] : memref<264x176xf32, #tpu.memory_space<vmem>>, vector<1x160xf32>
    %c16_131 = arith.constant 16 : index
    %c0_132 = arith.constant 0 : index
    %110 = vector.load %arg10[%c16_131, %c0_132] : memref<264x176xf32, #tpu.memory_space<vmem>>, vector<1x160xf32>
    %111 = tpu.concatenate %106, %107, %108, %109, %110 in 1 : vector<1x160xf32>, vector<1x160xf32>, vector<1x160xf32>, vector<1x160xf32>, vector<1x160xf32> -> vector<1x800xf32>
    %c0_133 = arith.constant 0 : index
    %c0_134 = arith.constant 0 : index
    %112 = vector.load %arg12[%c0_133, %c0_134] : memref<8x800xf32, #tpu.memory_space<vmem>>, vector<1x800xf32>
    tpu.vector_store %arg12[%c0_133, %c0_134], %111 {strides = array<i32>} : memref<8x800xf32, #tpu.memory_space<vmem>>, vector<1x800xf32>,
    %c32 = arith.constant 32 : index
    %c0_135 = arith.constant 0 : index
    %113 = vector.load %arg10[%c32, %c0_135] : memref<264x176xf32, #tpu.memory_space<vmem>>, vector<1x160xf32>
    %c36 = arith.constant 36 : index
    %c0_136 = arith.constant 0 : index
    %114 = vector.load %arg10[%c36, %c0_136] : memref<264x176xf32, #tpu.memory_space<vmem>>, vector<1x160xf32>
    %c40 = arith.constant 40 : index
    %c0_137 = arith.constant 0 : index
    %115 = vector.load %arg10[%c40, %c0_137] : memref<264x176xf32, #tpu.memory_space<vmem>>, vector<1x160xf32>
    %c44 = arith.constant 44 : index
    %c0_138 = arith.constant 0 : index
    %116 = vector.load %arg10[%c44, %c0_138] : memref<264x176xf32, #tpu.memory_space<vmem>>, vector<1x160xf32>
    %c48 = arith.constant 48 : index
    %c0_139 = arith.constant 0 : index
    %117 = vector.load %arg10[%c48, %c0_139] : memref<264x176xf32, #tpu.memory_space<vmem>>, vector<1x160xf32>
    %118 = tpu.concatenate %113, %114, %115, %116, %117 in 1 : vector<1x160xf32>, vector<1x160xf32>, vector<1x160xf32>, vector<1x160xf32>, vector<1x160xf32> -> vector<1x800xf32>
    %c1_140 = arith.constant 1 : index
    %c0_141 = arith.constant 0 : index
    %119 = vector.load %arg12[%c1_140, %c0_141] : memref<8x800xf32, #tpu.memory_space<vmem>>, vector<1x800xf32>
    tpu.vector_store %arg12[%c1_140, %c0_141], %118 {strides = array<i32>} : memref<8x800xf32, #tpu.memory_space<vmem>>, vector<1x800xf32>,
    %c64 = arith.constant 64 : index
    %c0_142 = arith.constant 0 : index
    %120 = vector.load %arg10[%c64, %c0_142] : memref<264x176xf32, #tpu.memory_space<vmem>>, vector<1x160xf32>
    %c68 = arith.constant 68 : index
    %c0_143 = arith.constant 0 : index
    %121 = vector.load %arg10[%c68, %c0_143] : memref<264x176xf32, #tpu.memory_space<vmem>>, vector<1x160xf32>
    %c72 = arith.constant 72 : index
    %c0_144 = arith.constant 0 : index
    %122 = vector.load %arg10[%c72, %c0_144] : memref<264x176xf32, #tpu.memory_space<vmem>>, vector<1x160xf32>
    %c76 = arith.constant 76 : index
    %c0_145 = arith.constant 0 : index
    %123 = vector.load %arg10[%c76, %c0_145] : memref<264x176xf32, #tpu.memory_space<vmem>>, vector<1x160xf32>
    %c80 = arith.constant 80 : index
    %c0_146 = arith.constant 0 : index
    %124 = vector.load %arg10[%c80, %c0_146] : memref<264x176xf32, #tpu.memory_space<vmem>>, vector<1x160xf32>
    %125 = tpu.concatenate %120, %121, %122, %123, %124 in 1 : vector<1x160xf32>, vector<1x160xf32>, vector<1x160xf32>, vector<1x160xf32>, vector<1x160xf32> -> vector<1x800xf32>
    %c2_147 = arith.constant 2 : index
    %c0_148 = arith.constant 0 : index
    %126 = vector.load %arg12[%c2_147, %c0_148] : memref<8x800xf32, #tpu.memory_space<vmem>>, vector<1x800xf32>
    tpu.vector_store %arg12[%c2_147, %c0_148], %125 {strides = array<i32>} : memref<8x800xf32, #tpu.memory_space<vmem>>, vector<1x800xf32>,
    %c96 = arith.constant 96 : index
    %c0_149 = arith.constant 0 : index
    %127 = vector.load %arg10[%c96, %c0_149] : memref<264x176xf32, #tpu.memory_space<vmem>>, vector<1x160xf32>
    %c100 = arith.constant 100 : index
    %c0_150 = arith.constant 0 : index
    %128 = vector.load %arg10[%c100, %c0_150] : memref<264x176xf32, #tpu.memory_space<vmem>>, vector<1x160xf32>
    %c104 = arith.constant 104 : index
    %c0_151 = arith.constant 0 : index
    %129 = vector.load %arg10[%c104, %c0_151] : memref<264x176xf32, #tpu.memory_space<vmem>>, vector<1x160xf32>
    %c108 = arith.constant 108 : index
    %c0_152 = arith.constant 0 : index
    %130 = vector.load %arg10[%c108, %c0_152] : memref<264x176xf32, #tpu.memory_space<vmem>>, vector<1x160xf32>
    %c112 = arith.constant 112 : index
    %c0_153 = arith.constant 0 : index
    %131 = vector.load %arg10[%c112, %c0_153] : memref<264x176xf32, #tpu.memory_space<vmem>>, vector<1x160xf32>
    %132 = tpu.concatenate %127, %128, %129, %130, %131 in 1 : vector<1x160xf32>, vector<1x160xf32>, vector<1x160xf32>, vector<1x160xf32>, vector<1x160xf32> -> vector<1x800xf32>
    %c3_154 = arith.constant 3 : index
    %c0_155 = arith.constant 0 : index
    %133 = vector.load %arg12[%c3_154, %c0_155] : memref<8x800xf32, #tpu.memory_space<vmem>>, vector<1x800xf32>
    tpu.vector_store %arg12[%c3_154, %c0_155], %132 {strides = array<i32>} : memref<8x800xf32, #tpu.memory_space<vmem>>, vector<1x800xf32>,
    %c128 = arith.constant 128 : index
    %c0_156 = arith.constant 0 : index
    %134 = vector.load %arg10[%c128, %c0_156] : memref<264x176xf32, #tpu.memory_space<vmem>>, vector<1x160xf32>
    %c132 = arith.constant 132 : index
    %c0_157 = arith.constant 0 : index
    %135 = vector.load %arg10[%c132, %c0_157] : memref<264x176xf32, #tpu.memory_space<vmem>>, vector<1x160xf32>
    %c136 = arith.constant 136 : index
    %c0_158 = arith.constant 0 : index
    %136 = vector.load %arg10[%c136, %c0_158] : memref<264x176xf32, #tpu.memory_space<vmem>>, vector<1x160xf32>
    %c140 = arith.constant 140 : index
    %c0_159 = arith.constant 0 : index
    %137 = vector.load %arg10[%c140, %c0_159] : memref<264x176xf32, #tpu.memory_space<vmem>>, vector<1x160xf32>
    %c144 = arith.constant 144 : index
    %c0_160 = arith.constant 0 : index
    %138 = vector.load %arg10[%c144, %c0_160] : memref<264x176xf32, #tpu.memory_space<vmem>>, vector<1x160xf32>
    %139 = tpu.concatenate %134, %135, %136, %137, %138 in 1 : vector<1x160xf32>, vector<1x160xf32>, vector<1x160xf32>, vector<1x160xf32>, vector<1x160xf32> -> vector<1x800xf32>
    %c4_161 = arith.constant 4 : index
    %c0_162 = arith.constant 0 : index
    %140 = vector.load %arg12[%c4_161, %c0_162] : memref<8x800xf32, #tpu.memory_space<vmem>>, vector<1x800xf32>
    tpu.vector_store %arg12[%c4_161, %c0_162], %139 {strides = array<i32>} : memref<8x800xf32, #tpu.memory_space<vmem>>, vector<1x800xf32>,
    %c160 = arith.constant 160 : index
    %c0_163 = arith.constant 0 : index
    %141 = vector.load %arg10[%c160, %c0_163] : memref<264x176xf32, #tpu.memory_space<vmem>>, vector<1x160xf32>
    %c164 = arith.constant 164 : index
    %c0_164 = arith.constant 0 : index
    %142 = vector.load %arg10[%c164, %c0_164] : memref<264x176xf32, #tpu.memory_space<vmem>>, vector<1x160xf32>
    %c168 = arith.constant 168 : index
    %c0_165 = arith.constant 0 : index
    %143 = vector.load %arg10[%c168, %c0_165] : memref<264x176xf32, #tpu.memory_space<vmem>>, vector<1x160xf32>
    %c172 = arith.constant 172 : index
    %c0_166 = arith.constant 0 : index
    %144 = vector.load %arg10[%c172, %c0_166] : memref<264x176xf32, #tpu.memory_space<vmem>>, vector<1x160xf32>
    %c176 = arith.constant 176 : index
    %c0_167 = arith.constant 0 : index
    %145 = vector.load %arg10[%c176, %c0_167] : memref<264x176xf32, #tpu.memory_space<vmem>>, vector<1x160xf32>
    %146 = tpu.concatenate %141, %142, %143, %144, %145 in 1 : vector<1x160xf32>, vector<1x160xf32>, vector<1x160xf32>, vector<1x160xf32>, vector<1x160xf32> -> vector<1x800xf32>
    %c5 = arith.constant 5 : index
    %c0_168 = arith.constant 0 : index
    %147 = vector.load %arg12[%c5, %c0_168] : memref<8x800xf32, #tpu.memory_space<vmem>>, vector<1x800xf32>
    tpu.vector_store %arg12[%c5, %c0_168], %146 {strides = array<i32>} : memref<8x800xf32, #tpu.memory_space<vmem>>, vector<1x800xf32>,
    %c192 = arith.constant 192 : index
    %c0_169 = arith.constant 0 : index
    %148 = vector.load %arg10[%c192, %c0_169] : memref<264x176xf32, #tpu.memory_space<vmem>>, vector<1x160xf32>
    %c196 = arith.constant 196 : index
    %c0_170 = arith.constant 0 : index
    %149 = vector.load %arg10[%c196, %c0_170] : memref<264x176xf32, #tpu.memory_space<vmem>>, vector<1x160xf32>
    %c200 = arith.constant 200 : index
    %c0_171 = arith.constant 0 : index
    %150 = vector.load %arg10[%c200, %c0_171] : memref<264x176xf32, #tpu.memory_space<vmem>>, vector<1x160xf32>
    %c204 = arith.constant 204 : index
    %c0_172 = arith.constant 0 : index
    %151 = vector.load %arg10[%c204, %c0_172] : memref<264x176xf32, #tpu.memory_space<vmem>>, vector<1x160xf32>
    %c208 = arith.constant 208 : index
    %c0_173 = arith.constant 0 : index
    %152 = vector.load %arg10[%c208, %c0_173] : memref<264x176xf32, #tpu.memory_space<vmem>>, vector<1x160xf32>
    %153 = tpu.concatenate %148, %149, %150, %151, %152 in 1 : vector<1x160xf32>, vector<1x160xf32>, vector<1x160xf32>, vector<1x160xf32>, vector<1x160xf32> -> vector<1x800xf32>
    %c6_174 = arith.constant 6 : index
    %c0_175 = arith.constant 0 : index
    %154 = vector.load %arg12[%c6_174, %c0_175] : memref<8x800xf32, #tpu.memory_space<vmem>>, vector<1x800xf32>
    tpu.vector_store %arg12[%c6_174, %c0_175], %153 {strides = array<i32>} : memref<8x800xf32, #tpu.memory_space<vmem>>, vector<1x800xf32>,
    %c224 = arith.constant 224 : index
    %c0_176 = arith.constant 0 : index
    %155 = vector.load %arg10[%c224, %c0_176] : memref<264x176xf32, #tpu.memory_space<vmem>>, vector<1x160xf32>
    %c228 = arith.constant 228 : index
    %c0_177 = arith.constant 0 : index
    %156 = vector.load %arg10[%c228, %c0_177] : memref<264x176xf32, #tpu.memory_space<vmem>>, vector<1x160xf32>
    %c232 = arith.constant 232 : index
    %c0_178 = arith.constant 0 : index
    %157 = vector.load %arg10[%c232, %c0_178] : memref<264x176xf32, #tpu.memory_space<vmem>>, vector<1x160xf32>
    %c236 = arith.constant 236 : index
    %c0_179 = arith.constant 0 : index
    %158 = vector.load %arg10[%c236, %c0_179] : memref<264x176xf32, #tpu.memory_space<vmem>>, vector<1x160xf32>
    %c240 = arith.constant 240 : index
    %c0_180 = arith.constant 0 : index
    %159 = vector.load %arg10[%c240, %c0_180] : memref<264x176xf32, #tpu.memory_space<vmem>>, vector<1x160xf32>
    %160 = tpu.concatenate %155, %156, %157, %158, %159 in 1 : vector<1x160xf32>, vector<1x160xf32>, vector<1x160xf32>, vector<1x160xf32>, vector<1x160xf32> -> vector<1x800xf32>
    %c7 = arith.constant 7 : index
    %c0_181 = arith.constant 0 : index
    %161 = vector.load %arg12[%c7, %c0_181] : memref<8x800xf32, #tpu.memory_space<vmem>>, vector<1x800xf32>
    tpu.vector_store %arg12[%c7, %c0_181], %160 {strides = array<i32>} : memref<8x800xf32, #tpu.memory_space<vmem>>, vector<1x800xf32>,
    %c0_182 = arith.constant 0 : index
    %c0_183 = arith.constant 0 : index
    %162 = vector.load %arg12[%c0_182, %c0_183] : memref<8x800xf32, #tpu.memory_space<vmem>>, vector<8x800xf32>
    %c0_184 = arith.constant 0 : index
    %c0_185 = arith.constant 0 : index
    %163 = vector.load %arg6[%c0_184, %c0_185] : memref<800x10xf32, #tpu.memory_space<vmem>>, vector<800x10xf32>
    %cst_186 = arith.constant dense<0.000000e+00> : vector<8x10xf32>
    %164 = tpu.matmul %162, %163, %cst_186 {dimension_numbers = #tpu.dot_dimension_numbers<[1], [0], [0], [1], [0, 0, 1, 1], [], []>} : vector<8x800xf32>, vector<800x10xf32>, vector<8x10xf32> -> vector<8x10xf32>
    %c0_187 = arith.constant 0 : index
    %c0_188 = arith.constant 0 : index
    %165 = vector.load %arg7[%c0_187, %c0_188] : memref<1x10xf32, #tpu.memory_space<vmem>>, vector<1x10xf32>
    %166 = vector.broadcast %165 : vector<1x10xf32> to vector<8x10xf32>
    %167 = arith.addf %164, %166 : vector<8x10xf32>
    %c0_189 = arith.constant 0 : index
    %c0_190 = arith.constant 0 : index
    %168 = vector.load %arg8[%c0_189, %c0_190] : memref<8x10xf32, #tpu.memory_space<vmem>>, vector<8x10xf32>
    tpu.vector_store %arg8[%c0_189, %c0_190], %167 {strides = array<i32>} : memref<8x10xf32, #tpu.memory_space<vmem>>, vector<8x10xf32>,
    return
  }
  func.func @transform_0(%arg0: i32) -> (i32, i32) {
    %c0_i32 = arith.constant 0 : i32
    %c0_i32_0 = arith.constant 0 : i32
    return %arg0, %c0_i32 : i32, i32
  }
  func.func @transform_1(%arg0: i32) -> (i32, i32, i32) {
    %c0_i32 = arith.constant 0 : i32
    %c0_i32_0 = arith.constant 0 : i32
    %c0_i32_1 = arith.constant 0 : i32
    %c0_i32_2 = arith.constant 0 : i32
    return %c0_i32, %c0_i32_0, %c0_i32_1 : i32, i32, i32
  }
  func.func @transform_2(%arg0: i32) -> (i32, i32) {
    %c0_i32 = arith.constant 0 : i32
    %c0_i32_0 = arith.constant 0 : i32
    %c0_i32_1 = arith.constant 0 : i32
    return %c0_i32, %c0_i32_0 : i32, i32
  }
  func.func @transform_3(%arg0: i32) -> (i32, i32, i32) {
    %c0_i32 = arith.constant 0 : i32
    %c0_i32_0 = arith.constant 0 : i32
    %c0_i32_1 = arith.constant 0 : i32
    %c0_i32_2 = arith.constant 0 : i32
    return %c0_i32, %c0_i32_0, %c0_i32_1 : i32, i32, i32
  }
  func.func @transform_4(%arg0: i32) -> (i32, i32) {
    %c0_i32 = arith.constant 0 : i32
    %c0_i32_0 = arith.constant 0 : i32
    %c0_i32_1 = arith.constant 0 : i32
    return %c0_i32, %c0_i32_0 : i32, i32
  }
  func.func @transform_5(%arg0: i32) -> (i32, i32) {
    %c0_i32 = arith.constant 0 : i32
    %c0_i32_0 = arith.constant 0 : i32
    %c0_i32_1 = arith.constant 0 : i32
    return %c0_i32, %c0_i32_0 : i32, i32
  }
  func.func @transform_6(%arg0: i32) -> (i32, i32) {
    %c0_i32 = arith.constant 0 : i32
    %c0_i32_0 = arith.constant 0 : i32
    %c0_i32_1 = arith.constant 0 : i32
    return %c0_i32, %c0_i32_0 : i32, i32
  }
  func.func @transform_7(%arg0: i32) -> (i32, i32) {
    %c0_i32 = arith.constant 0 : i32
    %c0_i32_0 = arith.constant 0 : i32
    return %arg0, %c0_i32 : i32, i32
  }
}

</mosaic_0001>

<llo_original>
// kernel: cnn_forward.1
$region0: #{cnn_forward.1}
  #allocation0 [shape = 'u32[]', space=smem, size = 0x4, offset = 0x4, fixed_abs, tag = 'smem constant byte address 0x4 - core index']
  #allocation1 [shape = 'u32[72,128]{1,0:T(1,128)}', space=vmem, size = 0x9000, scoped, tag = 'internal scratch']
  #allocation2 [shape = 'f32[256,168]{1,0:T(8,128)}', space=vmem, size = 0x40000, scoped, tag = 'scratch operand']
  #allocation3 [shape = 'f32[264,176]{1,0:T(8,128)}', space=vmem, size = 0x42000, scoped, tag = 'scratch operand']
  #allocation4 [shape = 'f32[256,168]{1,0:T(8,128)}', space=vmem, size = 0x40000, scoped, tag = 'scratch operand']
  #allocation5 [shape = 'f32[8,800]{1,0:T(8,128)}', space=vmem, size = 0x7000, scoped, tag = 'scratch operand']
  %s0 = inlined_call_operand.vmem [shape: f32[256,96], index: 0, kind: input, shape index: {}]
  %s1 = inlined_call_operand.vmem [shape: f32[5,96,168], index: 1, kind: input, shape index: {}]
  %s2 = inlined_call_operand.vmem [shape: f32[1,168], index: 2, kind: input, shape index: {}]
  %s3 = inlined_call_operand.vmem [shape: f32[5,168,160], index: 3, kind: input, shape index: {}]
  %s4 = inlined_call_operand.vmem [shape: f32[1,160], index: 4, kind: input, shape index: {}]
  %s5 = inlined_call_operand.vmem [shape: f32[800,10], index: 5, kind: input, shape index: {}]
  %s6 = inlined_call_operand.vmem [shape: f32[1,10], index: 6, kind: input, shape index: {}]
  %s7 = inlined_call_operand.vmem [shape: f32[8,10], index: 7, kind: output, shape index: {}]
  %s8 = sld [smem:[#allocation0]]
  $region38: #{cnn_forward.1} parent=0
    _
  %s10 = ssub.s32 1, %s8
  %s11 = scalar_select 0, %s10, %s8
  // Predicated region
  $region2: #{cnn_forward.1} parent=0 // pred_check
    _
  $region3: #{cnn_forward.1} parent=0 // pred_check_branch
    %13 = sbr.rel (0) target = $region5
  $region4: #{cnn_forward.1} parent=0 // pred_region
    _
  $region5: #{cnn_forward.1} parent=0 // pred_fallthru
    _
  // Predicated region
  $region6: #{cnn_forward.1} parent=0 // pred_check
    _
  $region7: #{cnn_forward.1} parent=0 // pred_check_branch
    %15 = sbr.rel (0) target = $region9
  $region8: #{cnn_forward.1} parent=0 // pred_region
    _
  $region9: #{cnn_forward.1} parent=0 // pred_fallthru
    _
  // Predicated region
  $region10: #{cnn_forward.1} parent=0 // pred_check
    _
  $region11: #{cnn_forward.1} parent=0 // pred_check_branch
    %17 = sbr.rel (0) target = $region13
  $region12: #{cnn_forward.1} parent=0 // pred_region
    _
  $region13: #{cnn_forward.1} parent=0 // pred_fallthru
    _
  // Predicated region
  $region14: #{cnn_forward.1} parent=0 // pred_check
    _
  $region15: #{cnn_forward.1} parent=0 // pred_check_branch
    %19 = sbr.rel (0) target = $region17
  $region16: #{cnn_forward.1} parent=0 // pred_region
    _
  $region17: #{cnn_forward.1} parent=0 // pred_fallthru
    _
  // Predicated region
  $region18: #{cnn_forward.1} parent=0 // pred_check
    _
  $region19: #{cnn_forward.1} parent=0 // pred_check_branch
    %21 = sbr.rel (0) target = $region21
  $region20: #{cnn_forward.1} parent=0 // pred_region
    _
  $region21: #{cnn_forward.1} parent=0 // pred_fallthru
    _
  // Predicated region
  $region22: #{cnn_forward.1} parent=0 // pred_check
    _
  $region23: #{cnn_forward.1} parent=0 // pred_check_branch
    %23 = sbr.rel (0) target = $region25
  $region24: #{cnn_forward.1} parent=0 // pred_region
    _
  $region25: #{cnn_forward.1} parent=0 // pred_fallthru
    _
  // Predicated region
  $region26: #{cnn_forward.1} parent=0 // pred_check
    _
  $region27: #{cnn_forward.1} parent=0 // pred_check_branch
    %25 = sbr.rel (0) target = $region29
  $region28: #{cnn_forward.1} parent=0 // pred_region
    _
  $region29: #{cnn_forward.1} parent=0 // pred_fallthru
    _
  %26 = vst [vmem:[#allocation3] sm:$0xff] 0.0
  %vm27 = vcmask 392192
  %28 = vst.msk [vmem:[#allocation3 + $0x8] sm:$0xff] %vm27, 0.0
  %29 = vst [vmem:[#allocation3 + $0x10] sm:$0xff] 0.0
  %30 = vst.msk [vmem:[#allocation3 + $0x18] sm:$0xff] %vm27, 0.0
  %31 = vst [vmem:[#allocation3 + $0x20] sm:$0xff] 0.0
  %32 = vst.msk [vmem:[#allocation3 + $0x28] sm:$0xff] %vm27, 0.0
  %33 = vst [vmem:[#allocation3 + $0x30] sm:$0xff] 0.0
  %34 = vst.msk [vmem:[#allocation3 + $0x38] sm:$0xff] %vm27, 0.0
  %35 = vst [vmem:[#allocation3 + $0x40] sm:$0xff] 0.0
  %36 = vst.msk [vmem:[#allocation3 + $0x48] sm:$0xff] %vm27, 0.0
  %37 = vst [vmem:[#allocation3 + $0x50] sm:$0xff] 0.0
  %38 = vst.msk [vmem:[#allocation3 + $0x58] sm:$0xff] %vm27, 0.0
  %39 = vst [vmem:[#allocation3 + $0x60] sm:$0xff] 0.0
  %40 = vst.msk [vmem:[#allocation3 + $0x68] sm:$0xff] %vm27, 0.0
  %41 = vst [vmem:[#allocation3 + $0x70] sm:$0xff] 0.0
  %42 = vst.msk [vmem:[#allocation3 + $0x78] sm:$0xff] %vm27, 0.0
  %43 = vst [vmem:[#allocation3 + $0x80] sm:$0xff] 0.0
  %44 = vst.msk [vmem:[#allocation3 + $0x88] sm:$0xff] %vm27, 0.0
  %45 = vst [vmem:[#allocation3 + $0x90] sm:$0xff] 0.0
  %46 = vst.msk [vmem:[#allocation3 + $0x98] sm:$0xff] %vm27, 0.0
  %47 = vst [vmem:[#allocation3 + $0xa0] sm:$0xff] 0.0
  %48 = vst.msk [vmem:[#allocation3 + $0xa8] sm:$0xff] %vm27, 0.0
  %49 = vst [vmem:[#allocation3 + $0xb0] sm:$0xff] 0.0
  %50 = vst.msk [vmem:[#allocation3 + $0xb8] sm:$0xff] %vm27, 0.0
  %51 = vst [vmem:[#allocation3 + $0xc0] sm:$0xff] 0.0
  %52 = vst.msk [vmem:[#allocation3 + $0xc8] sm:$0xff] %vm27, 0.0
  %53 = vst [vmem:[#allocation3 + $0xd0] sm:$0xff] 0.0
  %54 = vst.msk [vmem:[#allocation3 + $0xd8] sm:$0xff] %vm27, 0.0
  %55 = vst [vmem:[#allocation3 + $0xe0] sm:$0xff] 0.0
  %56 = vst.msk [vmem:[#allocation3 + $0xe8] sm:$0xff] %vm27, 0.0
  %57 = vst [vmem:[#allocation3 + $0xf0] sm:$0xff] 0.0
  %58 = vst.msk [vmem:[#allocation3 + $0xf8] sm:$0xff] %vm27, 0.0
  %59 = vst [vmem:[#allocation3 + $0x100] sm:$0xff] 0.0
  %60 = vst.msk [vmem:[#allocation3 + $0x108] sm:$0xff] %vm27, 0.0
  %61 = vst [vmem:[#allocation3 + $0x110] sm:$0xff] 0.0
  %62 = vst.msk [vmem:[#allocation3 + $0x118] sm:$0xff] %vm27, 0.0
  %63 = vst [vmem:[#allocation3 + $0x120] sm:$0xff] 0.0
  %64 = vst.msk [vmem:[#allocation3 + $0x128] sm:$0xff] %vm27, 0.0
  %65 = vst [vmem:[#allocation3 + $0x130] sm:$0xff] 0.0
  %66 = vst.msk [vmem:[#allocation3 + $0x138] sm:$0xff] %vm27, 0.0
  %67 = vst [vmem:[#allocation3 + $0x140] sm:$0xff] 0.0
  %68 = vst.msk [vmem:[#allocation3 + $0x148] sm:$0xff] %vm27, 0.0
  %69 = vst [vmem:[#allocation3 + $0x150] sm:$0xff] 0.0
  %70 = vst.msk [vmem:[#allocation3 + $0x158] sm:$0xff] %vm27, 0.0
  %71 = vst [vmem:[#allocation3 + $0x160] sm:$0xff] 0.0
  %72 = vst.msk [vmem:[#allocation3 + $0x168] sm:$0xff] %vm27, 0.0
  %73 = vst [vmem:[#allocation3 + $0x170] sm:$0xff] 0.0
  %74 = vst.msk [vmem:[#allocation3 + $0x178] sm:$0xff] %vm27, 0.0
  %75 = vst [vmem:[#allocation3 + $0x180] sm:$0xff] 0.0
  %76 = vst.msk [vmem:[#allocation3 + $0x188] sm:$0xff] %vm27, 0.0
  %77 = vst [vmem:[#allocation3 + $0x190] sm:$0xff] 0.0
  %78 = vst.msk [vmem:[#allocation3 + $0x198] sm:$0xff] %vm27, 0.0
  %79 = vst [vmem:[#allocation3 + $0x1a0] sm:$0xff] 0.0
  %80 = vst.msk [vmem:[#allocation3 + $0x1a8] sm:$0xff] %vm27, 0.0
  %81 = vst [vmem:[#allocation3 + $0x1b0] sm:$0xff] 0.0
  %82 = vst.msk [vmem:[#allocation3 + $0x1b8] sm:$0xff] %vm27, 0.0
  %83 = vst [vmem:[#allocation3 + $0x1c0] sm:$0xff] 0.0
  %84 = vst.msk [vmem:[#allocation3 + $0x1c8] sm:$0xff] %vm27, 0.0
  %85 = vst [vmem:[#allocation3 + $0x1d0] sm:$0xff] 0.0
  %86 = vst.msk [vmem:[#allocation3 + $0x1d8] sm:$0xff] %vm27, 0.0
  %87 = vst [vmem:[#allocation3 + $0x1e0] sm:$0xff] 0.0
  %88 = vst.msk [vmem:[#allocation3 + $0x1e8] sm:$0xff] %vm27, 0.0
  %89 = vst [vmem:[#allocation3 + $0x1f0] sm:$0xff] 0.0
  %90 = vst.msk [vmem:[#allocation3 + $0x1f8] sm:$0xff] %vm27, 0.0
  %91 = vst [vmem:[#allocation3 + $0x200] sm:$0xff] 0.0
  %92 = vst.msk [vmem:[#allocation3 + $0x208] sm:$0xff] %vm27, 0.0
  %v93 = vld [vmem:[%s0] sm:$0xff]
  %v94 = vld [vmem:[%s0 + $0x8] sm:$0xff]
  %v95 = vld [vmem:[%s0 + $0x10] sm:$0xff]
  %v96 = vld [vmem:[%s0 + $0x18] sm:$0xff]
  %v97 = vld [vmem:[%s0 + $0x20] sm:$0xff]
  %v98 = vld [vmem:[%s0 + $0x28] sm:$0xff]
  %v99 = vld [vmem:[%s0 + $0x30] sm:$0xff]
  %v100 = vld [vmem:[%s0 + $0x38] sm:$0xff]
  %v101 = vld [vmem:[%s0 + $0x40] sm:$0xff]
  %v102 = vld [vmem:[%s0 + $0x48] sm:$0xff]
  %v103 = vld [vmem:[%s0 + $0x50] sm:$0xff]
  %v104 = vld [vmem:[%s0 + $0x58] sm:$0xff]
  %v105 = vld [vmem:[%s0 + $0x60] sm:$0xff]
  %v106 = vld [vmem:[%s0 + $0x68] sm:$0xff]
  %v107 = vld [vmem:[%s0 + $0x70] sm:$0xff]
  %v108 = vld [vmem:[%s0 + $0x78] sm:$0xff]
  %v109 = vld [vmem:[%s0 + $0x80] sm:$0xff]
  %v110 = vld [vmem:[%s0 + $0x88] sm:$0xff]
  %v111 = vld [vmem:[%s0 + $0x90] sm:$0xff]
  %v112 = vld [vmem:[%s0 + $0x98] sm:$0xff]
  %v113 = vld [vmem:[%s0 + $0xa0] sm:$0xff]
  %v114 = vld [vmem:[%s0 + $0xa8] sm:$0xff]
  %v115 = vld [vmem:[%s0 + $0xb0] sm:$0xff]
  %v116 = vld [vmem:[%s0 + $0xb8] sm:$0xff]
  %v117 = vld [vmem:[%s0 + $0xc0] sm:$0xff]
  %v118 = vld [vmem:[%s0 + $0xc8] sm:$0xff]
  %v119 = vld [vmem:[%s0 + $0xd0] sm:$0xff]
  %v120 = vld [vmem:[%s0 + $0xd8] sm:$0xff]
  %v121 = vld [vmem:[%s0 + $0xe0] sm:$0xff]
  %v122 = vld [vmem:[%s0 + $0xe8] sm:$0xff]
  %v123 = vld [vmem:[%s0 + $0xf0] sm:$0xff]
  %v124 = vld [vmem:[%s0 + $0xf8] sm:$0xff]
  %v125 = vld [vmem:[%s1] sm:$0xff]
  %v126 = vld [vmem:[%s1 + $0x8] sm:$0xff]
  %v127 = vld [vmem:[%s1 + $0x10] sm:$0xff]
  %v128 = vld [vmem:[%s1 + $0x18] sm:$0xff]
  %v129 = vld [vmem:[%s1 + $0x20] sm:$0xff]
  %v130 = vld [vmem:[%s1 + $0x28] sm:$0xff]
  %v131 = vld [vmem:[%s1 + $0x30] sm:$0xff]
  %v132 = vld [vmem:[%s1 + $0x38] sm:$0xff]
  %v133 = vld [vmem:[%s1 + $0x40] sm:$0xff]
  %v134 = vld [vmem:[%s1 + $0x48] sm:$0xff]
  %v135 = vld [vmem:[%s1 + $0x50] sm:$0xff]
  %v136 = vld [vmem:[%s1 + $0x58] sm:$0xff]
  %v137 = vld [vmem:[%s1 + $0x60] sm:$0xff]
  %v138 = vld [vmem:[%s1 + $0x68] sm:$0xff]
  %v139 = vld [vmem:[%s1 + $0x70] sm:$0xff]
  %v140 = vld [vmem:[%s1 + $0x78] sm:$0xff]
  %v141 = vld [vmem:[%s1 + $0x80] sm:$0xff]
  %v142 = vld [vmem:[%s1 + $0x88] sm:$0xff]
  %v143 = vld [vmem:[%s1 + $0x90] sm:$0xff]
  %v144 = vld [vmem:[%s1 + $0x98] sm:$0xff]
  %v145 = vld [vmem:[%s1 + $0xa0] sm:$0xff]
  %v146 = vld [vmem:[%s1 + $0xa8] sm:$0xff]
  %v147 = vld [vmem:[%s1 + $0xb0] sm:$0xff]
  %v148 = vld [vmem:[%s1 + $0xb8] sm:$0xff]
  %vm149 = vcmask 785408
  %v151 = vsel %vm149, %v93, 0
  %v154 = vsel %vm149, %v94, 0
  %v157 = vsel %vm149, %v95, 0
  %v160 = vsel %vm149, %v96, 0
  %v163 = vsel %vm149, %v97, 0
  %v166 = vsel %vm149, %v98, 0
  %v169 = vsel %vm149, %v99, 0
  %v172 = vsel %vm149, %v100, 0
  %v175 = vsel %vm149, %v101, 0
  %v178 = vsel %vm149, %v102, 0
  %v181 = vsel %vm149, %v103, 0
  %v184 = vsel %vm149, %v104, 0
  %v187 = vsel %vm149, %v105, 0
  %v190 = vsel %vm149, %v106, 0
  %v193 = vsel %vm149, %v107, 0
  %v196 = vsel %vm149, %v108, 0
  %v199 = vsel %vm149, %v109, 0
  %v202 = vsel %vm149, %v110, 0
  %v205 = vsel %vm149, %v111, 0
  %v208 = vsel %vm149, %v112, 0
  %v211 = vsel %vm149, %v113, 0
  %v214 = vsel %vm149, %v114, 0
  %v217 = vsel %vm149, %v115, 0
  %v220 = vsel %vm149, %v116, 0
  %v223 = vsel %vm149, %v117, 0
  %v226 = vsel %vm149, %v118, 0
  %v229 = vsel %vm149, %v119, 0
  %v232 = vsel %vm149, %v120, 0
  %v235 = vsel %vm149, %v121, 0
  %v238 = vsel %vm149, %v122, 0
  %v241 = vsel %vm149, %v123, 0
  %v244 = vsel %vm149, %v124, 0
  %246 = vmatpush.msra.mxu0 0.0
  %247 = vmatpush.msra.mxu0 0.0
  %248 = vmatpush.msra.mxu0 0.0
  %249 = vmatpush.msra.mxu0 0.0
  %250 = vmatpush.msra.mxu0 %v147
  %251 = vmatpush.msra.mxu0 %v145
  %252 = vmatpush.msra.mxu0 %v143
  %253 = vmatpush.msra.mxu0 %v141
  %254 = vmatpush.msra.mxu0 %v139
  %255 = vmatpush.msra.mxu0 %v137
  %256 = vmatpush.msra.mxu0 %v135
  %257 = vmatpush.msra.mxu0 %v133
  %258 = vmatpush.msra.mxu0 %v131
  %259 = vmatpush.msra.mxu0 %v129
  %260 = vmatpush.msra.mxu0 %v127
  %261 = vmatpush.msra.mxu0 %v125
  %262 = vmatmul.f32.gmra.mxu0 %v151
  %v263 = vpop.f32.mrf.mxu0
  %v264 = vadd.f32 0.0, %v263
  %265 = vmatmul.f32.gmra.mxu0 %v154
  %v266 = vpop.f32.mrf.mxu0
  %v267 = vadd.f32 0.0, %v266
  %268 = vmatmul.f32.gmra.mxu0 %v157
  %v269 = vpop.f32.mrf.mxu0
  %v270 = vadd.f32 0.0, %v269
  %271 = vmatmul.f32.gmra.mxu0 %v160
  %v272 = vpop.f32.mrf.mxu0
  %v273 = vadd.f32 0.0, %v272
  %274 = vmatmul.f32.gmra.mxu0 %v163
  %v275 = vpop.f32.mrf.mxu0
  %v276 = vadd.f32 0.0, %v275
  %277 = vmatmul.f32.gmra.mxu0 %v166
  %v278 = vpop.f32.mrf.mxu0
  %v279 = vadd.f32 0.0, %v278
  %280 = vmatmul.f32.gmra.mxu0 %v169
  %v281 = vpop.f32.mrf.mxu0
  %v282 = vadd.f32 0.0, %v281
  %283 = vmatmul.f32.gmra.mxu0 %v172
  %v284 = vpop.f32.mrf.mxu0
  %v285 = vadd.f32 0.0, %v284
  %286 = vmatmul.f32.gmra.mxu0 %v175
  %v287 = vpop.f32.mrf.mxu0
  %v288 = vadd.f32 0.0, %v287
  %289 = vmatmul.f32.gmra.mxu0 %v178
  %v290 = vpop.f32.mrf.mxu0
  %v291 = vadd.f32 0.0, %v290
  %292 = vmatmul.f32.gmra.mxu0 %v181
  %v293 = vpop.f32.mrf.mxu0
  %v294 = vadd.f32 0.0, %v293
  %295 = vmatmul.f32.gmra.mxu0 %v184
  %v296 = vpop.f32.mrf.mxu0
  %v297 = vadd.f32 0.0, %v296
  %298 = vmatmul.f32.gmra.mxu0 %v187
  %v299 = vpop.f32.mrf.mxu0
  %v300 = vadd.f32 0.0, %v299
  %301 = vmatmul.f32.gmra.mxu0 %v190
  %v302 = vpop.f32.mrf.mxu0
  %v303 = vadd.f32 0.0, %v302
  %304 = vmatmul.f32.gmra.mxu0 %v193
  %v305 = vpop.f32.mrf.mxu0
  %v306 = vadd.f32 0.0, %v305
  %307 = vmatmul.f32.gmra.mxu0 %v196
  %v308 = vpop.f32.mrf.mxu0
  %v309 = vadd.f32 0.0, %v308
  %310 = vmatmul.f32.gmra.mxu0 %v199
  %v311 = vpop.f32.mrf.mxu0
  %v312 = vadd.f32 0.0, %v311
  %313 = vmatmul.f32.gmra.mxu0 %v202
  %v314 = vpop.f32.mrf.mxu0
  %v315 = vadd.f32 0.0, %v314
  %316 = vmatmul.f32.gmra.mxu0 %v205
  %v317 = vpop.f32.mrf.mxu0
  %v318 = vadd.f32 0.0, %v317
  %319 = vmatmul.f32.gmra.mxu0 %v208
  %v320 = vpop.f32.mrf.mxu0
  %v321 = vadd.f32 0.0, %v320
  %322 = vmatmul.f32.gmra.mxu0 %v211
  %v323 = vpop.f32.mrf.mxu0
  %v324 = vadd.f32 0.0, %v323
  %325 = vmatmul.f32.gmra.mxu0 %v214
  %v326 = vpop.f32.mrf.mxu0
  %v327 = vadd.f32 0.0, %v326
  %328 = vmatmul.f32.gmra.mxu0 %v217
  %v329 = vpop.f32.mrf.mxu0
  %v330 = vadd.f32 0.0, %v329
  %331 = vmatmul.f32.gmra.mxu0 %v220
  %v332 = vpop.f32.mrf.mxu0
  %v333 = vadd.f32 0.0, %v332
  %334 = vmatmul.f32.gmra.mxu0 %v223
  %v335 = vpop.f32.mrf.mxu0
  %v336 = vadd.f32 0.0, %v335
  %337 = vmatmul.f32.gmra.mxu0 %v226
  %v338 = vpop.f32.mrf.mxu0
  %v339 = vadd.f32 0.0, %v338
  %340 = vmatmul.f32.gmra.mxu0 %v229
  %v341 = vpop.f32.mrf.mxu0
  %v342 = vadd.f32 0.0, %v341
  %343 = vmatmul.f32.gmra.mxu0 %v232
  %v344 = vpop.f32.mrf.mxu0
  %v345 = vadd.f32 0.0, %v344
  %346 = vmatmul.f32.gmra.mxu0 %v235
  %v347 = vpop.f32.mrf.mxu0
  %v348 = vadd.f32 0.0, %v347
  %349 = vmatmul.f32.gmra.mxu0 %v238
  %v350 = vpop.f32.mrf.mxu0
  %v351 = vadd.f32 0.0, %v350
  %352 = vmatmul.f32.gmra.mxu0 %v241
  %v353 = vpop.f32.mrf.mxu0
  %v354 = vadd.f32 0.0, %v353
  %355 = vmatmul.f32.gmra.mxu0 %v244
  %v356 = vpop.f32.mrf.mxu0
  %v357 = vadd.f32 0.0, %v356
  %358 = vdwg.mxu0
  %359 = vmatpush.msra.mxu0 0.0
  %360 = vmatpush.msra.mxu0 0.0
  %361 = vmatpush.msra.mxu0 0.0
  %362 = vmatpush.msra.mxu0 0.0
  %363 = vmatpush.msra.mxu0 %v148
  %364 = vmatpush.msra.mxu0 %v146
  %365 = vmatpush.msra.mxu0 %v144
  %366 = vmatpush.msra.mxu0 %v142
  %367 = vmatpush.msra.mxu0 %v140
  %368 = vmatpush.msra.mxu0 %v138
  %369 = vmatpush.msra.mxu0 %v136
  %370 = vmatpush.msra.mxu0 %v134
  %371 = vmatpush.msra.mxu0 %v132
  %372 = vmatpush.msra.mxu0 %v130
  %373 = vmatpush.msra.mxu0 %v128
  %374 = vmatpush.msra.mxu0 %v126
  %375 = vmatmul.f32.gmra.mxu0 %v151
  %v376 = vpop.f32.mrf.mxu0
  %v377 = vadd.f32 0.0, %v376
  %378 = vmatmul.f32.gmra.mxu0 %v154
  %v379 = vpop.f32.mrf.mxu0
  %v380 = vadd.f32 0.0, %v379
  %381 = vmatmul.f32.gmra.mxu0 %v157
  %v382 = vpop.f32.mrf.mxu0
  %v383 = vadd.f32 0.0, %v382
  %384 = vmatmul.f32.gmra.mxu0 %v160
  %v385 = vpop.f32.mrf.mxu0
  %v386 = vadd.f32 0.0, %v385
  %387 = vmatmul.f32.gmra.mxu0 %v163
  %v388 = vpop.f32.mrf.mxu0
  %v389 = vadd.f32 0.0, %v388
  %390 = vmatmul.f32.gmra.mxu0 %v166
  %v391 = vpop.f32.mrf.mxu0
  %v392 = vadd.f32 0.0, %v391
  %393 = vmatmul.f32.gmra.mxu0 %v169
  %v394 = vpop.f32.mrf.mxu0
  %v395 = vadd.f32 0.0, %v394
  %396 = vmatmul.f32.gmra.mxu0 %v172
  %v397 = vpop.f32.mrf.mxu0
  %v398 = vadd.f32 0.0, %v397
  %399 = vmatmul.f32.gmra.mxu0 %v175
  %v400 = vpop.f32.mrf.mxu0
  %v401 = vadd.f32 0.0, %v400
  %402 = vmatmul.f32.gmra.mxu0 %v178
  %v403 = vpop.f32.mrf.mxu0
  %v404 = vadd.f32 0.0, %v403
  %405 = vmatmul.f32.gmra.mxu0 %v181
  %v406 = vpop.f32.mrf.mxu0
  %v407 = vadd.f32 0.0, %v406
  %408 = vmatmul.f32.gmra.mxu0 %v184
  %v409 = vpop.f32.mrf.mxu0
  %v410 = vadd.f32 0.0, %v409
  %411 = vmatmul.f32.gmra.mxu0 %v187
  %v412 = vpop.f32.mrf.mxu0
  %v413 = vadd.f32 0.0, %v412
  %414 = vmatmul.f32.gmra.mxu0 %v190
  %v415 = vpop.f32.mrf.mxu0
  %v416 = vadd.f32 0.0, %v415
  %417 = vmatmul.f32.gmra.mxu0 %v193
  %v418 = vpop.f32.mrf.mxu0
  %v419 = vadd.f32 0.0, %v418
  %420 = vmatmul.f32.gmra.mxu0 %v196
  %v421 = vpop.f32.mrf.mxu0
  %v422 = vadd.f32 0.0, %v421
  %423 = vmatmul.f32.gmra.mxu0 %v199
  %v424 = vpop.f32.mrf.mxu0
  %v425 = vadd.f32 0.0, %v424
  %426 = vmatmul.f32.gmra.mxu0 %v202
  %v427 = vpop.f32.mrf.mxu0
  %v428 = vadd.f32 0.0, %v427
  %429 = vmatmul.f32.gmra.mxu0 %v205
  %v430 = vpop.f32.mrf.mxu0
  %v431 = vadd.f32 0.0, %v430
  %432 = vmatmul.f32.gmra.mxu0 %v208
  %v433 = vpop.f32.mrf.mxu0
  %v434 = vadd.f32 0.0, %v433
  %435 = vmatmul.f32.gmra.mxu0 %v211
  %v436 = vpop.f32.mrf.mxu0
  %v437 = vadd.f32 0.0, %v436
  %438 = vmatmul.f32.gmra.mxu0 %v214
  %v439 = vpop.f32.mrf.mxu0
  %v440 = vadd.f32 0.0, %v439
  %441 = vmatmul.f32.gmra.mxu0 %v217
  %v442 = vpop.f32.mrf.mxu0
  %v443 = vadd.f32 0.0, %v442
  %444 = vmatmul.f32.gmra.mxu0 %v220
  %v445 = vpop.f32.mrf.mxu0
  %v446 = vadd.f32 0.0, %v445
  %447 = vmatmul.f32.gmra.mxu0 %v223
  %v448 = vpop.f32.mrf.mxu0
  %v449 = vadd.f32 0.0, %v448
  %450 = vmatmul.f32.gmra.mxu0 %v226
  %v451 = vpop.f32.mrf.mxu0
  %v452 = vadd.f32 0.0, %v451
  %453 = vmatmul.f32.gmra.mxu0 %v229
  %v454 = vpop.f32.mrf.mxu0
  %v455 = vadd.f32 0.0, %v454
  %456 = vmatmul.f32.gmra.mxu0 %v232
  %v457 = vpop.f32.mrf.mxu0
  %v458 = vadd.f32 0.0, %v457
  %459 = vmatmul.f32.gmra.mxu0 %v235
  %v460 = vpop.f32.mrf.mxu0
  %v461 = vadd.f32 0.0, %v460
  %462 = vmatmul.f32.gmra.mxu0 %v238
  %v463 = vpop.f32.mrf.mxu0
  %v464 = vadd.f32 0.0, %v463
  %465 = vmatmul.f32.gmra.mxu0 %v241
  %v466 = vpop.f32.mrf.mxu0
  %v467 = vadd.f32 0.0, %v466
  %468 = vmatmul.f32.gmra.mxu0 %v244
  %v469 = vpop.f32.mrf.mxu0
  %v470 = vadd.f32 0.0, %v469
  %471 = vdwg.mxu0
  %472 = vst [vmem:[#allocation2] sm:$0xff] %v264
  %vm473 = vcmask 326656
  %474 = vst.msk [vmem:[#allocation2 + $0x8] sm:$0xff] %vm473, %v377
  %475 = vst [vmem:[#allocation2 + $0x10] sm:$0xff] %v267
  %476 = vst.msk [vmem:[#allocation2 + $0x18] sm:$0xff] %vm473, %v380
  %477 = vst [vmem:[#allocation2 + $0x20] sm:$0xff] %v270
  %478 = vst.msk [vmem:[#allocation2 + $0x28] sm:$0xff] %vm473, %v383
  %479 = vst [vmem:[#allocation2 + $0x30] sm:$0xff] %v273
  %480 = vst.msk [vmem:[#allocation2 + $0x38] sm:$0xff] %vm473, %v386
  %481 = vst [vmem:[#allocation2 + $0x40] sm:$0xff] %v276
  %482 = vst.msk [vmem:[#allocation2 + $0x48] sm:$0xff] %vm473, %v389
  %483 = vst [vmem:[#allocation2 + $0x50] sm:$0xff] %v279
  %484 = vst.msk [vmem:[#allocation2 + $0x58] sm:$0xff] %vm473, %v392
  %485 = vst [vmem:[#allocation2 + $0x60] sm:$0xff] %v282
  %486 = vst.msk [vmem:[#allocation2 + $0x68] sm:$0xff] %vm473, %v395
  %487 = vst [vmem:[#allocation2 + $0x70] sm:$0xff] %v285
  %488 = vst.msk [vmem:[#allocation2 + $0x78] sm:$0xff] %vm473, %v398
  %489 = vst [vmem:[#allocation2 + $0x80] sm:$0xff] %v288
  %490 = vst.msk [vmem:[#allocation2 + $0x88] sm:$0xff] %vm473, %v401
  %491 = vst [vmem:[#allocation2 + $0x90] sm:$0xff] %v291
  %492 = vst.msk [vmem:[#allocation2 + $0x98] sm:$0xff] %vm473, %v404
  %493 = vst [vmem:[#allocation2 + $0xa0] sm:$0xff] %v294
  %494 = vst.msk [vmem:[#allocation2 + $0xa8] sm:$0xff] %vm473, %v407
  %495 = vst [vmem:[#allocation2 + $0xb0] sm:$0xff] %v297
  %496 = vst.msk [vmem:[#allocation2 + $0xb8] sm:$0xff] %vm473, %v410
  %497 = vst [vmem:[#allocation2 + $0xc0] sm:$0xff] %v300
  %498 = vst.msk [vmem:[#allocation2 + $0xc8] sm:$0xff] %vm473, %v413
  %499 = vst [vmem:[#allocation2 + $0xd0] sm:$0xff] %v303
  %500 = vst.msk [vmem:[#allocation2 + $0xd8] sm:$0xff] %vm473, %v416
  %501 = vst [vmem:[#allocation2 + $0xe0] sm:$0xff] %v306
  %502 = vst.msk [vmem:[#allocation2 + $0xe8] sm:$0xff] %vm473, %v419
  %503 = vst [vmem:[#allocation2 + $0xf0] sm:$0xff] %v309
  %504 = vst.msk [vmem:[#allocation2 + $0xf8] sm:$0xff] %vm473, %v422
  %505 = vst [vmem:[#allocation2 + $0x100] sm:$0xff] %v312
  %506 = vst.msk [vmem:[#allocation2 + $0x108] sm:$0xff] %vm473, %v425
  %507 = vst [vmem:[#allocation2 + $0x110] sm:$0xff] %v315
  %508 = vst.msk [vmem:[#allocation2 + $0x118] sm:$0xff] %vm473, %v428
  %509 = vst [vmem:[#allocation2 + $0x120] sm:$0xff] %v318
  %510 = vst.msk [vmem:[#allocation2 + $0x128] sm:$0xff] %vm473, %v431
  %511 = vst [vmem:[#allocation2 + $0x130] sm:$0xff] %v321
  %512 = vst.msk [vmem:[#allocation2 + $0x138] sm:$0xff] %vm473, %v434
  %513 = vst [vmem:[#allocation2 + $0x140] sm:$0xff] %v324
  %514 = vst.msk [vmem:[#allocation2 + $0x148] sm:$0xff] %vm473, %v437
  %515 = vst [vmem:[#allocation2 + $0x150] sm:$0xff] %v327
  %516 = vst.msk [vmem:[#allocation2 + $0x158] sm:$0xff] %vm473, %v440
  %517 = vst [vmem:[#allocation2 + $0x160] sm:$0xff] %v330
  %518 = vst.msk [vmem:[#allocation2 + $0x168] sm:$0xff] %vm473, %v443
  %519 = vst [vmem:[#allocation2 + $0x170] sm:$0xff] %v333
  %520 = vst.msk [vmem:[#allocation2 + $0x178] sm:$0xff] %vm473, %v446
  %521 = vst [vmem:[#allocation2 + $0x180] sm:$0xff] %v336
  %522 = vst.msk [vmem:[#allocation2 + $0x188] sm:$0xff] %vm473, %v449
  %523 = vst [vmem:[#allocation2 + $0x190] sm:$0xff] %v339
  %524 = vst.msk [vmem:[#allocation2 + $0x198] sm:$0xff] %vm473, %v452
  %525 = vst [vmem:[#allocation2 + $0x1a0] sm:$0xff] %v342
  %526 = vst.msk [vmem:[#allocation2 + $0x1a8] sm:$0xff] %vm473, %v455
  %527 = vst [vmem:[#allocation2 + $0x1b0] sm:$0xff] %v345
  %528 = vst.msk [vmem:[#allocation2 + $0x1b8] sm:$0xff] %vm473, %v458
  %529 = vst [vmem:[#allocation2 + $0x1c0] sm:$0xff] %v348
  %530 = vst.msk [vmem:[#allocation2 + $0x1c8] sm:$0xff] %vm473, %v461
  %531 = vst [vmem:[#allocation2 + $0x1d0] sm:$0xff] %v351
  %532 = vst.msk [vmem:[#allocation2 + $0x1d8] sm:$0xff] %vm473, %v464
  %533 = vst [vmem:[#allocation2 + $0x1e0] sm:$0xff] %v354
  %534 = vst.msk [vmem:[#allocation2 + $0x1e8] sm:$0xff] %vm473, %v467
  %535 = vst [vmem:[#allocation2 + $0x1f0] sm:$0xff] %v357
  %536 = vst.msk [vmem:[#allocation2 + $0x1f8] sm:$0xff] %vm473, %v470
  %v537 = vld [vmem:[%s0] sm:$0xff]
  %v538 = vld [vmem:[%s0 + $0x8] sm:$0xff]
  %v539 = vld [vmem:[%s0 + $0x10] sm:$0xff]
  %v540 = vld [vmem:[%s0 + $0x18] sm:$0xff]
  %v541 = vld [vmem:[%s0 + $0x20] sm:$0xff]
  %v542 = vld [vmem:[%s0 + $0x28] sm:$0xff]
  %v543 = vld [vmem:[%s0 + $0x30] sm:$0xff]
  %v544 = vld [vmem:[%s0 + $0x38] sm:$0xff]
  %v545 = vld [vmem:[%s0 + $0x40] sm:$0xff]
  %v546 = vld [vmem:[%s0 + $0x48] sm:$0xff]
  %v547 = vld [vmem:[%s0 + $0x50] sm:$0xff]
  %v548 = vld [vmem:[%s0 + $0x58] sm:$0xff]
  %v549 = vld [vmem:[%s0 + $0x60] sm:$0xff]
  %v550 = vld [vmem:[%s0 + $0x68] sm:$0xff]
  %v551 = vld [vmem:[%s0 + $0x70] sm:$0xff]
  %v552 = vld [vmem:[%s0 + $0x78] sm:$0xff]
  %v553 = vld [vmem:[%s0 + $0x80] sm:$0xff]
  %v554 = vld [vmem:[%s0 + $0x88] sm:$0xff]
  %v555 = vld [vmem:[%s0 + $0x90] sm:$0xff]
  %v556 = vld [vmem:[%s0 + $0x98] sm:$0xff]
  %v557 = vld [vmem:[%s0 + $0xa0] sm:$0xff]
  %v558 = vld [vmem:[%s0 + $0xa8] sm:$0xff]
  %v559 = vld [vmem:[%s0 + $0xb0] sm:$0xff]
  %v560 = vld [vmem:[%s0 + $0xb8] sm:$0xff]
  %v561 = vld [vmem:[%s0 + $0xc0] sm:$0xff]
  %v562 = vld [vmem:[%s0 + $0xc8] sm:$0xff]
  %v563 = vld [vmem:[%s0 + $0xd0] sm:$0xff]
  %v564 = vld [vmem:[%s0 + $0xd8] sm:$0xff]
  %v565 = vld [vmem:[%s0 + $0xe0] sm:$0xff]
  %v566 = vld [vmem:[%s0 + $0xe8] sm:$0xff]
  %v567 = vld [vmem:[%s0 + $0xf0] sm:$0xff]
  %v568 = vld [vmem:[%s0 + $0xf8] sm:$0xff]
  %s569 = scalar_lea.vmem %s1, 192
  %v570 = vld [vmem:[%s569] sm:$0xff]
  %v571 = vld [vmem:[%s569 + $0x8] sm:$0xff]
  %v572 = vld [vmem:[%s569 + $0x10] sm:$0xff]
  %v573 = vld [vmem:[%s569 + $0x18] sm:$0xff]
  %v574 = vld [vmem:[%s569 + $0x20] sm:$0xff]
  %v575 = vld [vmem:[%s569 + $0x28] sm:$0xff]
  %v576 = vld [vmem:[%s569 + $0x30] sm:$0xff]
  %v577 = vld [vmem:[%s569 + $0x38] sm:$0xff]
  %v578 = vld [vmem:[%s569 + $0x40] sm:$0xff]
  %v579 = vld [vmem:[%s569 + $0x48] sm:$0xff]
  %v580 = vld [vmem:[%s569 + $0x50] sm:$0xff]
  %v581 = vld [vmem:[%s569 + $0x58] sm:$0xff]
  %v582 = vld [vmem:[%s569 + $0x60] sm:$0xff]
  %v583 = vld [vmem:[%s569 + $0x68] sm:$0xff]
  %v584 = vld [vmem:[%s569 + $0x70] sm:$0xff]
  %v585 = vld [vmem:[%s569 + $0x78] sm:$0xff]
  %v586 = vld [vmem:[%s569 + $0x80] sm:$0xff]
  %v587 = vld [vmem:[%s569 + $0x88] sm:$0xff]
  %v588 = vld [vmem:[%s569 + $0x90] sm:$0xff]
  %v589 = vld [vmem:[%s569 + $0x98] sm:$0xff]
  %v590 = vld [vmem:[%s569 + $0xa0] sm:$0xff]
  %v591 = vld [vmem:[%s569 + $0xa8] sm:$0xff]
  %v592 = vld [vmem:[%s569 + $0xb0] sm:$0xff]
  %v593 = vld [vmem:[%s569 + $0xb8] sm:$0xff]
  %v595 = vsel %vm149, %v537, 0
  %v598 = vsel %vm149, %v538, 0
  %v601 = vsel %vm149, %v539, 0
  %v604 = vsel %vm149, %v540, 0
  %v607 = vsel %vm149, %v541, 0
  %v610 = vsel %vm149, %v542, 0
  %v613 = vsel %vm149, %v543, 0
  %v616 = vsel %vm149, %v544, 0
  %v619 = vsel %vm149, %v545, 0
  %v622 = vsel %vm149, %v546, 0
  %v625 = vsel %vm149, %v547, 0
  %v628 = vsel %vm149, %v548, 0
  %v631 = vsel %vm149, %v549, 0
  %v634 = vsel %vm149, %v550, 0
  %v637 = vsel %vm149, %v551, 0
  %v640 = vsel %vm149, %v552, 0
  %v643 = vsel %vm149, %v553, 0
  %v646 = vsel %vm149, %v554, 0
  %v649 = vsel %vm149, %v555, 0
  %v652 = vsel %vm149, %v556, 0
  %v655 = vsel %vm149, %v557, 0
  %v658 = vsel %vm149, %v558, 0
  %v661 = vsel %vm149, %v559, 0
  %v664 = vsel %vm149, %v560, 0
  %v667 = vsel %vm149, %v561, 0
  %v670 = vsel %vm149, %v562, 0
  %v673 = vsel %vm149, %v563, 0
  %v676 = vsel %vm149, %v564, 0
  %v679 = vsel %vm149, %v565, 0
  %v682 = vsel %vm149, %v566, 0
  %v685 = vsel %vm149, %v567, 0
  %v688 = vsel %vm149, %v568, 0
  %690 = vmatpush.msra.mxu0 0.0
  %691 = vmatpush.msra.mxu0 0.0
  %692 = vmatpush.msra.mxu0 0.0
  %693 = vmatpush.msra.mxu0 0.0
  %694 = vmatpush.msra.mxu0 %v592
  %695 = vmatpush.msra.mxu0 %v590
  %696 = vmatpush.msra.mxu0 %v588
  %697 = vmatpush.msra.mxu0 %v586
  %698 = vmatpush.msra.mxu0 %v584
  %699 = vmatpush.msra.mxu0 %v582
  %700 = vmatpush.msra.mxu0 %v580
  %701 = vmatpush.msra.mxu0 %v578
  %702 = vmatpush.msra.mxu0 %v576
  %703 = vmatpush.msra.mxu0 %v574
  %704 = vmatpush.msra.mxu0 %v572
  %705 = vmatpush.msra.mxu0 %v570
  %706 = vmatmul.f32.gmra.mxu0 %v595
  %v707 = vpop.f32.mrf.mxu0
  %v708 = vadd.f32 0.0, %v707
  %709 = vmatmul.f32.gmra.mxu0 %v598
  %v710 = vpop.f32.mrf.mxu0
  %v711 = vadd.f32 0.0, %v710
  %712 = vmatmul.f32.gmra.mxu0 %v601
  %v713 = vpop.f32.mrf.mxu0
  %v714 = vadd.f32 0.0, %v713
  %715 = vmatmul.f32.gmra.mxu0 %v604
  %v716 = vpop.f32.mrf.mxu0
  %v717 = vadd.f32 0.0, %v716
  %718 = vmatmul.f32.gmra.mxu0 %v607
  %v719 = vpop.f32.mrf.mxu0
  %v720 = vadd.f32 0.0, %v719
  %721 = vmatmul.f32.gmra.mxu0 %v610
  %v722 = vpop.f32.mrf.mxu0
  %v723 = vadd.f32 0.0, %v722
  %724 = vmatmul.f32.gmra.mxu0 %v613
  %v725 = vpop.f32.mrf.mxu0
  %v726 = vadd.f32 0.0, %v725
  %727 = vmatmul.f32.gmra.mxu0 %v616
  %v728 = vpop.f32.mrf.mxu0
  %v729 = vadd.f32 0.0, %v728
  %730 = vmatmul.f32.gmra.mxu0 %v619
  %v731 = vpop.f32.mrf.mxu0
  %v732 = vadd.f32 0.0, %v731
  %733 = vmatmul.f32.gmra.mxu0 %v622
  %v734 = vpop.f32.mrf.mxu0
  %v735 = vadd.f32 0.0, %v734
  %736 = vmatmul.f32.gmra.mxu0 %v625
  %v737 = vpop.f32.mrf.mxu0
  %v738 = vadd.f32 0.0, %v737
  %739 = vmatmul.f32.gmra.mxu0 %v628
  %v740 = vpop.f32.mrf.mxu0
  %v741 = vadd.f32 0.0, %v740
  %742 = vmatmul.f32.gmra.mxu0 %v631
  %v743 = vpop.f32.mrf.mxu0
  %v744 = vadd.f32 0.0, %v743
  %745 = vmatmul.f32.gmra.mxu0 %v634
  %v746 = vpop.f32.mrf.mxu0
  %v747 = vadd.f32 0.0, %v746
  %748 = vmatmul.f32.gmra.mxu0 %v637
  %v749 = vpop.f32.mrf.mxu0
  %v750 = vadd.f32 0.0, %v749
  %751 = vmatmul.f32.gmra.mxu0 %v640
  %v752 = vpop.f32.mrf.mxu0
  %v753 = vadd.f32 0.0, %v752
  %754 = vmatmul.f32.gmra.mxu0 %v643
  %v755 = vpop.f32.mrf.mxu0
  %v756 = vadd.f32 0.0, %v755
  %757 = vmatmul.f32.gmra.mxu0 %v646
  %v758 = vpop.f32.mrf.mxu0
  %v759 = vadd.f32 0.0, %v758
  %760 = vmatmul.f32.gmra.mxu0 %v649
  %v761 = vpop.f32.mrf.mxu0
  %v762 = vadd.f32 0.0, %v761
  %763 = vmatmul.f32.gmra.mxu0 %v652
  %v764 = vpop.f32.mrf.mxu0
  %v765 = vadd.f32 0.0, %v764
  %766 = vmatmul.f32.gmra.mxu0 %v655
  %v767 = vpop.f32.mrf.mxu0
  %v768 = vadd.f32 0.0, %v767
  %769 = vmatmul.f32.gmra.mxu0 %v658
  %v770 = vpop.f32.mrf.mxu0
  %v771 = vadd.f32 0.0, %v770
  %772 = vmatmul.f32.gmra.mxu0 %v661
  %v773 = vpop.f32.mrf.mxu0
  %v774 = vadd.f32 0.0, %v773
  %775 = vmatmul.f32.gmra.mxu0 %v664
  %v776 = vpop.f32.mrf.mxu0
  %v777 = vadd.f32 0.0, %v776
  %778 = vmatmul.f32.gmra.mxu0 %v667
  %v779 = vpop.f32.mrf.mxu0
  %v780 = vadd.f32 0.0, %v779
  %781 = vmatmul.f32.gmra.mxu0 %v670
  %v782 = vpop.f32.mrf.mxu0
  %v783 = vadd.f32 0.0, %v782
  %784 = vmatmul.f32.gmra.mxu0 %v673
  %v785 = vpop.f32.mrf.mxu0
  %v786 = vadd.f32 0.0, %v785
  %787 = vmatmul.f32.gmra.mxu0 %v676
  %v788 = vpop.f32.mrf.mxu0
  %v789 = vadd.f32 0.0, %v788
  %790 = vmatmul.f32.gmra.mxu0 %v679
  %v791 = vpop.f32.mrf.mxu0
  %v792 = vadd.f32 0.0, %v791
  %793 = vmatmul.f32.gmra.mxu0 %v682
  %v794 = vpop.f32.mrf.mxu0
  %v795 = vadd.f32 0.0, %v794
  %796 = vmatmul.f32.gmra.mxu0 %v685
  %v797 = vpop.f32.mrf.mxu0
  %v798 = vadd.f32 0.0, %v797
  %799 = vmatmul.f32.gmra.mxu0 %v688
  %v800 = vpop.f32.mrf.mxu0
  %v801 = vadd.f32 0.0, %v800
  %802 = vdwg.mxu0
  %803 = vmatpush.msra.mxu0 0.0
  %804 = vmatpush.msra.mxu0 0.0
  %805 = vmatpush.msra.mxu0 0.0
  %806 = vmatpush.msra.mxu0 0.0
  %807 = vmatpush.msra.mxu0 %v593
  %808 = vmatpush.msra.mxu0 %v591
  %809 = vmatpush.msra.mxu0 %v589
  %810 = vmatpush.msra.mxu0 %v587
  %811 = vmatpush.msra.mxu0 %v585
  %812 = vmatpush.msra.mxu0 %v583
  %813 = vmatpush.msra.mxu0 %v581
  %814 = vmatpush.msra.mxu0 %v579
  %815 = vmatpush.msra.mxu0 %v577
  %816 = vmatpush.msra.mxu0 %v575
  %817 = vmatpush.msra.mxu0 %v573
  %818 = vmatpush.msra.mxu0 %v571
  %819 = vmatmul.f32.gmra.mxu0 %v595
  %v820 = vpop.f32.mrf.mxu0
  %v821 = vadd.f32 0.0, %v820
  %822 = vmatmul.f32.gmra.mxu0 %v598
  %v823 = vpop.f32.mrf.mxu0
  %v824 = vadd.f32 0.0, %v823
  %825 = vmatmul.f32.gmra.mxu0 %v601
  %v826 = vpop.f32.mrf.mxu0
  %v827 = vadd.f32 0.0, %v826
  %828 = vmatmul.f32.gmra.mxu0 %v604
  %v829 = vpop.f32.mrf.mxu0
  %v830 = vadd.f32 0.0, %v829
  %831 = vmatmul.f32.gmra.mxu0 %v607
  %v832 = vpop.f32.mrf.mxu0
  %v833 = vadd.f32 0.0, %v832
  %834 = vmatmul.f32.gmra.mxu0 %v610
  %v835 = vpop.f32.mrf.mxu0
  %v836 = vadd.f32 0.0, %v835
  %837 = vmatmul.f32.gmra.mxu0 %v613
  %v838 = vpop.f32.mrf.mxu0
  %v839 = vadd.f32 0.0, %v838
  %840 = vmatmul.f32.gmra.mxu0 %v616
  %v841 = vpop.f32.mrf.mxu0
  %v842 = vadd.f32 0.0, %v841
  %843 = vmatmul.f32.gmra.mxu0 %v619
  %v844 = vpop.f32.mrf.mxu0
  %v845 = vadd.f32 0.0, %v844
  %846 = vmatmul.f32.gmra.mxu0 %v622
  %v847 = vpop.f32.mrf.mxu0
  %v848 = vadd.f32 0.0, %v847
  %849 = vmatmul.f32.gmra.mxu0 %v625
  %v850 = vpop.f32.mrf.mxu0
  %v851 = vadd.f32 0.0, %v850
  %852 = vmatmul.f32.gmra.mxu0 %v628
  %v853 = vpop.f32.mrf.mxu0
  %v854 = vadd.f32 0.0, %v853
  %855 = vmatmul.f32.gmra.mxu0 %v631
  %v856 = vpop.f32.mrf.mxu0
  %v857 = vadd.f32 0.0, %v856
  %858 = vmatmul.f32.gmra.mxu0 %v634
  %v859 = vpop.f32.mrf.mxu0
  %v860 = vadd.f32 0.0, %v859
  %861 = vmatmul.f32.gmra.mxu0 %v637
  %v862 = vpop.f32.mrf.mxu0
  %v863 = vadd.f32 0.0, %v862
  %864 = vmatmul.f32.gmra.mxu0 %v640
  %v865 = vpop.f32.mrf.mxu0
  %v866 = vadd.f32 0.0, %v865
  %867 = vmatmul.f32.gmra.mxu0 %v643
  %v868 = vpop.f32.mrf.mxu0
  %v869 = vadd.f32 0.0, %v868
  %870 = vmatmul.f32.gmra.mxu0 %v646
  %v871 = vpop.f32.mrf.mxu0
  %v872 = vadd.f32 0.0, %v871
  %873 = vmatmul.f32.gmra.mxu0 %v649
  %v874 = vpop.f32.mrf.mxu0
  %v875 = vadd.f32 0.0, %v874
  %876 = vmatmul.f32.gmra.mxu0 %v652
  %v877 = vpop.f32.mrf.mxu0
  %v878 = vadd.f32 0.0, %v877
  %879 = vmatmul.f32.gmra.mxu0 %v655
  %v880 = vpop.f32.mrf.mxu0
  %v881 = vadd.f32 0.0, %v880
  %882 = vmatmul.f32.gmra.mxu0 %v658
  %v883 = vpop.f32.mrf.mxu0
  %v884 = vadd.f32 0.0, %v883
  %885 = vmatmul.f32.gmra.mxu0 %v661
  %v886 = vpop.f32.mrf.mxu0
  %v887 = vadd.f32 0.0, %v886
  %888 = vmatmul.f32.gmra.mxu0 %v664
  %v889 = vpop.f32.mrf.mxu0
  %v890 = vadd.f32 0.0, %v889
  %891 = vmatmul.f32.gmra.mxu0 %v667
  %v892 = vpop.f32.mrf.mxu0
  %v893 = vadd.f32 0.0, %v892
  %894 = vmatmul.f32.gmra.mxu0 %v670
  %v895 = vpop.f32.mrf.mxu0
  %v896 = vadd.f32 0.0, %v895
  %897 = vmatmul.f32.gmra.mxu0 %v673
  %v898 = vpop.f32.mrf.mxu0
  %v899 = vadd.f32 0.0, %v898
  %900 = vmatmul.f32.gmra.mxu0 %v676
  %v901 = vpop.f32.mrf.mxu0
  %v902 = vadd.f32 0.0, %v901
  %903 = vmatmul.f32.gmra.mxu0 %v679
  %v904 = vpop.f32.mrf.mxu0
  %v905 = vadd.f32 0.0, %v904
  %906 = vmatmul.f32.gmra.mxu0 %v682
  %v907 = vpop.f32.mrf.mxu0
  %v908 = vadd.f32 0.0, %v907
  %909 = vmatmul.f32.gmra.mxu0 %v685
  %v910 = vpop.f32.mrf.mxu0
  %v911 = vadd.f32 0.0, %v910
  %912 = vmatmul.f32.gmra.mxu0 %v688
  %v913 = vpop.f32.mrf.mxu0
  %v914 = vadd.f32 0.0, %v913
  %915 = vdwg.mxu0
  %v916 = vld [vmem:[#allocation2] sm:$0xff]
  %v917 = vld [vmem:[#allocation2 + $0x8] sm:$0xff]
  %v918 = vld [vmem:[#allocation2 + $0x10] sm:$0xff]
  %v919 = vld [vmem:[#allocation2 + $0x18] sm:$0xff]
  %v920 = vld [vmem:[#allocation2 + $0x20] sm:$0xff]
  %v921 = vld [vmem:[#allocation2 + $0x28] sm:$0xff]
  %v922 = vld [vmem:[#allocation2 + $0x30] sm:$0xff]
  %v923 = vld [vmem:[#allocation2 + $0x38] sm:$0xff]
  %v924 = vld [vmem:[#allocation2 + $0x40] sm:$0xff]
  %v925 = vld [vmem:[#allocation2 + $0x48] sm:$0xff]
  %v926 = vld [vmem:[#allocation2 + $0x50] sm:$0xff]
  %v927 = vld [vmem:[#allocation2 + $0x58] sm:$0xff]
  %v928 = vld [vmem:[#allocation2 + $0x60] sm:$0xff]
  %v929 = vld [vmem:[#allocation2 + $0x68] sm:$0xff]
  %v930 = vld [vmem:[#allocation2 + $0x70] sm:$0xff]
  %v931 = vld [vmem:[#allocation2 + $0x78] sm:$0xff]
  %v932 = vld [vmem:[#allocation2 + $0x80] sm:$0xff]
  %v933 = vld [vmem:[#allocation2 + $0x88] sm:$0xff]
  %v934 = vld [vmem:[#allocation2 + $0x90] sm:$0xff]
  %v935 = vld [vmem:[#allocation2 + $0x98] sm:$0xff]
  %v936 = vld [vmem:[#allocation2 + $0xa0] sm:$0xff]
  %v937 = vld [vmem:[#allocation2 + $0xa8] sm:$0xff]
  %v938 = vld [vmem:[#allocation2 + $0xb0] sm:$0xff]
  %v939 = vld [vmem:[#allocation2 + $0xb8] sm:$0xff]
  %v940 = vld [vmem:[#allocation2 + $0xc0] sm:$0xff]
  %v941 = vld [vmem:[#allocation2 + $0xc8] sm:$0xff]
  %v942 = vld [vmem:[#allocation2 + $0xd0] sm:$0xff]
  %v943 = vld [vmem:[#allocation2 + $0xd8] sm:$0xff]
  %v944 = vld [vmem:[#allocation2 + $0xe0] sm:$0xff]
  %v945 = vld [vmem:[#allocation2 + $0xe8] sm:$0xff]
  %v946 = vld [vmem:[#allocation2 + $0xf0] sm:$0xff]
  %v947 = vld [vmem:[#allocation2 + $0xf8] sm:$0xff]
  %v948 = vld [vmem:[#allocation2 + $0x100] sm:$0xff]
  %v949 = vld [vmem:[#allocation2 + $0x108] sm:$0xff]
  %v950 = vld [vmem:[#allocation2 + $0x110] sm:$0xff]
  %v951 = vld [vmem:[#allocation2 + $0x118] sm:$0xff]
  %v952 = vld [vmem:[#allocation2 + $0x120] sm:$0xff]
  %v953 = vld [vmem:[#allocation2 + $0x128] sm:$0xff]
  %v954 = vld [vmem:[#allocation2 + $0x130] sm:$0xff]
  %v955 = vld [vmem:[#allocation2 + $0x138] sm:$0xff]
  %v956 = vld [vmem:[#allocation2 + $0x140] sm:$0xff]
  %v957 = vld [vmem:[#allocation2 + $0x148] sm:$0xff]
  %v958 = vld [vmem:[#allocation2 + $0x150] sm:$0xff]
  %v959 = vld [vmem:[#allocation2 + $0x158] sm:$0xff]
  %v960 = vld [vmem:[#allocation2 + $0x160] sm:$0xff]
  %v961 = vld [vmem:[#allocation2 + $0x168] sm:$0xff]
  %v962 = vld [vmem:[#allocation2 + $0x170] sm:$0xff]
  %v963 = vld [vmem:[#allocation2 + $0x178] sm:$0xff]
  %v964 = vld [vmem:[#allocation2 + $0x180] sm:$0xff]
  %v965 = vld [vmem:[#allocation2 + $0x188] sm:$0xff]
  %v966 = vld [vmem:[#allocation2 + $0x190] sm:$0xff]
  %v967 = vld [vmem:[#allocation2 + $0x198] sm:$0xff]
  %v968 = vld [vmem:[#allocation2 + $0x1a0] sm:$0xff]
  %v969 = vld [vmem:[#allocation2 + $0x1a8] sm:$0xff]
  %v970 = vld [vmem:[#allocation2 + $0x1b0] sm:$0xff]
  %v971 = vld [vmem:[#allocation2 + $0x1b8] sm:$0xff]
  %v972 = vld [vmem:[#allocation2 + $0x1c0] sm:$0xff]
  %v973 = vld [vmem:[#allocation2 + $0x1c8] sm:$0xff]
  %v974 = vld [vmem:[#allocation2 + $0x1d0] sm:$0xff]
  %v975 = vld [vmem:[#allocation2 + $0x1d8] sm:$0xff]
  %v976 = vld [vmem:[#allocation2 + $0x1e0] sm:$0xff]
  %v977 = vld [vmem:[#allocation2 + $0x1e8] sm:$0xff]
  %v978 = vld [vmem:[#allocation2 + $0x1f0] sm:$0x7f]
  %v979 = vld [vmem:[#allocation2 + $0x1f8] sm:$0x7f]
  %vm1044 = vcmask 1046528
  %v1045 = vrot.slane %v708, 1
  %v1046 = vrot.slane %v711, 1
  %v1047 = vsel %vm1044, %v1045, %v1046
  %v1048 = vrot.slane %v821, 1
  %v1049 = vrot.slane %v824, 1
  %v1050 = vsel %vm1044, %v1048, %v1049
  %v1051 = vrot.slane %v714, 1
  %v1052 = vsel %vm1044, %v1046, %v1051
  %v1053 = vrot.slane %v827, 1
  %v1054 = vsel %vm1044, %v1049, %v1053
  %v1055 = vrot.slane %v717, 1
  %v1056 = vsel %vm1044, %v1051, %v1055
  %v1057 = vrot.slane %v830, 1
  %v1058 = vsel %vm1044, %v1053, %v1057
  %v1059 = vrot.slane %v720, 1
  %v1060 = vsel %vm1044, %v1055, %v1059
  %v1061 = vrot.slane %v833, 1
  %v1062 = vsel %vm1044, %v1057, %v1061
  %v1063 = vrot.slane %v723, 1
  %v1064 = vsel %vm1044, %v1059, %v1063
  %v1065 = vrot.slane %v836, 1
  %v1066 = vsel %vm1044, %v1061, %v1065
  %v1067 = vrot.slane %v726, 1
  %v1068 = vsel %vm1044, %v1063, %v1067
  %v1069 = vrot.slane %v839, 1
  %v1070 = vsel %vm1044, %v1065, %v1069
  %v1071 = vrot.slane %v729, 1
  %v1072 = vsel %vm1044, %v1067, %v1071
  %v1073 = vrot.slane %v842, 1
  %v1074 = vsel %vm1044, %v1069, %v1073
  %v1075 = vrot.slane %v732, 1
  %v1076 = vsel %vm1044, %v1071, %v1075
  %v1077 = vrot.slane %v845, 1
  %v1078 = vsel %vm1044, %v1073, %v1077
  %v1079 = vrot.slane %v735, 1
  %v1080 = vsel %vm1044, %v1075, %v1079
  %v1081 = vrot.slane %v848, 1
  %v1082 = vsel %vm1044, %v1077, %v1081
  %v1083 = vrot.slane %v738, 1
  %v1084 = vsel %vm1044, %v1079, %v1083
  %v1085 = vrot.slane %v851, 1
  %v1086 = vsel %vm1044, %v1081, %v1085
  %v1087 = vrot.slane %v741, 1
  %v1088 = vsel %vm1044, %v1083, %v1087
  %v1089 = vrot.slane %v854, 1
  %v1090 = vsel %vm1044, %v1085, %v1089
  %v1091 = vrot.slane %v744, 1
  %v1092 = vsel %vm1044, %v1087, %v1091
  %v1093 = vrot.slane %v857, 1
  %v1094 = vsel %vm1044, %v1089, %v1093
  %v1095 = vrot.slane %v747, 1
  %v1096 = vsel %vm1044, %v1091, %v1095
  %v1097 = vrot.slane %v860, 1
  %v1098 = vsel %vm1044, %v1093, %v1097
  %v1099 = vrot.slane %v750, 1
  %v1100 = vsel %vm1044, %v1095, %v1099
  %v1101 = vrot.slane %v863, 1
  %v1102 = vsel %vm1044, %v1097, %v1101
  %v1103 = vrot.slane %v753, 1
  %v1104 = vsel %vm1044, %v1099, %v1103
  %v1105 = vrot.slane %v866, 1
  %v1106 = vsel %vm1044, %v1101, %v1105
  %v1107 = vrot.slane %v756, 1
  %v1108 = vsel %vm1044, %v1103, %v1107
  %v1109 = vrot.slane %v869, 1
  %v1110 = vsel %vm1044, %v1105, %v1109
  %v1111 = vrot.slane %v759, 1
  %v1112 = vsel %vm1044, %v1107, %v1111
  %v1113 = vrot.slane %v872, 1
  %v1114 = vsel %vm1044, %v1109, %v1113
  %v1115 = vrot.slane %v762, 1
  %v1116 = vsel %vm1044, %v1111, %v1115
  %v1117 = vrot.slane %v875, 1
  %v1118 = vsel %vm1044, %v1113, %v1117
  %v1119 = vrot.slane %v765, 1
  %v1120 = vsel %vm1044, %v1115, %v1119
  %v1121 = vrot.slane %v878, 1
  %v1122 = vsel %vm1044, %v1117, %v1121
  %v1123 = vrot.slane %v768, 1
  %v1124 = vsel %vm1044, %v1119, %v1123
  %v1125 = vrot.slane %v881, 1
  %v1126 = vsel %vm1044, %v1121, %v1125
  %v1127 = vrot.slane %v771, 1
  %v1128 = vsel %vm1044, %v1123, %v1127
  %v1129 = vrot.slane %v884, 1
  %v1130 = vsel %vm1044, %v1125, %v1129
  %v1131 = vrot.slane %v774, 1
  %v1132 = vsel %vm1044, %v1127, %v1131
  %v1133 = vrot.slane %v887, 1
  %v1134 = vsel %vm1044, %v1129, %v1133
  %v1135 = vrot.slane %v777, 1
  %v1136 = vsel %vm1044, %v1131, %v1135
  %v1137 = vrot.slane %v890, 1
  %v1138 = vsel %vm1044, %v1133, %v1137
  %v1139 = vrot.slane %v780, 1
  %v1140 = vsel %vm1044, %v1135, %v1139
  %v1141 = vrot.slane %v893, 1
  %v1142 = vsel %vm1044, %v1137, %v1141
  %v1143 = vrot.slane %v783, 1
  %v1144 = vsel %vm1044, %v1139, %v1143
  %v1145 = vrot.slane %v896, 1
  %v1146 = vsel %vm1044, %v1141, %v1145
  %v1147 = vrot.slane %v786, 1
  %v1148 = vsel %vm1044, %v1143, %v1147
  %v1149 = vrot.slane %v899, 1
  %v1150 = vsel %vm1044, %v1145, %v1149
  %v1151 = vrot.slane %v789, 1
  %v1152 = vsel %vm1044, %v1147, %v1151
  %v1153 = vrot.slane %v902, 1
  %v1154 = vsel %vm1044, %v1149, %v1153
  %v1155 = vrot.slane %v792, 1
  %v1156 = vsel %vm1044, %v1151, %v1155
  %v1157 = vrot.slane %v905, 1
  %v1158 = vsel %vm1044, %v1153, %v1157
  %v1159 = vrot.slane %v795, 1
  %v1160 = vsel %vm1044, %v1155, %v1159
  %v1161 = vrot.slane %v908, 1
  %v1162 = vsel %vm1044, %v1157, %v1161
  %v1163 = vrot.slane %v798, 1
  %v1164 = vsel %vm1044, %v1159, %v1163
  %v1165 = vrot.slane %v911, 1
  %v1166 = vsel %vm1044, %v1161, %v1165
  %v1167 = vrot.slane %v801, 1
  %v1168 = vsel %vm1044, %v1163, %v1167
  %v1169 = vrot.slane %v914, 1
  %v1170 = vsel %vm1044, %v1165, %v1169
  %v1235 = vadd.f32 %v916, %v1047
  %v1236 = vadd.f32 %v917, %v1050
  %v1237 = vadd.f32 %v918, %v1052
  %v1238 = vadd.f32 %v919, %v1054
  %v1239 = vadd.f32 %v920, %v1056
  %v1240 = vadd.f32 %v921, %v1058
  %v1241 = vadd.f32 %v922, %v1060
  %v1242 = vadd.f32 %v923, %v1062
  %v1243 = vadd.f32 %v924, %v1064
  %v1244 = vadd.f32 %v925, %v1066
  %v1245 = vadd.f32 %v926, %v1068
  %v1246 = vadd.f32 %v927, %v1070
  %v1247 = vadd.f32 %v928, %v1072
  %v1248 = vadd.f32 %v929, %v1074
  %v1249 = vadd.f32 %v930, %v1076
  %v1250 = vadd.f32 %v931, %v1078
  %v1251 = vadd.f32 %v932, %v1080
  %v1252 = vadd.f32 %v933, %v1082
  %v1253 = vadd.f32 %v934, %v1084
  %v1254 = vadd.f32 %v935, %v1086
  %v1255 = vadd.f32 %v936, %v1088
  %v1256 = vadd.f32 %v937, %v1090
  %v1257 = vadd.f32 %v938, %v1092
  %v1258 = vadd.f32 %v939, %v1094
  %v1259 = vadd.f32 %v940, %v1096
  %v1260 = vadd.f32 %v941, %v1098
  %v1261 = vadd.f32 %v942, %v1100
  %v1262 = vadd.f32 %v943, %v1102
  %v1263 = vadd.f32 %v944, %v1104
  %v1264 = vadd.f32 %v945, %v1106
  %v1265 = vadd.f32 %v946, %v1108
  %v1266 = vadd.f32 %v947, %v1110
  %v1267 = vadd.f32 %v948, %v1112
  %v1268 = vadd.f32 %v949, %v1114
  %v1269 = vadd.f32 %v950, %v1116
  %v1270 = vadd.f32 %v951, %v1118
  %v1271 = vadd.f32 %v952, %v1120
  %v1272 = vadd.f32 %v953, %v1122
  %v1273 = vadd.f32 %v954, %v1124
  %v1274 = vadd.f32 %v955, %v1126
  %v1275 = vadd.f32 %v956, %v1128
  %v1276 = vadd.f32 %v957, %v1130
  %v1277 = vadd.f32 %v958, %v1132
  %v1278 = vadd.f32 %v959, %v1134
  %v1279 = vadd.f32 %v960, %v1136
  %v1280 = vadd.f32 %v961, %v1138
  %v1281 = vadd.f32 %v962, %v1140
  %v1282 = vadd.f32 %v963, %v1142
  %v1283 = vadd.f32 %v964, %v1144
  %v1284 = vadd.f32 %v965, %v1146
  %v1285 = vadd.f32 %v966, %v1148
  %v1286 = vadd.f32 %v967, %v1150
  %v1287 = vadd.f32 %v968, %v1152
  %v1288 = vadd.f32 %v969, %v1154
  %v1289 = vadd.f32 %v970, %v1156
  %v1290 = vadd.f32 %v971, %v1158
  %v1291 = vadd.f32 %v972, %v1160
  %v1292 = vadd.f32 %v973, %v1162
  %v1293 = vadd.f32 %v974, %v1164
  %v1294 = vadd.f32 %v975, %v1166
  %v1295 = vadd.f32 %v976, %v1168
  %v1296 = vadd.f32 %v977, %v1170
  %v1297 = vadd.f32 %v978, %v1167
  %v1298 = vadd.f32 %v979, %v1169
  %1299 = vst [vmem:[#allocation2] sm:$0xff] %v1235
  %1300 = vst.msk [vmem:[#allocation2 + $0x8] sm:$0xff] %vm473, %v1236
  %1301 = vst [vmem:[#allocation2 + $0x10] sm:$0xff] %v1237
  %1302 = vst.msk [vmem:[#allocation2 + $0x18] sm:$0xff] %vm473, %v1238
  %1303 = vst [vmem:[#allocation2 + $0x20] sm:$0xff] %v1239
  %1304 = vst.msk [vmem:[#allocation2 + $0x28] sm:$0xff] %vm473, %v1240
  %1305 = vst [vmem:[#allocation2 + $0x30] sm:$0xff] %v1241
  %1306 = vst.msk [vmem:[#allocation2 + $0x38] sm:$0xff] %vm473, %v1242
  %1307 = vst [vmem:[#allocation2 + $0x40] sm:$0xff] %v1243
  %1308 = vst.msk [vmem:[#allocation2 + $0x48] sm:$0xff] %vm473, %v1244
  %1309 = vst [vmem:[#allocation2 + $0x50] sm:$0xff] %v1245
  %1310 = vst.msk [vmem:[#allocation2 + $0x58] sm:$0xff] %vm473, %v1246
  %1311 = vst [vmem:[#allocation2 + $0x60] sm:$0xff] %v1247
  %1312 = vst.msk [vmem:[#allocation2 + $0x68] sm:$0xff] %vm473, %v1248
  %1313 = vst [vmem:[#allocation2 + $0x70] sm:$0xff] %v1249
  %1314 = vst.msk [vmem:[#allocation2 + $0x78] sm:$0xff] %vm473, %v1250
  %1315 = vst [vmem:[#allocation2 + $0x80] sm:$0xff] %v1251
  %1316 = vst.msk [vmem:[#allocation2 + $0x88] sm:$0xff] %vm473, %v1252
  %1317 = vst [vmem:[#allocation2 + $0x90] sm:$0xff] %v1253
  %1318 = vst.msk [vmem:[#allocation2 + $0x98] sm:$0xff] %vm473, %v1254
  %1319 = vst [vmem:[#allocation2 + $0xa0] sm:$0xff] %v1255
  %1320 = vst.msk [vmem:[#allocation2 + $0xa8] sm:$0xff] %vm473, %v1256
  %1321 = vst [vmem:[#allocation2 + $0xb0] sm:$0xff] %v1257
  %1322 = vst.msk [vmem:[#allocation2 + $0xb8] sm:$0xff] %vm473, %v1258
  %1323 = vst [vmem:[#allocation2 + $0xc0] sm:$0xff] %v1259
  %1324 = vst.msk [vmem:[#allocation2 + $0xc8] sm:$0xff] %vm473, %v1260
  %1325 = vst [vmem:[#allocation2 + $0xd0] sm:$0xff] %v1261
  %1326 = vst.msk [vmem:[#allocation2 + $0xd8] sm:$0xff] %vm473, %v1262
  %1327 = vst [vmem:[#allocation2 + $0xe0] sm:$0xff] %v1263
  %1328 = vst.msk [vmem:[#allocation2 + $0xe8] sm:$0xff] %vm473, %v1264
  %1329 = vst [vmem:[#allocation2 + $0xf0] sm:$0xff] %v1265
  %1330 = vst.msk [vmem:[#allocation2 + $0xf8] sm:$0xff] %vm473, %v1266
  %1331 = vst [vmem:[#allocation2 + $0x100] sm:$0xff] %v1267
  %1332 = vst.msk [vmem:[#allocation2 + $0x108] sm:$0xff] %vm473, %v1268
  %1333 = vst [vmem:[#allocation2 + $0x110] sm:$0xff] %v1269
  %1334 = vst.msk [vmem:[#allocation2 + $0x118] sm:$0xff] %vm473, %v1270
  %1335 = vst [vmem:[#allocation2 + $0x120] sm:$0xff] %v1271
  %1336 = vst.msk [vmem:[#allocation2 + $0x128] sm:$0xff] %vm473, %v1272
  %1337 = vst [vmem:[#allocation2 + $0x130] sm:$0xff] %v1273
  %1338 = vst.msk [vmem:[#allocation2 + $0x138] sm:$0xff] %vm473, %v1274
  %1339 = vst [vmem:[#allocation2 + $0x140] sm:$0xff] %v1275
  %1340 = vst.msk [vmem:[#allocation2 + $0x148] sm:$0xff] %vm473, %v1276
  %1341 = vst [vmem:[#allocation2 + $0x150] sm:$0xff] %v1277
  %1342 = vst.msk [vmem:[#allocation2 + $0x158] sm:$0xff] %vm473, %v1278
  %1343 = vst [vmem:[#allocation2 + $0x160] sm:$0xff] %v1279
  %1344 = vst.msk [vmem:[#allocation2 + $0x168] sm:$0xff] %vm473, %v1280
  %1345 = vst [vmem:[#allocation2 + $0x170] sm:$0xff] %v1281
  %1346 = vst.msk [vmem:[#allocation2 + $0x178] sm:$0xff] %vm473, %v1282
  %1347 = vst [vmem:[#allocation2 + $0x180] sm:$0xff] %v1283
  %1348 = vst.msk [vmem:[#allocation2 + $0x188] sm:$0xff] %vm473, %v1284
  %1349 = vst [vmem:[#allocation2 + $0x190] sm:$0xff] %v1285
  %1350 = vst.msk [vmem:[#allocation2 + $0x198] sm:$0xff] %vm473, %v1286
  %1351 = vst [vmem:[#allocation2 + $0x1a0] sm:$0xff] %v1287
  %1352 = vst.msk [vmem:[#allocation2 + $0x1a8] sm:$0xff] %vm473, %v1288
  %1353 = vst [vmem:[#allocation2 + $0x1b0] sm:$0xff] %v1289
  %1354 = vst.msk [vmem:[#allocation2 + $0x1b8] sm:$0xff] %vm473, %v1290
  %1355 = vst [vmem:[#allocation2 + $0x1c0] sm:$0xff] %v1291
  %1356 = vst.msk [vmem:[#allocation2 + $0x1c8] sm:$0xff] %vm473, %v1292
  %1357 = vst [vmem:[#allocation2 + $0x1d0] sm:$0xff] %v1293
  %1358 = vst.msk [vmem:[#allocation2 + $0x1d8] sm:$0xff] %vm473, %v1294
  %1359 = vst [vmem:[#allocation2 + $0x1e0] sm:$0xff] %v1295
  %1360 = vst.msk [vmem:[#allocation2 + $0x1e8] sm:$0xff] %vm473, %v1296
  %1361 = vst [vmem:[#allocation2 + $0x1f0] sm:$0x7f] %v1297
  %vm1362 = vcmask 325632
  %1363 = vst.msk [vmem:[#allocation2 + $0x1f8] sm:$0x7f] %vm1362, %v1298
  %v1364 = vld [vmem:[%s0] sm:$0xff]
  %v1365 = vld [vmem:[%s0 + $0x8] sm:$0xff]
  %v1366 = vld [vmem:[%s0 + $0x10] sm:$0xff]
  %v1367 = vld [vmem:[%s0 + $0x18] sm:$0xff]
  %v1368 = vld [vmem:[%s0 + $0x20] sm:$0xff]
  %v1369 = vld [vmem:[%s0 + $0x28] sm:$0xff]
  %v1370 = vld [vmem:[%s0 + $0x30] sm:$0xff]
  %v1371 = vld [vmem:[%s0 + $0x38] sm:$0xff]
  %v1372 = vld [vmem:[%s0 + $0x40] sm:$0xff]
  %v1373 = vld [vmem:[%s0 + $0x48] sm:$0xff]
  %v1374 = vld [vmem:[%s0 + $0x50] sm:$0xff]
  %v1375 = vld [vmem:[%s0 + $0x58] sm:$0xff]
  %v1376 = vld [vmem:[%s0 + $0x60] sm:$0xff]
  %v1377 = vld [vmem:[%s0 + $0x68] sm:$0xff]
  %v1378 = vld [vmem:[%s0 + $0x70] sm:$0xff]
  %v1379 = vld [vmem:[%s0 + $0x78] sm:$0xff]
  %v1380 = vld [vmem:[%s0 + $0x80] sm:$0xff]
  %v1381 = vld [vmem:[%s0 + $0x88] sm:$0xff]
  %v1382 = vld [vmem:[%s0 + $0x90] sm:$0xff]
  %v1383 = vld [vmem:[%s0 + $0x98] sm:$0xff]
  %v1384 = vld [vmem:[%s0 + $0xa0] sm:$0xff]
  %v1385 = vld [vmem:[%s0 + $0xa8] sm:$0xff]
  %v1386 = vld [vmem:[%s0 + $0xb0] sm:$0xff]
  %v1387 = vld [vmem:[%s0 + $0xb8] sm:$0xff]
  %v1388 = vld [vmem:[%s0 + $0xc0] sm:$0xff]
  %v1389 = vld [vmem:[%s0 + $0xc8] sm:$0xff]
  %v1390 = vld [vmem:[%s0 + $0xd0] sm:$0xff]
  %v1391 = vld [vmem:[%s0 + $0xd8] sm:$0xff]
  %v1392 = vld [vmem:[%s0 + $0xe0] sm:$0xff]
  %v1393 = vld [vmem:[%s0 + $0xe8] sm:$0xff]
  %v1394 = vld [vmem:[%s0 + $0xf0] sm:$0xff]
  %v1395 = vld [vmem:[%s0 + $0xf8] sm:$0xff]
  %s1396 = scalar_lea.vmem %s1, 384
  %v1397 = vld [vmem:[%s1396] sm:$0xff]
  %v1398 = vld [vmem:[%s1396 + $0x8] sm:$0xff]
  %v1399 = vld [vmem:[%s1396 + $0x10] sm:$0xff]
  %v1400 = vld [vmem:[%s1396 + $0x18] sm:$0xff]
  %v1401 = vld [vmem:[%s1396 + $0x20] sm:$0xff]
  %v1402 = vld [vmem:[%s1396 + $0x28] sm:$0xff]
  %v1403 = vld [vmem:[%s1396 + $0x30] sm:$0xff]
  %v1404 = vld [vmem:[%s1396 + $0x38] sm:$0xff]
  %v1405 = vld [vmem:[%s1396 + $0x40] sm:$0xff]
  %v1406 = vld [vmem:[%s1396 + $0x48] sm:$0xff]
  %v1407 = vld [vmem:[%s1396 + $0x50] sm:$0xff]
  %v1408 = vld [vmem:[%s1396 + $0x58] sm:$0xff]
  %v1409 = vld [vmem:[%s1396 + $0x60] sm:$0xff]
  %v1410 = vld [vmem:[%s1396 + $0x68] sm:$0xff]
  %v1411 = vld [vmem:[%s1396 + $0x70] sm:$0xff]
  %v1412 = vld [vmem:[%s1396 + $0x78] sm:$0xff]
  %v1413 = vld [vmem:[%s1396 + $0x80] sm:$0xff]
  %v1414 = vld [vmem:[%s1396 + $0x88] sm:$0xff]
  %v1415 = vld [vmem:[%s1396 + $0x90] sm:$0xff]
  %v1416 = vld [vmem:[%s1396 + $0x98] sm:$0xff]
  %v1417 = vld [vmem:[%s1396 + $0xa0] sm:$0xff]
  %v1418 = vld [vmem:[%s1396 + $0xa8] sm:$0xff]
  %v1419 = vld [vmem:[%s1396 + $0xb0] sm:$0xff]
  %v1420 = vld [vmem:[%s1396 + $0xb8] sm:$0xff]
  %v1422 = vsel %vm149, %v1364, 0
  %v1425 = vsel %vm149, %v1365, 0
  %v1428 = vsel %vm149, %v1366, 0
  %v1431 = vsel %vm149, %v1367, 0
  %v1434 = vsel %vm149, %v1368, 0
  %v1437 = vsel %vm149, %v1369, 0
  %v1440 = vsel %vm149, %v1370, 0
  %v1443 = vsel %vm149, %v1371, 0
  %v1446 = vsel %vm149, %v1372, 0
  %v1449 = vsel %vm149, %v1373, 0
  %v1452 = vsel %vm149, %v1374, 0
  %v1455 = vsel %vm149, %v1375, 0
  %v1458 = vsel %vm149, %v1376, 0
  %v1461 = vsel %vm149, %v1377, 0
  %v1464 = vsel %vm149, %v1378, 0
  %v1467 = vsel %vm149, %v1379, 0
  %v1470 = vsel %vm149, %v1380, 0
  %v1473 = vsel %vm149, %v1381, 0
  %v1476 = vsel %vm149, %v1382, 0
  %v1479 = vsel %vm149, %v1383, 0
  %v1482 = vsel %vm149, %v1384, 0
  %v1485 = vsel %vm149, %v1385, 0
  %v1488 = vsel %vm149, %v1386, 0
  %v1491 = vsel %vm149, %v1387, 0
  %v1494 = vsel %vm149, %v1388, 0
  %v1497 = vsel %vm149, %v1389, 0
  %v1500 = vsel %vm149, %v1390, 0
  %v1503 = vsel %vm149, %v1391, 0
  %v1506 = vsel %vm149, %v1392, 0
  %v1509 = vsel %vm149, %v1393, 0
  %v1512 = vsel %vm149, %v1394, 0
  %v1515 = vsel %vm149, %v1395, 0
  %1517 = vmatpush.msra.mxu0 0.0
  %1518 = vmatpush.msra.mxu0 0.0
  %1519 = vmatpush.msra.mxu0 0.0
  %1520 = vmatpush.msra.mxu0 0.0
  %1521 = vmatpush.msra.mxu0 %v1419
  %1522 = vmatpush.msra.mxu0 %v1417
  %1523 = vmatpush.msra.mxu0 %v1415
  %1524 = vmatpush.msra.mxu0 %v1413
  %1525 = vmatpush.msra.mxu0 %v1411
  %1526 = vmatpush.msra.mxu0 %v1409
  %1527 = vmatpush.msra.mxu0 %v1407
  %1528 = vmatpush.msra.mxu0 %v1405
  %1529 = vmatpush.msra.mxu0 %v1403
  %1530 = vmatpush.msra.mxu0 %v1401
  %1531 = vmatpush.msra.mxu0 %v1399
  %1532 = vmatpush.msra.mxu0 %v1397
  %1533 = vmatmul.f32.gmra.mxu0 %v1422
  %v1534 = vpop.f32.mrf.mxu0
  %v1535 = vadd.f32 0.0, %v1534
  %1536 = vmatmul.f32.gmra.mxu0 %v1425
  %v1537 = vpop.f32.mrf.mxu0
  %v1538 = vadd.f32 0.0, %v1537
  %1539 = vmatmul.f32.gmra.mxu0 %v1428
  %v1540 = vpop.f32.mrf.mxu0
  %v1541 = vadd.f32 0.0, %v1540
  %1542 = vmatmul.f32.gmra.mxu0 %v1431
  %v1543 = vpop.f32.mrf.mxu0
  %v1544 = vadd.f32 0.0, %v1543
  %1545 = vmatmul.f32.gmra.mxu0 %v1434
  %v1546 = vpop.f32.mrf.mxu0
  %v1547 = vadd.f32 0.0, %v1546
  %1548 = vmatmul.f32.gmra.mxu0 %v1437
  %v1549 = vpop.f32.mrf.mxu0
  %v1550 = vadd.f32 0.0, %v1549
  %1551 = vmatmul.f32.gmra.mxu0 %v1440
  %v1552 = vpop.f32.mrf.mxu0
  %v1553 = vadd.f32 0.0, %v1552
  %1554 = vmatmul.f32.gmra.mxu0 %v1443
  %v1555 = vpop.f32.mrf.mxu0
  %v1556 = vadd.f32 0.0, %v1555
  %1557 = vmatmul.f32.gmra.mxu0 %v1446
  %v1558 = vpop.f32.mrf.mxu0
  %v1559 = vadd.f32 0.0, %v1558
  %1560 = vmatmul.f32.gmra.mxu0 %v1449
  %v1561 = vpop.f32.mrf.mxu0
  %v1562 = vadd.f32 0.0, %v1561
  %1563 = vmatmul.f32.gmra.mxu0 %v1452
  %v1564 = vpop.f32.mrf.mxu0
  %v1565 = vadd.f32 0.0, %v1564
  %1566 = vmatmul.f32.gmra.mxu0 %v1455
  %v1567 = vpop.f32.mrf.mxu0
  %v1568 = vadd.f32 0.0, %v1567
  %1569 = vmatmul.f32.gmra.mxu0 %v1458
  %v1570 = vpop.f32.mrf.mxu0
  %v1571 = vadd.f32 0.0, %v1570
  %1572 = vmatmul.f32.gmra.mxu0 %v1461
  %v1573 = vpop.f32.mrf.mxu0
  %v1574 = vadd.f32 0.0, %v1573
  %1575 = vmatmul.f32.gmra.mxu0 %v1464
  %v1576 = vpop.f32.mrf.mxu0
  %v1577 = vadd.f32 0.0, %v1576
  %1578 = vmatmul.f32.gmra.mxu0 %v1467
  %v1579 = vpop.f32.mrf.mxu0
  %v1580 = vadd.f32 0.0, %v1579
  %1581 = vmatmul.f32.gmra.mxu0 %v1470
  %v1582 = vpop.f32.mrf.mxu0
  %v1583 = vadd.f32 0.0, %v1582
  %1584 = vmatmul.f32.gmra.mxu0 %v1473
  %v1585 = vpop.f32.mrf.mxu0
  %v1586 = vadd.f32 0.0, %v1585
  %1587 = vmatmul.f32.gmra.mxu0 %v1476
  %v1588 = vpop.f32.mrf.mxu0
  %v1589 = vadd.f32 0.0, %v1588
  %1590 = vmatmul.f32.gmra.mxu0 %v1479
  %v1591 = vpop.f32.mrf.mxu0
  %v1592 = vadd.f32 0.0, %v1591
  %1593 = vmatmul.f32.gmra.mxu0 %v1482
  %v1594 = vpop.f32.mrf.mxu0
  %v1595 = vadd.f32 0.0, %v1594
  %1596 = vmatmul.f32.gmra.mxu0 %v1485
  %v1597 = vpop.f32.mrf.mxu0
  %v1598 = vadd.f32 0.0, %v1597
  %1599 = vmatmul.f32.gmra.mxu0 %v1488
  %v1600 = vpop.f32.mrf.mxu0
  %v1601 = vadd.f32 0.0, %v1600
  %1602 = vmatmul.f32.gmra.mxu0 %v1491
  %v1603 = vpop.f32.mrf.mxu0
  %v1604 = vadd.f32 0.0, %v1603
  %1605 = vmatmul.f32.gmra.mxu0 %v1494
  %v1606 = vpop.f32.mrf.mxu0
  %v1607 = vadd.f32 0.0, %v1606
  %1608 = vmatmul.f32.gmra.mxu0 %v1497
  %v1609 = vpop.f32.mrf.mxu0
  %v1610 = vadd.f32 0.0, %v1609
  %1611 = vmatmul.f32.gmra.mxu0 %v1500
  %v1612 = vpop.f32.mrf.mxu0
  %v1613 = vadd.f32 0.0, %v1612
  %1614 = vmatmul.f32.gmra.mxu0 %v1503
  %v1615 = vpop.f32.mrf.mxu0
  %v1616 = vadd.f32 0.0, %v1615
  %1617 = vmatmul.f32.gmra.mxu0 %v1506
  %v1618 = vpop.f32.mrf.mxu0
  %v1619 = vadd.f32 0.0, %v1618
  %1620 = vmatmul.f32.gmra.mxu0 %v1509
  %v1621 = vpop.f32.mrf.mxu0
  %v1622 = vadd.f32 0.0, %v1621
  %1623 = vmatmul.f32.gmra.mxu0 %v1512
  %v1624 = vpop.f32.mrf.mxu0
  %v1625 = vadd.f32 0.0, %v1624
  %1626 = vmatmul.f32.gmra.mxu0 %v1515
  %v1627 = vpop.f32.mrf.mxu0
  %v1628 = vadd.f32 0.0, %v1627
  %1629 = vdwg.mxu0
  %1630 = vmatpush.msra.mxu0 0.0
  %1631 = vmatpush.msra.mxu0 0.0
  %1632 = vmatpush.msra.mxu0 0.0
  %1633 = vmatpush.msra.mxu0 0.0
  %1634 = vmatpush.msra.mxu0 %v1420
  %1635 = vmatpush.msra.mxu0 %v1418
  %1636 = vmatpush.msra.mxu0 %v1416
  %1637 = vmatpush.msra.mxu0 %v1414
  %1638 = vmatpush.msra.mxu0 %v1412
  %1639 = vmatpush.msra.mxu0 %v1410
  %1640 = vmatpush.msra.mxu0 %v1408
  %1641 = vmatpush.msra.mxu0 %v1406
  %1642 = vmatpush.msra.mxu0 %v1404
  %1643 = vmatpush.msra.mxu0 %v1402
  %1644 = vmatpush.msra.mxu0 %v1400
  %1645 = vmatpush.msra.mxu0 %v1398
  %1646 = vmatmul.f32.gmra.mxu0 %v1422
  %v1647 = vpop.f32.mrf.mxu0
  %v1648 = vadd.f32 0.0, %v1647
  %1649 = vmatmul.f32.gmra.mxu0 %v1425
  %v1650 = vpop.f32.mrf.mxu0
  %v1651 = vadd.f32 0.0, %v1650
  %1652 = vmatmul.f32.gmra.mxu0 %v1428
  %v1653 = vpop.f32.mrf.mxu0
  %v1654 = vadd.f32 0.0, %v1653
  %1655 = vmatmul.f32.gmra.mxu0 %v1431
  %v1656 = vpop.f32.mrf.mxu0
  %v1657 = vadd.f32 0.0, %v1656
  %1658 = vmatmul.f32.gmra.mxu0 %v1434
  %v1659 = vpop.f32.mrf.mxu0
  %v1660 = vadd.f32 0.0, %v1659
  %1661 = vmatmul.f32.gmra.mxu0 %v1437
  %v1662 = vpop.f32.mrf.mxu0
  %v1663 = vadd.f32 0.0, %v1662
  %1664 = vmatmul.f32.gmra.mxu0 %v1440
  %v1665 = vpop.f32.mrf.mxu0
  %v1666 = vadd.f32 0.0, %v1665
  %1667 = vmatmul.f32.gmra.mxu0 %v1443
  %v1668 = vpop.f32.mrf.mxu0
  %v1669 = vadd.f32 0.0, %v1668
  %1670 = vmatmul.f32.gmra.mxu0 %v1446
  %v1671 = vpop.f32.mrf.mxu0
  %v1672 = vadd.f32 0.0, %v1671
  %1673 = vmatmul.f32.gmra.mxu0 %v1449
  %v1674 = vpop.f32.mrf.mxu0
  %v1675 = vadd.f32 0.0, %v1674
  %1676 = vmatmul.f32.gmra.mxu0 %v1452
  %v1677 = vpop.f32.mrf.mxu0
  %v1678 = vadd.f32 0.0, %v1677
  %1679 = vmatmul.f32.gmra.mxu0 %v1455
  %v1680 = vpop.f32.mrf.mxu0
  %v1681 = vadd.f32 0.0, %v1680
  %1682 = vmatmul.f32.gmra.mxu0 %v1458
  %v1683 = vpop.f32.mrf.mxu0
  %v1684 = vadd.f32 0.0, %v1683
  %1685 = vmatmul.f32.gmra.mxu0 %v1461
  %v1686 = vpop.f32.mrf.mxu0
  %v1687 = vadd.f32 0.0, %v1686
  %1688 = vmatmul.f32.gmra.mxu0 %v1464
  %v1689 = vpop.f32.mrf.mxu0
  %v1690 = vadd.f32 0.0, %v1689
  %1691 = vmatmul.f32.gmra.mxu0 %v1467
  %v1692 = vpop.f32.mrf.mxu0
  %v1693 = vadd.f32 0.0, %v1692
  %1694 = vmatmul.f32.gmra.mxu0 %v1470
  %v1695 = vpop.f32.mrf.mxu0
  %v1696 = vadd.f32 0.0, %v1695
  %1697 = vmatmul.f32.gmra.mxu0 %v1473
  %v1698 = vpop.f32.mrf.mxu0
  %v1699 = vadd.f32 0.0, %v1698
  %1700 = vmatmul.f32.gmra.mxu0 %v1476
  %v1701 = vpop.f32.mrf.mxu0
  %v1702 = vadd.f32 0.0, %v1701
  %1703 = vmatmul.f32.gmra.mxu0 %v1479
  %v1704 = vpop.f32.mrf.mxu0
  %v1705 = vadd.f32 0.0, %v1704
  %1706 = vmatmul.f32.gmra.mxu0 %v1482
  %v1707 = vpop.f32.mrf.mxu0
  %v1708 = vadd.f32 0.0, %v1707
  %1709 = vmatmul.f32.gmra.mxu0 %v1485
  %v1710 = vpop.f32.mrf.mxu0
  %v1711 = vadd.f32 0.0, %v1710
  %1712 = vmatmul.f32.gmra.mxu0 %v1488
  %v1713 = vpop.f32.mrf.mxu0
  %v1714 = vadd.f32 0.0, %v1713
  %1715 = vmatmul.f32.gmra.mxu0 %v1491
  %v1716 = vpop.f32.mrf.mxu0
  %v1717 = vadd.f32 0.0, %v1716
  %1718 = vmatmul.f32.gmra.mxu0 %v1494
  %v1719 = vpop.f32.mrf.mxu0
  %v1720 = vadd.f32 0.0, %v1719
  %1721 = vmatmul.f32.gmra.mxu0 %v1497
  %v1722 = vpop.f32.mrf.mxu0
  %v1723 = vadd.f32 0.0, %v1722
  %1724 = vmatmul.f32.gmra.mxu0 %v1500
  %v1725 = vpop.f32.mrf.mxu0
  %v1726 = vadd.f32 0.0, %v1725
  %1727 = vmatmul.f32.gmra.mxu0 %v1503
  %v1728 = vpop.f32.mrf.mxu0
  %v1729 = vadd.f32 0.0, %v1728
  %1730 = vmatmul.f32.gmra.mxu0 %v1506
  %v1731 = vpop.f32.mrf.mxu0
  %v1732 = vadd.f32 0.0, %v1731
  %1733 = vmatmul.f32.gmra.mxu0 %v1509
  %v1734 = vpop.f32.mrf.mxu0
  %v1735 = vadd.f32 0.0, %v1734
  %1736 = vmatmul.f32.gmra.mxu0 %v1512
  %v1737 = vpop.f32.mrf.mxu0
  %v1738 = vadd.f32 0.0, %v1737
  %1739 = vmatmul.f32.gmra.mxu0 %v1515
  %v1740 = vpop.f32.mrf.mxu0
  %v1741 = vadd.f32 0.0, %v1740
  %1742 = vdwg.mxu0
  %v1743 = vld [vmem:[#allocation2] sm:$0xff]
  %v1744 = vld [vmem:[#allocation2 + $0x8] sm:$0xff]
  %v1745 = vld [vmem:[#allocation2 + $0x10] sm:$0xff]
  %v1746 = vld [vmem:[#allocation2 + $0x18] sm:$0xff]
  %v1747 = vld [vmem:[#allocation2 + $0x20] sm:$0xff]
  %v1748 = vld [vmem:[#allocation2 + $0x28] sm:$0xff]
  %v1749 = vld [vmem:[#allocation2 + $0x30] sm:$0xff]
  %v1750 = vld [vmem:[#allocation2 + $0x38] sm:$0xff]
  %v1751 = vld [vmem:[#allocation2 + $0x40] sm:$0xff]
  %v1752 = vld [vmem:[#allocation2 + $0x48] sm:$0xff]
  %v1753 = vld [vmem:[#allocation2 + $0x50] sm:$0xff]
  %v1754 = vld [vmem:[#allocation2 + $0x58] sm:$0xff]
  %v1755 = vld [vmem:[#allocation2 + $0x60] sm:$0xff]
  %v1756 = vld [vmem:[#allocation2 + $0x68] sm:$0xff]
  %v1757 = vld [vmem:[#allocation2 + $0x70] sm:$0xff]
  %v1758 = vld [vmem:[#allocation2 + $0x78] sm:$0xff]
  %v1759 = vld [vmem:[#allocation2 + $0x80] sm:$0xff]
  %v1760 = vld [vmem:[#allocation2 + $0x88] sm:$0xff]
  %v1761 = vld [vmem:[#allocation2 + $0x90] sm:$0xff]
  %v1762 = vld [vmem:[#allocation2 + $0x98] sm:$0xff]
  %v1763 = vld [vmem:[#allocation2 + $0xa0] sm:$0xff]
  %v1764 = vld [vmem:[#allocation2 + $0xa8] sm:$0xff]
  %v1765 = vld [vmem:[#allocation2 + $0xb0] sm:$0xff]
  %v1766 = vld [vmem:[#allocation2 + $0xb8] sm:$0xff]
  %v1767 = vld [vmem:[#allocation2 + $0xc0] sm:$0xff]
  %v1768 = vld [vmem:[#allocation2 + $0xc8] sm:$0xff]
  %v1769 = vld [vmem:[#allocation2 + $0xd0] sm:$0xff]
  %v1770 = vld [vmem:[#allocation2 + $0xd8] sm:$0xff]
  %v1771 = vld [vmem:[#allocation2 + $0xe0] sm:$0xff]
  %v1772 = vld [vmem:[#allocation2 + $0xe8] sm:$0xff]
  %v1773 = vld [vmem:[#allocation2 + $0xf0] sm:$0xff]
  %v1774 = vld [vmem:[#allocation2 + $0xf8] sm:$0xff]
  %v1775 = vld [vmem:[#allocation2 + $0x100] sm:$0xff]
  %v1776 = vld [vmem:[#allocation2 + $0x108] sm:$0xff]
  %v1777 = vld [vmem:[#allocation2 + $0x110] sm:$0xff]
  %v1778 = vld [vmem:[#allocation2 + $0x118] sm:$0xff]
  %v1779 = vld [vmem:[#allocation2 + $0x120] sm:$0xff]
  %v1780 = vld [vmem:[#allocation2 + $0x128] sm:$0xff]
  %v1781 = vld [vmem:[#allocation2 + $0x130] sm:$0xff]
  %v1782 = vld [vmem:[#allocation2 + $0x138] sm:$0xff]
  %v1783 = vld [vmem:[#allocation2 + $0x140] sm:$0xff]
  %v1784 = vld [vmem:[#allocation2 + $0x148] sm:$0xff]
  %v1785 = vld [vmem:[#allocation2 + $0x150] sm:$0xff]
  %v1786 = vld [vmem:[#allocation2 + $0x158] sm:$0xff]
  %v1787 = vld [vmem:[#allocation2 + $0x160] sm:$0xff]
  %v1788 = vld [vmem:[#allocation2 + $0x168] sm:$0xff]
  %v1789 = vld [vmem:[#allocation2 + $0x170] sm:$0xff]
  %v1790 = vld [vmem:[#allocation2 + $0x178] sm:$0xff]
  %v1791 = vld [vmem:[#allocation2 + $0x180] sm:$0xff]
  %v1792 = vld [vmem:[#allocation2 + $0x188] sm:$0xff]
  %v1793 = vld [vmem:[#allocation2 + $0x190] sm:$0xff]
  %v1794 = vld [vmem:[#allocation2 + $0x198] sm:$0xff]
  %v1795 = vld [vmem:[#allocation2 + $0x1a0] sm:$0xff]
  %v1796 = vld [vmem:[#allocation2 + $0x1a8] sm:$0xff]
  %v1797 = vld [vmem:[#allocation2 + $0x1b0] sm:$0xff]
  %v1798 = vld [vmem:[#allocation2 + $0x1b8] sm:$0xff]
  %v1799 = vld [vmem:[#allocation2 + $0x1c0] sm:$0xff]
  %v1800 = vld [vmem:[#allocation2 + $0x1c8] sm:$0xff]
  %v1801 = vld [vmem:[#allocation2 + $0x1d0] sm:$0xff]
  %v1802 = vld [vmem:[#allocation2 + $0x1d8] sm:$0xff]
  %v1803 = vld [vmem:[#allocation2 + $0x1e0] sm:$0xff]
  %v1804 = vld [vmem:[#allocation2 + $0x1e8] sm:$0xff]
  %v1805 = vld [vmem:[#allocation2 + $0x1f0] sm:$0x3f]
  %v1806 = vld [vmem:[#allocation2 + $0x1f8] sm:$0x3f]
  %vm1871 = vcmask 1045504
  %v1872 = vrot.slane %v1535, 2
  %v1873 = vrot.slane %v1538, 2
  %v1874 = vsel %vm1871, %v1872, %v1873
  %v1875 = vrot.slane %v1648, 2
  %v1876 = vrot.slane %v1651, 2
  %v1877 = vsel %vm1871, %v1875, %v1876
  %v1878 = vrot.slane %v1541, 2
  %v1879 = vsel %vm1871, %v1873, %v1878
  %v1880 = vrot.slane %v1654, 2
  %v1881 = vsel %vm1871, %v1876, %v1880
  %v1882 = vrot.slane %v1544, 2
  %v1883 = vsel %vm1871, %v1878, %v1882
  %v1884 = vrot.slane %v1657, 2
  %v1885 = vsel %vm1871, %v1880, %v1884
  %v1886 = vrot.slane %v1547, 2
  %v1887 = vsel %vm1871, %v1882, %v1886
  %v1888 = vrot.slane %v1660, 2
  %v1889 = vsel %vm1871, %v1884, %v1888
  %v1890 = vrot.slane %v1550, 2
  %v1891 = vsel %vm1871, %v1886, %v1890
  %v1892 = vrot.slane %v1663, 2
  %v1893 = vsel %vm1871, %v1888, %v1892
  %v1894 = vrot.slane %v1553, 2
  %v1895 = vsel %vm1871, %v1890, %v1894
  %v1896 = vrot.slane %v1666, 2
  %v1897 = vsel %vm1871, %v1892, %v1896
  %v1898 = vrot.slane %v1556, 2
  %v1899 = vsel %vm1871, %v1894, %v1898
  %v1900 = vrot.slane %v1669, 2
  %v1901 = vsel %vm1871, %v1896, %v1900
  %v1902 = vrot.slane %v1559, 2
  %v1903 = vsel %vm1871, %v1898, %v1902
  %v1904 = vrot.slane %v1672, 2
  %v1905 = vsel %vm1871, %v1900, %v1904
  %v1906 = vrot.slane %v1562, 2
  %v1907 = vsel %vm1871, %v1902, %v1906
  %v1908 = vrot.slane %v1675, 2
  %v1909 = vsel %vm1871, %v1904, %v1908
  %v1910 = vrot.slane %v1565, 2
  %v1911 = vsel %vm1871, %v1906, %v1910
  %v1912 = vrot.slane %v1678, 2
  %v1913 = vsel %vm1871, %v1908, %v1912
  %v1914 = vrot.slane %v1568, 2
  %v1915 = vsel %vm1871, %v1910, %v1914
  %v1916 = vrot.slane %v1681, 2
  %v1917 = vsel %vm1871, %v1912, %v1916
  %v1918 = vrot.slane %v1571, 2
  %v1919 = vsel %vm1871, %v1914, %v1918
  %v1920 = vrot.slane %v1684, 2
  %v1921 = vsel %vm1871, %v1916, %v1920
  %v1922 = vrot.slane %v1574, 2
  %v1923 = vsel %vm1871, %v1918, %v1922
  %v1924 = vrot.slane %v1687, 2
  %v1925 = vsel %vm1871, %v1920, %v1924
  %v1926 = vrot.slane %v1577, 2
  %v1927 = vsel %vm1871, %v1922, %v1926
  %v1928 = vrot.slane %v1690, 2
  %v1929 = vsel %vm1871, %v1924, %v1928
  %v1930 = vrot.slane %v1580, 2
  %v1931 = vsel %vm1871, %v1926, %v1930
  %v1932 = vrot.slane %v1693, 2
  %v1933 = vsel %vm1871, %v1928, %v1932
  %v1934 = vrot.slane %v1583, 2
  %v1935 = vsel %vm1871, %v1930, %v1934
  %v1936 = vrot.slane %v1696, 2
  %v1937 = vsel %vm1871, %v1932, %v1936
  %v1938 = vrot.slane %v1586, 2
  %v1939 = vsel %vm1871, %v1934, %v1938
  %v1940 = vrot.slane %v1699, 2
  %v1941 = vsel %vm1871, %v1936, %v1940
  %v1942 = vrot.slane %v1589, 2
  %v1943 = vsel %vm1871, %v1938, %v1942
  %v1944 = vrot.slane %v1702, 2
  %v1945 = vsel %vm1871, %v1940, %v1944
  %v1946 = vrot.slane %v1592, 2
  %v1947 = vsel %vm1871, %v1942, %v1946
  %v1948 = vrot.slane %v1705, 2
  %v1949 = vsel %vm1871, %v1944, %v1948
  %v1950 = vrot.slane %v1595, 2
  %v1951 = vsel %vm1871, %v1946, %v1950
  %v1952 = vrot.slane %v1708, 2
  %v1953 = vsel %vm1871, %v1948, %v1952
  %v1954 = vrot.slane %v1598, 2
  %v1955 = vsel %vm1871, %v1950, %v1954
  %v1956 = vrot.slane %v1711, 2
  %v1957 = vsel %vm1871, %v1952, %v1956
  %v1958 = vrot.slane %v1601, 2
  %v1959 = vsel %vm1871, %v1954, %v1958
  %v1960 = vrot.slane %v1714, 2
  %v1961 = vsel %vm1871, %v1956, %v1960
  %v1962 = vrot.slane %v1604, 2
  %v1963 = vsel %vm1871, %v1958, %v1962
  %v1964 = vrot.slane %v1717, 2
  %v1965 = vsel %vm1871, %v1960, %v1964
  %v1966 = vrot.slane %v1607, 2
  %v1967 = vsel %vm1871, %v1962, %v1966
  %v1968 = vrot.slane %v1720, 2
  %v1969 = vsel %vm1871, %v1964, %v1968
  %v1970 = vrot.slane %v1610, 2
  %v1971 = vsel %vm1871, %v1966, %v1970
  %v1972 = vrot.slane %v1723, 2
  %v1973 = vsel %vm1871, %v1968, %v1972
  %v1974 = vrot.slane %v1613, 2
  %v1975 = vsel %vm1871, %v1970, %v1974
  %v1976 = vrot.slane %v1726, 2
  %v1977 = vsel %vm1871, %v1972, %v1976
  %v1978 = vrot.slane %v1616, 2
  %v1979 = vsel %vm1871, %v1974, %v1978
  %v1980 = vrot.slane %v1729, 2
  %v1981 = vsel %vm1871, %v1976, %v1980
  %v1982 = vrot.slane %v1619, 2
  %v1983 = vsel %vm1871, %v1978, %v1982
  %v1984 = vrot.slane %v1732, 2
  %v1985 = vsel %vm1871, %v1980, %v1984
  %v1986 = vrot.slane %v1622, 2
  %v1987 = vsel %vm1871, %v1982, %v1986
  %v1988 = vrot.slane %v1735, 2
  %v1989 = vsel %vm1871, %v1984, %v1988
  %v1990 = vrot.slane %v1625, 2
  %v1991 = vsel %vm1871, %v1986, %v1990
  %v1992 = vrot.slane %v1738, 2
  %v1993 = vsel %vm1871, %v1988, %v1992
  %v1994 = vrot.slane %v1628, 2
  %v1995 = vsel %vm1871, %v1990, %v1994
  %v1996 = vrot.slane %v1741, 2
  %v1997 = vsel %vm1871, %v1992, %v1996
  %v2062 = vadd.f32 %v1743, %v1874
  %v2063 = vadd.f32 %v1744, %v1877
  %v2064 = vadd.f32 %v1745, %v1879
  %v2065 = vadd.f32 %v1746, %v1881
  %v2066 = vadd.f32 %v1747, %v1883
  %v2067 = vadd.f32 %v1748, %v1885
  %v2068 = vadd.f32 %v1749, %v1887
  %v2069 = vadd.f32 %v1750, %v1889
  %v2070 = vadd.f32 %v1751, %v1891
  %v2071 = vadd.f32 %v1752, %v1893
  %v2072 = vadd.f32 %v1753, %v1895
  %v2073 = vadd.f32 %v1754, %v1897
  %v2074 = vadd.f32 %v1755, %v1899
  %v2075 = vadd.f32 %v1756, %v1901
  %v2076 = vadd.f32 %v1757, %v1903
  %v2077 = vadd.f32 %v1758, %v1905
  %v2078 = vadd.f32 %v1759, %v1907
  %v2079 = vadd.f32 %v1760, %v1909
  %v2080 = vadd.f32 %v1761, %v1911
  %v2081 = vadd.f32 %v1762, %v1913
  %v2082 = vadd.f32 %v1763, %v1915
  %v2083 = vadd.f32 %v1764, %v1917
  %v2084 = vadd.f32 %v1765, %v1919
  %v2085 = vadd.f32 %v1766, %v1921
  %v2086 = vadd.f32 %v1767, %v1923
  %v2087 = vadd.f32 %v1768, %v1925
  %v2088 = vadd.f32 %v1769, %v1927
  %v2089 = vadd.f32 %v1770, %v1929
  %v2090 = vadd.f32 %v1771, %v1931
  %v2091 = vadd.f32 %v1772, %v1933
  %v2092 = vadd.f32 %v1773, %v1935
  %v2093 = vadd.f32 %v1774, %v1937
  %v2094 = vadd.f32 %v1775, %v1939
  %v2095 = vadd.f32 %v1776, %v1941
  %v2096 = vadd.f32 %v1777, %v1943
  %v2097 = vadd.f32 %v1778, %v1945
  %v2098 = vadd.f32 %v1779, %v1947
  %v2099 = vadd.f32 %v1780, %v1949
  %v2100 = vadd.f32 %v1781, %v1951
  %v2101 = vadd.f32 %v1782, %v1953
  %v2102 = vadd.f32 %v1783, %v1955
  %v2103 = vadd.f32 %v1784, %v1957
  %v2104 = vadd.f32 %v1785, %v1959
  %v2105 = vadd.f32 %v1786, %v1961
  %v2106 = vadd.f32 %v1787, %v1963
  %v2107 = vadd.f32 %v1788, %v1965
  %v2108 = vadd.f32 %v1789, %v1967
  %v2109 = vadd.f32 %v1790, %v1969
  %v2110 = vadd.f32 %v1791, %v1971
  %v2111 = vadd.f32 %v1792, %v1973
  %v2112 = vadd.f32 %v1793, %v1975
  %v2113 = vadd.f32 %v1794, %v1977
  %v2114 = vadd.f32 %v1795, %v1979
  %v2115 = vadd.f32 %v1796, %v1981
  %v2116 = vadd.f32 %v1797, %v1983
  %v2117 = vadd.f32 %v1798, %v1985
  %v2118 = vadd.f32 %v1799, %v1987
  %v2119 = vadd.f32 %v1800, %v1989
  %v2120 = vadd.f32 %v1801, %v1991
  %v2121 = vadd.f32 %v1802, %v1993
  %v2122 = vadd.f32 %v1803, %v1995
  %v2123 = vadd.f32 %v1804, %v1997
  %v2124 = vadd.f32 %v1805, %v1994
  %v2125 = vadd.f32 %v1806, %v1996
  %2126 = vst [vmem:[#allocation2] sm:$0xff] %v2062
  %2127 = vst.msk [vmem:[#allocation2 + $0x8] sm:$0xff] %vm473, %v2063
  %2128 = vst [vmem:[#allocation2 + $0x10] sm:$0xff] %v2064
  %2129 = vst.msk [vmem:[#allocation2 + $0x18] sm:$0xff] %vm473, %v2065
  %2130 = vst [vmem:[#allocation2 + $0x20] sm:$0xff] %v2066
  %2131 = vst.msk [vmem:[#allocation2 + $0x28] sm:$0xff] %vm473, %v2067
  %2132 = vst [vmem:[#allocation2 + $0x30] sm:$0xff] %v2068
  %2133 = vst.msk [vmem:[#allocation2 + $0x38] sm:$0xff] %vm473, %v2069
  %2134 = vst [vmem:[#allocation2 + $0x40] sm:$0xff] %v2070
  %2135 = vst.msk [vmem:[#allocation2 + $0x48] sm:$0xff] %vm473, %v2071
  %2136 = vst [vmem:[#allocation2 + $0x50] sm:$0xff] %v2072
  %2137 = vst.msk [vmem:[#allocation2 + $0x58] sm:$0xff] %vm473, %v2073
  %2138 = vst [vmem:[#allocation2 + $0x60] sm:$0xff] %v2074
  %2139 = vst.msk [vmem:[#allocation2 + $0x68] sm:$0xff] %vm473, %v2075
  %2140 = vst [vmem:[#allocation2 + $0x70] sm:$0xff] %v2076
  %2141 = vst.msk [vmem:[#allocation2 + $0x78] sm:$0xff] %vm473, %v2077
  %2142 = vst [vmem:[#allocation2 + $0x80] sm:$0xff] %v2078
  %2143 = vst.msk [vmem:[#allocation2 + $0x88] sm:$0xff] %vm473, %v2079
  %2144 = vst [vmem:[#allocation2 + $0x90] sm:$0xff] %v2080
  %2145 = vst.msk [vmem:[#allocation2 + $0x98] sm:$0xff] %vm473, %v2081
  %2146 = vst [vmem:[#allocation2 + $0xa0] sm:$0xff] %v2082
  %2147 = vst.msk [vmem:[#allocation2 + $0xa8] sm:$0xff] %vm473, %v2083
  %2148 = vst [vmem:[#allocation2 + $0xb0] sm:$0xff] %v2084
  %2149 = vst.msk [vmem:[#allocation2 + $0xb8] sm:$0xff] %vm473, %v2085
  %2150 = vst [vmem:[#allocation2 + $0xc0] sm:$0xff] %v2086
  %2151 = vst.msk [vmem:[#allocation2 + $0xc8] sm:$0xff] %vm473, %v2087
  %2152 = vst [vmem:[#allocation2 + $0xd0] sm:$0xff] %v2088
  %2153 = vst.msk [vmem:[#allocation2 + $0xd8] sm:$0xff] %vm473, %v2089
  %2154 = vst [vmem:[#allocation2 + $0xe0] sm:$0xff] %v2090
  %2155 = vst.msk [vmem:[#allocation2 + $0xe8] sm:$0xff] %vm473, %v2091
  %2156 = vst [vmem:[#allocation2 + $0xf0] sm:$0xff] %v2092
  %2157 = vst.msk [vmem:[#allocation2 + $0xf8] sm:$0xff] %vm473, %v2093
  %2158 = vst [vmem:[#allocation2 + $0x100] sm:$0xff] %v2094
  %2159 = vst.msk [vmem:[#allocation2 + $0x108] sm:$0xff] %vm473, %v2095
  %2160 = vst [vmem:[#allocation2 + $0x110] sm:$0xff] %v2096
  %2161 = vst.msk [vmem:[#allocation2 + $0x118] sm:$0xff] %vm473, %v2097
  %2162 = vst [vmem:[#allocation2 + $0x120] sm:$0xff] %v2098
  %2163 = vst.msk [vmem:[#allocation2 + $0x128] sm:$0xff] %vm473, %v2099
  %2164 = vst [vmem:[#allocation2 + $0x130] sm:$0xff] %v2100
  %2165 = vst.msk [vmem:[#allocation2 + $0x138] sm:$0xff] %vm473, %v2101
  %2166 = vst [vmem:[#allocation2 + $0x140] sm:$0xff] %v2102
  %2167 = vst.msk [vmem:[#allocation2 + $0x148] sm:$0xff] %vm473, %v2103
  %2168 = vst [vmem:[#allocation2 + $0x150] sm:$0xff] %v2104
  %2169 = vst.msk [vmem:[#allocation2 + $0x158] sm:$0xff] %vm473, %v2105
  %2170 = vst [vmem:[#allocation2 + $0x160] sm:$0xff] %v2106
  %2171 = vst.msk [vmem:[#allocation2 + $0x168] sm:$0xff] %vm473, %v2107
  %2172 = vst [vmem:[#allocation2 + $0x170] sm:$0xff] %v2108
  %2173 = vst.msk [vmem:[#allocation2 + $0x178] sm:$0xff] %vm473, %v2109
  %2174 = vst [vmem:[#allocation2 + $0x180] sm:$0xff] %v2110
  %2175 = vst.msk [vmem:[#allocation2 + $0x188] sm:$0xff] %vm473, %v2111
  %2176 = vst [vmem:[#allocation2 + $0x190] sm:$0xff] %v2112
  %2177 = vst.msk [vmem:[#allocation2 + $0x198] sm:$0xff] %vm473, %v2113
  %2178 = vst [vmem:[#allocation2 + $0x1a0] sm:$0xff] %v2114
  %2179 = vst.msk [vmem:[#allocation2 + $0x1a8] sm:$0xff] %vm473, %v2115
  %2180 = vst [vmem:[#allocation2 + $0x1b0] sm:$0xff] %v2116
  %2181 = vst.msk [vmem:[#allocation2 + $0x1b8] sm:$0xff] %vm473, %v2117
  %2182 = vst [vmem:[#allocation2 + $0x1c0] sm:$0xff] %v2118
  %2183 = vst.msk [vmem:[#allocation2 + $0x1c8] sm:$0xff] %vm473, %v2119
  %2184 = vst [vmem:[#allocation2 + $0x1d0] sm:$0xff] %v2120
  %2185 = vst.msk [vmem:[#allocation2 + $0x1d8] sm:$0xff] %vm473, %v2121
  %2186 = vst [vmem:[#allocation2 + $0x1e0] sm:$0xff] %v2122
  %2187 = vst.msk [vmem:[#allocation2 + $0x1e8] sm:$0xff] %vm473, %v2123
  %2188 = vst [vmem:[#allocation2 + $0x1f0] sm:$0x3f] %v2124
  %vm2189 = vcmask 324608
  %2190 = vst.msk [vmem:[#allocation2 + $0x1f8] sm:$0x3f] %vm2189, %v2125
  %v2191 = vld [vmem:[%s0] sm:$0xff]
  %v2192 = vld [vmem:[%s0 + $0x8] sm:$0xff]
  %v2193 = vld [vmem:[%s0 + $0x10] sm:$0xff]
  %v2194 = vld [vmem:[%s0 + $0x18] sm:$0xff]
  %v2195 = vld [vmem:[%s0 + $0x20] sm:$0xff]
  %v2196 = vld [vmem:[%s0 + $0x28] sm:$0xff]
  %v2197 = vld [vmem:[%s0 + $0x30] sm:$0xff]
  %v2198 = vld [vmem:[%s0 + $0x38] sm:$0xff]
  %v2199 = vld [vmem:[%s0 + $0x40] sm:$0xff]
  %v2200 = vld [vmem:[%s0 + $0x48] sm:$0xff]
  %v2201 = vld [vmem:[%s0 + $0x50] sm:$0xff]
  %v2202 = vld [vmem:[%s0 + $0x58] sm:$0xff]
  %v2203 = vld [vmem:[%s0 + $0x60] sm:$0xff]
  %v2204 = vld [vmem:[%s0 + $0x68] sm:$0xff]
  %v2205 = vld [vmem:[%s0 + $0x70] sm:$0xff]
  %v2206 = vld [vmem:[%s0 + $0x78] sm:$0xff]
  %v2207 = vld [vmem:[%s0 + $0x80] sm:$0xff]
  %v2208 = vld [vmem:[%s0 + $0x88] sm:$0xff]
  %v2209 = vld [vmem:[%s0 + $0x90] sm:$0xff]
  %v2210 = vld [vmem:[%s0 + $0x98] sm:$0xff]
  %v2211 = vld [vmem:[%s0 + $0xa0] sm:$0xff]
  %v2212 = vld [vmem:[%s0 + $0xa8] sm:$0xff]
  %v2213 = vld [vmem:[%s0 + $0xb0] sm:$0xff]
  %v2214 = vld [vmem:[%s0 + $0xb8] sm:$0xff]
  %v2215 = vld [vmem:[%s0 + $0xc0] sm:$0xff]
  %v2216 = vld [vmem:[%s0 + $0xc8] sm:$0xff]
  %v2217 = vld [vmem:[%s0 + $0xd0] sm:$0xff]
  %v2218 = vld [vmem:[%s0 + $0xd8] sm:$0xff]
  %v2219 = vld [vmem:[%s0 + $0xe0] sm:$0xff]
  %v2220 = vld [vmem:[%s0 + $0xe8] sm:$0xff]
  %v2221 = vld [vmem:[%s0 + $0xf0] sm:$0xff]
  %v2222 = vld [vmem:[%s0 + $0xf8] sm:$0xff]
  %s2223 = scalar_lea.vmem %s1, 576
  %v2224 = vld [vmem:[%s2223] sm:$0xff]
  %v2225 = vld [vmem:[%s2223 + $0x8] sm:$0xff]
  %v2226 = vld [vmem:[%s2223 + $0x10] sm:$0xff]
  %v2227 = vld [vmem:[%s2223 + $0x18] sm:$0xff]
  %v2228 = vld [vmem:[%s2223 + $0x20] sm:$0xff]
  %v2229 = vld [vmem:[%s2223 + $0x28] sm:$0xff]
  %v2230 = vld [vmem:[%s2223 + $0x30] sm:$0xff]
  %v2231 = vld [vmem:[%s2223 + $0x38] sm:$0xff]
  %v2232 = vld [vmem:[%s2223 + $0x40] sm:$0xff]
  %v2233 = vld [vmem:[%s2223 + $0x48] sm:$0xff]
  %v2234 = vld [vmem:[%s2223 + $0x50] sm:$0xff]
  %v2235 = vld [vmem:[%s2223 + $0x58] sm:$0xff]
  %v2236 = vld [vmem:[%s2223 + $0x60] sm:$0xff]
  %v2237 = vld [vmem:[%s2223 + $0x68] sm:$0xff]
  %v2238 = vld [vmem:[%s2223 + $0x70] sm:$0xff]
  %v2239 = vld [vmem:[%s2223 + $0x78] sm:$0xff]
  %v2240 = vld [vmem:[%s2223 + $0x80] sm:$0xff]
  %v2241 = vld [vmem:[%s2223 + $0x88] sm:$0xff]
  %v2242 = vld [vmem:[%s2223 + $0x90] sm:$0xff]
  %v2243 = vld [vmem:[%s2223 + $0x98] sm:$0xff]
  %v2244 = vld [vmem:[%s2223 + $0xa0] sm:$0xff]
  %v2245 = vld [vmem:[%s2223 + $0xa8] sm:$0xff]
  %v2246 = vld [vmem:[%s2223 + $0xb0] sm:$0xff]
  %v2247 = vld [vmem:[%s2223 + $0xb8] sm:$0xff]
  %v2249 = vsel %vm149, %v2191, 0
  %v2252 = vsel %vm149, %v2192, 0
  %v2255 = vsel %vm149, %v2193, 0
  %v2258 = vsel %vm149, %v2194, 0
  %v2261 = vsel %vm149, %v2195, 0
  %v2264 = vsel %vm149, %v2196, 0
  %v2267 = vsel %vm149, %v2197, 0
  %v2270 = vsel %vm149, %v2198, 0
  %v2273 = vsel %vm149, %v2199, 0
  %v2276 = vsel %vm149, %v2200, 0
  %v2279 = vsel %vm149, %v2201, 0
  %v2282 = vsel %vm149, %v2202, 0
  %v2285 = vsel %vm149, %v2203, 0
  %v2288 = vsel %vm149, %v2204, 0
  %v2291 = vsel %vm149, %v2205, 0
  %v2294 = vsel %vm149, %v2206, 0
  %v2297 = vsel %vm149, %v2207, 0
  %v2300 = vsel %vm149, %v2208, 0
  %v2303 = vsel %vm149, %v2209, 0
  %v2306 = vsel %vm149, %v2210, 0
  %v2309 = vsel %vm149, %v2211, 0
  %v2312 = vsel %vm149, %v2212, 0
  %v2315 = vsel %vm149, %v2213, 0
  %v2318 = vsel %vm149, %v2214, 0
  %v2321 = vsel %vm149, %v2215, 0
  %v2324 = vsel %vm149, %v2216, 0
  %v2327 = vsel %vm149, %v2217, 0
  %v2330 = vsel %vm149, %v2218, 0
  %v2333 = vsel %vm149, %v2219, 0
  %v2336 = vsel %vm149, %v2220, 0
  %v2339 = vsel %vm149, %v2221, 0
  %v2342 = vsel %vm149, %v2222, 0
  %2344 = vmatpush.msra.mxu0 0.0
  %2345 = vmatpush.msra.mxu0 0.0
  %2346 = vmatpush.msra.mxu0 0.0
  %2347 = vmatpush.msra.mxu0 0.0
  %2348 = vmatpush.msra.mxu0 %v2246
  %2349 = vmatpush.msra.mxu0 %v2244
  %2350 = vmatpush.msra.mxu0 %v2242
  %2351 = vmatpush.msra.mxu0 %v2240
  %2352 = vmatpush.msra.mxu0 %v2238
  %2353 = vmatpush.msra.mxu0 %v2236
  %2354 = vmatpush.msra.mxu0 %v2234
  %2355 = vmatpush.msra.mxu0 %v2232
  %2356 = vmatpush.msra.mxu0 %v2230
  %2357 = vmatpush.msra.mxu0 %v2228
  %2358 = vmatpush.msra.mxu0 %v2226
  %2359 = vmatpush.msra.mxu0 %v2224
  %2360 = vmatmul.f32.gmra.mxu0 %v2249
  %v2361 = vpop.f32.mrf.mxu0
  %v2362 = vadd.f32 0.0, %v2361
  %2363 = vmatmul.f32.gmra.mxu0 %v2252
  %v2364 = vpop.f32.mrf.mxu0
  %v2365 = vadd.f32 0.0, %v2364
  %2366 = vmatmul.f32.gmra.mxu0 %v2255
  %v2367 = vpop.f32.mrf.mxu0
  %v2368 = vadd.f32 0.0, %v2367
  %2369 = vmatmul.f32.gmra.mxu0 %v2258
  %v2370 = vpop.f32.mrf.mxu0
  %v2371 = vadd.f32 0.0, %v2370
  %2372 = vmatmul.f32.gmra.mxu0 %v2261
  %v2373 = vpop.f32.mrf.mxu0
  %v2374 = vadd.f32 0.0, %v2373
  %2375 = vmatmul.f32.gmra.mxu0 %v2264
  %v2376 = vpop.f32.mrf.mxu0
  %v2377 = vadd.f32 0.0, %v2376
  %2378 = vmatmul.f32.gmra.mxu0 %v2267
  %v2379 = vpop.f32.mrf.mxu0
  %v2380 = vadd.f32 0.0, %v2379
  %2381 = vmatmul.f32.gmra.mxu0 %v2270
  %v2382 = vpop.f32.mrf.mxu0
  %v2383 = vadd.f32 0.0, %v2382
  %2384 = vmatmul.f32.gmra.mxu0 %v2273
  %v2385 = vpop.f32.mrf.mxu0
  %v2386 = vadd.f32 0.0, %v2385
  %2387 = vmatmul.f32.gmra.mxu0 %v2276
  %v2388 = vpop.f32.mrf.mxu0
  %v2389 = vadd.f32 0.0, %v2388
  %2390 = vmatmul.f32.gmra.mxu0 %v2279
  %v2391 = vpop.f32.mrf.mxu0
  %v2392 = vadd.f32 0.0, %v2391
  %2393 = vmatmul.f32.gmra.mxu0 %v2282
  %v2394 = vpop.f32.mrf.mxu0
  %v2395 = vadd.f32 0.0, %v2394
  %2396 = vmatmul.f32.gmra.mxu0 %v2285
  %v2397 = vpop.f32.mrf.mxu0
  %v2398 = vadd.f32 0.0, %v2397
  %2399 = vmatmul.f32.gmra.mxu0 %v2288
  %v2400 = vpop.f32.mrf.mxu0
  %v2401 = vadd.f32 0.0, %v2400
  %2402 = vmatmul.f32.gmra.mxu0 %v2291
  %v2403 = vpop.f32.mrf.mxu0
  %v2404 = vadd.f32 0.0, %v2403
  %2405 = vmatmul.f32.gmra.mxu0 %v2294
  %v2406 = vpop.f32.mrf.mxu0
  %v2407 = vadd.f32 0.0, %v2406
  %2408 = vmatmul.f32.gmra.mxu0 %v2297
  %v2409 = vpop.f32.mrf.mxu0
  %v2410 = vadd.f32 0.0, %v2409
  %2411 = vmatmul.f32.gmra.mxu0 %v2300
  %v2412 = vpop.f32.mrf.mxu0
  %v2413 = vadd.f32 0.0, %v2412
  %2414 = vmatmul.f32.gmra.mxu0 %v2303
  %v2415 = vpop.f32.mrf.mxu0
  %v2416 = vadd.f32 0.0, %v2415
  %2417 = vmatmul.f32.gmra.mxu0 %v2306
  %v2418 = vpop.f32.mrf.mxu0
  %v2419 = vadd.f32 0.0, %v2418
  %2420 = vmatmul.f32.gmra.mxu0 %v2309
  %v2421 = vpop.f32.mrf.mxu0
  %v2422 = vadd.f32 0.0, %v2421
  %2423 = vmatmul.f32.gmra.mxu0 %v2312
  %v2424 = vpop.f32.mrf.mxu0
  %v2425 = vadd.f32 0.0, %v2424
  %2426 = vmatmul.f32.gmra.mxu0 %v2315
  %v2427 = vpop.f32.mrf.mxu0
  %v2428 = vadd.f32 0.0, %v2427
  %2429 = vmatmul.f32.gmra.mxu0 %v2318
  %v2430 = vpop.f32.mrf.mxu0
  %v2431 = vadd.f32 0.0, %v2430
  %2432 = vmatmul.f32.gmra.mxu0 %v2321
  %v2433 = vpop.f32.mrf.mxu0
  %v2434 = vadd.f32 0.0, %v2433
  %2435 = vmatmul.f32.gmra.mxu0 %v2324
  %v2436 = vpop.f32.mrf.mxu0
  %v2437 = vadd.f32 0.0, %v2436
  %2438 = vmatmul.f32.gmra.mxu0 %v2327
  %v2439 = vpop.f32.mrf.mxu0
  %v2440 = vadd.f32 0.0, %v2439
  %2441 = vmatmul.f32.gmra.mxu0 %v2330
  %v2442 = vpop.f32.mrf.mxu0
  %v2443 = vadd.f32 0.0, %v2442
  %2444 = vmatmul.f32.gmra.mxu0 %v2333
  %v2445 = vpop.f32.mrf.mxu0
  %v2446 = vadd.f32 0.0, %v2445
  %2447 = vmatmul.f32.gmra.mxu0 %v2336
  %v2448 = vpop.f32.mrf.mxu0
  %v2449 = vadd.f32 0.0, %v2448
  %2450 = vmatmul.f32.gmra.mxu0 %v2339
  %v2451 = vpop.f32.mrf.mxu0
  %v2452 = vadd.f32 0.0, %v2451
  %2453 = vmatmul.f32.gmra.mxu0 %v2342
  %v2454 = vpop.f32.mrf.mxu0
  %v2455 = vadd.f32 0.0, %v2454
  %2456 = vdwg.mxu0
  %2457 = vmatpush.msra.mxu0 0.0
  %2458 = vmatpush.msra.mxu0 0.0
  %2459 = vmatpush.msra.mxu0 0.0
  %2460 = vmatpush.msra.mxu0 0.0
  %2461 = vmatpush.msra.mxu0 %v2247
  %2462 = vmatpush.msra.mxu0 %v2245
  %2463 = vmatpush.msra.mxu0 %v2243
  %2464 = vmatpush.msra.mxu0 %v2241
  %2465 = vmatpush.msra.mxu0 %v2239
  %2466 = vmatpush.msra.mxu0 %v2237
  %2467 = vmatpush.msra.mxu0 %v2235
  %2468 = vmatpush.msra.mxu0 %v2233
  %2469 = vmatpush.msra.mxu0 %v2231
  %2470 = vmatpush.msra.mxu0 %v2229
  %2471 = vmatpush.msra.mxu0 %v2227
  %2472 = vmatpush.msra.mxu0 %v2225
  %2473 = vmatmul.f32.gmra.mxu0 %v2249
  %v2474 = vpop.f32.mrf.mxu0
  %v2475 = vadd.f32 0.0, %v2474
  %2476 = vmatmul.f32.gmra.mxu0 %v2252
  %v2477 = vpop.f32.mrf.mxu0
  %v2478 = vadd.f32 0.0, %v2477
  %2479 = vmatmul.f32.gmra.mxu0 %v2255
  %v2480 = vpop.f32.mrf.mxu0
  %v2481 = vadd.f32 0.0, %v2480
  %2482 = vmatmul.f32.gmra.mxu0 %v2258
  %v2483 = vpop.f32.mrf.mxu0
  %v2484 = vadd.f32 0.0, %v2483
  %2485 = vmatmul.f32.gmra.mxu0 %v2261
  %v2486 = vpop.f32.mrf.mxu0
  %v2487 = vadd.f32 0.0, %v2486
  %2488 = vmatmul.f32.gmra.mxu0 %v2264
  %v2489 = vpop.f32.mrf.mxu0
  %v2490 = vadd.f32 0.0, %v2489
  %2491 = vmatmul.f32.gmra.mxu0 %v2267
  %v2492 = vpop.f32.mrf.mxu0
  %v2493 = vadd.f32 0.0, %v2492
  %2494 = vmatmul.f32.gmra.mxu0 %v2270
  %v2495 = vpop.f32.mrf.mxu0
  %v2496 = vadd.f32 0.0, %v2495
  %2497 = vmatmul.f32.gmra.mxu0 %v2273
  %v2498 = vpop.f32.mrf.mxu0
  %v2499 = vadd.f32 0.0, %v2498
  %2500 = vmatmul.f32.gmra.mxu0 %v2276
  %v2501 = vpop.f32.mrf.mxu0
  %v2502 = vadd.f32 0.0, %v2501
  %2503 = vmatmul.f32.gmra.mxu0 %v2279
  %v2504 = vpop.f32.mrf.mxu0
  %v2505 = vadd.f32 0.0, %v2504
  %2506 = vmatmul.f32.gmra.mxu0 %v2282
  %v2507 = vpop.f32.mrf.mxu0
  %v2508 = vadd.f32 0.0, %v2507
  %2509 = vmatmul.f32.gmra.mxu0 %v2285
  %v2510 = vpop.f32.mrf.mxu0
  %v2511 = vadd.f32 0.0, %v2510
  %2512 = vmatmul.f32.gmra.mxu0 %v2288
  %v2513 = vpop.f32.mrf.mxu0
  %v2514 = vadd.f32 0.0, %v2513
  %2515 = vmatmul.f32.gmra.mxu0 %v2291
  %v2516 = vpop.f32.mrf.mxu0
  %v2517 = vadd.f32 0.0, %v2516
  %2518 = vmatmul.f32.gmra.mxu0 %v2294
  %v2519 = vpop.f32.mrf.mxu0
  %v2520 = vadd.f32 0.0, %v2519
  %2521 = vmatmul.f32.gmra.mxu0 %v2297
  %v2522 = vpop.f32.mrf.mxu0
  %v2523 = vadd.f32 0.0, %v2522
  %2524 = vmatmul.f32.gmra.mxu0 %v2300
  %v2525 = vpop.f32.mrf.mxu0
  %v2526 = vadd.f32 0.0, %v2525
  %2527 = vmatmul.f32.gmra.mxu0 %v2303
  %v2528 = vpop.f32.mrf.mxu0
  %v2529 = vadd.f32 0.0, %v2528
  %2530 = vmatmul.f32.gmra.mxu0 %v2306
  %v2531 = vpop.f32.mrf.mxu0
  %v2532 = vadd.f32 0.0, %v2531
  %2533 = vmatmul.f32.gmra.mxu0 %v2309
  %v2534 = vpop.f32.mrf.mxu0
  %v2535 = vadd.f32 0.0, %v2534
  %2536 = vmatmul.f32.gmra.mxu0 %v2312
  %v2537 = vpop.f32.mrf.mxu0
  %v2538 = vadd.f32 0.0, %v2537
  %2539 = vmatmul.f32.gmra.mxu0 %v2315
  %v2540 = vpop.f32.mrf.mxu0
  %v2541 = vadd.f32 0.0, %v2540
  %2542 = vmatmul.f32.gmra.mxu0 %v2318
  %v2543 = vpop.f32.mrf.mxu0
  %v2544 = vadd.f32 0.0, %v2543
  %2545 = vmatmul.f32.gmra.mxu0 %v2321
  %v2546 = vpop.f32.mrf.mxu0
  %v2547 = vadd.f32 0.0, %v2546
  %2548 = vmatmul.f32.gmra.mxu0 %v2324
  %v2549 = vpop.f32.mrf.mxu0
  %v2550 = vadd.f32 0.0, %v2549
  %2551 = vmatmul.f32.gmra.mxu0 %v2327
  %v2552 = vpop.f32.mrf.mxu0
  %v2553 = vadd.f32 0.0, %v2552
  %2554 = vmatmul.f32.gmra.mxu0 %v2330
  %v2555 = vpop.f32.mrf.mxu0
  %v2556 = vadd.f32 0.0, %v2555
  %2557 = vmatmul.f32.gmra.mxu0 %v2333
  %v2558 = vpop.f32.mrf.mxu0
  %v2559 = vadd.f32 0.0, %v2558
  %2560 = vmatmul.f32.gmra.mxu0 %v2336
  %v2561 = vpop.f32.mrf.mxu0
  %v2562 = vadd.f32 0.0, %v2561
  %2563 = vmatmul.f32.gmra.mxu0 %v2339
  %v2564 = vpop.f32.mrf.mxu0
  %v2565 = vadd.f32 0.0, %v2564
  %2566 = vmatmul.f32.gmra.mxu0 %v2342
  %v2567 = vpop.f32.mrf.mxu0
  %v2568 = vadd.f32 0.0, %v2567
  %2569 = vdwg.mxu0
  %v2570 = vld [vmem:[#allocation2] sm:$0xff]
  %v2571 = vld [vmem:[#allocation2 + $0x8] sm:$0xff]
  %v2572 = vld [vmem:[#allocation2 + $0x10] sm:$0xff]
  %v2573 = vld [vmem:[#allocation2 + $0x18] sm:$0xff]
  %v2574 = vld [vmem:[#allocation2 + $0x20] sm:$0xff]
  %v2575 = vld [vmem:[#allocation2 + $0x28] sm:$0xff]
  %v2576 = vld [vmem:[#allocation2 + $0x30] sm:$0xff]
  %v2577 = vld [vmem:[#allocation2 + $0x38] sm:$0xff]
  %v2578 = vld [vmem:[#allocation2 + $0x40] sm:$0xff]
  %v2579 = vld [vmem:[#allocation2 + $0x48] sm:$0xff]
  %v2580 = vld [vmem:[#allocation2 + $0x50] sm:$0xff]
  %v2581 = vld [vmem:[#allocation2 + $0x58] sm:$0xff]
  %v2582 = vld [vmem:[#allocation2 + $0x60] sm:$0xff]
  %v2583 = vld [vmem:[#allocation2 + $0x68] sm:$0xff]
  %v2584 = vld [vmem:[#allocation2 + $0x70] sm:$0xff]
  %v2585 = vld [vmem:[#allocation2 + $0x78] sm:$0xff]
  %v2586 = vld [vmem:[#allocation2 + $0x80] sm:$0xff]
  %v2587 = vld [vmem:[#allocation2 + $0x88] sm:$0xff]
  %v2588 = vld [vmem:[#allocation2 + $0x90] sm:$0xff]
  %v2589 = vld [vmem:[#allocation2 + $0x98] sm:$0xff]
  %v2590 = vld [vmem:[#allocation2 + $0xa0] sm:$0xff]
  %v2591 = vld [vmem:[#allocation2 + $0xa8] sm:$0xff]
  %v2592 = vld [vmem:[#allocation2 + $0xb0] sm:$0xff]
  %v2593 = vld [vmem:[#allocation2 + $0xb8] sm:$0xff]
  %v2594 = vld [vmem:[#allocation2 + $0xc0] sm:$0xff]
  %v2595 = vld [vmem:[#allocation2 + $0xc8] sm:$0xff]
  %v2596 = vld [vmem:[#allocation2 + $0xd0] sm:$0xff]
  %v2597 = vld [vmem:[#allocation2 + $0xd8] sm:$0xff]
  %v2598 = vld [vmem:[#allocation2 + $0xe0] sm:$0xff]
  %v2599 = vld [vmem:[#allocation2 + $0xe8] sm:$0xff]
  %v2600 = vld [vmem:[#allocation2 + $0xf0] sm:$0xff]
  %v2601 = vld [vmem:[#allocation2 + $0xf8] sm:$0xff]
  %v2602 = vld [vmem:[#allocation2 + $0x100] sm:$0xff]
  %v2603 = vld [vmem:[#allocation2 + $0x108] sm:$0xff]
  %v2604 = vld [vmem:[#allocation2 + $0x110] sm:$0xff]
  %v2605 = vld [vmem:[#allocation2 + $0x118] sm:$0xff]
  %v2606 = vld [vmem:[#allocation2 + $0x120] sm:$0xff]
  %v2607 = vld [vmem:[#allocation2 + $0x128] sm:$0xff]
  %v2608 = vld [vmem:[#allocation2 + $0x130] sm:$0xff]
  %v2609 = vld [vmem:[#allocation2 + $0x138] sm:$0xff]
  %v2610 = vld [vmem:[#allocation2 + $0x140] sm:$0xff]
  %v2611 = vld [vmem:[#allocation2 + $0x148] sm:$0xff]
  %v2612 = vld [vmem:[#allocation2 + $0x150] sm:$0xff]
  %v2613 = vld [vmem:[#allocation2 + $0x158] sm:$0xff]
  %v2614 = vld [vmem:[#allocation2 + $0x160] sm:$0xff]
  %v2615 = vld [vmem:[#allocation2 + $0x168] sm:$0xff]
  %v2616 = vld [vmem:[#allocation2 + $0x170] sm:$0xff]
  %v2617 = vld [vmem:[#allocation2 + $0x178] sm:$0xff]
  %v2618 = vld [vmem:[#allocation2 + $0x180] sm:$0xff]
  %v2619 = vld [vmem:[#allocation2 + $0x188] sm:$0xff]
  %v2620 = vld [vmem:[#allocation2 + $0x190] sm:$0xff]
  %v2621 = vld [vmem:[#allocation2 + $0x198] sm:$0xff]
  %v2622 = vld [vmem:[#allocation2 + $0x1a0] sm:$0xff]
  %v2623 = vld [vmem:[#allocation2 + $0x1a8] sm:$0xff]
  %v2624 = vld [vmem:[#allocation2 + $0x1b0] sm:$0xff]
  %v2625 = vld [vmem:[#allocation2 + $0x1b8] sm:$0xff]
  %v2626 = vld [vmem:[#allocation2 + $0x1c0] sm:$0xff]
  %v2627 = vld [vmem:[#allocation2 + $0x1c8] sm:$0xff]
  %v2628 = vld [vmem:[#allocation2 + $0x1d0] sm:$0xff]
  %v2629 = vld [vmem:[#allocation2 + $0x1d8] sm:$0xff]
  %v2630 = vld [vmem:[#allocation2 + $0x1e0] sm:$0xff]
  %v2631 = vld [vmem:[#allocation2 + $0x1e8] sm:$0xff]
  %v2632 = vld [vmem:[#allocation2 + $0x1f0] sm:$0x1f]
  %v2633 = vld [vmem:[#allocation2 + $0x1f8] sm:$0x1f]
  %vm2698 = vcmask 1044480
  %v2699 = vrot.slane %v2362, 3
  %v2700 = vrot.slane %v2365, 3
  %v2701 = vsel %vm2698, %v2699, %v2700
  %v2702 = vrot.slane %v2475, 3
  %v2703 = vrot.slane %v2478, 3
  %v2704 = vsel %vm2698, %v2702, %v2703
  %v2705 = vrot.slane %v2368, 3
  %v2706 = vsel %vm2698, %v2700, %v2705
  %v2707 = vrot.slane %v2481, 3
  %v2708 = vsel %vm2698, %v2703, %v2707
  %v2709 = vrot.slane %v2371, 3
  %v2710 = vsel %vm2698, %v2705, %v2709
  %v2711 = vrot.slane %v2484, 3
  %v2712 = vsel %vm2698, %v2707, %v2711
  %v2713 = vrot.slane %v2374, 3
  %v2714 = vsel %vm2698, %v2709, %v2713
  %v2715 = vrot.slane %v2487, 3
  %v2716 = vsel %vm2698, %v2711, %v2715
  %v2717 = vrot.slane %v2377, 3
  %v2718 = vsel %vm2698, %v2713, %v2717
  %v2719 = vrot.slane %v2490, 3
  %v2720 = vsel %vm2698, %v2715, %v2719
  %v2721 = vrot.slane %v2380, 3
  %v2722 = vsel %vm2698, %v2717, %v2721
  %v2723 = vrot.slane %v2493, 3
  %v2724 = vsel %vm2698, %v2719, %v2723
  %v2725 = vrot.slane %v2383, 3
  %v2726 = vsel %vm2698, %v2721, %v2725
  %v2727 = vrot.slane %v2496, 3
  %v2728 = vsel %vm2698, %v2723, %v2727
  %v2729 = vrot.slane %v2386, 3
  %v2730 = vsel %vm2698, %v2725, %v2729
  %v2731 = vrot.slane %v2499, 3
  %v2732 = vsel %vm2698, %v2727, %v2731
  %v2733 = vrot.slane %v2389, 3
  %v2734 = vsel %vm2698, %v2729, %v2733
  %v2735 = vrot.slane %v2502, 3
  %v2736 = vsel %vm2698, %v2731, %v2735
  %v2737 = vrot.slane %v2392, 3
  %v2738 = vsel %vm2698, %v2733, %v2737
  %v2739 = vrot.slane %v2505, 3
  %v2740 = vsel %vm2698, %v2735, %v2739
  %v2741 = vrot.slane %v2395, 3
  %v2742 = vsel %vm2698, %v2737, %v2741
  %v2743 = vrot.slane %v2508, 3
  %v2744 = vsel %vm2698, %v2739, %v2743
  %v2745 = vrot.slane %v2398, 3
  %v2746 = vsel %vm2698, %v2741, %v2745
  %v2747 = vrot.slane %v2511, 3
  %v2748 = vsel %vm2698, %v2743, %v2747
  %v2749 = vrot.slane %v2401, 3
  %v2750 = vsel %vm2698, %v2745, %v2749
  %v2751 = vrot.slane %v2514, 3
  %v2752 = vsel %vm2698, %v2747, %v2751
  %v2753 = vrot.slane %v2404, 3
  %v2754 = vsel %vm2698, %v2749, %v2753
  %v2755 = vrot.slane %v2517, 3
  %v2756 = vsel %vm2698, %v2751, %v2755
  %v2757 = vrot.slane %v2407, 3
  %v2758 = vsel %vm2698, %v2753, %v2757
  %v2759 = vrot.slane %v2520, 3
  %v2760 = vsel %vm2698, %v2755, %v2759
  %v2761 = vrot.slane %v2410, 3
  %v2762 = vsel %vm2698, %v2757, %v2761
  %v2763 = vrot.slane %v2523, 3
  %v2764 = vsel %vm2698, %v2759, %v2763
  %v2765 = vrot.slane %v2413, 3
  %v2766 = vsel %vm2698, %v2761, %v2765
  %v2767 = vrot.slane %v2526, 3
  %v2768 = vsel %vm2698, %v2763, %v2767
  %v2769 = vrot.slane %v2416, 3
  %v2770 = vsel %vm2698, %v2765, %v2769
  %v2771 = vrot.slane %v2529, 3
  %v2772 = vsel %vm2698, %v2767, %v2771
  %v2773 = vrot.slane %v2419, 3
  %v2774 = vsel %vm2698, %v2769, %v2773
  %v2775 = vrot.slane %v2532, 3
  %v2776 = vsel %vm2698, %v2771, %v2775
  %v2777 = vrot.slane %v2422, 3
  %v2778 = vsel %vm2698, %v2773, %v2777
  %v2779 = vrot.slane %v2535, 3
  %v2780 = vsel %vm2698, %v2775, %v2779
  %v2781 = vrot.slane %v2425, 3
  %v2782 = vsel %vm2698, %v2777, %v2781
  %v2783 = vrot.slane %v2538, 3
  %v2784 = vsel %vm2698, %v2779, %v2783
  %v2785 = vrot.slane %v2428, 3
  %v2786 = vsel %vm2698, %v2781, %v2785
  %v2787 = vrot.slane %v2541, 3
  %v2788 = vsel %vm2698, %v2783, %v2787
  %v2789 = vrot.slane %v2431, 3
  %v2790 = vsel %vm2698, %v2785, %v2789
  %v2791 = vrot.slane %v2544, 3
  %v2792 = vsel %vm2698, %v2787, %v2791
  %v2793 = vrot.slane %v2434, 3
  %v2794 = vsel %vm2698, %v2789, %v2793
  %v2795 = vrot.slane %v2547, 3
  %v2796 = vsel %vm2698, %v2791, %v2795
  %v2797 = vrot.slane %v2437, 3
  %v2798 = vsel %vm2698, %v2793, %v2797
  %v2799 = vrot.slane %v2550, 3
  %v2800 = vsel %vm2698, %v2795, %v2799
  %v2801 = vrot.slane %v2440, 3
  %v2802 = vsel %vm2698, %v2797, %v2801
  %v2803 = vrot.slane %v2553, 3
  %v2804 = vsel %vm2698, %v2799, %v2803
  %v2805 = vrot.slane %v2443, 3
  %v2806 = vsel %vm2698, %v2801, %v2805
  %v2807 = vrot.slane %v2556, 3
  %v2808 = vsel %vm2698, %v2803, %v2807
  %v2809 = vrot.slane %v2446, 3
  %v2810 = vsel %vm2698, %v2805, %v2809
  %v2811 = vrot.slane %v2559, 3
  %v2812 = vsel %vm2698, %v2807, %v2811
  %v2813 = vrot.slane %v2449, 3
  %v2814 = vsel %vm2698, %v2809, %v2813
  %v2815 = vrot.slane %v2562, 3
  %v2816 = vsel %vm2698, %v2811, %v2815
  %v2817 = vrot.slane %v2452, 3
  %v2818 = vsel %vm2698, %v2813, %v2817
  %v2819 = vrot.slane %v2565, 3
  %v2820 = vsel %vm2698, %v2815, %v2819
  %v2821 = vrot.slane %v2455, 3
  %v2822 = vsel %vm2698, %v2817, %v2821
  %v2823 = vrot.slane %v2568, 3
  %v2824 = vsel %vm2698, %v2819, %v2823
  %v2889 = vadd.f32 %v2570, %v2701
  %v2890 = vadd.f32 %v2571, %v2704
  %v2891 = vadd.f32 %v2572, %v2706
  %v2892 = vadd.f32 %v2573, %v2708
  %v2893 = vadd.f32 %v2574, %v2710
  %v2894 = vadd.f32 %v2575, %v2712
  %v2895 = vadd.f32 %v2576, %v2714
  %v2896 = vadd.f32 %v2577, %v2716
  %v2897 = vadd.f32 %v2578, %v2718
  %v2898 = vadd.f32 %v2579, %v2720
  %v2899 = vadd.f32 %v2580, %v2722
  %v2900 = vadd.f32 %v2581, %v2724
  %v2901 = vadd.f32 %v2582, %v2726
  %v2902 = vadd.f32 %v2583, %v2728
  %v2903 = vadd.f32 %v2584, %v2730
  %v2904 = vadd.f32 %v2585, %v2732
  %v2905 = vadd.f32 %v2586, %v2734
  %v2906 = vadd.f32 %v2587, %v2736
  %v2907 = vadd.f32 %v2588, %v2738
  %v2908 = vadd.f32 %v2589, %v2740
  %v2909 = vadd.f32 %v2590, %v2742
  %v2910 = vadd.f32 %v2591, %v2744
  %v2911 = vadd.f32 %v2592, %v2746
  %v2912 = vadd.f32 %v2593, %v2748
  %v2913 = vadd.f32 %v2594, %v2750
  %v2914 = vadd.f32 %v2595, %v2752
  %v2915 = vadd.f32 %v2596, %v2754
  %v2916 = vadd.f32 %v2597, %v2756
  %v2917 = vadd.f32 %v2598, %v2758
  %v2918 = vadd.f32 %v2599, %v2760
  %v2919 = vadd.f32 %v2600, %v2762
  %v2920 = vadd.f32 %v2601, %v2764
  %v2921 = vadd.f32 %v2602, %v2766
  %v2922 = vadd.f32 %v2603, %v2768
  %v2923 = vadd.f32 %v2604, %v2770
  %v2924 = vadd.f32 %v2605, %v2772
  %v2925 = vadd.f32 %v2606, %v2774
  %v2926 = vadd.f32 %v2607, %v2776
  %v2927 = vadd.f32 %v2608, %v2778
  %v2928 = vadd.f32 %v2609, %v2780
  %v2929 = vadd.f32 %v2610, %v2782
  %v2930 = vadd.f32 %v2611, %v2784
  %v2931 = vadd.f32 %v2612, %v2786
  %v2932 = vadd.f32 %v2613, %v2788
  %v2933 = vadd.f32 %v2614, %v2790
  %v2934 = vadd.f32 %v2615, %v2792
  %v2935 = vadd.f32 %v2616, %v2794
  %v2936 = vadd.f32 %v2617, %v2796
  %v2937 = vadd.f32 %v2618, %v2798
  %v2938 = vadd.f32 %v2619, %v2800
  %v2939 = vadd.f32 %v2620, %v2802
  %v2940 = vadd.f32 %v2621, %v2804
  %v2941 = vadd.f32 %v2622, %v2806
  %v2942 = vadd.f32 %v2623, %v2808
  %v2943 = vadd.f32 %v2624, %v2810
  %v2944 = vadd.f32 %v2625, %v2812
  %v2945 = vadd.f32 %v2626, %v2814
  %v2946 = vadd.f32 %v2627, %v2816
  %v2947 = vadd.f32 %v2628, %v2818
  %v2948 = vadd.f32 %v2629, %v2820
  %v2949 = vadd.f32 %v2630, %v2822
  %v2950 = vadd.f32 %v2631, %v2824
  %v2951 = vadd.f32 %v2632, %v2821
  %v2952 = vadd.f32 %v2633, %v2823
  %2953 = vst [vmem:[#allocation2] sm:$0xff] %v2889
  %2954 = vst.msk [vmem:[#allocation2 + $0x8] sm:$0xff] %vm473, %v2890
  %2955 = vst [vmem:[#allocation2 + $0x10] sm:$0xff] %v2891
  %2956 = vst.msk [vmem:[#allocation2 + $0x18] sm:$0xff] %vm473, %v2892
  %2957 = vst [vmem:[#allocation2 + $0x20] sm:$0xff] %v2893
  %2958 = vst.msk [vmem:[#allocation2 + $0x28] sm:$0xff] %vm473, %v2894
  %2959 = vst [vmem:[#allocation2 + $0x30] sm:$0xff] %v2895
  %2960 = vst.msk [vmem:[#allocation2 + $0x38] sm:$0xff] %vm473, %v2896
  %2961 = vst [vmem:[#allocation2 + $0x40] sm:$0xff] %v2897
  %2962 = vst.msk [vmem:[#allocation2 + $0x48] sm:$0xff] %vm473, %v2898
  %2963 = vst [vmem:[#allocation2 + $0x50] sm:$0xff] %v2899
  %2964 = vst.msk [vmem:[#allocation2 + $0x58] sm:$0xff] %vm473, %v2900
  %2965 = vst [vmem:[#allocation2 + $0x60] sm:$0xff] %v2901
  %2966 = vst.msk [vmem:[#allocation2 + $0x68] sm:$0xff] %vm473, %v2902
  %2967 = vst [vmem:[#allocation2 + $0x70] sm:$0xff] %v2903
  %2968 = vst.msk [vmem:[#allocation2 + $0x78] sm:$0xff] %vm473, %v2904
  %2969 = vst [vmem:[#allocation2 + $0x80] sm:$0xff] %v2905
  %2970 = vst.msk [vmem:[#allocation2 + $0x88] sm:$0xff] %vm473, %v2906
  %2971 = vst [vmem:[#allocation2 + $0x90] sm:$0xff] %v2907
  %2972 = vst.msk [vmem:[#allocation2 + $0x98] sm:$0xff] %vm473, %v2908
  %2973 = vst [vmem:[#allocation2 + $0xa0] sm:$0xff] %v2909
  %2974 = vst.msk [vmem:[#allocation2 + $0xa8] sm:$0xff] %vm473, %v2910
  %2975 = vst [vmem:[#allocation2 + $0xb0] sm:$0xff] %v2911
  %2976 = vst.msk [vmem:[#allocation2 + $0xb8] sm:$0xff] %vm473, %v2912
  %2977 = vst [vmem:[#allocation2 + $0xc0] sm:$0xff] %v2913
  %2978 = vst.msk [vmem:[#allocation2 + $0xc8] sm:$0xff] %vm473, %v2914
  %2979 = vst [vmem:[#allocation2 + $0xd0] sm:$0xff] %v2915
  %2980 = vst.msk [vmem:[#allocation2 + $0xd8] sm:$0xff] %vm473, %v2916
  %2981 = vst [vmem:[#allocation2 + $0xe0] sm:$0xff] %v2917
  %2982 = vst.msk [vmem:[#allocation2 + $0xe8] sm:$0xff] %vm473, %v2918
  %2983 = vst [vmem:[#allocation2 + $0xf0] sm:$0xff] %v2919
  %2984 = vst.msk [vmem:[#allocation2 + $0xf8] sm:$0xff] %vm473, %v2920
  %2985 = vst [vmem:[#allocation2 + $0x100] sm:$0xff] %v2921
  %2986 = vst.msk [vmem:[#allocation2 + $0x108] sm:$0xff] %vm473, %v2922
  %2987 = vst [vmem:[#allocation2 + $0x110] sm:$0xff] %v2923
  %2988 = vst.msk [vmem:[#allocation2 + $0x118] sm:$0xff] %vm473, %v2924
  %2989 = vst [vmem:[#allocation2 + $0x120] sm:$0xff] %v2925
  %2990 = vst.msk [vmem:[#allocation2 + $0x128] sm:$0xff] %vm473, %v2926
  %2991 = vst [vmem:[#allocation2 + $0x130] sm:$0xff] %v2927
  %2992 = vst.msk [vmem:[#allocation2 + $0x138] sm:$0xff] %vm473, %v2928
  %2993 = vst [vmem:[#allocation2 + $0x140] sm:$0xff] %v2929
  %2994 = vst.msk [vmem:[#allocation2 + $0x148] sm:$0xff] %vm473, %v2930
  %2995 = vst [vmem:[#allocation2 + $0x150] sm:$0xff] %v2931
  %2996 = vst.msk [vmem:[#allocation2 + $0x158] sm:$0xff] %vm473, %v2932
  %2997 = vst [vmem:[#allocation2 + $0x160] sm:$0xff] %v2933
  %2998 = vst.msk [vmem:[#allocation2 + $0x168] sm:$0xff] %vm473, %v2934
  %2999 = vst [vmem:[#allocation2 + $0x170] sm:$0xff] %v2935
  %3000 = vst.msk [vmem:[#allocation2 + $0x178] sm:$0xff] %vm473, %v2936
  %3001 = vst [vmem:[#allocation2 + $0x180] sm:$0xff] %v2937
  %3002 = vst.msk [vmem:[#allocation2 + $0x188] sm:$0xff] %vm473, %v2938
  %3003 = vst [vmem:[#allocation2 + $0x190] sm:$0xff] %v2939
  %3004 = vst.msk [vmem:[#allocation2 + $0x198] sm:$0xff] %vm473, %v2940
  %3005 = vst [vmem:[#allocation2 + $0x1a0] sm:$0xff] %v2941
  %3006 = vst.msk [vmem:[#allocation2 + $0x1a8] sm:$0xff] %vm473, %v2942
  %3007 = vst [vmem:[#allocation2 + $0x1b0] sm:$0xff] %v2943
  %3008 = vst.msk [vmem:[#allocation2 + $0x1b8] sm:$0xff] %vm473, %v2944
  %3009 = vst [vmem:[#allocation2 + $0x1c0] sm:$0xff] %v2945
  %3010 = vst.msk [vmem:[#allocation2 + $0x1c8] sm:$0xff] %vm473, %v2946
  %3011 = vst [vmem:[#allocation2 + $0x1d0] sm:$0xff] %v2947
  %3012 = vst.msk [vmem:[#allocation2 + $0x1d8] sm:$0xff] %vm473, %v2948
  %3013 = vst [vmem:[#allocation2 + $0x1e0] sm:$0xff] %v2949
  %3014 = vst.msk [vmem:[#allocation2 + $0x1e8] sm:$0xff] %vm473, %v2950
  %3015 = vst [vmem:[#allocation2 + $0x1f0] sm:$0x1f] %v2951
  %vm3016 = vcmask 323584
  %3017 = vst.msk [vmem:[#allocation2 + $0x1f8] sm:$0x1f] %vm3016, %v2952
  %v3018 = vld [vmem:[%s0] sm:$0xff]
  %v3019 = vld [vmem:[%s0 + $0x8] sm:$0xff]
  %v3020 = vld [vmem:[%s0 + $0x10] sm:$0xff]
  %v3021 = vld [vmem:[%s0 + $0x18] sm:$0xff]
  %v3022 = vld [vmem:[%s0 + $0x20] sm:$0xff]
  %v3023 = vld [vmem:[%s0 + $0x28] sm:$0xff]
  %v3024 = vld [vmem:[%s0 + $0x30] sm:$0xff]
  %v3025 = vld [vmem:[%s0 + $0x38] sm:$0xff]
  %v3026 = vld [vmem:[%s0 + $0x40] sm:$0xff]
  %v3027 = vld [vmem:[%s0 + $0x48] sm:$0xff]
  %v3028 = vld [vmem:[%s0 + $0x50] sm:$0xff]
  %v3029 = vld [vmem:[%s0 + $0x58] sm:$0xff]
  %v3030 = vld [vmem:[%s0 + $0x60] sm:$0xff]
  %v3031 = vld [vmem:[%s0 + $0x68] sm:$0xff]
  %v3032 = vld [vmem:[%s0 + $0x70] sm:$0xff]
  %v3033 = vld [vmem:[%s0 + $0x78] sm:$0xff]
  %v3034 = vld [vmem:[%s0 + $0x80] sm:$0xff]
  %v3035 = vld [vmem:[%s0 + $0x88] sm:$0xff]
  %v3036 = vld [vmem:[%s0 + $0x90] sm:$0xff]
  %v3037 = vld [vmem:[%s0 + $0x98] sm:$0xff]
  %v3038 = vld [vmem:[%s0 + $0xa0] sm:$0xff]
  %v3039 = vld [vmem:[%s0 + $0xa8] sm:$0xff]
  %v3040 = vld [vmem:[%s0 + $0xb0] sm:$0xff]
  %v3041 = vld [vmem:[%s0 + $0xb8] sm:$0xff]
  %v3042 = vld [vmem:[%s0 + $0xc0] sm:$0xff]
  %v3043 = vld [vmem:[%s0 + $0xc8] sm:$0xff]
  %v3044 = vld [vmem:[%s0 + $0xd0] sm:$0xff]
  %v3045 = vld [vmem:[%s0 + $0xd8] sm:$0xff]
  %v3046 = vld [vmem:[%s0 + $0xe0] sm:$0xff]
  %v3047 = vld [vmem:[%s0 + $0xe8] sm:$0xff]
  %v3048 = vld [vmem:[%s0 + $0xf0] sm:$0xff]
  %v3049 = vld [vmem:[%s0 + $0xf8] sm:$0xff]
  %s3050 = scalar_lea.vmem %s1, 768
  %v3051 = vld [vmem:[%s3050] sm:$0xff]
  %v3052 = vld [vmem:[%s3050 + $0x8] sm:$0xff]
  %v3053 = vld [vmem:[%s3050 + $0x10] sm:$0xff]
  %v3054 = vld [vmem:[%s3050 + $0x18] sm:$0xff]
  %v3055 = vld [vmem:[%s3050 + $0x20] sm:$0xff]
  %v3056 = vld [vmem:[%s3050 + $0x28] sm:$0xff]
  %v3057 = vld [vmem:[%s3050 + $0x30] sm:$0xff]
  %v3058 = vld [vmem:[%s3050 + $0x38] sm:$0xff]
  %v3059 = vld [vmem:[%s3050 + $0x40] sm:$0xff]
  %v3060 = vld [vmem:[%s3050 + $0x48] sm:$0xff]
  %v3061 = vld [vmem:[%s3050 + $0x50] sm:$0xff]
  %v3062 = vld [vmem:[%s3050 + $0x58] sm:$0xff]
  %v3063 = vld [vmem:[%s3050 + $0x60] sm:$0xff]
  %v3064 = vld [vmem:[%s3050 + $0x68] sm:$0xff]
  %v3065 = vld [vmem:[%s3050 + $0x70] sm:$0xff]
  %v3066 = vld [vmem:[%s3050 + $0x78] sm:$0xff]
  %v3067 = vld [vmem:[%s3050 + $0x80] sm:$0xff]
  %v3068 = vld [vmem:[%s3050 + $0x88] sm:$0xff]
  %v3069 = vld [vmem:[%s3050 + $0x90] sm:$0xff]
  %v3070 = vld [vmem:[%s3050 + $0x98] sm:$0xff]
  %v3071 = vld [vmem:[%s3050 + $0xa0] sm:$0xff]
  %v3072 = vld [vmem:[%s3050 + $0xa8] sm:$0xff]
  %v3073 = vld [vmem:[%s3050 + $0xb0] sm:$0xff]
  %v3074 = vld [vmem:[%s3050 + $0xb8] sm:$0xff]
  %v3076 = vsel %vm149, %v3018, 0
  %v3079 = vsel %vm149, %v3019, 0
  %v3082 = vsel %vm149, %v3020, 0
  %v3085 = vsel %vm149, %v3021, 0
  %v3088 = vsel %vm149, %v3022, 0
  %v3091 = vsel %vm149, %v3023, 0
  %v3094 = vsel %vm149, %v3024, 0
  %v3097 = vsel %vm149, %v3025, 0
  %v3100 = vsel %vm149, %v3026, 0
  %v3103 = vsel %vm149, %v3027, 0
  %v3106 = vsel %vm149, %v3028, 0
  %v3109 = vsel %vm149, %v3029, 0
  %v3112 = vsel %vm149, %v3030, 0
  %v3115 = vsel %vm149, %v3031, 0
  %v3118 = vsel %vm149, %v3032, 0
  %v3121 = vsel %vm149, %v3033, 0
  %v3124 = vsel %vm149, %v3034, 0
  %v3127 = vsel %vm149, %v3035, 0
  %v3130 = vsel %vm149, %v3036, 0
  %v3133 = vsel %vm149, %v3037, 0
  %v3136 = vsel %vm149, %v3038, 0
  %v3139 = vsel %vm149, %v3039, 0
  %v3142 = vsel %vm149, %v3040, 0
  %v3145 = vsel %vm149, %v3041, 0
  %v3148 = vsel %vm149, %v3042, 0
  %v3151 = vsel %vm149, %v3043, 0
  %v3154 = vsel %vm149, %v3044, 0
  %v3157 = vsel %vm149, %v3045, 0
  %v3160 = vsel %vm149, %v3046, 0
  %v3163 = vsel %vm149, %v3047, 0
  %v3166 = vsel %vm149, %v3048, 0
  %v3169 = vsel %vm149, %v3049, 0
  %3171 = vmatpush.msra.mxu0 0.0
  %3172 = vmatpush.msra.mxu0 0.0
  %3173 = vmatpush.msra.mxu0 0.0
  %3174 = vmatpush.msra.mxu0 0.0
  %3175 = vmatpush.msra.mxu0 %v3073
  %3176 = vmatpush.msra.mxu0 %v3071
  %3177 = vmatpush.msra.mxu0 %v3069
  %3178 = vmatpush.msra.mxu0 %v3067
  %3179 = vmatpush.msra.mxu0 %v3065
  %3180 = vmatpush.msra.mxu0 %v3063
  %3181 = vmatpush.msra.mxu0 %v3061
  %3182 = vmatpush.msra.mxu0 %v3059
  %3183 = vmatpush.msra.mxu0 %v3057
  %3184 = vmatpush.msra.mxu0 %v3055
  %3185 = vmatpush.msra.mxu0 %v3053
  %3186 = vmatpush.msra.mxu0 %v3051
  %3187 = vmatmul.f32.gmra.mxu0 %v3076
  %v3188 = vpop.f32.mrf.mxu0
  %v3189 = vadd.f32 0.0, %v3188
  %3190 = vmatmul.f32.gmra.mxu0 %v3079
  %v3191 = vpop.f32.mrf.mxu0
  %v3192 = vadd.f32 0.0, %v3191
  %3193 = vmatmul.f32.gmra.mxu0 %v3082
  %v3194 = vpop.f32.mrf.mxu0
  %v3195 = vadd.f32 0.0, %v3194
  %3196 = vmatmul.f32.gmra.mxu0 %v3085
  %v3197 = vpop.f32.mrf.mxu0
  %v3198 = vadd.f32 0.0, %v3197
  %3199 = vmatmul.f32.gmra.mxu0 %v3088
  %v3200 = vpop.f32.mrf.mxu0
  %v3201 = vadd.f32 0.0, %v3200
  %3202 = vmatmul.f32.gmra.mxu0 %v3091
  %v3203 = vpop.f32.mrf.mxu0
  %v3204 = vadd.f32 0.0, %v3203
  %3205 = vmatmul.f32.gmra.mxu0 %v3094
  %v3206 = vpop.f32.mrf.mxu0
  %v3207 = vadd.f32 0.0, %v3206
  %3208 = vmatmul.f32.gmra.mxu0 %v3097
  %v3209 = vpop.f32.mrf.mxu0
  %v3210 = vadd.f32 0.0, %v3209
  %3211 = vmatmul.f32.gmra.mxu0 %v3100
  %v3212 = vpop.f32.mrf.mxu0
  %v3213 = vadd.f32 0.0, %v3212
  %3214 = vmatmul.f32.gmra.mxu0 %v3103
  %v3215 = vpop.f32.mrf.mxu0
  %v3216 = vadd.f32 0.0, %v3215
  %3217 = vmatmul.f32.gmra.mxu0 %v3106
  %v3218 = vpop.f32.mrf.mxu0
  %v3219 = vadd.f32 0.0, %v3218
  %3220 = vmatmul.f32.gmra.mxu0 %v3109
  %v3221 = vpop.f32.mrf.mxu0
  %v3222 = vadd.f32 0.0, %v3221
  %3223 = vmatmul.f32.gmra.mxu0 %v3112
  %v3224 = vpop.f32.mrf.mxu0
  %v3225 = vadd.f32 0.0, %v3224
  %3226 = vmatmul.f32.gmra.mxu0 %v3115
  %v3227 = vpop.f32.mrf.mxu0
  %v3228 = vadd.f32 0.0, %v3227
  %3229 = vmatmul.f32.gmra.mxu0 %v3118
  %v3230 = vpop.f32.mrf.mxu0
  %v3231 = vadd.f32 0.0, %v3230
  %3232 = vmatmul.f32.gmra.mxu0 %v3121
  %v3233 = vpop.f32.mrf.mxu0
  %v3234 = vadd.f32 0.0, %v3233
  %3235 = vmatmul.f32.gmra.mxu0 %v3124
  %v3236 = vpop.f32.mrf.mxu0
  %v3237 = vadd.f32 0.0, %v3236
  %3238 = vmatmul.f32.gmra.mxu0 %v3127
  %v3239 = vpop.f32.mrf.mxu0
  %v3240 = vadd.f32 0.0, %v3239
  %3241 = vmatmul.f32.gmra.mxu0 %v3130
  %v3242 = vpop.f32.mrf.mxu0
  %v3243 = vadd.f32 0.0, %v3242
  %3244 = vmatmul.f32.gmra.mxu0 %v3133
  %v3245 = vpop.f32.mrf.mxu0
  %v3246 = vadd.f32 0.0, %v3245
  %3247 = vmatmul.f32.gmra.mxu0 %v3136
  %v3248 = vpop.f32.mrf.mxu0
  %v3249 = vadd.f32 0.0, %v3248
  %3250 = vmatmul.f32.gmra.mxu0 %v3139
  %v3251 = vpop.f32.mrf.mxu0
  %v3252 = vadd.f32 0.0, %v3251
  %3253 = vmatmul.f32.gmra.mxu0 %v3142
  %v3254 = vpop.f32.mrf.mxu0
  %v3255 = vadd.f32 0.0, %v3254
  %3256 = vmatmul.f32.gmra.mxu0 %v3145
  %v3257 = vpop.f32.mrf.mxu0
  %v3258 = vadd.f32 0.0, %v3257
  %3259 = vmatmul.f32.gmra.mxu0 %v3148
  %v3260 = vpop.f32.mrf.mxu0
  %v3261 = vadd.f32 0.0, %v3260
  %3262 = vmatmul.f32.gmra.mxu0 %v3151
  %v3263 = vpop.f32.mrf.mxu0
  %v3264 = vadd.f32 0.0, %v3263
  %3265 = vmatmul.f32.gmra.mxu0 %v3154
  %v3266 = vpop.f32.mrf.mxu0
  %v3267 = vadd.f32 0.0, %v3266
  %3268 = vmatmul.f32.gmra.mxu0 %v3157
  %v3269 = vpop.f32.mrf.mxu0
  %v3270 = vadd.f32 0.0, %v3269
  %3271 = vmatmul.f32.gmra.mxu0 %v3160
  %v3272 = vpop.f32.mrf.mxu0
  %v3273 = vadd.f32 0.0, %v3272
  %3274 = vmatmul.f32.gmra.mxu0 %v3163
  %v3275 = vpop.f32.mrf.mxu0
  %v3276 = vadd.f32 0.0, %v3275
  %3277 = vmatmul.f32.gmra.mxu0 %v3166
  %v3278 = vpop.f32.mrf.mxu0
  %v3279 = vadd.f32 0.0, %v3278
  %3280 = vmatmul.f32.gmra.mxu0 %v3169
  %v3281 = vpop.f32.mrf.mxu0
  %v3282 = vadd.f32 0.0, %v3281
  %3283 = vdwg.mxu0
  %3284 = vmatpush.msra.mxu0 0.0
  %3285 = vmatpush.msra.mxu0 0.0
  %3286 = vmatpush.msra.mxu0 0.0
  %3287 = vmatpush.msra.mxu0 0.0
  %3288 = vmatpush.msra.mxu0 %v3074
  %3289 = vmatpush.msra.mxu0 %v3072
  %3290 = vmatpush.msra.mxu0 %v3070
  %3291 = vmatpush.msra.mxu0 %v3068
  %3292 = vmatpush.msra.mxu0 %v3066
  %3293 = vmatpush.msra.mxu0 %v3064
  %3294 = vmatpush.msra.mxu0 %v3062
  %3295 = vmatpush.msra.mxu0 %v3060
  %3296 = vmatpush.msra.mxu0 %v3058
  %3297 = vmatpush.msra.mxu0 %v3056
  %3298 = vmatpush.msra.mxu0 %v3054
  %3299 = vmatpush.msra.mxu0 %v3052
  %3300 = vmatmul.f32.gmra.mxu0 %v3076
  %v3301 = vpop.f32.mrf.mxu0
  %v3302 = vadd.f32 0.0, %v3301
  %3303 = vmatmul.f32.gmra.mxu0 %v3079
  %v3304 = vpop.f32.mrf.mxu0
  %v3305 = vadd.f32 0.0, %v3304
  %3306 = vmatmul.f32.gmra.mxu0 %v3082
  %v3307 = vpop.f32.mrf.mxu0
  %v3308 = vadd.f32 0.0, %v3307
  %3309 = vmatmul.f32.gmra.mxu0 %v3085
  %v3310 = vpop.f32.mrf.mxu0
  %v3311 = vadd.f32 0.0, %v3310
  %3312 = vmatmul.f32.gmra.mxu0 %v3088
  %v3313 = vpop.f32.mrf.mxu0
  %v3314 = vadd.f32 0.0, %v3313
  %3315 = vmatmul.f32.gmra.mxu0 %v3091
  %v3316 = vpop.f32.mrf.mxu0
  %v3317 = vadd.f32 0.0, %v3316
  %3318 = vmatmul.f32.gmra.mxu0 %v3094
  %v3319 = vpop.f32.mrf.mxu0
  %v3320 = vadd.f32 0.0, %v3319
  %3321 = vmatmul.f32.gmra.mxu0 %v3097
  %v3322 = vpop.f32.mrf.mxu0
  %v3323 = vadd.f32 0.0, %v3322
  %3324 = vmatmul.f32.gmra.mxu0 %v3100
  %v3325 = vpop.f32.mrf.mxu0
  %v3326 = vadd.f32 0.0, %v3325
  %3327 = vmatmul.f32.gmra.mxu0 %v3103
  %v3328 = vpop.f32.mrf.mxu0
  %v3329 = vadd.f32 0.0, %v3328
  %3330 = vmatmul.f32.gmra.mxu0 %v3106
  %v3331 = vpop.f32.mrf.mxu0
  %v3332 = vadd.f32 0.0, %v3331
  %3333 = vmatmul.f32.gmra.mxu0 %v3109
  %v3334 = vpop.f32.mrf.mxu0
  %v3335 = vadd.f32 0.0, %v3334
  %3336 = vmatmul.f32.gmra.mxu0 %v3112
  %v3337 = vpop.f32.mrf.mxu0
  %v3338 = vadd.f32 0.0, %v3337
  %3339 = vmatmul.f32.gmra.mxu0 %v3115
  %v3340 = vpop.f32.mrf.mxu0
  %v3341 = vadd.f32 0.0, %v3340
  %3342 = vmatmul.f32.gmra.mxu0 %v3118
  %v3343 = vpop.f32.mrf.mxu0
  %v3344 = vadd.f32 0.0, %v3343
  %3345 = vmatmul.f32.gmra.mxu0 %v3121
  %v3346 = vpop.f32.mrf.mxu0
  %v3347 = vadd.f32 0.0, %v3346
  %3348 = vmatmul.f32.gmra.mxu0 %v3124
  %v3349 = vpop.f32.mrf.mxu0
  %v3350 = vadd.f32 0.0, %v3349
  %3351 = vmatmul.f32.gmra.mxu0 %v3127
  %v3352 = vpop.f32.mrf.mxu0
  %v3353 = vadd.f32 0.0, %v3352
  %3354 = vmatmul.f32.gmra.mxu0 %v3130
  %v3355 = vpop.f32.mrf.mxu0
  %v3356 = vadd.f32 0.0, %v3355
  %3357 = vmatmul.f32.gmra.mxu0 %v3133
  %v3358 = vpop.f32.mrf.mxu0
  %v3359 = vadd.f32 0.0, %v3358
  %3360 = vmatmul.f32.gmra.mxu0 %v3136
  %v3361 = vpop.f32.mrf.mxu0
  %v3362 = vadd.f32 0.0, %v3361
  %3363 = vmatmul.f32.gmra.mxu0 %v3139
  %v3364 = vpop.f32.mrf.mxu0
  %v3365 = vadd.f32 0.0, %v3364
  %3366 = vmatmul.f32.gmra.mxu0 %v3142
  %v3367 = vpop.f32.mrf.mxu0
  %v3368 = vadd.f32 0.0, %v3367
  %3369 = vmatmul.f32.gmra.mxu0 %v3145
  %v3370 = vpop.f32.mrf.mxu0
  %v3371 = vadd.f32 0.0, %v3370
  %3372 = vmatmul.f32.gmra.mxu0 %v3148
  %v3373 = vpop.f32.mrf.mxu0
  %v3374 = vadd.f32 0.0, %v3373
  %3375 = vmatmul.f32.gmra.mxu0 %v3151
  %v3376 = vpop.f32.mrf.mxu0
  %v3377 = vadd.f32 0.0, %v3376
  %3378 = vmatmul.f32.gmra.mxu0 %v3154
  %v3379 = vpop.f32.mrf.mxu0
  %v3380 = vadd.f32 0.0, %v3379
  %3381 = vmatmul.f32.gmra.mxu0 %v3157
  %v3382 = vpop.f32.mrf.mxu0
  %v3383 = vadd.f32 0.0, %v3382
  %3384 = vmatmul.f32.gmra.mxu0 %v3160
  %v3385 = vpop.f32.mrf.mxu0
  %v3386 = vadd.f32 0.0, %v3385
  %3387 = vmatmul.f32.gmra.mxu0 %v3163
  %v3388 = vpop.f32.mrf.mxu0
  %v3389 = vadd.f32 0.0, %v3388
  %3390 = vmatmul.f32.gmra.mxu0 %v3166
  %v3391 = vpop.f32.mrf.mxu0
  %v3392 = vadd.f32 0.0, %v3391
  %3393 = vmatmul.f32.gmra.mxu0 %v3169
  %v3394 = vpop.f32.mrf.mxu0
  %v3395 = vadd.f32 0.0, %v3394
  %3396 = vdwg.mxu0
  %v3397 = vld [vmem:[#allocation2] sm:$0xff]
  %v3398 = vld [vmem:[#allocation2 + $0x8] sm:$0xff]
  %v3399 = vld [vmem:[#allocation2 + $0x10] sm:$0xff]
  %v3400 = vld [vmem:[#allocation2 + $0x18] sm:$0xff]
  %v3401 = vld [vmem:[#allocation2 + $0x20] sm:$0xff]
  %v3402 = vld [vmem:[#allocation2 + $0x28] sm:$0xff]
  %v3403 = vld [vmem:[#allocation2 + $0x30] sm:$0xff]
  %v3404 = vld [vmem:[#allocation2 + $0x38] sm:$0xff]
  %v3405 = vld [vmem:[#allocation2 + $0x40] sm:$0xff]
  %v3406 = vld [vmem:[#allocation2 + $0x48] sm:$0xff]
  %v3407 = vld [vmem:[#allocation2 + $0x50] sm:$0xff]
  %v3408 = vld [vmem:[#allocation2 + $0x58] sm:$0xff]
  %v3409 = vld [vmem:[#allocation2 + $0x60] sm:$0xff]
  %v3410 = vld [vmem:[#allocation2 + $0x68] sm:$0xff]
  %v3411 = vld [vmem:[#allocation2 + $0x70] sm:$0xff]
  %v3412 = vld [vmem:[#allocation2 + $0x78] sm:$0xff]
  %v3413 = vld [vmem:[#allocation2 + $0x80] sm:$0xff]
  %v3414 = vld [vmem:[#allocation2 + $0x88] sm:$0xff]
  %v3415 = vld [vmem:[#allocation2 + $0x90] sm:$0xff]
  %v3416 = vld [vmem:[#allocation2 + $0x98] sm:$0xff]
  %v3417 = vld [vmem:[#allocation2 + $0xa0] sm:$0xff]
  %v3418 = vld [vmem:[#allocation2 + $0xa8] sm:$0xff]
  %v3419 = vld [vmem:[#allocation2 + $0xb0] sm:$0xff]
  %v3420 = vld [vmem:[#allocation2 + $0xb8] sm:$0xff]
  %v3421 = vld [vmem:[#allocation2 + $0xc0] sm:$0xff]
  %v3422 = vld [vmem:[#allocation2 + $0xc8] sm:$0xff]
  %v3423 = vld [vmem:[#allocation2 + $0xd0] sm:$0xff]
  %v3424 = vld [vmem:[#allocation2 + $0xd8] sm:$0xff]
  %v3425 = vld [vmem:[#allocation2 + $0xe0] sm:$0xff]
  %v3426 = vld [vmem:[#allocation2 + $0xe8] sm:$0xff]
  %v3427 = vld [vmem:[#allocation2 + $0xf0] sm:$0xff]
  %v3428 = vld [vmem:[#allocation2 + $0xf8] sm:$0xff]
  %v3429 = vld [vmem:[#allocation2 + $0x100] sm:$0xff]
  %v3430 = vld [vmem:[#allocation2 + $0x108] sm:$0xff]
  %v3431 = vld [vmem:[#allocation2 + $0x110] sm:$0xff]
  %v3432 = vld [vmem:[#allocation2 + $0x118] sm:$0xff]
  %v3433 = vld [vmem:[#allocation2 + $0x120] sm:$0xff]
  %v3434 = vld [vmem:[#allocation2 + $0x128] sm:$0xff]
  %v3435 = vld [vmem:[#allocation2 + $0x130] sm:$0xff]
  %v3436 = vld [vmem:[#allocation2 + $0x138] sm:$0xff]
  %v3437 = vld [vmem:[#allocation2 + $0x140] sm:$0xff]
  %v3438 = vld [vmem:[#allocation2 + $0x148] sm:$0xff]
  %v3439 = vld [vmem:[#allocation2 + $0x150] sm:$0xff]
  %v3440 = vld [vmem:[#allocation2 + $0x158] sm:$0xff]
  %v3441 = vld [vmem:[#allocation2 + $0x160] sm:$0xff]
  %v3442 = vld [vmem:[#allocation2 + $0x168] sm:$0xff]
  %v3443 = vld [vmem:[#allocation2 + $0x170] sm:$0xff]
  %v3444 = vld [vmem:[#allocation2 + $0x178] sm:$0xff]
  %v3445 = vld [vmem:[#allocation2 + $0x180] sm:$0xff]
  %v3446 = vld [vmem:[#allocation2 + $0x188] sm:$0xff]
  %v3447 = vld [vmem:[#allocation2 + $0x190] sm:$0xff]
  %v3448 = vld [vmem:[#allocation2 + $0x198] sm:$0xff]
  %v3449 = vld [vmem:[#allocation2 + $0x1a0] sm:$0xff]
  %v3450 = vld [vmem:[#allocation2 + $0x1a8] sm:$0xff]
  %v3451 = vld [vmem:[#allocation2 + $0x1b0] sm:$0xff]
  %v3452 = vld [vmem:[#allocation2 + $0x1b8] sm:$0xff]
  %v3453 = vld [vmem:[#allocation2 + $0x1c0] sm:$0xff]
  %v3454 = vld [vmem:[#allocation2 + $0x1c8] sm:$0xff]
  %v3455 = vld [vmem:[#allocation2 + $0x1d0] sm:$0xff]
  %v3456 = vld [vmem:[#allocation2 + $0x1d8] sm:$0xff]
  %v3457 = vld [vmem:[#allocation2 + $0x1e0] sm:$0xff]
  %v3458 = vld [vmem:[#allocation2 + $0x1e8] sm:$0xff]
  %v3459 = vld [vmem:[#allocation2 + $0x1f0] sm:$0xf]
  %v3460 = vld [vmem:[#allocation2 + $0x1f8] sm:$0xf]
  %vm3525 = vcmask 1043456
  %v3526 = vrot.slane %v3189, 4
  %v3527 = vrot.slane %v3192, 4
  %v3528 = vsel %vm3525, %v3526, %v3527
  %v3529 = vrot.slane %v3302, 4
  %v3530 = vrot.slane %v3305, 4
  %v3531 = vsel %vm3525, %v3529, %v3530
  %v3532 = vrot.slane %v3195, 4
  %v3533 = vsel %vm3525, %v3527, %v3532
  %v3534 = vrot.slane %v3308, 4
  %v3535 = vsel %vm3525, %v3530, %v3534
  %v3536 = vrot.slane %v3198, 4
  %v3537 = vsel %vm3525, %v3532, %v3536
  %v3538 = vrot.slane %v3311, 4
  %v3539 = vsel %vm3525, %v3534, %v3538
  %v3540 = vrot.slane %v3201, 4
  %v3541 = vsel %vm3525, %v3536, %v3540
  %v3542 = vrot.slane %v3314, 4
  %v3543 = vsel %vm3525, %v3538, %v3542
  %v3544 = vrot.slane %v3204, 4
  %v3545 = vsel %vm3525, %v3540, %v3544
  %v3546 = vrot.slane %v3317, 4
  %v3547 = vsel %vm3525, %v3542, %v3546
  %v3548 = vrot.slane %v3207, 4
  %v3549 = vsel %vm3525, %v3544, %v3548
  %v3550 = vrot.slane %v3320, 4
  %v3551 = vsel %vm3525, %v3546, %v3550
  %v3552 = vrot.slane %v3210, 4
  %v3553 = vsel %vm3525, %v3548, %v3552
  %v3554 = vrot.slane %v3323, 4
  %v3555 = vsel %vm3525, %v3550, %v3554
  %v3556 = vrot.slane %v3213, 4
  %v3557 = vsel %vm3525, %v3552, %v3556
  %v3558 = vrot.slane %v3326, 4
  %v3559 = vsel %vm3525, %v3554, %v3558
  %v3560 = vrot.slane %v3216, 4
  %v3561 = vsel %vm3525, %v3556, %v3560
  %v3562 = vrot.slane %v3329, 4
  %v3563 = vsel %vm3525, %v3558, %v3562
  %v3564 = vrot.slane %v3219, 4
  %v3565 = vsel %vm3525, %v3560, %v3564
  %v3566 = vrot.slane %v3332, 4
  %v3567 = vsel %vm3525, %v3562, %v3566
  %v3568 = vrot.slane %v3222, 4
  %v3569 = vsel %vm3525, %v3564, %v3568
  %v3570 = vrot.slane %v3335, 4
  %v3571 = vsel %vm3525, %v3566, %v3570
  %v3572 = vrot.slane %v3225, 4
  %v3573 = vsel %vm3525, %v3568, %v3572
  %v3574 = vrot.slane %v3338, 4
  %v3575 = vsel %vm3525, %v3570, %v3574
  %v3576 = vrot.slane %v3228, 4
  %v3577 = vsel %vm3525, %v3572, %v3576
  %v3578 = vrot.slane %v3341, 4
  %v3579 = vsel %vm3525, %v3574, %v3578
  %v3580 = vrot.slane %v3231, 4
  %v3581 = vsel %vm3525, %v3576, %v3580
  %v3582 = vrot.slane %v3344, 4
  %v3583 = vsel %vm3525, %v3578, %v3582
  %v3584 = vrot.slane %v3234, 4
  %v3585 = vsel %vm3525, %v3580, %v3584
  %v3586 = vrot.slane %v3347, 4
  %v3587 = vsel %vm3525, %v3582, %v3586
  %v3588 = vrot.slane %v3237, 4
  %v3589 = vsel %vm3525, %v3584, %v3588
  %v3590 = vrot.slane %v3350, 4
  %v3591 = vsel %vm3525, %v3586, %v3590
  %v3592 = vrot.slane %v3240, 4
  %v3593 = vsel %vm3525, %v3588, %v3592
  %v3594 = vrot.slane %v3353, 4
  %v3595 = vsel %vm3525, %v3590, %v3594
  %v3596 = vrot.slane %v3243, 4
  %v3597 = vsel %vm3525, %v3592, %v3596
  %v3598 = vrot.slane %v3356, 4
  %v3599 = vsel %vm3525, %v3594, %v3598
  %v3600 = vrot.slane %v3246, 4
  %v3601 = vsel %vm3525, %v3596, %v3600
  %v3602 = vrot.slane %v3359, 4
  %v3603 = vsel %vm3525, %v3598, %v3602
  %v3604 = vrot.slane %v3249, 4
  %v3605 = vsel %vm3525, %v3600, %v3604
  %v3606 = vrot.slane %v3362, 4
  %v3607 = vsel %vm3525, %v3602, %v3606
  %v3608 = vrot.slane %v3252, 4
  %v3609 = vsel %vm3525, %v3604, %v3608
  %v3610 = vrot.slane %v3365, 4
  %v3611 = vsel %vm3525, %v3606, %v3610
  %v3612 = vrot.slane %v3255, 4
  %v3613 = vsel %vm3525, %v3608, %v3612
  %v3614 = vrot.slane %v3368, 4
  %v3615 = vsel %vm3525, %v3610, %v3614
  %v3616 = vrot.slane %v3258, 4
  %v3617 = vsel %vm3525, %v3612, %v3616
  %v3618 = vrot.slane %v3371, 4
  %v3619 = vsel %vm3525, %v3614, %v3618
  %v3620 = vrot.slane %v3261, 4
  %v3621 = vsel %vm3525, %v3616, %v3620
  %v3622 = vrot.slane %v3374, 4
  %v3623 = vsel %vm3525, %v3618, %v3622
  %v3624 = vrot.slane %v3264, 4
  %v3625 = vsel %vm3525, %v3620, %v3624
  %v3626 = vrot.slane %v3377, 4
  %v3627 = vsel %vm3525, %v3622, %v3626
  %v3628 = vrot.slane %v3267, 4
  %v3629 = vsel %vm3525, %v3624, %v3628
  %v3630 = vrot.slane %v3380, 4
  %v3631 = vsel %vm3525, %v3626, %v3630
  %v3632 = vrot.slane %v3270, 4
  %v3633 = vsel %vm3525, %v3628, %v3632
  %v3634 = vrot.slane %v3383, 4
  %v3635 = vsel %vm3525, %v3630, %v3634
  %v3636 = vrot.slane %v3273, 4
  %v3637 = vsel %vm3525, %v3632, %v3636
  %v3638 = vrot.slane %v3386, 4
  %v3639 = vsel %vm3525, %v3634, %v3638
  %v3640 = vrot.slane %v3276, 4
  %v3641 = vsel %vm3525, %v3636, %v3640
  %v3642 = vrot.slane %v3389, 4
  %v3643 = vsel %vm3525, %v3638, %v3642
  %v3644 = vrot.slane %v3279, 4
  %v3645 = vsel %vm3525, %v3640, %v3644
  %v3646 = vrot.slane %v3392, 4
  %v3647 = vsel %vm3525, %v3642, %v3646
  %v3648 = vrot.slane %v3282, 4
  %v3649 = vsel %vm3525, %v3644, %v3648
  %v3650 = vrot.slane %v3395, 4
  %v3651 = vsel %vm3525, %v3646, %v3650
  %v3716 = vadd.f32 %v3397, %v3528
  %v3717 = vadd.f32 %v3398, %v3531
  %v3718 = vadd.f32 %v3399, %v3533
  %v3719 = vadd.f32 %v3400, %v3535
  %v3720 = vadd.f32 %v3401, %v3537
  %v3721 = vadd.f32 %v3402, %v3539
  %v3722 = vadd.f32 %v3403, %v3541
  %v3723 = vadd.f32 %v3404, %v3543
  %v3724 = vadd.f32 %v3405, %v3545
  %v3725 = vadd.f32 %v3406, %v3547
  %v3726 = vadd.f32 %v3407, %v3549
  %v3727 = vadd.f32 %v3408, %v3551
  %v3728 = vadd.f32 %v3409, %v3553
  %v3729 = vadd.f32 %v3410, %v3555
  %v3730 = vadd.f32 %v3411, %v3557
  %v3731 = vadd.f32 %v3412, %v3559
  %v3732 = vadd.f32 %v3413, %v3561
  %v3733 = vadd.f32 %v3414, %v3563
  %v3734 = vadd.f32 %v3415, %v3565
  %v3735 = vadd.f32 %v3416, %v3567
  %v3736 = vadd.f32 %v3417, %v3569
  %v3737 = vadd.f32 %v3418, %v3571
  %v3738 = vadd.f32 %v3419, %v3573
  %v3739 = vadd.f32 %v3420, %v3575
  %v3740 = vadd.f32 %v3421, %v3577
  %v3741 = vadd.f32 %v3422, %v3579
  %v3742 = vadd.f32 %v3423, %v3581
  %v3743 = vadd.f32 %v3424, %v3583
  %v3744 = vadd.f32 %v3425, %v3585
  %v3745 = vadd.f32 %v3426, %v3587
  %v3746 = vadd.f32 %v3427, %v3589
  %v3747 = vadd.f32 %v3428, %v3591
  %v3748 = vadd.f32 %v3429, %v3593
  %v3749 = vadd.f32 %v3430, %v3595
  %v3750 = vadd.f32 %v3431, %v3597
  %v3751 = vadd.f32 %v3432, %v3599
  %v3752 = vadd.f32 %v3433, %v3601
  %v3753 = vadd.f32 %v3434, %v3603
  %v3754 = vadd.f32 %v3435, %v3605
  %v3755 = vadd.f32 %v3436, %v3607
  %v3756 = vadd.f32 %v3437, %v3609
  %v3757 = vadd.f32 %v3438, %v3611
  %v3758 = vadd.f32 %v3439, %v3613
  %v3759 = vadd.f32 %v3440, %v3615
  %v3760 = vadd.f32 %v3441, %v3617
  %v3761 = vadd.f32 %v3442, %v3619
  %v3762 = vadd.f32 %v3443, %v3621
  %v3763 = vadd.f32 %v3444, %v3623
  %v3764 = vadd.f32 %v3445, %v3625
  %v3765 = vadd.f32 %v3446, %v3627
  %v3766 = vadd.f32 %v3447, %v3629
  %v3767 = vadd.f32 %v3448, %v3631
  %v3768 = vadd.f32 %v3449, %v3633
  %v3769 = vadd.f32 %v3450, %v3635
  %v3770 = vadd.f32 %v3451, %v3637
  %v3771 = vadd.f32 %v3452, %v3639
  %v3772 = vadd.f32 %v3453, %v3641
  %v3773 = vadd.f32 %v3454, %v3643
  %v3774 = vadd.f32 %v3455, %v3645
  %v3775 = vadd.f32 %v3456, %v3647
  %v3776 = vadd.f32 %v3457, %v3649
  %v3777 = vadd.f32 %v3458, %v3651
  %v3778 = vadd.f32 %v3459, %v3648
  %v3779 = vadd.f32 %v3460, %v3650
  %3780 = vst [vmem:[#allocation2] sm:$0xff] %v3716
  %3781 = vst.msk [vmem:[#allocation2 + $0x8] sm:$0xff] %vm473, %v3717
  %3782 = vst [vmem:[#allocation2 + $0x10] sm:$0xff] %v3718
  %3783 = vst.msk [vmem:[#allocation2 + $0x18] sm:$0xff] %vm473, %v3719
  %3784 = vst [vmem:[#allocation2 + $0x20] sm:$0xff] %v3720
  %3785 = vst.msk [vmem:[#allocation2 + $0x28] sm:$0xff] %vm473, %v3721
  %3786 = vst [vmem:[#allocation2 + $0x30] sm:$0xff] %v3722
  %3787 = vst.msk [vmem:[#allocation2 + $0x38] sm:$0xff] %vm473, %v3723
  %3788 = vst [vmem:[#allocation2 + $0x40] sm:$0xff] %v3724
  %3789 = vst.msk [vmem:[#allocation2 + $0x48] sm:$0xff] %vm473, %v3725
  %3790 = vst [vmem:[#allocation2 + $0x50] sm:$0xff] %v3726
  %3791 = vst.msk [vmem:[#allocation2 + $0x58] sm:$0xff] %vm473, %v3727
  %3792 = vst [vmem:[#allocation2 + $0x60] sm:$0xff] %v3728
  %3793 = vst.msk [vmem:[#allocation2 + $0x68] sm:$0xff] %vm473, %v3729
  %3794 = vst [vmem:[#allocation2 + $0x70] sm:$0xff] %v3730
  %3795 = vst.msk [vmem:[#allocation2 + $0x78] sm:$0xff] %vm473, %v3731
  %3796 = vst [vmem:[#allocation2 + $0x80] sm:$0xff] %v3732
  %3797 = vst.msk [vmem:[#allocation2 + $0x88] sm:$0xff] %vm473, %v3733
  %3798 = vst [vmem:[#allocation2 + $0x90] sm:$0xff] %v3734
  %3799 = vst.msk [vmem:[#allocation2 + $0x98] sm:$0xff] %vm473, %v3735
  %3800 = vst [vmem:[#allocation2 + $0xa0] sm:$0xff] %v3736
  %3801 = vst.msk [vmem:[#allocation2 + $0xa8] sm:$0xff] %vm473, %v3737
  %3802 = vst [vmem:[#allocation2 + $0xb0] sm:$0xff] %v3738
  %3803 = vst.msk [vmem:[#allocation2 + $0xb8] sm:$0xff] %vm473, %v3739
  %3804 = vst [vmem:[#allocation2 + $0xc0] sm:$0xff] %v3740
  %3805 = vst.msk [vmem:[#allocation2 + $0xc8] sm:$0xff] %vm473, %v3741
  %3806 = vst [vmem:[#allocation2 + $0xd0] sm:$0xff] %v3742
  %3807 = vst.msk [vmem:[#allocation2 + $0xd8] sm:$0xff] %vm473, %v3743
  %3808 = vst [vmem:[#allocation2 + $0xe0] sm:$0xff] %v3744
  %3809 = vst.msk [vmem:[#allocation2 + $0xe8] sm:$0xff] %vm473, %v3745
  %3810 = vst [vmem:[#allocation2 + $0xf0] sm:$0xff] %v3746
  %3811 = vst.msk [vmem:[#allocation2 + $0xf8] sm:$0xff] %vm473, %v3747
  %3812 = vst [vmem:[#allocation2 + $0x100] sm:$0xff] %v3748
  %3813 = vst.msk [vmem:[#allocation2 + $0x108] sm:$0xff] %vm473, %v3749
  %3814 = vst [vmem:[#allocation2 + $0x110] sm:$0xff] %v3750
  %3815 = vst.msk [vmem:[#allocation2 + $0x118] sm:$0xff] %vm473, %v3751
  %3816 = vst [vmem:[#allocation2 + $0x120] sm:$0xff] %v3752
  %3817 = vst.msk [vmem:[#allocation2 + $0x128] sm:$0xff] %vm473, %v3753
  %3818 = vst [vmem:[#allocation2 + $0x130] sm:$0xff] %v3754
  %3819 = vst.msk [vmem:[#allocation2 + $0x138] sm:$0xff] %vm473, %v3755
  %3820 = vst [vmem:[#allocation2 + $0x140] sm:$0xff] %v3756
  %3821 = vst.msk [vmem:[#allocation2 + $0x148] sm:$0xff] %vm473, %v3757
  %3822 = vst [vmem:[#allocation2 + $0x150] sm:$0xff] %v3758
  %3823 = vst.msk [vmem:[#allocation2 + $0x158] sm:$0xff] %vm473, %v3759
  %3824 = vst [vmem:[#allocation2 + $0x160] sm:$0xff] %v3760
  %3825 = vst.msk [vmem:[#allocation2 + $0x168] sm:$0xff] %vm473, %v3761
  %3826 = vst [vmem:[#allocation2 + $0x170] sm:$0xff] %v3762
  %3827 = vst.msk [vmem:[#allocation2 + $0x178] sm:$0xff] %vm473, %v3763
  %3828 = vst [vmem:[#allocation2 + $0x180] sm:$0xff] %v3764
  %3829 = vst.msk [vmem:[#allocation2 + $0x188] sm:$0xff] %vm473, %v3765
  %3830 = vst [vmem:[#allocation2 + $0x190] sm:$0xff] %v3766
  %3831 = vst.msk [vmem:[#allocation2 + $0x198] sm:$0xff] %vm473, %v3767
  %3832 = vst [vmem:[#allocation2 + $0x1a0] sm:$0xff] %v3768
  %3833 = vst.msk [vmem:[#allocation2 + $0x1a8] sm:$0xff] %vm473, %v3769
  %3834 = vst [vmem:[#allocation2 + $0x1b0] sm:$0xff] %v3770
  %3835 = vst.msk [vmem:[#allocation2 + $0x1b8] sm:$0xff] %vm473, %v3771
  %3836 = vst [vmem:[#allocation2 + $0x1c0] sm:$0xff] %v3772
  %3837 = vst.msk [vmem:[#allocation2 + $0x1c8] sm:$0xff] %vm473, %v3773
  %3838 = vst [vmem:[#allocation2 + $0x1d0] sm:$0xff] %v3774
  %3839 = vst.msk [vmem:[#allocation2 + $0x1d8] sm:$0xff] %vm473, %v3775
  %3840 = vst [vmem:[#allocation2 + $0x1e0] sm:$0xff] %v3776
  %3841 = vst.msk [vmem:[#allocation2 + $0x1e8] sm:$0xff] %vm473, %v3777
  %3842 = vst [vmem:[#allocation2 + $0x1f0] sm:$0xf] %v3778
  %vm3843 = vcmask 322560
  %3844 = vst.msk [vmem:[#allocation2 + $0x1f8] sm:$0xf] %vm3843, %v3779
  %v3845 = vld [vmem:[#allocation2] sm:$0xff]
  %v3846 = vld [vmem:[#allocation2 + $0x8] sm:$0xff]
  %v3847 = vld [vmem:[#allocation2 + $0x10] sm:$0xff]
  %v3848 = vld [vmem:[#allocation2 + $0x18] sm:$0xff]
  %v3849 = vld [vmem:[#allocation2 + $0x20] sm:$0xff]
  %v3850 = vld [vmem:[#allocation2 + $0x28] sm:$0xff]
  %v3851 = vld [vmem:[#allocation2 + $0x30] sm:$0xff]
  %v3852 = vld [vmem:[#allocation2 + $0x38] sm:$0xff]
  %v3853 = vld [vmem:[#allocation2 + $0x40] sm:$0xff]
  %v3854 = vld [vmem:[#allocation2 + $0x48] sm:$0xff]
  %v3855 = vld [vmem:[#allocation2 + $0x50] sm:$0xff]
  %v3856 = vld [vmem:[#allocation2 + $0x58] sm:$0xff]
  %v3857 = vld [vmem:[#allocation2 + $0x60] sm:$0xff]
  %v3858 = vld [vmem:[#allocation2 + $0x68] sm:$0xff]
  %v3859 = vld [vmem:[#allocation2 + $0x70] sm:$0xff]
  %v3860 = vld [vmem:[#allocation2 + $0x78] sm:$0xff]
  %v3861 = vld [vmem:[#allocation2 + $0x80] sm:$0xff]
  %v3862 = vld [vmem:[#allocation2 + $0x88] sm:$0xff]
  %v3863 = vld [vmem:[#allocation2 + $0x90] sm:$0xff]
  %v3864 = vld [vmem:[#allocation2 + $0x98] sm:$0xff]
  %v3865 = vld [vmem:[#allocation2 + $0xa0] sm:$0xff]
  %v3866 = vld [vmem:[#allocation2 + $0xa8] sm:$0xff]
  %v3867 = vld [vmem:[#allocation2 + $0xb0] sm:$0xff]
  %v3868 = vld [vmem:[#allocation2 + $0xb8] sm:$0xff]
  %v3869 = vld [vmem:[#allocation2 + $0xc0] sm:$0xff]
  %v3870 = vld [vmem:[#allocation2 + $0xc8] sm:$0xff]
  %v3871 = vld [vmem:[#allocation2 + $0xd0] sm:$0xff]
  %v3872 = vld [vmem:[#allocation2 + $0xd8] sm:$0xff]
  %v3873 = vld [vmem:[#allocation2 + $0xe0] sm:$0xff]
  %v3874 = vld [vmem:[#allocation2 + $0xe8] sm:$0xff]
  %v3875 = vld [vmem:[#allocation2 + $0xf0] sm:$0xff]
  %v3876 = vld [vmem:[#allocation2 + $0xf8] sm:$0xff]
  %v3877 = vld [vmem:[#allocation2 + $0x100] sm:$0xff]
  %v3878 = vld [vmem:[#allocation2 + $0x108] sm:$0xff]
  %v3879 = vld [vmem:[#allocation2 + $0x110] sm:$0xff]
  %v3880 = vld [vmem:[#allocation2 + $0x118] sm:$0xff]
  %v3881 = vld [vmem:[#allocation2 + $0x120] sm:$0xff]
  %v3882 = vld [vmem:[#allocation2 + $0x128] sm:$0xff]
  %v3883 = vld [vmem:[#allocation2 + $0x130] sm:$0xff]
  %v3884 = vld [vmem:[#allocation2 + $0x138] sm:$0xff]
  %v3885 = vld [vmem:[#allocation2 + $0x140] sm:$0xff]
  %v3886 = vld [vmem:[#allocation2 + $0x148] sm:$0xff]
  %v3887 = vld [vmem:[#allocation2 + $0x150] sm:$0xff]
  %v3888 = vld [vmem:[#allocation2 + $0x158] sm:$0xff]
  %v3889 = vld [vmem:[#allocation2 + $0x160] sm:$0xff]
  %v3890 = vld [vmem:[#allocation2 + $0x168] sm:$0xff]
  %v3891 = vld [vmem:[#allocation2 + $0x170] sm:$0xff]
  %v3892 = vld [vmem:[#allocation2 + $0x178] sm:$0xff]
  %v3893 = vld [vmem:[#allocation2 + $0x180] sm:$0xff]
  %v3894 = vld [vmem:[#allocation2 + $0x188] sm:$0xff]
  %v3895 = vld [vmem:[#allocation2 + $0x190] sm:$0xff]
  %v3896 = vld [vmem:[#allocation2 + $0x198] sm:$0xff]
  %v3897 = vld [vmem:[#allocation2 + $0x1a0] sm:$0xff]
  %v3898 = vld [vmem:[#allocation2 + $0x1a8] sm:$0xff]
  %v3899 = vld [vmem:[#allocation2 + $0x1b0] sm:$0xff]
  %v3900 = vld [vmem:[#allocation2 + $0x1b8] sm:$0xff]
  %v3901 = vld [vmem:[#allocation2 + $0x1c0] sm:$0xff]
  %v3902 = vld [vmem:[#allocation2 + $0x1c8] sm:$0xff]
  %v3903 = vld [vmem:[#allocation2 + $0x1d0] sm:$0xff]
  %v3904 = vld [vmem:[#allocation2 + $0x1d8] sm:$0xff]
  %v3905 = vld [vmem:[#allocation2 + $0x1e0] sm:$0xff]
  %v3906 = vld [vmem:[#allocation2 + $0x1e8] sm:$0xff]
  %v3907 = vld [vmem:[#allocation2 + $0x1f0] sm:$0xff]
  %v3908 = vld [vmem:[#allocation2 + $0x1f8] sm:$0xff]
  %v3909 = vld [vmem:[%s2] sm:$0x3]
  %v3911 = vperm.slane %v3909, 0
  %v3912 = vperm.slane %v3909, 1
  %v3915 = vadd.f32 %v3845, %v3911
  %v3916 = vadd.f32 %v3846, %v3912
  %v3917 = vadd.f32 %v3847, %v3911
  %v3918 = vadd.f32 %v3848, %v3912
  %v3919 = vadd.f32 %v3849, %v3911
  %v3920 = vadd.f32 %v3850, %v3912
  %v3921 = vadd.f32 %v3851, %v3911
  %v3922 = vadd.f32 %v3852, %v3912
  %v3923 = vadd.f32 %v3853, %v3911
  %v3924 = vadd.f32 %v3854, %v3912
  %v3925 = vadd.f32 %v3855, %v3911
  %v3926 = vadd.f32 %v3856, %v3912
  %v3927 = vadd.f32 %v3857, %v3911
  %v3928 = vadd.f32 %v3858, %v3912
  %v3929 = vadd.f32 %v3859, %v3911
  %v3930 = vadd.f32 %v3860, %v3912
  %v3931 = vadd.f32 %v3861, %v3911
  %v3932 = vadd.f32 %v3862, %v3912
  %v3933 = vadd.f32 %v3863, %v3911
  %v3934 = vadd.f32 %v3864, %v3912
  %v3935 = vadd.f32 %v3865, %v3911
  %v3936 = vadd.f32 %v3866, %v3912
  %v3937 = vadd.f32 %v3867, %v3911
  %v3938 = vadd.f32 %v3868, %v3912
  %v3939 = vadd.f32 %v3869, %v3911
  %v3940 = vadd.f32 %v3870, %v3912
  %v3941 = vadd.f32 %v3871, %v3911
  %v3942 = vadd.f32 %v3872, %v3912
  %v3943 = vadd.f32 %v3873, %v3911
  %v3944 = vadd.f32 %v3874, %v3912
  %v3945 = vadd.f32 %v3875, %v3911
  %v3946 = vadd.f32 %v3876, %v3912
  %v3947 = vadd.f32 %v3877, %v3911
  %v3948 = vadd.f32 %v3878, %v3912
  %v3949 = vadd.f32 %v3879, %v3911
  %v3950 = vadd.f32 %v3880, %v3912
  %v3951 = vadd.f32 %v3881, %v3911
  %v3952 = vadd.f32 %v3882, %v3912
  %v3953 = vadd.f32 %v3883, %v3911
  %v3954 = vadd.f32 %v3884, %v3912
  %v3955 = vadd.f32 %v3885, %v3911
  %v3956 = vadd.f32 %v3886, %v3912
  %v3957 = vadd.f32 %v3887, %v3911
  %v3958 = vadd.f32 %v3888, %v3912
  %v3959 = vadd.f32 %v3889, %v3911
  %v3960 = vadd.f32 %v3890, %v3912
  %v3961 = vadd.f32 %v3891, %v3911
  %v3962 = vadd.f32 %v3892, %v3912
  %v3963 = vadd.f32 %v3893, %v3911
  %v3964 = vadd.f32 %v3894, %v3912
  %v3965 = vadd.f32 %v3895, %v3911
  %v3966 = vadd.f32 %v3896, %v3912
  %v3967 = vadd.f32 %v3897, %v3911
  %v3968 = vadd.f32 %v3898, %v3912
  %v3969 = vadd.f32 %v3899, %v3911
  %v3970 = vadd.f32 %v3900, %v3912
  %v3971 = vadd.f32 %v3901, %v3911
  %v3972 = vadd.f32 %v3902, %v3912
  %v3973 = vadd.f32 %v3903, %v3911
  %v3974 = vadd.f32 %v3904, %v3912
  %v3975 = vadd.f32 %v3905, %v3911
  %v3976 = vadd.f32 %v3906, %v3912
  %v3977 = vadd.f32 %v3907, %v3911
  %v3978 = vadd.f32 %v3908, %v3912
  %v3979 = vmax.f32 %v3915, 0.0
  %v3980 = vmax.f32 %v3916, 0.0
  %v3981 = vmax.f32 %v3917, 0.0
  %v3982 = vmax.f32 %v3918, 0.0
  %v3983 = vmax.f32 %v3919, 0.0
  %v3984 = vmax.f32 %v3920, 0.0
  %v3985 = vmax.f32 %v3921, 0.0
  %v3986 = vmax.f32 %v3922, 0.0
  %v3987 = vmax.f32 %v3923, 0.0
  %v3988 = vmax.f32 %v3924, 0.0
  %v3989 = vmax.f32 %v3925, 0.0
  %v3990 = vmax.f32 %v3926, 0.0
  %v3991 = vmax.f32 %v3927, 0.0
  %v3992 = vmax.f32 %v3928, 0.0
  %v3993 = vmax.f32 %v3929, 0.0
  %v3994 = vmax.f32 %v3930, 0.0
  %v3995 = vmax.f32 %v3931, 0.0
  %v3996 = vmax.f32 %v3932, 0.0
  %v3997 = vmax.f32 %v3933, 0.0
  %v3998 = vmax.f32 %v3934, 0.0
  %v3999 = vmax.f32 %v3935, 0.0
  %v4000 = vmax.f32 %v3936, 0.0
  %v4001 = vmax.f32 %v3937, 0.0
  %v4002 = vmax.f32 %v3938, 0.0
  %v4003 = vmax.f32 %v3939, 0.0
  %v4004 = vmax.f32 %v3940, 0.0
  %v4005 = vmax.f32 %v3941, 0.0
  %v4006 = vmax.f32 %v3942, 0.0
  %v4007 = vmax.f32 %v3943, 0.0
  %v4008 = vmax.f32 %v3944, 0.0
  %v4009 = vmax.f32 %v3945, 0.0
  %v4010 = vmax.f32 %v3946, 0.0
  %v4011 = vmax.f32 %v3947, 0.0
  %v4012 = vmax.f32 %v3948, 0.0
  %v4013 = vmax.f32 %v3949, 0.0
  %v4014 = vmax.f32 %v3950, 0.0
  %v4015 = vmax.f32 %v3951, 0.0
  %v4016 = vmax.f32 %v3952, 0.0
  %v4017 = vmax.f32 %v3953, 0.0
  %v4018 = vmax.f32 %v3954, 0.0
  %v4019 = vmax.f32 %v3955, 0.0
  %v4020 = vmax.f32 %v3956, 0.0
  %v4021 = vmax.f32 %v3957, 0.0
  %v4022 = vmax.f32 %v3958, 0.0
  %v4023 = vmax.f32 %v3959, 0.0
  %v4024 = vmax.f32 %v3960, 0.0
  %v4025 = vmax.f32 %v3961, 0.0
  %v4026 = vmax.f32 %v3962, 0.0
  %v4027 = vmax.f32 %v3963, 0.0
  %v4028 = vmax.f32 %v3964, 0.0
  %v4029 = vmax.f32 %v3965, 0.0
  %v4030 = vmax.f32 %v3966, 0.0
  %v4031 = vmax.f32 %v3967, 0.0
  %v4032 = vmax.f32 %v3968, 0.0
  %v4033 = vmax.f32 %v3969, 0.0
  %v4034 = vmax.f32 %v3970, 0.0
  %v4035 = vmax.f32 %v3971, 0.0
  %v4036 = vmax.f32 %v3972, 0.0
  %v4037 = vmax.f32 %v3973, 0.0
  %v4038 = vmax.f32 %v3974, 0.0
  %v4039 = vmax.f32 %v3975, 0.0
  %v4040 = vmax.f32 %v3976, 0.0
  %v4041 = vmax.f32 %v3977, 0.0
  %v4042 = vmax.f32 %v3978, 0.0
  %4043 = vst [vmem:[#allocation3] sm:$0xff] %v3979
  %4044 = vst.msk [vmem:[#allocation3 + $0x8] sm:$0xff] %vm473, %v3980
  %4045 = vst [vmem:[#allocation3 + $0x10] sm:$0xff] %v3981
  %4046 = vst.msk [vmem:[#allocation3 + $0x18] sm:$0xff] %vm473, %v3982
  %4047 = vst [vmem:[#allocation3 + $0x20] sm:$0xff] %v3983
  %4048 = vst.msk [vmem:[#allocation3 + $0x28] sm:$0xff] %vm473, %v3984
  %4049 = vst [vmem:[#allocation3 + $0x30] sm:$0xff] %v3985
  %4050 = vst.msk [vmem:[#allocation3 + $0x38] sm:$0xff] %vm473, %v3986
  %4051 = vst [vmem:[#allocation3 + $0x40] sm:$0xff] %v3987
  %4052 = vst.msk [vmem:[#allocation3 + $0x48] sm:$0xff] %vm473, %v3988
  %4053 = vst [vmem:[#allocation3 + $0x50] sm:$0xff] %v3989
  %4054 = vst.msk [vmem:[#allocation3 + $0x58] sm:$0xff] %vm473, %v3990
  %4055 = vst [vmem:[#allocation3 + $0x60] sm:$0xff] %v3991
  %4056 = vst.msk [vmem:[#allocation3 + $0x68] sm:$0xff] %vm473, %v3992
  %4057 = vst [vmem:[#allocation3 + $0x70] sm:$0xff] %v3993
  %4058 = vst.msk [vmem:[#allocation3 + $0x78] sm:$0xff] %vm473, %v3994
  %4059 = vst [vmem:[#allocation3 + $0x80] sm:$0xff] %v3995
  %4060 = vst.msk [vmem:[#allocation3 + $0x88] sm:$0xff] %vm473, %v3996
  %4061 = vst [vmem:[#allocation3 + $0x90] sm:$0xff] %v3997
  %4062 = vst.msk [vmem:[#allocation3 + $0x98] sm:$0xff] %vm473, %v3998
  %4063 = vst [vmem:[#allocation3 + $0xa0] sm:$0xff] %v3999
  %4064 = vst.msk [vmem:[#allocation3 + $0xa8] sm:$0xff] %vm473, %v4000
  %4065 = vst [vmem:[#allocation3 + $0xb0] sm:$0xff] %v4001
  %4066 = vst.msk [vmem:[#allocation3 + $0xb8] sm:$0xff] %vm473, %v4002
  %4067 = vst [vmem:[#allocation3 + $0xc0] sm:$0xff] %v4003
  %4068 = vst.msk [vmem:[#allocation3 + $0xc8] sm:$0xff] %vm473, %v4004
  %4069 = vst [vmem:[#allocation3 + $0xd0] sm:$0xff] %v4005
  %4070 = vst.msk [vmem:[#allocation3 + $0xd8] sm:$0xff] %vm473, %v4006
  %4071 = vst [vmem:[#allocation3 + $0xe0] sm:$0xff] %v4007
  %4072 = vst.msk [vmem:[#allocation3 + $0xe8] sm:$0xff] %vm473, %v4008
  %4073 = vst [vmem:[#allocation3 + $0xf0] sm:$0xff] %v4009
  %4074 = vst.msk [vmem:[#allocation3 + $0xf8] sm:$0xff] %vm473, %v4010
  %4075 = vst [vmem:[#allocation3 + $0x100] sm:$0xff] %v4011
  %4076 = vst.msk [vmem:[#allocation3 + $0x108] sm:$0xff] %vm473, %v4012
  %4077 = vst [vmem:[#allocation3 + $0x110] sm:$0xff] %v4013
  %4078 = vst.msk [vmem:[#allocation3 + $0x118] sm:$0xff] %vm473, %v4014
  %4079 = vst [vmem:[#allocation3 + $0x120] sm:$0xff] %v4015
  %4080 = vst.msk [vmem:[#allocation3 + $0x128] sm:$0xff] %vm473, %v4016
  %4081 = vst [vmem:[#allocation3 + $0x130] sm:$0xff] %v4017
  %4082 = vst.msk [vmem:[#allocation3 + $0x138] sm:$0xff] %vm473, %v4018
  %4083 = vst [vmem:[#allocation3 + $0x140] sm:$0xff] %v4019
  %4084 = vst.msk [vmem:[#allocation3 + $0x148] sm:$0xff] %vm473, %v4020
  %4085 = vst [vmem:[#allocation3 + $0x150] sm:$0xff] %v4021
  %4086 = vst.msk [vmem:[#allocation3 + $0x158] sm:$0xff] %vm473, %v4022
  %4087 = vst [vmem:[#allocation3 + $0x160] sm:$0xff] %v4023
  %4088 = vst.msk [vmem:[#allocation3 + $0x168] sm:$0xff] %vm473, %v4024
  %4089 = vst [vmem:[#allocation3 + $0x170] sm:$0xff] %v4025
  %4090 = vst.msk [vmem:[#allocation3 + $0x178] sm:$0xff] %vm473, %v4026
  %4091 = vst [vmem:[#allocation3 + $0x180] sm:$0xff] %v4027
  %4092 = vst.msk [vmem:[#allocation3 + $0x188] sm:$0xff] %vm473, %v4028
  %4093 = vst [vmem:[#allocation3 + $0x190] sm:$0xff] %v4029
  %4094 = vst.msk [vmem:[#allocation3 + $0x198] sm:$0xff] %vm473, %v4030
  %4095 = vst [vmem:[#allocation3 + $0x1a0] sm:$0xff] %v4031
  %4096 = vst.msk [vmem:[#allocation3 + $0x1a8] sm:$0xff] %vm473, %v4032
  %4097 = vst [vmem:[#allocation3 + $0x1b0] sm:$0xff] %v4033
  %4098 = vst.msk [vmem:[#allocation3 + $0x1b8] sm:$0xff] %vm473, %v4034
  %4099 = vst [vmem:[#allocation3 + $0x1c0] sm:$0xff] %v4035
  %4100 = vst.msk [vmem:[#allocation3 + $0x1c8] sm:$0xff] %vm473, %v4036
  %4101 = vst [vmem:[#allocation3 + $0x1d0] sm:$0xff] %v4037
  %4102 = vst.msk [vmem:[#allocation3 + $0x1d8] sm:$0xff] %vm473, %v4038
  %4103 = vst [vmem:[#allocation3 + $0x1e0] sm:$0xff] %v4039
  %4104 = vst.msk [vmem:[#allocation3 + $0x1e8] sm:$0xff] %vm473, %v4040
  %4105 = vst [vmem:[#allocation3 + $0x1f0] sm:$0xff] %v4041
  %4106 = vst.msk [vmem:[#allocation3 + $0x1f8] sm:$0xff] %vm473, %v4042
  %v4107 = vld [vmem:[#allocation3] sm:$0xff]
  %v4108 = vld [vmem:[#allocation3 + $0x8] sm:$0xff]
  %v4109 = vld [vmem:[#allocation3 + $0x10] sm:$0xff]
  %v4110 = vld [vmem:[#allocation3 + $0x18] sm:$0xff]
  %v4111 = vld [vmem:[#allocation3 + $0x20] sm:$0xff]
  %v4112 = vld [vmem:[#allocation3 + $0x28] sm:$0xff]
  %v4113 = vld [vmem:[#allocation3 + $0x30] sm:$0xff]
  %v4114 = vld [vmem:[#allocation3 + $0x38] sm:$0xff]
  %v4115 = vld [vmem:[#allocation3 + $0x40] sm:$0xff]
  %v4116 = vld [vmem:[#allocation3 + $0x48] sm:$0xff]
  %v4117 = vld [vmem:[#allocation3 + $0x50] sm:$0xff]
  %v4118 = vld [vmem:[#allocation3 + $0x58] sm:$0xff]
  %v4119 = vld [vmem:[#allocation3 + $0x60] sm:$0xff]
  %v4120 = vld [vmem:[#allocation3 + $0x68] sm:$0xff]
  %v4121 = vld [vmem:[#allocation3 + $0x70] sm:$0xff]
  %v4122 = vld [vmem:[#allocation3 + $0x78] sm:$0xff]
  %v4123 = vld [vmem:[#allocation3 + $0x80] sm:$0xff]
  %v4124 = vld [vmem:[#allocation3 + $0x88] sm:$0xff]
  %v4125 = vld [vmem:[#allocation3 + $0x90] sm:$0xff]
  %v4126 = vld [vmem:[#allocation3 + $0x98] sm:$0xff]
  %v4127 = vld [vmem:[#allocation3 + $0xa0] sm:$0xff]
  %v4128 = vld [vmem:[#allocation3 + $0xa8] sm:$0xff]
  %v4129 = vld [vmem:[#allocation3 + $0xb0] sm:$0xff]
  %v4130 = vld [vmem:[#allocation3 + $0xb8] sm:$0xff]
  %v4131 = vld [vmem:[#allocation3 + $0xc0] sm:$0xff]
  %v4132 = vld [vmem:[#allocation3 + $0xc8] sm:$0xff]
  %v4133 = vld [vmem:[#allocation3 + $0xd0] sm:$0xff]
  %v4134 = vld [vmem:[#allocation3 + $0xd8] sm:$0xff]
  %v4135 = vld [vmem:[#allocation3 + $0xe0] sm:$0xff]
  %v4136 = vld [vmem:[#allocation3 + $0xe8] sm:$0xff]
  %v4137 = vld [vmem:[#allocation3 + $0xf0] sm:$0xff]
  %v4138 = vld [vmem:[#allocation3 + $0xf8] sm:$0xff]
  %v4139 = vld [vmem:[#allocation3 + $0x100] sm:$0xff]
  %v4140 = vld [vmem:[#allocation3 + $0x108] sm:$0xff]
  %v4141 = vld [vmem:[#allocation3 + $0x110] sm:$0xff]
  %v4142 = vld [vmem:[#allocation3 + $0x118] sm:$0xff]
  %v4143 = vld [vmem:[#allocation3 + $0x120] sm:$0xff]
  %v4144 = vld [vmem:[#allocation3 + $0x128] sm:$0xff]
  %v4145 = vld [vmem:[#allocation3 + $0x130] sm:$0xff]
  %v4146 = vld [vmem:[#allocation3 + $0x138] sm:$0xff]
  %v4147 = vld [vmem:[#allocation3 + $0x140] sm:$0xff]
  %v4148 = vld [vmem:[#allocation3 + $0x148] sm:$0xff]
  %v4149 = vld [vmem:[#allocation3 + $0x150] sm:$0xff]
  %v4150 = vld [vmem:[#allocation3 + $0x158] sm:$0xff]
  %v4151 = vld [vmem:[#allocation3 + $0x160] sm:$0xff]
  %v4152 = vld [vmem:[#allocation3 + $0x168] sm:$0xff]
  %v4153 = vld [vmem:[#allocation3 + $0x170] sm:$0xff]
  %v4154 = vld [vmem:[#allocation3 + $0x178] sm:$0xff]
  %v4155 = vld [vmem:[#allocation3 + $0x180] sm:$0xff]
  %v4156 = vld [vmem:[#allocation3 + $0x188] sm:$0xff]
  %v4157 = vld [vmem:[#allocation3 + $0x190] sm:$0xff]
  %v4158 = vld [vmem:[#allocation3 + $0x198] sm:$0xff]
  %v4159 = vld [vmem:[#allocation3 + $0x1a0] sm:$0xff]
  %v4160 = vld [vmem:[#allocation3 + $0x1a8] sm:$0xff]
  %v4161 = vld [vmem:[#allocation3 + $0x1b0] sm:$0xff]
  %v4162 = vld [vmem:[#allocation3 + $0x1b8] sm:$0xff]
  %v4163 = vld [vmem:[#allocation3 + $0x1c0] sm:$0xff]
  %v4164 = vld [vmem:[#allocation3 + $0x1c8] sm:$0xff]
  %v4165 = vld [vmem:[#allocation3 + $0x1d0] sm:$0xff]
  %v4166 = vld [vmem:[#allocation3 + $0x1d8] sm:$0xff]
  %v4167 = vld [vmem:[#allocation3 + $0x1e0] sm:$0xff]
  %v4168 = vld [vmem:[#allocation3 + $0x1e8] sm:$0xff]
  %v4169 = vld [vmem:[#allocation3 + $0x1f0] sm:$0xff]
  %v4170 = vld [vmem:[#allocation3 + $0x1f8] sm:$0xff]
  %v4171 = vld [vmem:[#allocation3] sm:$0xfe]
  %v4172 = vld [vmem:[#allocation3 + $0x8] sm:$0xfe]
  %v4173 = vld [vmem:[#allocation3 + $0x200] sm:$0x1]
  %v4174 = vld [vmem:[#allocation3 + $0x208] sm:$0x1]
  %v4241 = vrot.slane %v4171, 1
  %v4242 = vrot.slane %v4109, 1
  %v4243 = vsel %vm1044, %v4241, %v4242
  %v4244 = vrot.slane %v4172, 1
  %v4245 = vrot.slane %v4110, 1
  %v4246 = vsel %vm1044, %v4244, %v4245
  %v4247 = vrot.slane %v4111, 1
  %v4248 = vsel %vm1044, %v4242, %v4247
  %v4249 = vrot.slane %v4112, 1
  %v4250 = vsel %vm1044, %v4245, %v4249
  %v4251 = vrot.slane %v4113, 1
  %v4252 = vsel %vm1044, %v4247, %v4251
  %v4253 = vrot.slane %v4114, 1
  %v4254 = vsel %vm1044, %v4249, %v4253
  %v4255 = vrot.slane %v4115, 1
  %v4256 = vsel %vm1044, %v4251, %v4255
  %v4257 = vrot.slane %v4116, 1
  %v4258 = vsel %vm1044, %v4253, %v4257
  %v4259 = vrot.slane %v4117, 1
  %v4260 = vsel %vm1044, %v4255, %v4259
  %v4261 = vrot.slane %v4118, 1
  %v4262 = vsel %vm1044, %v4257, %v4261
  %v4263 = vrot.slane %v4119, 1
  %v4264 = vsel %vm1044, %v4259, %v4263
  %v4265 = vrot.slane %v4120, 1
  %v4266 = vsel %vm1044, %v4261, %v4265
  %v4267 = vrot.slane %v4121, 1
  %v4268 = vsel %vm1044, %v4263, %v4267
  %v4269 = vrot.slane %v4122, 1
  %v4270 = vsel %vm1044, %v4265, %v4269
  %v4271 = vrot.slane %v4123, 1
  %v4272 = vsel %vm1044, %v4267, %v4271
  %v4273 = vrot.slane %v4124, 1
  %v4274 = vsel %vm1044, %v4269, %v4273
  %v4275 = vrot.slane %v4125, 1
  %v4276 = vsel %vm1044, %v4271, %v4275
  %v4277 = vrot.slane %v4126, 1
  %v4278 = vsel %vm1044, %v4273, %v4277
  %v4279 = vrot.slane %v4127, 1
  %v4280 = vsel %vm1044, %v4275, %v4279
  %v4281 = vrot.slane %v4128, 1
  %v4282 = vsel %vm1044, %v4277, %v4281
  %v4283 = vrot.slane %v4129, 1
  %v4284 = vsel %vm1044, %v4279, %v4283
  %v4285 = vrot.slane %v4130, 1
  %v4286 = vsel %vm1044, %v4281, %v4285
  %v4287 = vrot.slane %v4131, 1
  %v4288 = vsel %vm1044, %v4283, %v4287
  %v4289 = vrot.slane %v4132, 1
  %v4290 = vsel %vm1044, %v4285, %v4289
  %v4291 = vrot.slane %v4133, 1
  %v4292 = vsel %vm1044, %v4287, %v4291
  %v4293 = vrot.slane %v4134, 1
  %v4294 = vsel %vm1044, %v4289, %v4293
  %v4295 = vrot.slane %v4135, 1
  %v4296 = vsel %vm1044, %v4291, %v4295
  %v4297 = vrot.slane %v4136, 1
  %v4298 = vsel %vm1044, %v4293, %v4297
  %v4299 = vrot.slane %v4137, 1
  %v4300 = vsel %vm1044, %v4295, %v4299
  %v4301 = vrot.slane %v4138, 1
  %v4302 = vsel %vm1044, %v4297, %v4301
  %v4303 = vrot.slane %v4139, 1
  %v4304 = vsel %vm1044, %v4299, %v4303
  %v4305 = vrot.slane %v4140, 1
  %v4306 = vsel %vm1044, %v4301, %v4305
  %v4307 = vrot.slane %v4141, 1
  %v4308 = vsel %vm1044, %v4303, %v4307
  %v4309 = vrot.slane %v4142, 1
  %v4310 = vsel %vm1044, %v4305, %v4309
  %v4311 = vrot.slane %v4143, 1
  %v4312 = vsel %vm1044, %v4307, %v4311
  %v4313 = vrot.slane %v4144, 1
  %v4314 = vsel %vm1044, %v4309, %v4313
  %v4315 = vrot.slane %v4145, 1
  %v4316 = vsel %vm1044, %v4311, %v4315
  %v4317 = vrot.slane %v4146, 1
  %v4318 = vsel %vm1044, %v4313, %v4317
  %v4319 = vrot.slane %v4147, 1
  %v4320 = vsel %vm1044, %v4315, %v4319
  %v4321 = vrot.slane %v4148, 1
  %v4322 = vsel %vm1044, %v4317, %v4321
  %v4323 = vrot.slane %v4149, 1
  %v4324 = vsel %vm1044, %v4319, %v4323
  %v4325 = vrot.slane %v4150, 1
  %v4326 = vsel %vm1044, %v4321, %v4325
  %v4327 = vrot.slane %v4151, 1
  %v4328 = vsel %vm1044, %v4323, %v4327
  %v4329 = vrot.slane %v4152, 1
  %v4330 = vsel %vm1044, %v4325, %v4329
  %v4331 = vrot.slane %v4153, 1
  %v4332 = vsel %vm1044, %v4327, %v4331
  %v4333 = vrot.slane %v4154, 1
  %v4334 = vsel %vm1044, %v4329, %v4333
  %v4335 = vrot.slane %v4155, 1
  %v4336 = vsel %vm1044, %v4331, %v4335
  %v4337 = vrot.slane %v4156, 1
  %v4338 = vsel %vm1044, %v4333, %v4337
  %v4339 = vrot.slane %v4157, 1
  %v4340 = vsel %vm1044, %v4335, %v4339
  %v4341 = vrot.slane %v4158, 1
  %v4342 = vsel %vm1044, %v4337, %v4341
  %v4343 = vrot.slane %v4159, 1
  %v4344 = vsel %vm1044, %v4339, %v4343
  %v4345 = vrot.slane %v4160, 1
  %v4346 = vsel %vm1044, %v4341, %v4345
  %v4347 = vrot.slane %v4161, 1
  %v4348 = vsel %vm1044, %v4343, %v4347
  %v4349 = vrot.slane %v4162, 1
  %v4350 = vsel %vm1044, %v4345, %v4349
  %v4351 = vrot.slane %v4163, 1
  %v4352 = vsel %vm1044, %v4347, %v4351
  %v4353 = vrot.slane %v4164, 1
  %v4354 = vsel %vm1044, %v4349, %v4353
  %v4355 = vrot.slane %v4165, 1
  %v4356 = vsel %vm1044, %v4351, %v4355
  %v4357 = vrot.slane %v4166, 1
  %v4358 = vsel %vm1044, %v4353, %v4357
  %v4359 = vrot.slane %v4167, 1
  %v4360 = vsel %vm1044, %v4355, %v4359
  %v4361 = vrot.slane %v4168, 1
  %v4362 = vsel %vm1044, %v4357, %v4361
  %v4363 = vrot.slane %v4169, 1
  %v4364 = vsel %vm1044, %v4359, %v4363
  %v4365 = vrot.slane %v4170, 1
  %v4366 = vsel %vm1044, %v4361, %v4365
  %v4367 = vrot.slane %v4173, 1
  %v4368 = vsel %vm1044, %v4363, %v4367
  %v4369 = vrot.slane %v4174, 1
  %v4370 = vsel %vm1044, %v4365, %v4369
  %v4435 = vmax.f32 %v4107, %v4243
  %v4436 = vmax.f32 %v4108, %v4246
  %v4437 = vmax.f32 %v4109, %v4248
  %v4438 = vmax.f32 %v4110, %v4250
  %v4439 = vmax.f32 %v4111, %v4252
  %v4440 = vmax.f32 %v4112, %v4254
  %v4441 = vmax.f32 %v4113, %v4256
  %v4442 = vmax.f32 %v4114, %v4258
  %v4443 = vmax.f32 %v4115, %v4260
  %v4444 = vmax.f32 %v4116, %v4262
  %v4445 = vmax.f32 %v4117, %v4264
  %v4446 = vmax.f32 %v4118, %v4266
  %v4447 = vmax.f32 %v4119, %v4268
  %v4448 = vmax.f32 %v4120, %v4270
  %v4449 = vmax.f32 %v4121, %v4272
  %v4450 = vmax.f32 %v4122, %v4274
  %v4451 = vmax.f32 %v4123, %v4276
  %v4452 = vmax.f32 %v4124, %v4278
  %v4453 = vmax.f32 %v4125, %v4280
  %v4454 = vmax.f32 %v4126, %v4282
  %v4455 = vmax.f32 %v4127, %v4284
  %v4456 = vmax.f32 %v4128, %v4286
  %v4457 = vmax.f32 %v4129, %v4288
  %v4458 = vmax.f32 %v4130, %v4290
  %v4459 = vmax.f32 %v4131, %v4292
  %v4460 = vmax.f32 %v4132, %v4294
  %v4461 = vmax.f32 %v4133, %v4296
  %v4462 = vmax.f32 %v4134, %v4298
  %v4463 = vmax.f32 %v4135, %v4300
  %v4464 = vmax.f32 %v4136, %v4302
  %v4465 = vmax.f32 %v4137, %v4304
  %v4466 = vmax.f32 %v4138, %v4306
  %v4467 = vmax.f32 %v4139, %v4308
  %v4468 = vmax.f32 %v4140, %v4310
  %v4469 = vmax.f32 %v4141, %v4312
  %v4470 = vmax.f32 %v4142, %v4314
  %v4471 = vmax.f32 %v4143, %v4316
  %v4472 = vmax.f32 %v4144, %v4318
  %v4473 = vmax.f32 %v4145, %v4320
  %v4474 = vmax.f32 %v4146, %v4322
  %v4475 = vmax.f32 %v4147, %v4324
  %v4476 = vmax.f32 %v4148, %v4326
  %v4477 = vmax.f32 %v4149, %v4328
  %v4478 = vmax.f32 %v4150, %v4330
  %v4479 = vmax.f32 %v4151, %v4332
  %v4480 = vmax.f32 %v4152, %v4334
  %v4481 = vmax.f32 %v4153, %v4336
  %v4482 = vmax.f32 %v4154, %v4338
  %v4483 = vmax.f32 %v4155, %v4340
  %v4484 = vmax.f32 %v4156, %v4342
  %v4485 = vmax.f32 %v4157, %v4344
  %v4486 = vmax.f32 %v4158, %v4346
  %v4487 = vmax.f32 %v4159, %v4348
  %v4488 = vmax.f32 %v4160, %v4350
  %v4489 = vmax.f32 %v4161, %v4352
  %v4490 = vmax.f32 %v4162, %v4354
  %v4491 = vmax.f32 %v4163, %v4356
  %v4492 = vmax.f32 %v4164, %v4358
  %v4493 = vmax.f32 %v4165, %v4360
  %v4494 = vmax.f32 %v4166, %v4362
  %v4495 = vmax.f32 %v4167, %v4364
  %v4496 = vmax.f32 %v4168, %v4366
  %v4497 = vmax.f32 %v4169, %v4368
  %v4498 = vmax.f32 %v4170, %v4370
  %4563 = vrot.lane.b32.xlu0 %v4435, 122
  %v4564 = vpop.permute.xlu0 %4563
  %4565 = vrot.lane.b32.xlu0 %v4436, 122
  %v4566 = vpop.permute.xlu0 %4565
  %4567 = vrot.lane.b32.xlu0 %v4437, 122
  %v4568 = vpop.permute.xlu0 %4567
  %4569 = vrot.lane.b32.xlu0 %v4438, 122
  %v4570 = vpop.permute.xlu0 %4569
  %4571 = vrot.lane.b32.xlu0 %v4439, 122
  %v4572 = vpop.permute.xlu0 %4571
  %4573 = vrot.lane.b32.xlu0 %v4440, 122
  %v4574 = vpop.permute.xlu0 %4573
  %4575 = vrot.lane.b32.xlu0 %v4441, 122
  %v4576 = vpop.permute.xlu0 %4575
  %4577 = vrot.lane.b32.xlu0 %v4442, 122
  %v4578 = vpop.permute.xlu0 %4577
  %4579 = vrot.lane.b32.xlu0 %v4443, 122
  %v4580 = vpop.permute.xlu0 %4579
  %4581 = vrot.lane.b32.xlu0 %v4444, 122
  %v4582 = vpop.permute.xlu0 %4581
  %4583 = vrot.lane.b32.xlu0 %v4445, 122
  %v4584 = vpop.permute.xlu0 %4583
  %4585 = vrot.lane.b32.xlu0 %v4446, 122
  %v4586 = vpop.permute.xlu0 %4585
  %4587 = vrot.lane.b32.xlu0 %v4447, 122
  %v4588 = vpop.permute.xlu0 %4587
  %4589 = vrot.lane.b32.xlu0 %v4448, 122
  %v4590 = vpop.permute.xlu0 %4589
  %4591 = vrot.lane.b32.xlu0 %v4449, 122
  %v4592 = vpop.permute.xlu0 %4591
  %4593 = vrot.lane.b32.xlu0 %v4450, 122
  %v4594 = vpop.permute.xlu0 %4593
  %4595 = vrot.lane.b32.xlu0 %v4451, 122
  %v4596 = vpop.permute.xlu0 %4595
  %4597 = vrot.lane.b32.xlu0 %v4452, 122
  %v4598 = vpop.permute.xlu0 %4597
  %4599 = vrot.lane.b32.xlu0 %v4453, 122
  %v4600 = vpop.permute.xlu0 %4599
  %4601 = vrot.lane.b32.xlu0 %v4454, 122
  %v4602 = vpop.permute.xlu0 %4601
  %4603 = vrot.lane.b32.xlu0 %v4455, 122
  %v4604 = vpop.permute.xlu0 %4603
  %4605 = vrot.lane.b32.xlu0 %v4456, 122
  %v4606 = vpop.permute.xlu0 %4605
  %4607 = vrot.lane.b32.xlu0 %v4457, 122
  %v4608 = vpop.permute.xlu0 %4607
  %4609 = vrot.lane.b32.xlu0 %v4458, 122
  %v4610 = vpop.permute.xlu0 %4609
  %4611 = vrot.lane.b32.xlu0 %v4459, 122
  %v4612 = vpop.permute.xlu0 %4611
  %4613 = vrot.lane.b32.xlu0 %v4460, 122
  %v4614 = vpop.permute.xlu0 %4613
  %4615 = vrot.lane.b32.xlu0 %v4461, 122
  %v4616 = vpop.permute.xlu0 %4615
  %4617 = vrot.lane.b32.xlu0 %v4462, 122
  %v4618 = vpop.permute.xlu0 %4617
  %4619 = vrot.lane.b32.xlu0 %v4463, 122
  %v4620 = vpop.permute.xlu0 %4619
  %4621 = vrot.lane.b32.xlu0 %v4464, 122
  %v4622 = vpop.permute.xlu0 %4621
  %4623 = vrot.lane.b32.xlu0 %v4465, 122
  %v4624 = vpop.permute.xlu0 %4623
  %4625 = vrot.lane.b32.xlu0 %v4466, 122
  %v4626 = vpop.permute.xlu0 %4625
  %4627 = vrot.lane.b32.xlu0 %v4467, 122
  %v4628 = vpop.permute.xlu0 %4627
  %4629 = vrot.lane.b32.xlu0 %v4468, 122
  %v4630 = vpop.permute.xlu0 %4629
  %4631 = vrot.lane.b32.xlu0 %v4469, 122
  %v4632 = vpop.permute.xlu0 %4631
  %4633 = vrot.lane.b32.xlu0 %v4470, 122
  %v4634 = vpop.permute.xlu0 %4633
  %4635 = vrot.lane.b32.xlu0 %v4471, 122
  %v4636 = vpop.permute.xlu0 %4635
  %4637 = vrot.lane.b32.xlu0 %v4472, 122
  %v4638 = vpop.permute.xlu0 %4637
  %4639 = vrot.lane.b32.xlu0 %v4473, 122
  %v4640 = vpop.permute.xlu0 %4639
  %4641 = vrot.lane.b32.xlu0 %v4474, 122
  %v4642 = vpop.permute.xlu0 %4641
  %4643 = vrot.lane.b32.xlu0 %v4475, 122
  %v4644 = vpop.permute.xlu0 %4643
  %4645 = vrot.lane.b32.xlu0 %v4476, 122
  %v4646 = vpop.permute.xlu0 %4645
  %4647 = vrot.lane.b32.xlu0 %v4477, 122
  %v4648 = vpop.permute.xlu0 %4647
  %4649 = vrot.lane.b32.xlu0 %v4478, 122
  %v4650 = vpop.permute.xlu0 %4649
  %4651 = vrot.lane.b32.xlu0 %v4479, 122
  %v4652 = vpop.permute.xlu0 %4651
  %4653 = vrot.lane.b32.xlu0 %v4480, 122
  %v4654 = vpop.permute.xlu0 %4653
  %4655 = vrot.lane.b32.xlu0 %v4481, 122
  %v4656 = vpop.permute.xlu0 %4655
  %4657 = vrot.lane.b32.xlu0 %v4482, 122
  %v4658 = vpop.permute.xlu0 %4657
  %4659 = vrot.lane.b32.xlu0 %v4483, 122
  %v4660 = vpop.permute.xlu0 %4659
  %4661 = vrot.lane.b32.xlu0 %v4484, 122
  %v4662 = vpop.permute.xlu0 %4661
  %4663 = vrot.lane.b32.xlu0 %v4485, 122
  %v4664 = vpop.permute.xlu0 %4663
  %4665 = vrot.lane.b32.xlu0 %v4486, 122
  %v4666 = vpop.permute.xlu0 %4665
  %4667 = vrot.lane.b32.xlu0 %v4487, 122
  %v4668 = vpop.permute.xlu0 %4667
  %4669 = vrot.lane.b32.xlu0 %v4488, 122
  %v4670 = vpop.permute.xlu0 %4669
  %4671 = vrot.lane.b32.xlu0 %v4489, 122
  %v4672 = vpop.permute.xlu0 %4671
  %4673 = vrot.lane.b32.xlu0 %v4490, 122
  %v4674 = vpop.permute.xlu0 %4673
  %4675 = vrot.lane.b32.xlu0 %v4491, 122
  %v4676 = vpop.permute.xlu0 %4675
  %4677 = vrot.lane.b32.xlu0 %v4492, 122
  %v4678 = vpop.permute.xlu0 %4677
  %4679 = vrot.lane.b32.xlu0 %v4493, 122
  %v4680 = vpop.permute.xlu0 %4679
  %4681 = vrot.lane.b32.xlu0 %v4494, 122
  %v4682 = vpop.permute.xlu0 %4681
  %4683 = vrot.lane.b32.xlu0 %v4495, 122
  %v4684 = vpop.permute.xlu0 %4683
  %4685 = vrot.lane.b32.xlu0 %v4496, 122
  %v4686 = vpop.permute.xlu0 %4685
  %4687 = vrot.lane.b32.xlu0 %v4497, 122
  %v4688 = vpop.permute.xlu0 %4687
  %4689 = vrot.lane.b32.xlu0 %v4498, 122
  %v4690 = vpop.permute.xlu0 %4689
  %vm4691 = vcmask 998400
  %v4692 = vsel %vm4691, %v4564, %v4566
  %v4693 = vsel %vm4691, %v4568, %v4570
  %v4694 = vsel %vm4691, %v4572, %v4574
  %v4695 = vsel %vm4691, %v4576, %v4578
  %v4696 = vsel %vm4691, %v4580, %v4582
  %v4697 = vsel %vm4691, %v4584, %v4586
  %v4698 = vsel %vm4691, %v4588, %v4590
  %v4699 = vsel %vm4691, %v4592, %v4594
  %v4700 = vsel %vm4691, %v4596, %v4598
  %v4701 = vsel %vm4691, %v4600, %v4602
  %v4702 = vsel %vm4691, %v4604, %v4606
  %v4703 = vsel %vm4691, %v4608, %v4610
  %v4704 = vsel %vm4691, %v4612, %v4614
  %v4705 = vsel %vm4691, %v4616, %v4618
  %v4706 = vsel %vm4691, %v4620, %v4622
  %v4707 = vsel %vm4691, %v4624, %v4626
  %v4708 = vsel %vm4691, %v4628, %v4630
  %v4709 = vsel %vm4691, %v4632, %v4634
  %v4710 = vsel %vm4691, %v4636, %v4638
  %v4711 = vsel %vm4691, %v4640, %v4642
  %v4712 = vsel %vm4691, %v4644, %v4646
  %v4713 = vsel %vm4691, %v4648, %v4650
  %v4714 = vsel %vm4691, %v4652, %v4654
  %v4715 = vsel %vm4691, %v4656, %v4658
  %v4716 = vsel %vm4691, %v4660, %v4662
  %v4717 = vsel %vm4691, %v4664, %v4666
  %v4718 = vsel %vm4691, %v4668, %v4670
  %v4719 = vsel %vm4691, %v4672, %v4674
  %v4720 = vsel %vm4691, %v4676, %v4678
  %v4721 = vsel %vm4691, %v4680, %v4682
  %v4722 = vsel %vm4691, %v4684, %v4686
  %v4723 = vsel %vm4691, %v4688, %v4690
  %v4788 = vmax.f32 %v4435, %v4692
  %v4789 = vmax.f32 %v4436, %v4566
  %v4790 = vmax.f32 %v4437, %v4693
  %v4791 = vmax.f32 %v4438, %v4570
  %v4792 = vmax.f32 %v4439, %v4694
  %v4793 = vmax.f32 %v4440, %v4574
  %v4794 = vmax.f32 %v4441, %v4695
  %v4795 = vmax.f32 %v4442, %v4578
  %v4796 = vmax.f32 %v4443, %v4696
  %v4797 = vmax.f32 %v4444, %v4582
  %v4798 = vmax.f32 %v4445, %v4697
  %v4799 = vmax.f32 %v4446, %v4586
  %v4800 = vmax.f32 %v4447, %v4698
  %v4801 = vmax.f32 %v4448, %v4590
  %v4802 = vmax.f32 %v4449, %v4699
  %v4803 = vmax.f32 %v4450, %v4594
  %v4804 = vmax.f32 %v4451, %v4700
  %v4805 = vmax.f32 %v4452, %v4598
  %v4806 = vmax.f32 %v4453, %v4701
  %v4807 = vmax.f32 %v4454, %v4602
  %v4808 = vmax.f32 %v4455, %v4702
  %v4809 = vmax.f32 %v4456, %v4606
  %v4810 = vmax.f32 %v4457, %v4703
  %v4811 = vmax.f32 %v4458, %v4610
  %v4812 = vmax.f32 %v4459, %v4704
  %v4813 = vmax.f32 %v4460, %v4614
  %v4814 = vmax.f32 %v4461, %v4705
  %v4815 = vmax.f32 %v4462, %v4618
  %v4816 = vmax.f32 %v4463, %v4706
  %v4817 = vmax.f32 %v4464, %v4622
  %v4818 = vmax.f32 %v4465, %v4707
  %v4819 = vmax.f32 %v4466, %v4626
  %v4820 = vmax.f32 %v4467, %v4708
  %v4821 = vmax.f32 %v4468, %v4630
  %v4822 = vmax.f32 %v4469, %v4709
  %v4823 = vmax.f32 %v4470, %v4634
  %v4824 = vmax.f32 %v4471, %v4710
  %v4825 = vmax.f32 %v4472, %v4638
  %v4826 = vmax.f32 %v4473, %v4711
  %v4827 = vmax.f32 %v4474, %v4642
  %v4828 = vmax.f32 %v4475, %v4712
  %v4829 = vmax.f32 %v4476, %v4646
  %v4830 = vmax.f32 %v4477, %v4713
  %v4831 = vmax.f32 %v4478, %v4650
  %v4832 = vmax.f32 %v4479, %v4714
  %v4833 = vmax.f32 %v4480, %v4654
  %v4834 = vmax.f32 %v4481, %v4715
  %v4835 = vmax.f32 %v4482, %v4658
  %v4836 = vmax.f32 %v4483, %v4716
  %v4837 = vmax.f32 %v4484, %v4662
  %v4838 = vmax.f32 %v4485, %v4717
  %v4839 = vmax.f32 %v4486, %v4666
  %v4840 = vmax.f32 %v4487, %v4718
  %v4841 = vmax.f32 %v4488, %v4670
  %v4842 = vmax.f32 %v4489, %v4719
  %v4843 = vmax.f32 %v4490, %v4674
  %v4844 = vmax.f32 %v4491, %v4720
  %v4845 = vmax.f32 %v4492, %v4678
  %v4846 = vmax.f32 %v4493, %v4721
  %v4847 = vmax.f32 %v4494, %v4682
  %v4848 = vmax.f32 %v4495, %v4722
  %v4849 = vmax.f32 %v4496, %v4686
  %v4850 = vmax.f32 %v4497, %v4723
  %v4851 = vmax.f32 %v4498, %v4690
  %4852 = vst [vmem:[#allocation4] sm:$0xff] %v4788
  %4853 = vst.msk [vmem:[#allocation4 + $0x8] sm:$0xff] %vm473, %v4789
  %4854 = vst [vmem:[#allocation4 + $0x10] sm:$0xff] %v4790
  %4855 = vst.msk [vmem:[#allocation4 + $0x18] sm:$0xff] %vm473, %v4791
  %4856 = vst [vmem:[#allocation4 + $0x20] sm:$0xff] %v4792
  %4857 = vst.msk [vmem:[#allocation4 + $0x28] sm:$0xff] %vm473, %v4793
  %4858 = vst [vmem:[#allocation4 + $0x30] sm:$0xff] %v4794
  %4859 = vst.msk [vmem:[#allocation4 + $0x38] sm:$0xff] %vm473, %v4795
  %4860 = vst [vmem:[#allocation4 + $0x40] sm:$0xff] %v4796
  %4861 = vst.msk [vmem:[#allocation4 + $0x48] sm:$0xff] %vm473, %v4797
  %4862 = vst [vmem:[#allocation4 + $0x50] sm:$0xff] %v4798
  %4863 = vst.msk [vmem:[#allocation4 + $0x58] sm:$0xff] %vm473, %v4799
  %4864 = vst [vmem:[#allocation4 + $0x60] sm:$0xff] %v4800
  %4865 = vst.msk [vmem:[#allocation4 + $0x68] sm:$0xff] %vm473, %v4801
  %4866 = vst [vmem:[#allocation4 + $0x70] sm:$0xff] %v4802
  %4867 = vst.msk [vmem:[#allocation4 + $0x78] sm:$0xff] %vm473, %v4803
  %4868 = vst [vmem:[#allocation4 + $0x80] sm:$0xff] %v4804
  %4869 = vst.msk [vmem:[#allocation4 + $0x88] sm:$0xff] %vm473, %v4805
  %4870 = vst [vmem:[#allocation4 + $0x90] sm:$0xff] %v4806
  %4871 = vst.msk [vmem:[#allocation4 + $0x98] sm:$0xff] %vm473, %v4807
  %4872 = vst [vmem:[#allocation4 + $0xa0] sm:$0xff] %v4808
  %4873 = vst.msk [vmem:[#allocation4 + $0xa8] sm:$0xff] %vm473, %v4809
  %4874 = vst [vmem:[#allocation4 + $0xb0] sm:$0xff] %v4810
  %4875 = vst.msk [vmem:[#allocation4 + $0xb8] sm:$0xff] %vm473, %v4811
  %4876 = vst [vmem:[#allocation4 + $0xc0] sm:$0xff] %v4812
  %4877 = vst.msk [vmem:[#allocation4 + $0xc8] sm:$0xff] %vm473, %v4813
  %4878 = vst [vmem:[#allocation4 + $0xd0] sm:$0xff] %v4814
  %4879 = vst.msk [vmem:[#allocation4 + $0xd8] sm:$0xff] %vm473, %v4815
  %4880 = vst [vmem:[#allocation4 + $0xe0] sm:$0xff] %v4816
  %4881 = vst.msk [vmem:[#allocation4 + $0xe8] sm:$0xff] %vm473, %v4817
  %4882 = vst [vmem:[#allocation4 + $0xf0] sm:$0xff] %v4818
  %4883 = vst.msk [vmem:[#allocation4 + $0xf8] sm:$0xff] %vm473, %v4819
  %4884 = vst [vmem:[#allocation4 + $0x100] sm:$0xff] %v4820
  %4885 = vst.msk [vmem:[#allocation4 + $0x108] sm:$0xff] %vm473, %v4821
  %4886 = vst [vmem:[#allocation4 + $0x110] sm:$0xff] %v4822
  %4887 = vst.msk [vmem:[#allocation4 + $0x118] sm:$0xff] %vm473, %v4823
  %4888 = vst [vmem:[#allocation4 + $0x120] sm:$0xff] %v4824
  %4889 = vst.msk [vmem:[#allocation4 + $0x128] sm:$0xff] %vm473, %v4825
  %4890 = vst [vmem:[#allocation4 + $0x130] sm:$0xff] %v4826
  %4891 = vst.msk [vmem:[#allocation4 + $0x138] sm:$0xff] %vm473, %v4827
  %4892 = vst [vmem:[#allocation4 + $0x140] sm:$0xff] %v4828
  %4893 = vst.msk [vmem:[#allocation4 + $0x148] sm:$0xff] %vm473, %v4829
  %4894 = vst [vmem:[#allocation4 + $0x150] sm:$0xff] %v4830
  %4895 = vst.msk [vmem:[#allocation4 + $0x158] sm:$0xff] %vm473, %v4831
  %4896 = vst [vmem:[#allocation4 + $0x160] sm:$0xff] %v4832
  %4897 = vst.msk [vmem:[#allocation4 + $0x168] sm:$0xff] %vm473, %v4833
  %4898 = vst [vmem:[#allocation4 + $0x170] sm:$0xff] %v4834
  %4899 = vst.msk [vmem:[#allocation4 + $0x178] sm:$0xff] %vm473, %v4835
  %4900 = vst [vmem:[#allocation4 + $0x180] sm:$0xff] %v4836
  %4901 = vst.msk [vmem:[#allocation4 + $0x188] sm:$0xff] %vm473, %v4837
  %4902 = vst [vmem:[#allocation4 + $0x190] sm:$0xff] %v4838
  %4903 = vst.msk [vmem:[#allocation4 + $0x198] sm:$0xff] %vm473, %v4839
  %4904 = vst [vmem:[#allocation4 + $0x1a0] sm:$0xff] %v4840
  %4905 = vst.msk [vmem:[#allocation4 + $0x1a8] sm:$0xff] %vm473, %v4841
  %4906 = vst [vmem:[#allocation4 + $0x1b0] sm:$0xff] %v4842
  %4907 = vst.msk [vmem:[#allocation4 + $0x1b8] sm:$0xff] %vm473, %v4843
  %4908 = vst [vmem:[#allocation4 + $0x1c0] sm:$0xff] %v4844
  %4909 = vst.msk [vmem:[#allocation4 + $0x1c8] sm:$0xff] %vm473, %v4845
  %4910 = vst [vmem:[#allocation4 + $0x1d0] sm:$0xff] %v4846
  %4911 = vst.msk [vmem:[#allocation4 + $0x1d8] sm:$0xff] %vm473, %v4847
  %4912 = vst [vmem:[#allocation4 + $0x1e0] sm:$0xff] %v4848
  %4913 = vst.msk [vmem:[#allocation4 + $0x1e8] sm:$0xff] %vm473, %v4849
  %4914 = vst [vmem:[#allocation4 + $0x1f0] sm:$0xff] %v4850
  %4915 = vst.msk [vmem:[#allocation4 + $0x1f8] sm:$0xff] %vm473, %v4851
  %v4916 = vld [vmem:[#allocation4] sm:$0xff]
  %v4917 = vld [vmem:[#allocation4 + $0x8] sm:$0xff]
  %v4918 = vld [vmem:[#allocation4 + $0x10] sm:$0xff]
  %v4919 = vld [vmem:[#allocation4 + $0x18] sm:$0xff]
  %v4920 = vld [vmem:[#allocation4 + $0x20] sm:$0xff]
  %v4921 = vld [vmem:[#allocation4 + $0x28] sm:$0xff]
  %v4922 = vld [vmem:[#allocation4 + $0x30] sm:$0xff]
  %v4923 = vld [vmem:[#allocation4 + $0x38] sm:$0xff]
  %v4924 = vld [vmem:[#allocation4 + $0x40] sm:$0xff]
  %v4925 = vld [vmem:[#allocation4 + $0x48] sm:$0xff]
  %v4926 = vld [vmem:[#allocation4 + $0x50] sm:$0xff]
  %v4927 = vld [vmem:[#allocation4 + $0x58] sm:$0xff]
  %v4928 = vld [vmem:[#allocation4 + $0x60] sm:$0xff]
  %v4929 = vld [vmem:[#allocation4 + $0x68] sm:$0xff]
  %v4930 = vld [vmem:[#allocation4 + $0x70] sm:$0xff]
  %v4931 = vld [vmem:[#allocation4 + $0x78] sm:$0xff]
  %v4932 = vld [vmem:[#allocation4 + $0x80] sm:$0xff]
  %v4933 = vld [vmem:[#allocation4 + $0x88] sm:$0xff]
  %v4934 = vld [vmem:[#allocation4 + $0x90] sm:$0xff]
  %v4935 = vld [vmem:[#allocation4 + $0x98] sm:$0xff]
  %v4936 = vld [vmem:[#allocation4 + $0xa0] sm:$0xff]
  %v4937 = vld [vmem:[#allocation4 + $0xa8] sm:$0xff]
  %v4938 = vld [vmem:[#allocation4 + $0xb0] sm:$0xff]
  %v4939 = vld [vmem:[#allocation4 + $0xb8] sm:$0xff]
  %v4940 = vld [vmem:[#allocation4 + $0xc0] sm:$0xff]
  %v4941 = vld [vmem:[#allocation4 + $0xc8] sm:$0xff]
  %v4942 = vld [vmem:[#allocation4 + $0xd0] sm:$0xff]
  %v4943 = vld [vmem:[#allocation4 + $0xd8] sm:$0xff]
  %v4944 = vld [vmem:[#allocation4 + $0xe0] sm:$0xff]
  %v4945 = vld [vmem:[#allocation4 + $0xe8] sm:$0xff]
  %v4946 = vld [vmem:[#allocation4 + $0xf0] sm:$0xff]
  %v4947 = vld [vmem:[#allocation4 + $0xf8] sm:$0xff]
  %v4948 = vld [vmem:[#allocation4 + $0x100] sm:$0xff]
  %v4949 = vld [vmem:[#allocation4 + $0x108] sm:$0xff]
  %v4950 = vld [vmem:[#allocation4 + $0x110] sm:$0xff]
  %v4951 = vld [vmem:[#allocation4 + $0x118] sm:$0xff]
  %v4952 = vld [vmem:[#allocation4 + $0x120] sm:$0xff]
  %v4953 = vld [vmem:[#allocation4 + $0x128] sm:$0xff]
  %v4954 = vld [vmem:[#allocation4 + $0x130] sm:$0xff]
  %v4955 = vld [vmem:[#allocation4 + $0x138] sm:$0xff]
  %v4956 = vld [vmem:[#allocation4 + $0x140] sm:$0xff]
  %v4957 = vld [vmem:[#allocation4 + $0x148] sm:$0xff]
  %v4958 = vld [vmem:[#allocation4 + $0x150] sm:$0xff]
  %v4959 = vld [vmem:[#allocation4 + $0x158] sm:$0xff]
  %v4960 = vld [vmem:[#allocation4 + $0x160] sm:$0xff]
  %v4961 = vld [vmem:[#allocation4 + $0x168] sm:$0xff]
  %v4962 = vld [vmem:[#allocation4 + $0x170] sm:$0xff]
  %v4963 = vld [vmem:[#allocation4 + $0x178] sm:$0xff]
  %v4964 = vld [vmem:[#allocation4 + $0x180] sm:$0xff]
  %v4965 = vld [vmem:[#allocation4 + $0x188] sm:$0xff]
  %v4966 = vld [vmem:[#allocation4 + $0x190] sm:$0xff]
  %v4967 = vld [vmem:[#allocation4 + $0x198] sm:$0xff]
  %v4968 = vld [vmem:[#allocation4 + $0x1a0] sm:$0xff]
  %v4969 = vld [vmem:[#allocation4 + $0x1a8] sm:$0xff]
  %v4970 = vld [vmem:[#allocation4 + $0x1b0] sm:$0xff]
  %v4971 = vld [vmem:[#allocation4 + $0x1b8] sm:$0xff]
  %v4972 = vld [vmem:[#allocation4 + $0x1c0] sm:$0xff]
  %v4973 = vld [vmem:[#allocation4 + $0x1c8] sm:$0xff]
  %v4974 = vld [vmem:[#allocation4 + $0x1d0] sm:$0xff]
  %v4975 = vld [vmem:[#allocation4 + $0x1d8] sm:$0xff]
  %v4976 = vld [vmem:[#allocation4 + $0x1e0] sm:$0xff]
  %v4977 = vld [vmem:[#allocation4 + $0x1e8] sm:$0xff]
  %v4978 = vld [vmem:[#allocation4 + $0x1f0] sm:$0xff]
  %v4979 = vld [vmem:[#allocation4 + $0x1f8] sm:$0xff]
  %v4980 = vld [vmem:[%s3] sm:$0xff]
  %v4981 = vld [vmem:[%s3 + $0x8] sm:$0xff]
  %v4982 = vld [vmem:[%s3 + $0x10] sm:$0xff]
  %v4983 = vld [vmem:[%s3 + $0x18] sm:$0xff]
  %v4984 = vld [vmem:[%s3 + $0x20] sm:$0xff]
  %v4985 = vld [vmem:[%s3 + $0x28] sm:$0xff]
  %v4986 = vld [vmem:[%s3 + $0x30] sm:$0xff]
  %v4987 = vld [vmem:[%s3 + $0x38] sm:$0xff]
  %v4988 = vld [vmem:[%s3 + $0x40] sm:$0xff]
  %v4989 = vld [vmem:[%s3 + $0x48] sm:$0xff]
  %v4990 = vld [vmem:[%s3 + $0x50] sm:$0xff]
  %v4991 = vld [vmem:[%s3 + $0x58] sm:$0xff]
  %v4992 = vld [vmem:[%s3 + $0x60] sm:$0xff]
  %v4993 = vld [vmem:[%s3 + $0x68] sm:$0xff]
  %v4994 = vld [vmem:[%s3 + $0x70] sm:$0xff]
  %v4995 = vld [vmem:[%s3 + $0x78] sm:$0xff]
  %v4996 = vld [vmem:[%s3 + $0x80] sm:$0xff]
  %v4997 = vld [vmem:[%s3 + $0x88] sm:$0xff]
  %v4998 = vld [vmem:[%s3 + $0x90] sm:$0xff]
  %v4999 = vld [vmem:[%s3 + $0x98] sm:$0xff]
  %v5000 = vld [vmem:[%s3 + $0xa0] sm:$0xff]
  %v5001 = vld [vmem:[%s3 + $0xa8] sm:$0xff]
  %v5002 = vld [vmem:[%s3 + $0xb0] sm:$0xff]
  %v5003 = vld [vmem:[%s3 + $0xb8] sm:$0xff]
  %v5004 = vld [vmem:[%s3 + $0xc0] sm:$0xff]
  %v5005 = vld [vmem:[%s3 + $0xc8] sm:$0xff]
  %v5006 = vld [vmem:[%s3 + $0xd0] sm:$0xff]
  %v5007 = vld [vmem:[%s3 + $0xd8] sm:$0xff]
  %v5008 = vld [vmem:[%s3 + $0xe0] sm:$0xff]
  %v5009 = vld [vmem:[%s3 + $0xe8] sm:$0xff]
  %v5010 = vld [vmem:[%s3 + $0xf0] sm:$0xff]
  %v5011 = vld [vmem:[%s3 + $0xf8] sm:$0xff]
  %v5012 = vld [vmem:[%s3 + $0x100] sm:$0xff]
  %v5013 = vld [vmem:[%s3 + $0x108] sm:$0xff]
  %v5014 = vld [vmem:[%s3 + $0x110] sm:$0xff]
  %v5015 = vld [vmem:[%s3 + $0x118] sm:$0xff]
  %v5016 = vld [vmem:[%s3 + $0x120] sm:$0xff]
  %v5017 = vld [vmem:[%s3 + $0x128] sm:$0xff]
  %v5018 = vld [vmem:[%s3 + $0x130] sm:$0xff]
  %v5019 = vld [vmem:[%s3 + $0x138] sm:$0xff]
  %v5020 = vld [vmem:[%s3 + $0x140] sm:$0xff]
  %v5021 = vld [vmem:[%s3 + $0x148] sm:$0xff]
  %v5023 = vsel %vm473, %v4917, 0
  %v5026 = vsel %vm473, %v4919, 0
  %v5029 = vsel %vm473, %v4921, 0
  %v5032 = vsel %vm473, %v4923, 0
  %v5035 = vsel %vm473, %v4925, 0
  %v5038 = vsel %vm473, %v4927, 0
  %v5041 = vsel %vm473, %v4929, 0
  %v5044 = vsel %vm473, %v4931, 0
  %v5047 = vsel %vm473, %v4933, 0
  %v5050 = vsel %vm473, %v4935, 0
  %v5053 = vsel %vm473, %v4937, 0
  %v5056 = vsel %vm473, %v4939, 0
  %v5059 = vsel %vm473, %v4941, 0
  %v5062 = vsel %vm473, %v4943, 0
  %v5065 = vsel %vm473, %v4945, 0
  %v5068 = vsel %vm473, %v4947, 0
  %v5071 = vsel %vm473, %v4949, 0
  %v5074 = vsel %vm473, %v4951, 0
  %v5077 = vsel %vm473, %v4953, 0
  %v5080 = vsel %vm473, %v4955, 0
  %v5083 = vsel %vm473, %v4957, 0
  %v5086 = vsel %vm473, %v4959, 0
  %v5089 = vsel %vm473, %v4961, 0
  %v5092 = vsel %vm473, %v4963, 0
  %v5095 = vsel %vm473, %v4965, 0
  %v5098 = vsel %vm473, %v4967, 0
  %v5101 = vsel %vm473, %v4969, 0
  %v5104 = vsel %vm473, %v4971, 0
  %v5107 = vsel %vm473, %v4973, 0
  %v5110 = vsel %vm473, %v4975, 0
  %v5113 = vsel %vm473, %v4977, 0
  %v5116 = vsel %vm473, %v4979, 0
  %5118 = vmatpush.msra.mxu0 %v5010
  %5119 = vmatpush.msra.mxu0 %v5008
  %5120 = vmatpush.msra.mxu0 %v5006
  %5121 = vmatpush.msra.mxu0 %v5004
  %5122 = vmatpush.msra.mxu0 %v5002
  %5123 = vmatpush.msra.mxu0 %v5000
  %5124 = vmatpush.msra.mxu0 %v4998
  %5125 = vmatpush.msra.mxu0 %v4996
  %5126 = vmatpush.msra.mxu0 %v4994
  %5127 = vmatpush.msra.mxu0 %v4992
  %5128 = vmatpush.msra.mxu0 %v4990
  %5129 = vmatpush.msra.mxu0 %v4988
  %5130 = vmatpush.msra.mxu0 %v4986
  %5131 = vmatpush.msra.mxu0 %v4984
  %5132 = vmatpush.msra.mxu0 %v4982
  %5133 = vmatpush.msra.mxu0 %v4980
  %5134 = vmatmul.f32.gmra.mxu0 %v4916
  %v5135 = vpop.f32.mrf.mxu0
  %v5136 = vadd.f32 0.0, %v5135
  %5137 = vmatmul.f32.gmra.mxu0 %v4918
  %v5138 = vpop.f32.mrf.mxu0
  %v5139 = vadd.f32 0.0, %v5138
  %5140 = vmatmul.f32.gmra.mxu0 %v4920
  %v5141 = vpop.f32.mrf.mxu0
  %v5142 = vadd.f32 0.0, %v5141
  %5143 = vmatmul.f32.gmra.mxu0 %v4922
  %v5144 = vpop.f32.mrf.mxu0
  %v5145 = vadd.f32 0.0, %v5144
  %5146 = vmatmul.f32.gmra.mxu0 %v4924
  %v5147 = vpop.f32.mrf.mxu0
  %v5148 = vadd.f32 0.0, %v5147
  %5149 = vmatmul.f32.gmra.mxu0 %v4926
  %v5150 = vpop.f32.mrf.mxu0
  %v5151 = vadd.f32 0.0, %v5150
  %5152 = vmatmul.f32.gmra.mxu0 %v4928
  %v5153 = vpop.f32.mrf.mxu0
  %v5154 = vadd.f32 0.0, %v5153
  %5155 = vmatmul.f32.gmra.mxu0 %v4930
  %v5156 = vpop.f32.mrf.mxu0
  %v5157 = vadd.f32 0.0, %v5156
  %5158 = vmatmul.f32.gmra.mxu0 %v4932
  %v5159 = vpop.f32.mrf.mxu0
  %v5160 = vadd.f32 0.0, %v5159
  %5161 = vmatmul.f32.gmra.mxu0 %v4934
  %v5162 = vpop.f32.mrf.mxu0
  %v5163 = vadd.f32 0.0, %v5162
  %5164 = vmatmul.f32.gmra.mxu0 %v4936
  %v5165 = vpop.f32.mrf.mxu0
  %v5166 = vadd.f32 0.0, %v5165
  %5167 = vmatmul.f32.gmra.mxu0 %v4938
  %v5168 = vpop.f32.mrf.mxu0
  %v5169 = vadd.f32 0.0, %v5168
  %5170 = vmatmul.f32.gmra.mxu0 %v4940
  %v5171 = vpop.f32.mrf.mxu0
  %v5172 = vadd.f32 0.0, %v5171
  %5173 = vmatmul.f32.gmra.mxu0 %v4942
  %v5174 = vpop.f32.mrf.mxu0
  %v5175 = vadd.f32 0.0, %v5174
  %5176 = vmatmul.f32.gmra.mxu0 %v4944
  %v5177 = vpop.f32.mrf.mxu0
  %v5178 = vadd.f32 0.0, %v5177
  %5179 = vmatmul.f32.gmra.mxu0 %v4946
  %v5180 = vpop.f32.mrf.mxu0
  %v5181 = vadd.f32 0.0, %v5180
  %5182 = vmatmul.f32.gmra.mxu0 %v4948
  %v5183 = vpop.f32.mrf.mxu0
  %v5184 = vadd.f32 0.0, %v5183
  %5185 = vmatmul.f32.gmra.mxu0 %v4950
  %v5186 = vpop.f32.mrf.mxu0
  %v5187 = vadd.f32 0.0, %v5186
  %5188 = vmatmul.f32.gmra.mxu0 %v4952
  %v5189 = vpop.f32.mrf.mxu0
  %v5190 = vadd.f32 0.0, %v5189
  %5191 = vmatmul.f32.gmra.mxu0 %v4954
  %v5192 = vpop.f32.mrf.mxu0
  %v5193 = vadd.f32 0.0, %v5192
  %5194 = vmatmul.f32.gmra.mxu0 %v4956
  %v5195 = vpop.f32.mrf.mxu0
  %v5196 = vadd.f32 0.0, %v5195
  %5197 = vmatmul.f32.gmra.mxu0 %v4958
  %v5198 = vpop.f32.mrf.mxu0
  %v5199 = vadd.f32 0.0, %v5198
  %5200 = vmatmul.f32.gmra.mxu0 %v4960
  %v5201 = vpop.f32.mrf.mxu0
  %v5202 = vadd.f32 0.0, %v5201
  %5203 = vmatmul.f32.gmra.mxu0 %v4962
  %v5204 = vpop.f32.mrf.mxu0
  %v5205 = vadd.f32 0.0, %v5204
  %5206 = vmatmul.f32.gmra.mxu0 %v4964
  %v5207 = vpop.f32.mrf.mxu0
  %v5208 = vadd.f32 0.0, %v5207
  %5209 = vmatmul.f32.gmra.mxu0 %v4966
  %v5210 = vpop.f32.mrf.mxu0
  %v5211 = vadd.f32 0.0, %v5210
  %5212 = vmatmul.f32.gmra.mxu0 %v4968
  %v5213 = vpop.f32.mrf.mxu0
  %v5214 = vadd.f32 0.0, %v5213
  %5215 = vmatmul.f32.gmra.mxu0 %v4970
  %v5216 = vpop.f32.mrf.mxu0
  %v5217 = vadd.f32 0.0, %v5216
  %5218 = vmatmul.f32.gmra.mxu0 %v4972
  %v5219 = vpop.f32.mrf.mxu0
  %v5220 = vadd.f32 0.0, %v5219
  %5221 = vmatmul.f32.gmra.mxu0 %v4974
  %v5222 = vpop.f32.mrf.mxu0
  %v5223 = vadd.f32 0.0, %v5222
  %5224 = vmatmul.f32.gmra.mxu0 %v4976
  %v5225 = vpop.f32.mrf.mxu0
  %v5226 = vadd.f32 0.0, %v5225
  %5227 = vmatmul.f32.gmra.mxu0 %v4978
  %v5228 = vpop.f32.mrf.mxu0
  %v5229 = vadd.f32 0.0, %v5228
  %5230 = vdwg.mxu0
  %5231 = vmatpush.msra.mxu0 0.0
  %5232 = vmatpush.msra.mxu0 0.0
  %5233 = vmatpush.msra.mxu0 0.0
  %5234 = vmatpush.msra.mxu0 0.0
  %5235 = vmatpush.msra.mxu0 0.0
  %5236 = vmatpush.msra.mxu0 0.0
  %5237 = vmatpush.msra.mxu0 0.0
  %5238 = vmatpush.msra.mxu0 0.0
  %5239 = vmatpush.msra.mxu0 0.0
  %5240 = vmatpush.msra.mxu0 0.0
  %5241 = vmatpush.msra.mxu0 0.0
  %5242 = vmatpush.msra.mxu0 %v5020
  %5243 = vmatpush.msra.mxu0 %v5018
  %5244 = vmatpush.msra.mxu0 %v5016
  %5245 = vmatpush.msra.mxu0 %v5014
  %5246 = vmatpush.msra.mxu0 %v5012
  %5247 = vmatmul.f32.gmra.mxu0 %v5023
  %v5248 = vpop.f32.mrf.mxu0
  %v5249 = vadd.f32 %v5136, %v5248
  %5250 = vmatmul.f32.gmra.mxu0 %v5026
  %v5251 = vpop.f32.mrf.mxu0
  %v5252 = vadd.f32 %v5139, %v5251
  %5253 = vmatmul.f32.gmra.mxu0 %v5029
  %v5254 = vpop.f32.mrf.mxu0
  %v5255 = vadd.f32 %v5142, %v5254
  %5256 = vmatmul.f32.gmra.mxu0 %v5032
  %v5257 = vpop.f32.mrf.mxu0
  %v5258 = vadd.f32 %v5145, %v5257
  %5259 = vmatmul.f32.gmra.mxu0 %v5035
  %v5260 = vpop.f32.mrf.mxu0
  %v5261 = vadd.f32 %v5148, %v5260
  %5262 = vmatmul.f32.gmra.mxu0 %v5038
  %v5263 = vpop.f32.mrf.mxu0
  %v5264 = vadd.f32 %v5151, %v5263
  %5265 = vmatmul.f32.gmra.mxu0 %v5041
  %v5266 = vpop.f32.mrf.mxu0
  %v5267 = vadd.f32 %v5154, %v5266
  %5268 = vmatmul.f32.gmra.mxu0 %v5044
  %v5269 = vpop.f32.mrf.mxu0
  %v5270 = vadd.f32 %v5157, %v5269
  %5271 = vmatmul.f32.gmra.mxu0 %v5047
  %v5272 = vpop.f32.mrf.mxu0
  %v5273 = vadd.f32 %v5160, %v5272
  %5274 = vmatmul.f32.gmra.mxu0 %v5050
  %v5275 = vpop.f32.mrf.mxu0
  %v5276 = vadd.f32 %v5163, %v5275
  %5277 = vmatmul.f32.gmra.mxu0 %v5053
  %v5278 = vpop.f32.mrf.mxu0
  %v5279 = vadd.f32 %v5166, %v5278
  %5280 = vmatmul.f32.gmra.mxu0 %v5056
  %v5281 = vpop.f32.mrf.mxu0
  %v5282 = vadd.f32 %v5169, %v5281
  %5283 = vmatmul.f32.gmra.mxu0 %v5059
  %v5284 = vpop.f32.mrf.mxu0
  %v5285 = vadd.f32 %v5172, %v5284
  %5286 = vmatmul.f32.gmra.mxu0 %v5062
  %v5287 = vpop.f32.mrf.mxu0
  %v5288 = vadd.f32 %v5175, %v5287
  %5289 = vmatmul.f32.gmra.mxu0 %v5065
  %v5290 = vpop.f32.mrf.mxu0
  %v5291 = vadd.f32 %v5178, %v5290
  %5292 = vmatmul.f32.gmra.mxu0 %v5068
  %v5293 = vpop.f32.mrf.mxu0
  %v5294 = vadd.f32 %v5181, %v5293
  %5295 = vmatmul.f32.gmra.mxu0 %v5071
  %v5296 = vpop.f32.mrf.mxu0
  %v5297 = vadd.f32 %v5184, %v5296
  %5298 = vmatmul.f32.gmra.mxu0 %v5074
  %v5299 = vpop.f32.mrf.mxu0
  %v5300 = vadd.f32 %v5187, %v5299
  %5301 = vmatmul.f32.gmra.mxu0 %v5077
  %v5302 = vpop.f32.mrf.mxu0
  %v5303 = vadd.f32 %v5190, %v5302
  %5304 = vmatmul.f32.gmra.mxu0 %v5080
  %v5305 = vpop.f32.mrf.mxu0
  %v5306 = vadd.f32 %v5193, %v5305
  %5307 = vmatmul.f32.gmra.mxu0 %v5083
  %v5308 = vpop.f32.mrf.mxu0
  %v5309 = vadd.f32 %v5196, %v5308
  %5310 = vmatmul.f32.gmra.mxu0 %v5086
  %v5311 = vpop.f32.mrf.mxu0
  %v5312 = vadd.f32 %v5199, %v5311
  %5313 = vmatmul.f32.gmra.mxu0 %v5089
  %v5314 = vpop.f32.mrf.mxu0
  %v5315 = vadd.f32 %v5202, %v5314
  %5316 = vmatmul.f32.gmra.mxu0 %v5092
  %v5317 = vpop.f32.mrf.mxu0
  %v5318 = vadd.f32 %v5205, %v5317
  %5319 = vmatmul.f32.gmra.mxu0 %v5095
  %v5320 = vpop.f32.mrf.mxu0
  %v5321 = vadd.f32 %v5208, %v5320
  %5322 = vmatmul.f32.gmra.mxu0 %v5098
  %v5323 = vpop.f32.mrf.mxu0
  %v5324 = vadd.f32 %v5211, %v5323
  %5325 = vmatmul.f32.gmra.mxu0 %v5101
  %v5326 = vpop.f32.mrf.mxu0
  %v5327 = vadd.f32 %v5214, %v5326
  %5328 = vmatmul.f32.gmra.mxu0 %v5104
  %v5329 = vpop.f32.mrf.mxu0
  %v5330 = vadd.f32 %v5217, %v5329
  %5331 = vmatmul.f32.gmra.mxu0 %v5107
  %v5332 = vpop.f32.mrf.mxu0
  %v5333 = vadd.f32 %v5220, %v5332
  %5334 = vmatmul.f32.gmra.mxu0 %v5110
  %v5335 = vpop.f32.mrf.mxu0
  %v5336 = vadd.f32 %v5223, %v5335
  %5337 = vmatmul.f32.gmra.mxu0 %v5113
  %v5338 = vpop.f32.mrf.mxu0
  %v5339 = vadd.f32 %v5226, %v5338
  %5340 = vmatmul.f32.gmra.mxu0 %v5116
  %v5341 = vpop.f32.mrf.mxu0
  %v5342 = vadd.f32 %v5229, %v5341
  %5343 = vdwg.mxu0
  %5344 = vmatpush.msra.mxu0 %v5011
  %5345 = vmatpush.msra.mxu0 %v5009
  %5346 = vmatpush.msra.mxu0 %v5007
  %5347 = vmatpush.msra.mxu0 %v5005
  %5348 = vmatpush.msra.mxu0 %v5003
  %5349 = vmatpush.msra.mxu0 %v5001
  %5350 = vmatpush.msra.mxu0 %v4999
  %5351 = vmatpush.msra.mxu0 %v4997
  %5352 = vmatpush.msra.mxu0 %v4995
  %5353 = vmatpush.msra.mxu0 %v4993
  %5354 = vmatpush.msra.mxu0 %v4991
  %5355 = vmatpush.msra.mxu0 %v4989
  %5356 = vmatpush.msra.mxu0 %v4987
  %5357 = vmatpush.msra.mxu0 %v4985
  %5358 = vmatpush.msra.mxu0 %v4983
  %5359 = vmatpush.msra.mxu0 %v4981
  %5360 = vmatmul.f32.gmra.mxu0 %v4916
  %v5361 = vpop.f32.mrf.mxu0
  %v5362 = vadd.f32 0.0, %v5361
  %5363 = vmatmul.f32.gmra.mxu0 %v4918
  %v5364 = vpop.f32.mrf.mxu0
  %v5365 = vadd.f32 0.0, %v5364
  %5366 = vmatmul.f32.gmra.mxu0 %v4920
  %v5367 = vpop.f32.mrf.mxu0
  %v5368 = vadd.f32 0.0, %v5367
  %5369 = vmatmul.f32.gmra.mxu0 %v4922
  %v5370 = vpop.f32.mrf.mxu0
  %v5371 = vadd.f32 0.0, %v5370
  %5372 = vmatmul.f32.gmra.mxu0 %v4924
  %v5373 = vpop.f32.mrf.mxu0
  %v5374 = vadd.f32 0.0, %v5373
  %5375 = vmatmul.f32.gmra.mxu0 %v4926
  %v5376 = vpop.f32.mrf.mxu0
  %v5377 = vadd.f32 0.0, %v5376
  %5378 = vmatmul.f32.gmra.mxu0 %v4928
  %v5379 = vpop.f32.mrf.mxu0
  %v5380 = vadd.f32 0.0, %v5379
  %5381 = vmatmul.f32.gmra.mxu0 %v4930
  %v5382 = vpop.f32.mrf.mxu0
  %v5383 = vadd.f32 0.0, %v5382
  %5384 = vmatmul.f32.gmra.mxu0 %v4932
  %v5385 = vpop.f32.mrf.mxu0
  %v5386 = vadd.f32 0.0, %v5385
  %5387 = vmatmul.f32.gmra.mxu0 %v4934
  %v5388 = vpop.f32.mrf.mxu0
  %v5389 = vadd.f32 0.0, %v5388
  %5390 = vmatmul.f32.gmra.mxu0 %v4936
  %v5391 = vpop.f32.mrf.mxu0
  %v5392 = vadd.f32 0.0, %v5391
  %5393 = vmatmul.f32.gmra.mxu0 %v4938
  %v5394 = vpop.f32.mrf.mxu0
  %v5395 = vadd.f32 0.0, %v5394
  %5396 = vmatmul.f32.gmra.mxu0 %v4940
  %v5397 = vpop.f32.mrf.mxu0
  %v5398 = vadd.f32 0.0, %v5397
  %5399 = vmatmul.f32.gmra.mxu0 %v4942
  %v5400 = vpop.f32.mrf.mxu0
  %v5401 = vadd.f32 0.0, %v5400
  %5402 = vmatmul.f32.gmra.mxu0 %v4944
  %v5403 = vpop.f32.mrf.mxu0
  %v5404 = vadd.f32 0.0, %v5403
  %5405 = vmatmul.f32.gmra.mxu0 %v4946
  %v5406 = vpop.f32.mrf.mxu0
  %v5407 = vadd.f32 0.0, %v5406
  %5408 = vmatmul.f32.gmra.mxu0 %v4948
  %v5409 = vpop.f32.mrf.mxu0
  %v5410 = vadd.f32 0.0, %v5409
  %5411 = vmatmul.f32.gmra.mxu0 %v4950
  %v5412 = vpop.f32.mrf.mxu0
  %v5413 = vadd.f32 0.0, %v5412
  %5414 = vmatmul.f32.gmra.mxu0 %v4952
  %v5415 = vpop.f32.mrf.mxu0
  %v5416 = vadd.f32 0.0, %v5415
  %5417 = vmatmul.f32.gmra.mxu0 %v4954
  %v5418 = vpop.f32.mrf.mxu0
  %v5419 = vadd.f32 0.0, %v5418
  %5420 = vmatmul.f32.gmra.mxu0 %v4956
  %v5421 = vpop.f32.mrf.mxu0
  %v5422 = vadd.f32 0.0, %v5421
  %5423 = vmatmul.f32.gmra.mxu0 %v4958
  %v5424 = vpop.f32.mrf.mxu0
  %v5425 = vadd.f32 0.0, %v5424
  %5426 = vmatmul.f32.gmra.mxu0 %v4960
  %v5427 = vpop.f32.mrf.mxu0
  %v5428 = vadd.f32 0.0, %v5427
  %5429 = vmatmul.f32.gmra.mxu0 %v4962
  %v5430 = vpop.f32.mrf.mxu0
  %v5431 = vadd.f32 0.0, %v5430
  %5432 = vmatmul.f32.gmra.mxu0 %v4964
  %v5433 = vpop.f32.mrf.mxu0
  %v5434 = vadd.f32 0.0, %v5433
  %5435 = vmatmul.f32.gmra.mxu0 %v4966
  %v5436 = vpop.f32.mrf.mxu0
  %v5437 = vadd.f32 0.0, %v5436
  %5438 = vmatmul.f32.gmra.mxu0 %v4968
  %v5439 = vpop.f32.mrf.mxu0
  %v5440 = vadd.f32 0.0, %v5439
  %5441 = vmatmul.f32.gmra.mxu0 %v4970
  %v5442 = vpop.f32.mrf.mxu0
  %v5443 = vadd.f32 0.0, %v5442
  %5444 = vmatmul.f32.gmra.mxu0 %v4972
  %v5445 = vpop.f32.mrf.mxu0
  %v5446 = vadd.f32 0.0, %v5445
  %5447 = vmatmul.f32.gmra.mxu0 %v4974
  %v5448 = vpop.f32.mrf.mxu0
  %v5449 = vadd.f32 0.0, %v5448
  %5450 = vmatmul.f32.gmra.mxu0 %v4976
  %v5451 = vpop.f32.mrf.mxu0
  %v5452 = vadd.f32 0.0, %v5451
  %5453 = vmatmul.f32.gmra.mxu0 %v4978
  %v5454 = vpop.f32.mrf.mxu0
  %v5455 = vadd.f32 0.0, %v5454
  %5456 = vdwg.mxu0
  %5457 = vmatpush.msra.mxu0 0.0
  %5458 = vmatpush.msra.mxu0 0.0
  %5459 = vmatpush.msra.mxu0 0.0
  %5460 = vmatpush.msra.mxu0 0.0
  %5461 = vmatpush.msra.mxu0 0.0
  %5462 = vmatpush.msra.mxu0 0.0
  %5463 = vmatpush.msra.mxu0 0.0
  %5464 = vmatpush.msra.mxu0 0.0
  %5465 = vmatpush.msra.mxu0 0.0
  %5466 = vmatpush.msra.mxu0 0.0
  %5467 = vmatpush.msra.mxu0 0.0
  %5468 = vmatpush.msra.mxu0 %v5021
  %5469 = vmatpush.msra.mxu0 %v5019
  %5470 = vmatpush.msra.mxu0 %v5017
  %5471 = vmatpush.msra.mxu0 %v5015
  %5472 = vmatpush.msra.mxu0 %v5013
  %5473 = vmatmul.f32.gmra.mxu0 %v5023
  %v5474 = vpop.f32.mrf.mxu0
  %v5475 = vadd.f32 %v5362, %v5474
  %5476 = vmatmul.f32.gmra.mxu0 %v5026
  %v5477 = vpop.f32.mrf.mxu0
  %v5478 = vadd.f32 %v5365, %v5477
  %5479 = vmatmul.f32.gmra.mxu0 %v5029
  %v5480 = vpop.f32.mrf.mxu0
  %v5481 = vadd.f32 %v5368, %v5480
  %5482 = vmatmul.f32.gmra.mxu0 %v5032
  %v5483 = vpop.f32.mrf.mxu0
  %v5484 = vadd.f32 %v5371, %v5483
  %5485 = vmatmul.f32.gmra.mxu0 %v5035
  %v5486 = vpop.f32.mrf.mxu0
  %v5487 = vadd.f32 %v5374, %v5486
  %5488 = vmatmul.f32.gmra.mxu0 %v5038
  %v5489 = vpop.f32.mrf.mxu0
  %v5490 = vadd.f32 %v5377, %v5489
  %5491 = vmatmul.f32.gmra.mxu0 %v5041
  %v5492 = vpop.f32.mrf.mxu0
  %v5493 = vadd.f32 %v5380, %v5492
  %5494 = vmatmul.f32.gmra.mxu0 %v5044
  %v5495 = vpop.f32.mrf.mxu0
  %v5496 = vadd.f32 %v5383, %v5495
  %5497 = vmatmul.f32.gmra.mxu0 %v5047
  %v5498 = vpop.f32.mrf.mxu0
  %v5499 = vadd.f32 %v5386, %v5498
  %5500 = vmatmul.f32.gmra.mxu0 %v5050
  %v5501 = vpop.f32.mrf.mxu0
  %v5502 = vadd.f32 %v5389, %v5501
  %5503 = vmatmul.f32.gmra.mxu0 %v5053
  %v5504 = vpop.f32.mrf.mxu0
  %v5505 = vadd.f32 %v5392, %v5504
  %5506 = vmatmul.f32.gmra.mxu0 %v5056
  %v5507 = vpop.f32.mrf.mxu0
  %v5508 = vadd.f32 %v5395, %v5507
  %5509 = vmatmul.f32.gmra.mxu0 %v5059
  %v5510 = vpop.f32.mrf.mxu0
  %v5511 = vadd.f32 %v5398, %v5510
  %5512 = vmatmul.f32.gmra.mxu0 %v5062
  %v5513 = vpop.f32.mrf.mxu0
  %v5514 = vadd.f32 %v5401, %v5513
  %5515 = vmatmul.f32.gmra.mxu0 %v5065
  %v5516 = vpop.f32.mrf.mxu0
  %v5517 = vadd.f32 %v5404, %v5516
  %5518 = vmatmul.f32.gmra.mxu0 %v5068
  %v5519 = vpop.f32.mrf.mxu0
  %v5520 = vadd.f32 %v5407, %v5519
  %5521 = vmatmul.f32.gmra.mxu0 %v5071
  %v5522 = vpop.f32.mrf.mxu0
  %v5523 = vadd.f32 %v5410, %v5522
  %5524 = vmatmul.f32.gmra.mxu0 %v5074
  %v5525 = vpop.f32.mrf.mxu0
  %v5526 = vadd.f32 %v5413, %v5525
  %5527 = vmatmul.f32.gmra.mxu0 %v5077
  %v5528 = vpop.f32.mrf.mxu0
  %v5529 = vadd.f32 %v5416, %v5528
  %5530 = vmatmul.f32.gmra.mxu0 %v5080
  %v5531 = vpop.f32.mrf.mxu0
  %v5532 = vadd.f32 %v5419, %v5531
  %5533 = vmatmul.f32.gmra.mxu0 %v5083
  %v5534 = vpop.f32.mrf.mxu0
  %v5535 = vadd.f32 %v5422, %v5534
  %5536 = vmatmul.f32.gmra.mxu0 %v5086
  %v5537 = vpop.f32.mrf.mxu0
  %v5538 = vadd.f32 %v5425, %v5537
  %5539 = vmatmul.f32.gmra.mxu0 %v5089
  %v5540 = vpop.f32.mrf.mxu0
  %v5541 = vadd.f32 %v5428, %v5540
  %5542 = vmatmul.f32.gmra.mxu0 %v5092
  %v5543 = vpop.f32.mrf.mxu0
  %v5544 = vadd.f32 %v5431, %v5543
  %5545 = vmatmul.f32.gmra.mxu0 %v5095
  %v5546 = vpop.f32.mrf.mxu0
  %v5547 = vadd.f32 %v5434, %v5546
  %5548 = vmatmul.f32.gmra.mxu0 %v5098
  %v5549 = vpop.f32.mrf.mxu0
  %v5550 = vadd.f32 %v5437, %v5549
  %5551 = vmatmul.f32.gmra.mxu0 %v5101
  %v5552 = vpop.f32.mrf.mxu0
  %v5553 = vadd.f32 %v5440, %v5552
  %5554 = vmatmul.f32.gmra.mxu0 %v5104
  %v5555 = vpop.f32.mrf.mxu0
  %v5556 = vadd.f32 %v5443, %v5555
  %5557 = vmatmul.f32.gmra.mxu0 %v5107
  %v5558 = vpop.f32.mrf.mxu0
  %v5559 = vadd.f32 %v5446, %v5558
  %5560 = vmatmul.f32.gmra.mxu0 %v5110
  %v5561 = vpop.f32.mrf.mxu0
  %v5562 = vadd.f32 %v5449, %v5561
  %5563 = vmatmul.f32.gmra.mxu0 %v5113
  %v5564 = vpop.f32.mrf.mxu0
  %v5565 = vadd.f32 %v5452, %v5564
  %5566 = vmatmul.f32.gmra.mxu0 %v5116
  %v5567 = vpop.f32.mrf.mxu0
  %v5568 = vadd.f32 %v5455, %v5567
  %5569 = vdwg.mxu0
  %5570 = vst [vmem:[#allocation2] sm:$0xff] %v5249
  %vm5571 = vcmask 261120
  %5572 = vst.msk [vmem:[#allocation2 + $0x8] sm:$0xff] %vm5571, %v5475
  %5573 = vst [vmem:[#allocation2 + $0x10] sm:$0xff] %v5252
  %5574 = vst.msk [vmem:[#allocation2 + $0x18] sm:$0xff] %vm5571, %v5478
  %5575 = vst [vmem:[#allocation2 + $0x20] sm:$0xff] %v5255
  %5576 = vst.msk [vmem:[#allocation2 + $0x28] sm:$0xff] %vm5571, %v5481
  %5577 = vst [vmem:[#allocation2 + $0x30] sm:$0xff] %v5258
  %5578 = vst.msk [vmem:[#allocation2 + $0x38] sm:$0xff] %vm5571, %v5484
  %5579 = vst [vmem:[#allocation2 + $0x40] sm:$0xff] %v5261
  %5580 = vst.msk [vmem:[#allocation2 + $0x48] sm:$0xff] %vm5571, %v5487
  %5581 = vst [vmem:[#allocation2 + $0x50] sm:$0xff] %v5264
  %5582 = vst.msk [vmem:[#allocation2 + $0x58] sm:$0xff] %vm5571, %v5490
  %5583 = vst [vmem:[#allocation2 + $0x60] sm:$0xff] %v5267
  %5584 = vst.msk [vmem:[#allocation2 + $0x68] sm:$0xff] %vm5571, %v5493
  %5585 = vst [vmem:[#allocation2 + $0x70] sm:$0xff] %v5270
  %5586 = vst.msk [vmem:[#allocation2 + $0x78] sm:$0xff] %vm5571, %v5496
  %5587 = vst [vmem:[#allocation2 + $0x80] sm:$0xff] %v5273
  %5588 = vst.msk [vmem:[#allocation2 + $0x88] sm:$0xff] %vm5571, %v5499
  %5589 = vst [vmem:[#allocation2 + $0x90] sm:$0xff] %v5276
  %5590 = vst.msk [vmem:[#allocation2 + $0x98] sm:$0xff] %vm5571, %v5502
  %5591 = vst [vmem:[#allocation2 + $0xa0] sm:$0xff] %v5279
  %5592 = vst.msk [vmem:[#allocation2 + $0xa8] sm:$0xff] %vm5571, %v5505
  %5593 = vst [vmem:[#allocation2 + $0xb0] sm:$0xff] %v5282
  %5594 = vst.msk [vmem:[#allocation2 + $0xb8] sm:$0xff] %vm5571, %v5508
  %5595 = vst [vmem:[#allocation2 + $0xc0] sm:$0xff] %v5285
  %5596 = vst.msk [vmem:[#allocation2 + $0xc8] sm:$0xff] %vm5571, %v5511
  %5597 = vst [vmem:[#allocation2 + $0xd0] sm:$0xff] %v5288
  %5598 = vst.msk [vmem:[#allocation2 + $0xd8] sm:$0xff] %vm5571, %v5514
  %5599 = vst [vmem:[#allocation2 + $0xe0] sm:$0xff] %v5291
  %5600 = vst.msk [vmem:[#allocation2 + $0xe8] sm:$0xff] %vm5571, %v5517
  %5601 = vst [vmem:[#allocation2 + $0xf0] sm:$0xff] %v5294
  %5602 = vst.msk [vmem:[#allocation2 + $0xf8] sm:$0xff] %vm5571, %v5520
  %5603 = vst [vmem:[#allocation2 + $0x100] sm:$0xff] %v5297
  %5604 = vst.msk [vmem:[#allocation2 + $0x108] sm:$0xff] %vm5571, %v5523
  %5605 = vst [vmem:[#allocation2 + $0x110] sm:$0xff] %v5300
  %5606 = vst.msk [vmem:[#allocation2 + $0x118] sm:$0xff] %vm5571, %v5526
  %5607 = vst [vmem:[#allocation2 + $0x120] sm:$0xff] %v5303
  %5608 = vst.msk [vmem:[#allocation2 + $0x128] sm:$0xff] %vm5571, %v5529
  %5609 = vst [vmem:[#allocation2 + $0x130] sm:$0xff] %v5306
  %5610 = vst.msk [vmem:[#allocation2 + $0x138] sm:$0xff] %vm5571, %v5532
  %5611 = vst [vmem:[#allocation2 + $0x140] sm:$0xff] %v5309
  %5612 = vst.msk [vmem:[#allocation2 + $0x148] sm:$0xff] %vm5571, %v5535
  %5613 = vst [vmem:[#allocation2 + $0x150] sm:$0xff] %v5312
  %5614 = vst.msk [vmem:[#allocation2 + $0x158] sm:$0xff] %vm5571, %v5538
  %5615 = vst [vmem:[#allocation2 + $0x160] sm:$0xff] %v5315
  %5616 = vst.msk [vmem:[#allocation2 + $0x168] sm:$0xff] %vm5571, %v5541
  %5617 = vst [vmem:[#allocation2 + $0x170] sm:$0xff] %v5318
  %5618 = vst.msk [vmem:[#allocation2 + $0x178] sm:$0xff] %vm5571, %v5544
  %5619 = vst [vmem:[#allocation2 + $0x180] sm:$0xff] %v5321
  %5620 = vst.msk [vmem:[#allocation2 + $0x188] sm:$0xff] %vm5571, %v5547
  %5621 = vst [vmem:[#allocation2 + $0x190] sm:$0xff] %v5324
  %5622 = vst.msk [vmem:[#allocation2 + $0x198] sm:$0xff] %vm5571, %v5550
  %5623 = vst [vmem:[#allocation2 + $0x1a0] sm:$0xff] %v5327
  %5624 = vst.msk [vmem:[#allocation2 + $0x1a8] sm:$0xff] %vm5571, %v5553
  %5625 = vst [vmem:[#allocation2 + $0x1b0] sm:$0xff] %v5330
  %5626 = vst.msk [vmem:[#allocation2 + $0x1b8] sm:$0xff] %vm5571, %v5556
  %5627 = vst [vmem:[#allocation2 + $0x1c0] sm:$0xff] %v5333
  %5628 = vst.msk [vmem:[#allocation2 + $0x1c8] sm:$0xff] %vm5571, %v5559
  %5629 = vst [vmem:[#allocation2 + $0x1d0] sm:$0xff] %v5336
  %5630 = vst.msk [vmem:[#allocation2 + $0x1d8] sm:$0xff] %vm5571, %v5562
  %5631 = vst [vmem:[#allocation2 + $0x1e0] sm:$0xff] %v5339
  %5632 = vst.msk [vmem:[#allocation2 + $0x1e8] sm:$0xff] %vm5571, %v5565
  %5633 = vst [vmem:[#allocation2 + $0x1f0] sm:$0xff] %v5342
  %5634 = vst.msk [vmem:[#allocation2 + $0x1f8] sm:$0xff] %vm5571, %v5568
  %v5635 = vld [vmem:[#allocation4] sm:$0xff]
  %v5636 = vld [vmem:[#allocation4 + $0x8] sm:$0xff]
  %v5637 = vld [vmem:[#allocation4 + $0x10] sm:$0xff]
  %v5638 = vld [vmem:[#allocation4 + $0x18] sm:$0xff]
  %v5639 = vld [vmem:[#allocation4 + $0x20] sm:$0xff]
  %v5640 = vld [vmem:[#allocation4 + $0x28] sm:$0xff]
  %v5641 = vld [vmem:[#allocation4 + $0x30] sm:$0xff]
  %v5642 = vld [vmem:[#allocation4 + $0x38] sm:$0xff]
  %v5643 = vld [vmem:[#allocation4 + $0x40] sm:$0xff]
  %v5644 = vld [vmem:[#allocation4 + $0x48] sm:$0xff]
  %v5645 = vld [vmem:[#allocation4 + $0x50] sm:$0xff]
  %v5646 = vld [vmem:[#allocation4 + $0x58] sm:$0xff]
  %v5647 = vld [vmem:[#allocation4 + $0x60] sm:$0xff]
  %v5648 = vld [vmem:[#allocation4 + $0x68] sm:$0xff]
  %v5649 = vld [vmem:[#allocation4 + $0x70] sm:$0xff]
  %v5650 = vld [vmem:[#allocation4 + $0x78] sm:$0xff]
  %v5651 = vld [vmem:[#allocation4 + $0x80] sm:$0xff]
  %v5652 = vld [vmem:[#allocation4 + $0x88] sm:$0xff]
  %v5653 = vld [vmem:[#allocation4 + $0x90] sm:$0xff]
  %v5654 = vld [vmem:[#allocation4 + $0x98] sm:$0xff]
  %v5655 = vld [vmem:[#allocation4 + $0xa0] sm:$0xff]
  %v5656 = vld [vmem:[#allocation4 + $0xa8] sm:$0xff]
  %v5657 = vld [vmem:[#allocation4 + $0xb0] sm:$0xff]
  %v5658 = vld [vmem:[#allocation4 + $0xb8] sm:$0xff]
  %v5659 = vld [vmem:[#allocation4 + $0xc0] sm:$0xff]
  %v5660 = vld [vmem:[#allocation4 + $0xc8] sm:$0xff]
  %v5661 = vld [vmem:[#allocation4 + $0xd0] sm:$0xff]
  %v5662 = vld [vmem:[#allocation4 + $0xd8] sm:$0xff]
  %v5663 = vld [vmem:[#allocation4 + $0xe0] sm:$0xff]
  %v5664 = vld [vmem:[#allocation4 + $0xe8] sm:$0xff]
  %v5665 = vld [vmem:[#allocation4 + $0xf0] sm:$0xff]
  %v5666 = vld [vmem:[#allocation4 + $0xf8] sm:$0xff]
  %v5667 = vld [vmem:[#allocation4 + $0x100] sm:$0xff]
  %v5668 = vld [vmem:[#allocation4 + $0x108] sm:$0xff]
  %v5669 = vld [vmem:[#allocation4 + $0x110] sm:$0xff]
  %v5670 = vld [vmem:[#allocation4 + $0x118] sm:$0xff]
  %v5671 = vld [vmem:[#allocation4 + $0x120] sm:$0xff]
  %v5672 = vld [vmem:[#allocation4 + $0x128] sm:$0xff]
  %v5673 = vld [vmem:[#allocation4 + $0x130] sm:$0xff]
  %v5674 = vld [vmem:[#allocation4 + $0x138] sm:$0xff]
  %v5675 = vld [vmem:[#allocation4 + $0x140] sm:$0xff]
  %v5676 = vld [vmem:[#allocation4 + $0x148] sm:$0xff]
  %v5677 = vld [vmem:[#allocation4 + $0x150] sm:$0xff]
  %v5678 = vld [vmem:[#allocation4 + $0x158] sm:$0xff]
  %v5679 = vld [vmem:[#allocation4 + $0x160] sm:$0xff]
  %v5680 = vld [vmem:[#allocation4 + $0x168] sm:$0xff]
  %v5681 = vld [vmem:[#allocation4 + $0x170] sm:$0xff]
  %v5682 = vld [vmem:[#allocation4 + $0x178] sm:$0xff]
  %v5683 = vld [vmem:[#allocation4 + $0x180] sm:$0xff]
  %v5684 = vld [vmem:[#allocation4 + $0x188] sm:$0xff]
  %v5685 = vld [vmem:[#allocation4 + $0x190] sm:$0xff]
  %v5686 = vld [vmem:[#allocation4 + $0x198] sm:$0xff]
  %v5687 = vld [vmem:[#allocation4 + $0x1a0] sm:$0xff]
  %v5688 = vld [vmem:[#allocation4 + $0x1a8] sm:$0xff]
  %v5689 = vld [vmem:[#allocation4 + $0x1b0] sm:$0xff]
  %v5690 = vld [vmem:[#allocation4 + $0x1b8] sm:$0xff]
  %v5691 = vld [vmem:[#allocation4 + $0x1c0] sm:$0xff]
  %v5692 = vld [vmem:[#allocation4 + $0x1c8] sm:$0xff]
  %v5693 = vld [vmem:[#allocation4 + $0x1d0] sm:$0xff]
  %v5694 = vld [vmem:[#allocation4 + $0x1d8] sm:$0xff]
  %v5695 = vld [vmem:[#allocation4 + $0x1e0] sm:$0xff]
  %v5696 = vld [vmem:[#allocation4 + $0x1e8] sm:$0xff]
  %v5697 = vld [vmem:[#allocation4 + $0x1f0] sm:$0xff]
  %v5698 = vld [vmem:[#allocation4 + $0x1f8] sm:$0xff]
  %s5699 = scalar_lea.vmem %s3, 336
  %v5700 = vld [vmem:[%s5699] sm:$0xff]
  %v5701 = vld [vmem:[%s5699 + $0x8] sm:$0xff]
  %v5702 = vld [vmem:[%s5699 + $0x10] sm:$0xff]
  %v5703 = vld [vmem:[%s5699 + $0x18] sm:$0xff]
  %v5704 = vld [vmem:[%s5699 + $0x20] sm:$0xff]
  %v5705 = vld [vmem:[%s5699 + $0x28] sm:$0xff]
  %v5706 = vld [vmem:[%s5699 + $0x30] sm:$0xff]
  %v5707 = vld [vmem:[%s5699 + $0x38] sm:$0xff]
  %v5708 = vld [vmem:[%s5699 + $0x40] sm:$0xff]
  %v5709 = vld [vmem:[%s5699 + $0x48] sm:$0xff]
  %v5710 = vld [vmem:[%s5699 + $0x50] sm:$0xff]
  %v5711 = vld [vmem:[%s5699 + $0x58] sm:$0xff]
  %v5712 = vld [vmem:[%s5699 + $0x60] sm:$0xff]
  %v5713 = vld [vmem:[%s5699 + $0x68] sm:$0xff]
  %v5714 = vld [vmem:[%s5699 + $0x70] sm:$0xff]
  %v5715 = vld [vmem:[%s5699 + $0x78] sm:$0xff]
  %v5716 = vld [vmem:[%s5699 + $0x80] sm:$0xff]
  %v5717 = vld [vmem:[%s5699 + $0x88] sm:$0xff]
  %v5718 = vld [vmem:[%s5699 + $0x90] sm:$0xff]
  %v5719 = vld [vmem:[%s5699 + $0x98] sm:$0xff]
  %v5720 = vld [vmem:[%s5699 + $0xa0] sm:$0xff]
  %v5721 = vld [vmem:[%s5699 + $0xa8] sm:$0xff]
  %v5722 = vld [vmem:[%s5699 + $0xb0] sm:$0xff]
  %v5723 = vld [vmem:[%s5699 + $0xb8] sm:$0xff]
  %v5724 = vld [vmem:[%s5699 + $0xc0] sm:$0xff]
  %v5725 = vld [vmem:[%s5699 + $0xc8] sm:$0xff]
  %v5726 = vld [vmem:[%s5699 + $0xd0] sm:$0xff]
  %v5727 = vld [vmem:[%s5699 + $0xd8] sm:$0xff]
  %v5728 = vld [vmem:[%s5699 + $0xe0] sm:$0xff]
  %v5729 = vld [vmem:[%s5699 + $0xe8] sm:$0xff]
  %v5730 = vld [vmem:[%s5699 + $0xf0] sm:$0xff]
  %v5731 = vld [vmem:[%s5699 + $0xf8] sm:$0xff]
  %v5732 = vld [vmem:[%s5699 + $0x100] sm:$0xff]
  %v5733 = vld [vmem:[%s5699 + $0x108] sm:$0xff]
  %v5734 = vld [vmem:[%s5699 + $0x110] sm:$0xff]
  %v5735 = vld [vmem:[%s5699 + $0x118] sm:$0xff]
  %v5736 = vld [vmem:[%s5699 + $0x120] sm:$0xff]
  %v5737 = vld [vmem:[%s5699 + $0x128] sm:$0xff]
  %v5738 = vld [vmem:[%s5699 + $0x130] sm:$0xff]
  %v5739 = vld [vmem:[%s5699 + $0x138] sm:$0xff]
  %v5740 = vld [vmem:[%s5699 + $0x140] sm:$0xff]
  %v5741 = vld [vmem:[%s5699 + $0x148] sm:$0xff]
  %v5743 = vsel %vm473, %v5636, 0
  %v5746 = vsel %vm473, %v5638, 0
  %v5749 = vsel %vm473, %v5640, 0
  %v5752 = vsel %vm473, %v5642, 0
  %v5755 = vsel %vm473, %v5644, 0
  %v5758 = vsel %vm473, %v5646, 0
  %v5761 = vsel %vm473, %v5648, 0
  %v5764 = vsel %vm473, %v5650, 0
  %v5767 = vsel %vm473, %v5652, 0
  %v5770 = vsel %vm473, %v5654, 0
  %v5773 = vsel %vm473, %v5656, 0
  %v5776 = vsel %vm473, %v5658, 0
  %v5779 = vsel %vm473, %v5660, 0
  %v5782 = vsel %vm473, %v5662, 0
  %v5785 = vsel %vm473, %v5664, 0
  %v5788 = vsel %vm473, %v5666, 0
  %v5791 = vsel %vm473, %v5668, 0
  %v5794 = vsel %vm473, %v5670, 0
  %v5797 = vsel %vm473, %v5672, 0
  %v5800 = vsel %vm473, %v5674, 0
  %v5803 = vsel %vm473, %v5676, 0
  %v5806 = vsel %vm473, %v5678, 0
  %v5809 = vsel %vm473, %v5680, 0
  %v5812 = vsel %vm473, %v5682, 0
  %v5815 = vsel %vm473, %v5684, 0
  %v5818 = vsel %vm473, %v5686, 0
  %v5821 = vsel %vm473, %v5688, 0
  %v5824 = vsel %vm473, %v5690, 0
  %v5827 = vsel %vm473, %v5692, 0
  %v5830 = vsel %vm473, %v5694, 0
  %v5833 = vsel %vm473, %v5696, 0
  %v5836 = vsel %vm473, %v5698, 0
  %5838 = vmatpush.msra.mxu0 %v5730
  %5839 = vmatpush.msra.mxu0 %v5728
  %5840 = vmatpush.msra.mxu0 %v5726
  %5841 = vmatpush.msra.mxu0 %v5724
  %5842 = vmatpush.msra.mxu0 %v5722
  %5843 = vmatpush.msra.mxu0 %v5720
  %5844 = vmatpush.msra.mxu0 %v5718
  %5845 = vmatpush.msra.mxu0 %v5716
  %5846 = vmatpush.msra.mxu0 %v5714
  %5847 = vmatpush.msra.mxu0 %v5712
  %5848 = vmatpush.msra.mxu0 %v5710
  %5849 = vmatpush.msra.mxu0 %v5708
  %5850 = vmatpush.msra.mxu0 %v5706
  %5851 = vmatpush.msra.mxu0 %v5704
  %5852 = vmatpush.msra.mxu0 %v5702
  %5853 = vmatpush.msra.mxu0 %v5700
  %5854 = vmatmul.f32.gmra.mxu0 %v5635
  %v5855 = vpop.f32.mrf.mxu0
  %v5856 = vadd.f32 0.0, %v5855
  %5857 = vmatmul.f32.gmra.mxu0 %v5637
  %v5858 = vpop.f32.mrf.mxu0
  %v5859 = vadd.f32 0.0, %v5858
  %5860 = vmatmul.f32.gmra.mxu0 %v5639
  %v5861 = vpop.f32.mrf.mxu0
  %v5862 = vadd.f32 0.0, %v5861
  %5863 = vmatmul.f32.gmra.mxu0 %v5641
  %v5864 = vpop.f32.mrf.mxu0
  %v5865 = vadd.f32 0.0, %v5864
  %5866 = vmatmul.f32.gmra.mxu0 %v5643
  %v5867 = vpop.f32.mrf.mxu0
  %v5868 = vadd.f32 0.0, %v5867
  %5869 = vmatmul.f32.gmra.mxu0 %v5645
  %v5870 = vpop.f32.mrf.mxu0
  %v5871 = vadd.f32 0.0, %v5870
  %5872 = vmatmul.f32.gmra.mxu0 %v5647
  %v5873 = vpop.f32.mrf.mxu0
  %v5874 = vadd.f32 0.0, %v5873
  %5875 = vmatmul.f32.gmra.mxu0 %v5649
  %v5876 = vpop.f32.mrf.mxu0
  %v5877 = vadd.f32 0.0, %v5876
  %5878 = vmatmul.f32.gmra.mxu0 %v5651
  %v5879 = vpop.f32.mrf.mxu0
  %v5880 = vadd.f32 0.0, %v5879
  %5881 = vmatmul.f32.gmra.mxu0 %v5653
  %v5882 = vpop.f32.mrf.mxu0
  %v5883 = vadd.f32 0.0, %v5882
  %5884 = vmatmul.f32.gmra.mxu0 %v5655
  %v5885 = vpop.f32.mrf.mxu0
  %v5886 = vadd.f32 0.0, %v5885
  %5887 = vmatmul.f32.gmra.mxu0 %v5657
  %v5888 = vpop.f32.mrf.mxu0
  %v5889 = vadd.f32 0.0, %v5888
  %5890 = vmatmul.f32.gmra.mxu0 %v5659
  %v5891 = vpop.f32.mrf.mxu0
  %v5892 = vadd.f32 0.0, %v5891
  %5893 = vmatmul.f32.gmra.mxu0 %v5661
  %v5894 = vpop.f32.mrf.mxu0
  %v5895 = vadd.f32 0.0, %v5894
  %5896 = vmatmul.f32.gmra.mxu0 %v5663
  %v5897 = vpop.f32.mrf.mxu0
  %v5898 = vadd.f32 0.0, %v5897
  %5899 = vmatmul.f32.gmra.mxu0 %v5665
  %v5900 = vpop.f32.mrf.mxu0
  %v5901 = vadd.f32 0.0, %v5900
  %5902 = vmatmul.f32.gmra.mxu0 %v5667
  %v5903 = vpop.f32.mrf.mxu0
  %v5904 = vadd.f32 0.0, %v5903
  %5905 = vmatmul.f32.gmra.mxu0 %v5669
  %v5906 = vpop.f32.mrf.mxu0
  %v5907 = vadd.f32 0.0, %v5906
  %5908 = vmatmul.f32.gmra.mxu0 %v5671
  %v5909 = vpop.f32.mrf.mxu0
  %v5910 = vadd.f32 0.0, %v5909
  %5911 = vmatmul.f32.gmra.mxu0 %v5673
  %v5912 = vpop.f32.mrf.mxu0
  %v5913 = vadd.f32 0.0, %v5912
  %5914 = vmatmul.f32.gmra.mxu0 %v5675
  %v5915 = vpop.f32.mrf.mxu0
  %v5916 = vadd.f32 0.0, %v5915
  %5917 = vmatmul.f32.gmra.mxu0 %v5677
  %v5918 = vpop.f32.mrf.mxu0
  %v5919 = vadd.f32 0.0, %v5918
  %5920 = vmatmul.f32.gmra.mxu0 %v5679
  %v5921 = vpop.f32.mrf.mxu0
  %v5922 = vadd.f32 0.0, %v5921
  %5923 = vmatmul.f32.gmra.mxu0 %v5681
  %v5924 = vpop.f32.mrf.mxu0
  %v5925 = vadd.f32 0.0, %v5924
  %5926 = vmatmul.f32.gmra.mxu0 %v5683
  %v5927 = vpop.f32.mrf.mxu0
  %v5928 = vadd.f32 0.0, %v5927
  %5929 = vmatmul.f32.gmra.mxu0 %v5685
  %v5930 = vpop.f32.mrf.mxu0
  %v5931 = vadd.f32 0.0, %v5930
  %5932 = vmatmul.f32.gmra.mxu0 %v5687
  %v5933 = vpop.f32.mrf.mxu0
  %v5934 = vadd.f32 0.0, %v5933
  %5935 = vmatmul.f32.gmra.mxu0 %v5689
  %v5936 = vpop.f32.mrf.mxu0
  %v5937 = vadd.f32 0.0, %v5936
  %5938 = vmatmul.f32.gmra.mxu0 %v5691
  %v5939 = vpop.f32.mrf.mxu0
  %v5940 = vadd.f32 0.0, %v5939
  %5941 = vmatmul.f32.gmra.mxu0 %v5693
  %v5942 = vpop.f32.mrf.mxu0
  %v5943 = vadd.f32 0.0, %v5942
  %5944 = vmatmul.f32.gmra.mxu0 %v5695
  %v5945 = vpop.f32.mrf.mxu0
  %v5946 = vadd.f32 0.0, %v5945
  %5947 = vmatmul.f32.gmra.mxu0 %v5697
  %v5948 = vpop.f32.mrf.mxu0
  %v5949 = vadd.f32 0.0, %v5948
  %5950 = vdwg.mxu0
  %5951 = vmatpush.msra.mxu0 0.0
  %5952 = vmatpush.msra.mxu0 0.0
  %5953 = vmatpush.msra.mxu0 0.0
  %5954 = vmatpush.msra.mxu0 0.0
  %5955 = vmatpush.msra.mxu0 0.0
  %5956 = vmatpush.msra.mxu0 0.0
  %5957 = vmatpush.msra.mxu0 0.0
  %5958 = vmatpush.msra.mxu0 0.0
  %5959 = vmatpush.msra.mxu0 0.0
  %5960 = vmatpush.msra.mxu0 0.0
  %5961 = vmatpush.msra.mxu0 0.0
  %5962 = vmatpush.msra.mxu0 %v5740
  %5963 = vmatpush.msra.mxu0 %v5738
  %5964 = vmatpush.msra.mxu0 %v5736
  %5965 = vmatpush.msra.mxu0 %v5734
  %5966 = vmatpush.msra.mxu0 %v5732
  %5967 = vmatmul.f32.gmra.mxu0 %v5743
  %v5968 = vpop.f32.mrf.mxu0
  %v5969 = vadd.f32 %v5856, %v5968
  %5970 = vmatmul.f32.gmra.mxu0 %v5746
  %v5971 = vpop.f32.mrf.mxu0
  %v5972 = vadd.f32 %v5859, %v5971
  %5973 = vmatmul.f32.gmra.mxu0 %v5749
  %v5974 = vpop.f32.mrf.mxu0
  %v5975 = vadd.f32 %v5862, %v5974
  %5976 = vmatmul.f32.gmra.mxu0 %v5752
  %v5977 = vpop.f32.mrf.mxu0
  %v5978 = vadd.f32 %v5865, %v5977
  %5979 = vmatmul.f32.gmra.mxu0 %v5755
  %v5980 = vpop.f32.mrf.mxu0
  %v5981 = vadd.f32 %v5868, %v5980
  %5982 = vmatmul.f32.gmra.mxu0 %v5758
  %v5983 = vpop.f32.mrf.mxu0
  %v5984 = vadd.f32 %v5871, %v5983
  %5985 = vmatmul.f32.gmra.mxu0 %v5761
  %v5986 = vpop.f32.mrf.mxu0
  %v5987 = vadd.f32 %v5874, %v5986
  %5988 = vmatmul.f32.gmra.mxu0 %v5764
  %v5989 = vpop.f32.mrf.mxu0
  %v5990 = vadd.f32 %v5877, %v5989
  %5991 = vmatmul.f32.gmra.mxu0 %v5767
  %v5992 = vpop.f32.mrf.mxu0
  %v5993 = vadd.f32 %v5880, %v5992
  %5994 = vmatmul.f32.gmra.mxu0 %v5770
  %v5995 = vpop.f32.mrf.mxu0
  %v5996 = vadd.f32 %v5883, %v5995
  %5997 = vmatmul.f32.gmra.mxu0 %v5773
  %v5998 = vpop.f32.mrf.mxu0
  %v5999 = vadd.f32 %v5886, %v5998
  %6000 = vmatmul.f32.gmra.mxu0 %v5776
  %v6001 = vpop.f32.mrf.mxu0
  %v6002 = vadd.f32 %v5889, %v6001
  %6003 = vmatmul.f32.gmra.mxu0 %v5779
  %v6004 = vpop.f32.mrf.mxu0
  %v6005 = vadd.f32 %v5892, %v6004
  %6006 = vmatmul.f32.gmra.mxu0 %v5782
  %v6007 = vpop.f32.mrf.mxu0
  %v6008 = vadd.f32 %v5895, %v6007
  %6009 = vmatmul.f32.gmra.mxu0 %v5785
  %v6010 = vpop.f32.mrf.mxu0
  %v6011 = vadd.f32 %v5898, %v6010
  %6012 = vmatmul.f32.gmra.mxu0 %v5788
  %v6013 = vpop.f32.mrf.mxu0
  %v6014 = vadd.f32 %v5901, %v6013
  %6015 = vmatmul.f32.gmra.mxu0 %v5791
  %v6016 = vpop.f32.mrf.mxu0
  %v6017 = vadd.f32 %v5904, %v6016
  %6018 = vmatmul.f32.gmra.mxu0 %v5794
  %v6019 = vpop.f32.mrf.mxu0
  %v6020 = vadd.f32 %v5907, %v6019
  %6021 = vmatmul.f32.gmra.mxu0 %v5797
  %v6022 = vpop.f32.mrf.mxu0
  %v6023 = vadd.f32 %v5910, %v6022
  %6024 = vmatmul.f32.gmra.mxu0 %v5800
  %v6025 = vpop.f32.mrf.mxu0
  %v6026 = vadd.f32 %v5913, %v6025
  %6027 = vmatmul.f32.gmra.mxu0 %v5803
  %v6028 = vpop.f32.mrf.mxu0
  %v6029 = vadd.f32 %v5916, %v6028
  %6030 = vmatmul.f32.gmra.mxu0 %v5806
  %v6031 = vpop.f32.mrf.mxu0
  %v6032 = vadd.f32 %v5919, %v6031
  %6033 = vmatmul.f32.gmra.mxu0 %v5809
  %v6034 = vpop.f32.mrf.mxu0
  %v6035 = vadd.f32 %v5922, %v6034
  %6036 = vmatmul.f32.gmra.mxu0 %v5812
  %v6037 = vpop.f32.mrf.mxu0
  %v6038 = vadd.f32 %v5925, %v6037
  %6039 = vmatmul.f32.gmra.mxu0 %v5815
  %v6040 = vpop.f32.mrf.mxu0
  %v6041 = vadd.f32 %v5928, %v6040
  %6042 = vmatmul.f32.gmra.mxu0 %v5818
  %v6043 = vpop.f32.mrf.mxu0
  %v6044 = vadd.f32 %v5931, %v6043
  %6045 = vmatmul.f32.gmra.mxu0 %v5821
  %v6046 = vpop.f32.mrf.mxu0
  %v6047 = vadd.f32 %v5934, %v6046
  %6048 = vmatmul.f32.gmra.mxu0 %v5824
  %v6049 = vpop.f32.mrf.mxu0
  %v6050 = vadd.f32 %v5937, %v6049
  %6051 = vmatmul.f32.gmra.mxu0 %v5827
  %v6052 = vpop.f32.mrf.mxu0
  %v6053 = vadd.f32 %v5940, %v6052
  %6054 = vmatmul.f32.gmra.mxu0 %v5830
  %v6055 = vpop.f32.mrf.mxu0
  %v6056 = vadd.f32 %v5943, %v6055
  %6057 = vmatmul.f32.gmra.mxu0 %v5833
  %v6058 = vpop.f32.mrf.mxu0
  %v6059 = vadd.f32 %v5946, %v6058
  %6060 = vmatmul.f32.gmra.mxu0 %v5836
  %v6061 = vpop.f32.mrf.mxu0
  %v6062 = vadd.f32 %v5949, %v6061
  %6063 = vdwg.mxu0
  %6064 = vmatpush.msra.mxu0 %v5731
  %6065 = vmatpush.msra.mxu0 %v5729
  %6066 = vmatpush.msra.mxu0 %v5727
  %6067 = vmatpush.msra.mxu0 %v5725
  %6068 = vmatpush.msra.mxu0 %v5723
  %6069 = vmatpush.msra.mxu0 %v5721
  %6070 = vmatpush.msra.mxu0 %v5719
  %6071 = vmatpush.msra.mxu0 %v5717
  %6072 = vmatpush.msra.mxu0 %v5715
  %6073 = vmatpush.msra.mxu0 %v5713
  %6074 = vmatpush.msra.mxu0 %v5711
  %6075 = vmatpush.msra.mxu0 %v5709
  %6076 = vmatpush.msra.mxu0 %v5707
  %6077 = vmatpush.msra.mxu0 %v5705
  %6078 = vmatpush.msra.mxu0 %v5703
  %6079 = vmatpush.msra.mxu0 %v5701
  %6080 = vmatmul.f32.gmra.mxu0 %v5635
  %v6081 = vpop.f32.mrf.mxu0
  %v6082 = vadd.f32 0.0, %v6081
  %6083 = vmatmul.f32.gmra.mxu0 %v5637
  %v6084 = vpop.f32.mrf.mxu0
  %v6085 = vadd.f32 0.0, %v6084
  %6086 = vmatmul.f32.gmra.mxu0 %v5639
  %v6087 = vpop.f32.mrf.mxu0
  %v6088 = vadd.f32 0.0, %v6087
  %6089 = vmatmul.f32.gmra.mxu0 %v5641
  %v6090 = vpop.f32.mrf.mxu0
  %v6091 = vadd.f32 0.0, %v6090
  %6092 = vmatmul.f32.gmra.mxu0 %v5643
  %v6093 = vpop.f32.mrf.mxu0
  %v6094 = vadd.f32 0.0, %v6093
  %6095 = vmatmul.f32.gmra.mxu0 %v5645
  %v6096 = vpop.f32.mrf.mxu0
  %v6097 = vadd.f32 0.0, %v6096
  %6098 = vmatmul.f32.gmra.mxu0 %v5647
  %v6099 = vpop.f32.mrf.mxu0
  %v6100 = vadd.f32 0.0, %v6099
  %6101 = vmatmul.f32.gmra.mxu0 %v5649
  %v6102 = vpop.f32.mrf.mxu0
  %v6103 = vadd.f32 0.0, %v6102
  %6104 = vmatmul.f32.gmra.mxu0 %v5651
  %v6105 = vpop.f32.mrf.mxu0
  %v6106 = vadd.f32 0.0, %v6105
  %6107 = vmatmul.f32.gmra.mxu0 %v5653
  %v6108 = vpop.f32.mrf.mxu0
  %v6109 = vadd.f32 0.0, %v6108
  %6110 = vmatmul.f32.gmra.mxu0 %v5655
  %v6111 = vpop.f32.mrf.mxu0
  %v6112 = vadd.f32 0.0, %v6111
  %6113 = vmatmul.f32.gmra.mxu0 %v5657
  %v6114 = vpop.f32.mrf.mxu0
  %v6115 = vadd.f32 0.0, %v6114
  %6116 = vmatmul.f32.gmra.mxu0 %v5659
  %v6117 = vpop.f32.mrf.mxu0
  %v6118 = vadd.f32 0.0, %v6117
  %6119 = vmatmul.f32.gmra.mxu0 %v5661
  %v6120 = vpop.f32.mrf.mxu0
  %v6121 = vadd.f32 0.0, %v6120
  %6122 = vmatmul.f32.gmra.mxu0 %v5663
  %v6123 = vpop.f32.mrf.mxu0
  %v6124 = vadd.f32 0.0, %v6123
  %6125 = vmatmul.f32.gmra.mxu0 %v5665
  %v6126 = vpop.f32.mrf.mxu0
  %v6127 = vadd.f32 0.0, %v6126
  %6128 = vmatmul.f32.gmra.mxu0 %v5667
  %v6129 = vpop.f32.mrf.mxu0
  %v6130 = vadd.f32 0.0, %v6129
  %6131 = vmatmul.f32.gmra.mxu0 %v5669
  %v6132 = vpop.f32.mrf.mxu0
  %v6133 = vadd.f32 0.0, %v6132
  %6134 = vmatmul.f32.gmra.mxu0 %v5671
  %v6135 = vpop.f32.mrf.mxu0
  %v6136 = vadd.f32 0.0, %v6135
  %6137 = vmatmul.f32.gmra.mxu0 %v5673
  %v6138 = vpop.f32.mrf.mxu0
  %v6139 = vadd.f32 0.0, %v6138
  %6140 = vmatmul.f32.gmra.mxu0 %v5675
  %v6141 = vpop.f32.mrf.mxu0
  %v6142 = vadd.f32 0.0, %v6141
  %6143 = vmatmul.f32.gmra.mxu0 %v5677
  %v6144 = vpop.f32.mrf.mxu0
  %v6145 = vadd.f32 0.0, %v6144
  %6146 = vmatmul.f32.gmra.mxu0 %v5679
  %v6147 = vpop.f32.mrf.mxu0
  %v6148 = vadd.f32 0.0, %v6147
  %6149 = vmatmul.f32.gmra.mxu0 %v5681
  %v6150 = vpop.f32.mrf.mxu0
  %v6151 = vadd.f32 0.0, %v6150
  %6152 = vmatmul.f32.gmra.mxu0 %v5683
  %v6153 = vpop.f32.mrf.mxu0
  %v6154 = vadd.f32 0.0, %v6153
  %6155 = vmatmul.f32.gmra.mxu0 %v5685
  %v6156 = vpop.f32.mrf.mxu0
  %v6157 = vadd.f32 0.0, %v6156
  %6158 = vmatmul.f32.gmra.mxu0 %v5687
  %v6159 = vpop.f32.mrf.mxu0
  %v6160 = vadd.f32 0.0, %v6159
  %6161 = vmatmul.f32.gmra.mxu0 %v5689
  %v6162 = vpop.f32.mrf.mxu0
  %v6163 = vadd.f32 0.0, %v6162
  %6164 = vmatmul.f32.gmra.mxu0 %v5691
  %v6165 = vpop.f32.mrf.mxu0
  %v6166 = vadd.f32 0.0, %v6165
  %6167 = vmatmul.f32.gmra.mxu0 %v5693
  %v6168 = vpop.f32.mrf.mxu0
  %v6169 = vadd.f32 0.0, %v6168
  %6170 = vmatmul.f32.gmra.mxu0 %v5695
  %v6171 = vpop.f32.mrf.mxu0
  %v6172 = vadd.f32 0.0, %v6171
  %6173 = vmatmul.f32.gmra.mxu0 %v5697
  %v6174 = vpop.f32.mrf.mxu0
  %v6175 = vadd.f32 0.0, %v6174
  %6176 = vdwg.mxu0
  %6177 = vmatpush.msra.mxu0 0.0
  %6178 = vmatpush.msra.mxu0 0.0
  %6179 = vmatpush.msra.mxu0 0.0
  %6180 = vmatpush.msra.mxu0 0.0
  %6181 = vmatpush.msra.mxu0 0.0
  %6182 = vmatpush.msra.mxu0 0.0
  %6183 = vmatpush.msra.mxu0 0.0
  %6184 = vmatpush.msra.mxu0 0.0
  %6185 = vmatpush.msra.mxu0 0.0
  %6186 = vmatpush.msra.mxu0 0.0
  %6187 = vmatpush.msra.mxu0 0.0
  %6188 = vmatpush.msra.mxu0 %v5741
  %6189 = vmatpush.msra.mxu0 %v5739
  %6190 = vmatpush.msra.mxu0 %v5737
  %6191 = vmatpush.msra.mxu0 %v5735
  %6192 = vmatpush.msra.mxu0 %v5733
  %6193 = vmatmul.f32.gmra.mxu0 %v5743
  %v6194 = vpop.f32.mrf.mxu0
  %v6195 = vadd.f32 %v6082, %v6194
  %6196 = vmatmul.f32.gmra.mxu0 %v5746
  %v6197 = vpop.f32.mrf.mxu0
  %v6198 = vadd.f32 %v6085, %v6197
  %6199 = vmatmul.f32.gmra.mxu0 %v5749
  %v6200 = vpop.f32.mrf.mxu0
  %v6201 = vadd.f32 %v6088, %v6200
  %6202 = vmatmul.f32.gmra.mxu0 %v5752
  %v6203 = vpop.f32.mrf.mxu0
  %v6204 = vadd.f32 %v6091, %v6203
  %6205 = vmatmul.f32.gmra.mxu0 %v5755
  %v6206 = vpop.f32.mrf.mxu0
  %v6207 = vadd.f32 %v6094, %v6206
  %6208 = vmatmul.f32.gmra.mxu0 %v5758
  %v6209 = vpop.f32.mrf.mxu0
  %v6210 = vadd.f32 %v6097, %v6209
  %6211 = vmatmul.f32.gmra.mxu0 %v5761
  %v6212 = vpop.f32.mrf.mxu0
  %v6213 = vadd.f32 %v6100, %v6212
  %6214 = vmatmul.f32.gmra.mxu0 %v5764
  %v6215 = vpop.f32.mrf.mxu0
  %v6216 = vadd.f32 %v6103, %v6215
  %6217 = vmatmul.f32.gmra.mxu0 %v5767
  %v6218 = vpop.f32.mrf.mxu0
  %v6219 = vadd.f32 %v6106, %v6218
  %6220 = vmatmul.f32.gmra.mxu0 %v5770
  %v6221 = vpop.f32.mrf.mxu0
  %v6222 = vadd.f32 %v6109, %v6221
  %6223 = vmatmul.f32.gmra.mxu0 %v5773
  %v6224 = vpop.f32.mrf.mxu0
  %v6225 = vadd.f32 %v6112, %v6224
  %6226 = vmatmul.f32.gmra.mxu0 %v5776
  %v6227 = vpop.f32.mrf.mxu0
  %v6228 = vadd.f32 %v6115, %v6227
  %6229 = vmatmul.f32.gmra.mxu0 %v5779
  %v6230 = vpop.f32.mrf.mxu0
  %v6231 = vadd.f32 %v6118, %v6230
  %6232 = vmatmul.f32.gmra.mxu0 %v5782
  %v6233 = vpop.f32.mrf.mxu0
  %v6234 = vadd.f32 %v6121, %v6233
  %6235 = vmatmul.f32.gmra.mxu0 %v5785
  %v6236 = vpop.f32.mrf.mxu0
  %v6237 = vadd.f32 %v6124, %v6236
  %6238 = vmatmul.f32.gmra.mxu0 %v5788
  %v6239 = vpop.f32.mrf.mxu0
  %v6240 = vadd.f32 %v6127, %v6239
  %6241 = vmatmul.f32.gmra.mxu0 %v5791
  %v6242 = vpop.f32.mrf.mxu0
  %v6243 = vadd.f32 %v6130, %v6242
  %6244 = vmatmul.f32.gmra.mxu0 %v5794
  %v6245 = vpop.f32.mrf.mxu0
  %v6246 = vadd.f32 %v6133, %v6245
  %6247 = vmatmul.f32.gmra.mxu0 %v5797
  %v6248 = vpop.f32.mrf.mxu0
  %v6249 = vadd.f32 %v6136, %v6248
  %6250 = vmatmul.f32.gmra.mxu0 %v5800
  %v6251 = vpop.f32.mrf.mxu0
  %v6252 = vadd.f32 %v6139, %v6251
  %6253 = vmatmul.f32.gmra.mxu0 %v5803
  %v6254 = vpop.f32.mrf.mxu0
  %v6255 = vadd.f32 %v6142, %v6254
  %6256 = vmatmul.f32.gmra.mxu0 %v5806
  %v6257 = vpop.f32.mrf.mxu0
  %v6258 = vadd.f32 %v6145, %v6257
  %6259 = vmatmul.f32.gmra.mxu0 %v5809
  %v6260 = vpop.f32.mrf.mxu0
  %v6261 = vadd.f32 %v6148, %v6260
  %6262 = vmatmul.f32.gmra.mxu0 %v5812
  %v6263 = vpop.f32.mrf.mxu0
  %v6264 = vadd.f32 %v6151, %v6263
  %6265 = vmatmul.f32.gmra.mxu0 %v5815
  %v6266 = vpop.f32.mrf.mxu0
  %v6267 = vadd.f32 %v6154, %v6266
  %6268 = vmatmul.f32.gmra.mxu0 %v5818
  %v6269 = vpop.f32.mrf.mxu0
  %v6270 = vadd.f32 %v6157, %v6269
  %6271 = vmatmul.f32.gmra.mxu0 %v5821
  %v6272 = vpop.f32.mrf.mxu0
  %v6273 = vadd.f32 %v6160, %v6272
  %6274 = vmatmul.f32.gmra.mxu0 %v5824
  %v6275 = vpop.f32.mrf.mxu0
  %v6276 = vadd.f32 %v6163, %v6275
  %6277 = vmatmul.f32.gmra.mxu0 %v5827
  %v6278 = vpop.f32.mrf.mxu0
  %v6279 = vadd.f32 %v6166, %v6278
  %6280 = vmatmul.f32.gmra.mxu0 %v5830
  %v6281 = vpop.f32.mrf.mxu0
  %v6282 = vadd.f32 %v6169, %v6281
  %6283 = vmatmul.f32.gmra.mxu0 %v5833
  %v6284 = vpop.f32.mrf.mxu0
  %v6285 = vadd.f32 %v6172, %v6284
  %6286 = vmatmul.f32.gmra.mxu0 %v5836
  %v6287 = vpop.f32.mrf.mxu0
  %v6288 = vadd.f32 %v6175, %v6287
  %6289 = vdwg.mxu0
  %v6290 = vld [vmem:[#allocation2] sm:$0xff]
  %v6291 = vld [vmem:[#allocation2 + $0x8] sm:$0xff]
  %v6292 = vld [vmem:[#allocation2 + $0x10] sm:$0xff]
  %v6293 = vld [vmem:[#allocation2 + $0x18] sm:$0xff]
  %v6294 = vld [vmem:[#allocation2 + $0x20] sm:$0xff]
  %v6295 = vld [vmem:[#allocation2 + $0x28] sm:$0xff]
  %v6296 = vld [vmem:[#allocation2 + $0x30] sm:$0xff]
  %v6297 = vld [vmem:[#allocation2 + $0x38] sm:$0xff]
  %v6298 = vld [vmem:[#allocation2 + $0x40] sm:$0xff]
  %v6299 = vld [vmem:[#allocation2 + $0x48] sm:$0xff]
  %v6300 = vld [vmem:[#allocation2 + $0x50] sm:$0xff]
  %v6301 = vld [vmem:[#allocation2 + $0x58] sm:$0xff]
  %v6302 = vld [vmem:[#allocation2 + $0x60] sm:$0xff]
  %v6303 = vld [vmem:[#allocation2 + $0x68] sm:$0xff]
  %v6304 = vld [vmem:[#allocation2 + $0x70] sm:$0xff]
  %v6305 = vld [vmem:[#allocation2 + $0x78] sm:$0xff]
  %v6306 = vld [vmem:[#allocation2 + $0x80] sm:$0xff]
  %v6307 = vld [vmem:[#allocation2 + $0x88] sm:$0xff]
  %v6308 = vld [vmem:[#allocation2 + $0x90] sm:$0xff]
  %v6309 = vld [vmem:[#allocation2 + $0x98] sm:$0xff]
  %v6310 = vld [vmem:[#allocation2 + $0xa0] sm:$0xff]
  %v6311 = vld [vmem:[#allocation2 + $0xa8] sm:$0xff]
  %v6312 = vld [vmem:[#allocation2 + $0xb0] sm:$0xff]
  %v6313 = vld [vmem:[#allocation2 + $0xb8] sm:$0xff]
  %v6314 = vld [vmem:[#allocation2 + $0xc0] sm:$0xff]
  %v6315 = vld [vmem:[#allocation2 + $0xc8] sm:$0xff]
  %v6316 = vld [vmem:[#allocation2 + $0xd0] sm:$0xff]
  %v6317 = vld [vmem:[#allocation2 + $0xd8] sm:$0xff]
  %v6318 = vld [vmem:[#allocation2 + $0xe0] sm:$0xff]
  %v6319 = vld [vmem:[#allocation2 + $0xe8] sm:$0xff]
  %v6320 = vld [vmem:[#allocation2 + $0xf0] sm:$0xff]
  %v6321 = vld [vmem:[#allocation2 + $0xf8] sm:$0xff]
  %v6322 = vld [vmem:[#allocation2 + $0x100] sm:$0xff]
  %v6323 = vld [vmem:[#allocation2 + $0x108] sm:$0xff]
  %v6324 = vld [vmem:[#allocation2 + $0x110] sm:$0xff]
  %v6325 = vld [vmem:[#allocation2 + $0x118] sm:$0xff]
  %v6326 = vld [vmem:[#allocation2 + $0x120] sm:$0xff]
  %v6327 = vld [vmem:[#allocation2 + $0x128] sm:$0xff]
  %v6328 = vld [vmem:[#allocation2 + $0x130] sm:$0xff]
  %v6329 = vld [vmem:[#allocation2 + $0x138] sm:$0xff]
  %v6330 = vld [vmem:[#allocation2 + $0x140] sm:$0xff]
  %v6331 = vld [vmem:[#allocation2 + $0x148] sm:$0xff]
  %v6332 = vld [vmem:[#allocation2 + $0x150] sm:$0xff]
  %v6333 = vld [vmem:[#allocation2 + $0x158] sm:$0xff]
  %v6334 = vld [vmem:[#allocation2 + $0x160] sm:$0xff]
  %v6335 = vld [vmem:[#allocation2 + $0x168] sm:$0xff]
  %v6336 = vld [vmem:[#allocation2 + $0x170] sm:$0xff]
  %v6337 = vld [vmem:[#allocation2 + $0x178] sm:$0xff]
  %v6338 = vld [vmem:[#allocation2 + $0x180] sm:$0xff]
  %v6339 = vld [vmem:[#allocation2 + $0x188] sm:$0xff]
  %v6340 = vld [vmem:[#allocation2 + $0x190] sm:$0xff]
  %v6341 = vld [vmem:[#allocation2 + $0x198] sm:$0xff]
  %v6342 = vld [vmem:[#allocation2 + $0x1a0] sm:$0xff]
  %v6343 = vld [vmem:[#allocation2 + $0x1a8] sm:$0xff]
  %v6344 = vld [vmem:[#allocation2 + $0x1b0] sm:$0xff]
  %v6345 = vld [vmem:[#allocation2 + $0x1b8] sm:$0xff]
  %v6346 = vld [vmem:[#allocation2 + $0x1c0] sm:$0xff]
  %v6347 = vld [vmem:[#allocation2 + $0x1c8] sm:$0xff]
  %v6348 = vld [vmem:[#allocation2 + $0x1d0] sm:$0xff]
  %v6349 = vld [vmem:[#allocation2 + $0x1d8] sm:$0xff]
  %v6350 = vld [vmem:[#allocation2 + $0x1e0] sm:$0xff]
  %v6351 = vld [vmem:[#allocation2 + $0x1e8] sm:$0xff]
  %v6352 = vld [vmem:[#allocation2 + $0x1f0] sm:$0x3f]
  %v6353 = vld [vmem:[#allocation2 + $0x1f8] sm:$0x3f]
  %v6418 = vrot.slane %v5969, 2
  %v6419 = vrot.slane %v5972, 2
  %v6420 = vsel %vm1871, %v6418, %v6419
  %v6421 = vrot.slane %v6195, 2
  %v6422 = vrot.slane %v6198, 2
  %v6423 = vsel %vm1871, %v6421, %v6422
  %v6424 = vrot.slane %v5975, 2
  %v6425 = vsel %vm1871, %v6419, %v6424
  %v6426 = vrot.slane %v6201, 2
  %v6427 = vsel %vm1871, %v6422, %v6426
  %v6428 = vrot.slane %v5978, 2
  %v6429 = vsel %vm1871, %v6424, %v6428
  %v6430 = vrot.slane %v6204, 2
  %v6431 = vsel %vm1871, %v6426, %v6430
  %v6432 = vrot.slane %v5981, 2
  %v6433 = vsel %vm1871, %v6428, %v6432
  %v6434 = vrot.slane %v6207, 2
  %v6435 = vsel %vm1871, %v6430, %v6434
  %v6436 = vrot.slane %v5984, 2
  %v6437 = vsel %vm1871, %v6432, %v6436
  %v6438 = vrot.slane %v6210, 2
  %v6439 = vsel %vm1871, %v6434, %v6438
  %v6440 = vrot.slane %v5987, 2
  %v6441 = vsel %vm1871, %v6436, %v6440
  %v6442 = vrot.slane %v6213, 2
  %v6443 = vsel %vm1871, %v6438, %v6442
  %v6444 = vrot.slane %v5990, 2
  %v6445 = vsel %vm1871, %v6440, %v6444
  %v6446 = vrot.slane %v6216, 2
  %v6447 = vsel %vm1871, %v6442, %v6446
  %v6448 = vrot.slane %v5993, 2
  %v6449 = vsel %vm1871, %v6444, %v6448
  %v6450 = vrot.slane %v6219, 2
  %v6451 = vsel %vm1871, %v6446, %v6450
  %v6452 = vrot.slane %v5996, 2
  %v6453 = vsel %vm1871, %v6448, %v6452
  %v6454 = vrot.slane %v6222, 2
  %v6455 = vsel %vm1871, %v6450, %v6454
  %v6456 = vrot.slane %v5999, 2
  %v6457 = vsel %vm1871, %v6452, %v6456
  %v6458 = vrot.slane %v6225, 2
  %v6459 = vsel %vm1871, %v6454, %v6458
  %v6460 = vrot.slane %v6002, 2
  %v6461 = vsel %vm1871, %v6456, %v6460
  %v6462 = vrot.slane %v6228, 2
  %v6463 = vsel %vm1871, %v6458, %v6462
  %v6464 = vrot.slane %v6005, 2
  %v6465 = vsel %vm1871, %v6460, %v6464
  %v6466 = vrot.slane %v6231, 2
  %v6467 = vsel %vm1871, %v6462, %v6466
  %v6468 = vrot.slane %v6008, 2
  %v6469 = vsel %vm1871, %v6464, %v6468
  %v6470 = vrot.slane %v6234, 2
  %v6471 = vsel %vm1871, %v6466, %v6470
  %v6472 = vrot.slane %v6011, 2
  %v6473 = vsel %vm1871, %v6468, %v6472
  %v6474 = vrot.slane %v6237, 2
  %v6475 = vsel %vm1871, %v6470, %v6474
  %v6476 = vrot.slane %v6014, 2
  %v6477 = vsel %vm1871, %v6472, %v6476
  %v6478 = vrot.slane %v6240, 2
  %v6479 = vsel %vm1871, %v6474, %v6478
  %v6480 = vrot.slane %v6017, 2
  %v6481 = vsel %vm1871, %v6476, %v6480
  %v6482 = vrot.slane %v6243, 2
  %v6483 = vsel %vm1871, %v6478, %v6482
  %v6484 = vrot.slane %v6020, 2
  %v6485 = vsel %vm1871, %v6480, %v6484
  %v6486 = vrot.slane %v6246, 2
  %v6487 = vsel %vm1871, %v6482, %v6486
  %v6488 = vrot.slane %v6023, 2
  %v6489 = vsel %vm1871, %v6484, %v6488
  %v6490 = vrot.slane %v6249, 2
  %v6491 = vsel %vm1871, %v6486, %v6490
  %v6492 = vrot.slane %v6026, 2
  %v6493 = vsel %vm1871, %v6488, %v6492
  %v6494 = vrot.slane %v6252, 2
  %v6495 = vsel %vm1871, %v6490, %v6494
  %v6496 = vrot.slane %v6029, 2
  %v6497 = vsel %vm1871, %v6492, %v6496
  %v6498 = vrot.slane %v6255, 2
  %v6499 = vsel %vm1871, %v6494, %v6498
  %v6500 = vrot.slane %v6032, 2
  %v6501 = vsel %vm1871, %v6496, %v6500
  %v6502 = vrot.slane %v6258, 2
  %v6503 = vsel %vm1871, %v6498, %v6502
  %v6504 = vrot.slane %v6035, 2
  %v6505 = vsel %vm1871, %v6500, %v6504
  %v6506 = vrot.slane %v6261, 2
  %v6507 = vsel %vm1871, %v6502, %v6506
  %v6508 = vrot.slane %v6038, 2
  %v6509 = vsel %vm1871, %v6504, %v6508
  %v6510 = vrot.slane %v6264, 2
  %v6511 = vsel %vm1871, %v6506, %v6510
  %v6512 = vrot.slane %v6041, 2
  %v6513 = vsel %vm1871, %v6508, %v6512
  %v6514 = vrot.slane %v6267, 2
  %v6515 = vsel %vm1871, %v6510, %v6514
  %v6516 = vrot.slane %v6044, 2
  %v6517 = vsel %vm1871, %v6512, %v6516
  %v6518 = vrot.slane %v6270, 2
  %v6519 = vsel %vm1871, %v6514, %v6518
  %v6520 = vrot.slane %v6047, 2
  %v6521 = vsel %vm1871, %v6516, %v6520
  %v6522 = vrot.slane %v6273, 2
  %v6523 = vsel %vm1871, %v6518, %v6522
  %v6524 = vrot.slane %v6050, 2
  %v6525 = vsel %vm1871, %v6520, %v6524
  %v6526 = vrot.slane %v6276, 2
  %v6527 = vsel %vm1871, %v6522, %v6526
  %v6528 = vrot.slane %v6053, 2
  %v6529 = vsel %vm1871, %v6524, %v6528
  %v6530 = vrot.slane %v6279, 2
  %v6531 = vsel %vm1871, %v6526, %v6530
  %v6532 = vrot.slane %v6056, 2
  %v6533 = vsel %vm1871, %v6528, %v6532
  %v6534 = vrot.slane %v6282, 2
  %v6535 = vsel %vm1871, %v6530, %v6534
  %v6536 = vrot.slane %v6059, 2
  %v6537 = vsel %vm1871, %v6532, %v6536
  %v6538 = vrot.slane %v6285, 2
  %v6539 = vsel %vm1871, %v6534, %v6538
  %v6540 = vrot.slane %v6062, 2
  %v6541 = vsel %vm1871, %v6536, %v6540
  %v6542 = vrot.slane %v6288, 2
  %v6543 = vsel %vm1871, %v6538, %v6542
  %v6608 = vadd.f32 %v6290, %v6420
  %v6609 = vadd.f32 %v6291, %v6423
  %v6610 = vadd.f32 %v6292, %v6425
  %v6611 = vadd.f32 %v6293, %v6427
  %v6612 = vadd.f32 %v6294, %v6429
  %v6613 = vadd.f32 %v6295, %v6431
  %v6614 = vadd.f32 %v6296, %v6433
  %v6615 = vadd.f32 %v6297, %v6435
  %v6616 = vadd.f32 %v6298, %v6437
  %v6617 = vadd.f32 %v6299, %v6439
  %v6618 = vadd.f32 %v6300, %v6441
  %v6619 = vadd.f32 %v6301, %v6443
  %v6620 = vadd.f32 %v6302, %v6445
  %v6621 = vadd.f32 %v6303, %v6447
  %v6622 = vadd.f32 %v6304, %v6449
  %v6623 = vadd.f32 %v6305, %v6451
  %v6624 = vadd.f32 %v6306, %v6453
  %v6625 = vadd.f32 %v6307, %v6455
  %v6626 = vadd.f32 %v6308, %v6457
  %v6627 = vadd.f32 %v6309, %v6459
  %v6628 = vadd.f32 %v6310, %v6461
  %v6629 = vadd.f32 %v6311, %v6463
  %v6630 = vadd.f32 %v6312, %v6465
  %v6631 = vadd.f32 %v6313, %v6467
  %v6632 = vadd.f32 %v6314, %v6469
  %v6633 = vadd.f32 %v6315, %v6471
  %v6634 = vadd.f32 %v6316, %v6473
  %v6635 = vadd.f32 %v6317, %v6475
  %v6636 = vadd.f32 %v6318, %v6477
  %v6637 = vadd.f32 %v6319, %v6479
  %v6638 = vadd.f32 %v6320, %v6481
  %v6639 = vadd.f32 %v6321, %v6483
  %v6640 = vadd.f32 %v6322, %v6485
  %v6641 = vadd.f32 %v6323, %v6487
  %v6642 = vadd.f32 %v6324, %v6489
  %v6643 = vadd.f32 %v6325, %v6491
  %v6644 = vadd.f32 %v6326, %v6493
  %v6645 = vadd.f32 %v6327, %v6495
  %v6646 = vadd.f32 %v6328, %v6497
  %v6647 = vadd.f32 %v6329, %v6499
  %v6648 = vadd.f32 %v6330, %v6501
  %v6649 = vadd.f32 %v6331, %v6503
  %v6650 = vadd.f32 %v6332, %v6505
  %v6651 = vadd.f32 %v6333, %v6507
  %v6652 = vadd.f32 %v6334, %v6509
  %v6653 = vadd.f32 %v6335, %v6511
  %v6654 = vadd.f32 %v6336, %v6513
  %v6655 = vadd.f32 %v6337, %v6515
  %v6656 = vadd.f32 %v6338, %v6517
  %v6657 = vadd.f32 %v6339, %v6519
  %v6658 = vadd.f32 %v6340, %v6521
  %v6659 = vadd.f32 %v6341, %v6523
  %v6660 = vadd.f32 %v6342, %v6525
  %v6661 = vadd.f32 %v6343, %v6527
  %v6662 = vadd.f32 %v6344, %v6529
  %v6663 = vadd.f32 %v6345, %v6531
  %v6664 = vadd.f32 %v6346, %v6533
  %v6665 = vadd.f32 %v6347, %v6535
  %v6666 = vadd.f32 %v6348, %v6537
  %v6667 = vadd.f32 %v6349, %v6539
  %v6668 = vadd.f32 %v6350, %v6541
  %v6669 = vadd.f32 %v6351, %v6543
  %v6670 = vadd.f32 %v6352, %v6540
  %v6671 = vadd.f32 %v6353, %v6542
  %6672 = vst [vmem:[#allocation2] sm:$0xff] %v6608
  %6673 = vst.msk [vmem:[#allocation2 + $0x8] sm:$0xff] %vm5571, %v6609
  %6674 = vst [vmem:[#allocation2 + $0x10] sm:$0xff] %v6610
  %6675 = vst.msk [vmem:[#allocation2 + $0x18] sm:$0xff] %vm5571, %v6611
  %6676 = vst [vmem:[#allocation2 + $0x20] sm:$0xff] %v6612
  %6677 = vst.msk [vmem:[#allocation2 + $0x28] sm:$0xff] %vm5571, %v6613
  %6678 = vst [vmem:[#allocation2 + $0x30] sm:$0xff] %v6614
  %6679 = vst.msk [vmem:[#allocation2 + $0x38] sm:$0xff] %vm5571, %v6615
  %6680 = vst [vmem:[#allocation2 + $0x40] sm:$0xff] %v6616
  %6681 = vst.msk [vmem:[#allocation2 + $0x48] sm:$0xff] %vm5571, %v6617
  %6682 = vst [vmem:[#allocation2 + $0x50] sm:$0xff] %v6618
  %6683 = vst.msk [vmem:[#allocation2 + $0x58] sm:$0xff] %vm5571, %v6619
  %6684 = vst [vmem:[#allocation2 + $0x60] sm:$0xff] %v6620
  %6685 = vst.msk [vmem:[#allocation2 + $0x68] sm:$0xff] %vm5571, %v6621
  %6686 = vst [vmem:[#allocation2 + $0x70] sm:$0xff] %v6622
  %6687 = vst.msk [vmem:[#allocation2 + $0x78] sm:$0xff] %vm5571, %v6623
  %6688 = vst [vmem:[#allocation2 + $0x80] sm:$0xff] %v6624
  %6689 = vst.msk [vmem:[#allocation2 + $0x88] sm:$0xff] %vm5571, %v6625
  %6690 = vst [vmem:[#allocation2 + $0x90] sm:$0xff] %v6626
  %6691 = vst.msk [vmem:[#allocation2 + $0x98] sm:$0xff] %vm5571, %v6627
  %6692 = vst [vmem:[#allocation2 + $0xa0] sm:$0xff] %v6628
  %6693 = vst.msk [vmem:[#allocation2 + $0xa8] sm:$0xff] %vm5571, %v6629
  %6694 = vst [vmem:[#allocation2 + $0xb0] sm:$0xff] %v6630
  %6695 = vst.msk [vmem:[#allocation2 + $0xb8] sm:$0xff] %vm5571, %v6631
  %6696 = vst [vmem:[#allocation2 + $0xc0] sm:$0xff] %v6632
  %6697 = vst.msk [vmem:[#allocation2 + $0xc8] sm:$0xff] %vm5571, %v6633
  %6698 = vst [vmem:[#allocation2 + $0xd0] sm:$0xff] %v6634
  %6699 = vst.msk [vmem:[#allocation2 + $0xd8] sm:$0xff] %vm5571, %v6635
  %6700 = vst [vmem:[#allocation2 + $0xe0] sm:$0xff] %v6636
  %6701 = vst.msk [vmem:[#allocation2 + $0xe8] sm:$0xff] %vm5571, %v6637
  %6702 = vst [vmem:[#allocation2 + $0xf0] sm:$0xff] %v6638
  %6703 = vst.msk [vmem:[#allocation2 + $0xf8] sm:$0xff] %vm5571, %v6639
  %6704 = vst [vmem:[#allocation2 + $0x100] sm:$0xff] %v6640
  %6705 = vst.msk [vmem:[#allocation2 + $0x108] sm:$0xff] %vm5571, %v6641
  %6706 = vst [vmem:[#allocation2 + $0x110] sm:$0xff] %v6642
  %6707 = vst.msk [vmem:[#allocation2 + $0x118] sm:$0xff] %vm5571, %v6643
  %6708 = vst [vmem:[#allocation2 + $0x120] sm:$0xff] %v6644
  %6709 = vst.msk [vmem:[#allocation2 + $0x128] sm:$0xff] %vm5571, %v6645
  %6710 = vst [vmem:[#allocation2 + $0x130] sm:$0xff] %v6646
  %6711 = vst.msk [vmem:[#allocation2 + $0x138] sm:$0xff] %vm5571, %v6647
  %6712 = vst [vmem:[#allocation2 + $0x140] sm:$0xff] %v6648
  %6713 = vst.msk [vmem:[#allocation2 + $0x148] sm:$0xff] %vm5571, %v6649
  %6714 = vst [vmem:[#allocation2 + $0x150] sm:$0xff] %v6650
  %6715 = vst.msk [vmem:[#allocation2 + $0x158] sm:$0xff] %vm5571, %v6651
  %6716 = vst [vmem:[#allocation2 + $0x160] sm:$0xff] %v6652
  %6717 = vst.msk [vmem:[#allocation2 + $0x168] sm:$0xff] %vm5571, %v6653
  %6718 = vst [vmem:[#allocation2 + $0x170] sm:$0xff] %v6654
  %6719 = vst.msk [vmem:[#allocation2 + $0x178] sm:$0xff] %vm5571, %v6655
  %6720 = vst [vmem:[#allocation2 + $0x180] sm:$0xff] %v6656
  %6721 = vst.msk [vmem:[#allocation2 + $0x188] sm:$0xff] %vm5571, %v6657
  %6722 = vst [vmem:[#allocation2 + $0x190] sm:$0xff] %v6658
  %6723 = vst.msk [vmem:[#allocation2 + $0x198] sm:$0xff] %vm5571, %v6659
  %6724 = vst [vmem:[#allocation2 + $0x1a0] sm:$0xff] %v6660
  %6725 = vst.msk [vmem:[#allocation2 + $0x1a8] sm:$0xff] %vm5571, %v6661
  %6726 = vst [vmem:[#allocation2 + $0x1b0] sm:$0xff] %v6662
  %6727 = vst.msk [vmem:[#allocation2 + $0x1b8] sm:$0xff] %vm5571, %v6663
  %6728 = vst [vmem:[#allocation2 + $0x1c0] sm:$0xff] %v6664
  %6729 = vst.msk [vmem:[#allocation2 + $0x1c8] sm:$0xff] %vm5571, %v6665
  %6730 = vst [vmem:[#allocation2 + $0x1d0] sm:$0xff] %v6666
  %6731 = vst.msk [vmem:[#allocation2 + $0x1d8] sm:$0xff] %vm5571, %v6667
  %6732 = vst [vmem:[#allocation2 + $0x1e0] sm:$0xff] %v6668
  %6733 = vst.msk [vmem:[#allocation2 + $0x1e8] sm:$0xff] %vm5571, %v6669
  %6734 = vst [vmem:[#allocation2 + $0x1f0] sm:$0x3f] %v6670
  %vm6735 = vcmask 259072
  %6736 = vst.msk [vmem:[#allocation2 + $0x1f8] sm:$0x3f] %vm6735, %v6671
  %v6737 = vld [vmem:[#allocation4] sm:$0xff]
  %v6738 = vld [vmem:[#allocation4 + $0x8] sm:$0xff]
  %v6739 = vld [vmem:[#allocation4 + $0x10] sm:$0xff]
  %v6740 = vld [vmem:[#allocation4 + $0x18] sm:$0xff]
  %v6741 = vld [vmem:[#allocation4 + $0x20] sm:$0xff]
  %v6742 = vld [vmem:[#allocation4 + $0x28] sm:$0xff]
  %v6743 = vld [vmem:[#allocation4 + $0x30] sm:$0xff]
  %v6744 = vld [vmem:[#allocation4 + $0x38] sm:$0xff]
  %v6745 = vld [vmem:[#allocation4 + $0x40] sm:$0xff]
  %v6746 = vld [vmem:[#allocation4 + $0x48] sm:$0xff]
  %v6747 = vld [vmem:[#allocation4 + $0x50] sm:$0xff]
  %v6748 = vld [vmem:[#allocation4 + $0x58] sm:$0xff]
  %v6749 = vld [vmem:[#allocation4 + $0x60] sm:$0xff]
  %v6750 = vld [vmem:[#allocation4 + $0x68] sm:$0xff]
  %v6751 = vld [vmem:[#allocation4 + $0x70] sm:$0xff]
  %v6752 = vld [vmem:[#allocation4 + $0x78] sm:$0xff]
  %v6753 = vld [vmem:[#allocation4 + $0x80] sm:$0xff]
  %v6754 = vld [vmem:[#allocation4 + $0x88] sm:$0xff]
  %v6755 = vld [vmem:[#allocation4 + $0x90] sm:$0xff]
  %v6756 = vld [vmem:[#allocation4 + $0x98] sm:$0xff]
  %v6757 = vld [vmem:[#allocation4 + $0xa0] sm:$0xff]
  %v6758 = vld [vmem:[#allocation4 + $0xa8] sm:$0xff]
  %v6759 = vld [vmem:[#allocation4 + $0xb0] sm:$0xff]
  %v6760 = vld [vmem:[#allocation4 + $0xb8] sm:$0xff]
  %v6761 = vld [vmem:[#allocation4 + $0xc0] sm:$0xff]
  %v6762 = vld [vmem:[#allocation4 + $0xc8] sm:$0xff]
  %v6763 = vld [vmem:[#allocation4 + $0xd0] sm:$0xff]
  %v6764 = vld [vmem:[#allocation4 + $0xd8] sm:$0xff]
  %v6765 = vld [vmem:[#allocation4 + $0xe0] sm:$0xff]
  %v6766 = vld [vmem:[#allocation4 + $0xe8] sm:$0xff]
  %v6767 = vld [vmem:[#allocation4 + $0xf0] sm:$0xff]
  %v6768 = vld [vmem:[#allocation4 + $0xf8] sm:$0xff]
  %v6769 = vld [vmem:[#allocation4 + $0x100] sm:$0xff]
  %v6770 = vld [vmem:[#allocation4 + $0x108] sm:$0xff]
  %v6771 = vld [vmem:[#allocation4 + $0x110] sm:$0xff]
  %v6772 = vld [vmem:[#allocation4 + $0x118] sm:$0xff]
  %v6773 = vld [vmem:[#allocation4 + $0x120] sm:$0xff]
  %v6774 = vld [vmem:[#allocation4 + $0x128] sm:$0xff]
  %v6775 = vld [vmem:[#allocation4 + $0x130] sm:$0xff]
  %v6776 = vld [vmem:[#allocation4 + $0x138] sm:$0xff]
  %v6777 = vld [vmem:[#allocation4 + $0x140] sm:$0xff]
  %v6778 = vld [vmem:[#allocation4 + $0x148] sm:$0xff]
  %v6779 = vld [vmem:[#allocation4 + $0x150] sm:$0xff]
  %v6780 = vld [vmem:[#allocation4 + $0x158] sm:$0xff]
  %v6781 = vld [vmem:[#allocation4 + $0x160] sm:$0xff]
  %v6782 = vld [vmem:[#allocation4 + $0x168] sm:$0xff]
  %v6783 = vld [vmem:[#allocation4 + $0x170] sm:$0xff]
  %v6784 = vld [vmem:[#allocation4 + $0x178] sm:$0xff]
  %v6785 = vld [vmem:[#allocation4 + $0x180] sm:$0xff]
  %v6786 = vld [vmem:[#allocation4 + $0x188] sm:$0xff]
  %v6787 = vld [vmem:[#allocation4 + $0x190] sm:$0xff]
  %v6788 = vld [vmem:[#allocation4 + $0x198] sm:$0xff]
  %v6789 = vld [vmem:[#allocation4 + $0x1a0] sm:$0xff]
  %v6790 = vld [vmem:[#allocation4 + $0x1a8] sm:$0xff]
  %v6791 = vld [vmem:[#allocation4 + $0x1b0] sm:$0xff]
  %v6792 = vld [vmem:[#allocation4 + $0x1b8] sm:$0xff]
  %v6793 = vld [vmem:[#allocation4 + $0x1c0] sm:$0xff]
  %v6794 = vld [vmem:[#allocation4 + $0x1c8] sm:$0xff]
  %v6795 = vld [vmem:[#allocation4 + $0x1d0] sm:$0xff]
  %v6796 = vld [vmem:[#allocation4 + $0x1d8] sm:$0xff]
  %v6797 = vld [vmem:[#allocation4 + $0x1e0] sm:$0xff]
  %v6798 = vld [vmem:[#allocation4 + $0x1e8] sm:$0xff]
  %v6799 = vld [vmem:[#allocation4 + $0x1f0] sm:$0xff]
  %v6800 = vld [vmem:[#allocation4 + $0x1f8] sm:$0xff]
  %s6801 = scalar_lea.vmem %s3, 672
  %v6802 = vld [vmem:[%s6801] sm:$0xff]
  %v6803 = vld [vmem:[%s6801 + $0x8] sm:$0xff]
  %v6804 = vld [vmem:[%s6801 + $0x10] sm:$0xff]
  %v6805 = vld [vmem:[%s6801 + $0x18] sm:$0xff]
  %v6806 = vld [vmem:[%s6801 + $0x20] sm:$0xff]
  %v6807 = vld [vmem:[%s6801 + $0x28] sm:$0xff]
  %v6808 = vld [vmem:[%s6801 + $0x30] sm:$0xff]
  %v6809 = vld [vmem:[%s6801 + $0x38] sm:$0xff]
  %v6810 = vld [vmem:[%s6801 + $0x40] sm:$0xff]
  %v6811 = vld [vmem:[%s6801 + $0x48] sm:$0xff]
  %v6812 = vld [vmem:[%s6801 + $0x50] sm:$0xff]
  %v6813 = vld [vmem:[%s6801 + $0x58] sm:$0xff]
  %v6814 = vld [vmem:[%s6801 + $0x60] sm:$0xff]
  %v6815 = vld [vmem:[%s6801 + $0x68] sm:$0xff]
  %v6816 = vld [vmem:[%s6801 + $0x70] sm:$0xff]
  %v6817 = vld [vmem:[%s6801 + $0x78] sm:$0xff]
  %v6818 = vld [vmem:[%s6801 + $0x80] sm:$0xff]
  %v6819 = vld [vmem:[%s6801 + $0x88] sm:$0xff]
  %v6820 = vld [vmem:[%s6801 + $0x90] sm:$0xff]
  %v6821 = vld [vmem:[%s6801 + $0x98] sm:$0xff]
  %v6822 = vld [vmem:[%s6801 + $0xa0] sm:$0xff]
  %v6823 = vld [vmem:[%s6801 + $0xa8] sm:$0xff]
  %v6824 = vld [vmem:[%s6801 + $0xb0] sm:$0xff]
  %v6825 = vld [vmem:[%s6801 + $0xb8] sm:$0xff]
  %v6826 = vld [vmem:[%s6801 + $0xc0] sm:$0xff]
  %v6827 = vld [vmem:[%s6801 + $0xc8] sm:$0xff]
  %v6828 = vld [vmem:[%s6801 + $0xd0] sm:$0xff]
  %v6829 = vld [vmem:[%s6801 + $0xd8] sm:$0xff]
  %v6830 = vld [vmem:[%s6801 + $0xe0] sm:$0xff]
  %v6831 = vld [vmem:[%s6801 + $0xe8] sm:$0xff]
  %v6832 = vld [vmem:[%s6801 + $0xf0] sm:$0xff]
  %v6833 = vld [vmem:[%s6801 + $0xf8] sm:$0xff]
  %v6834 = vld [vmem:[%s6801 + $0x100] sm:$0xff]
  %v6835 = vld [vmem:[%s6801 + $0x108] sm:$0xff]
  %v6836 = vld [vmem:[%s6801 + $0x110] sm:$0xff]
  %v6837 = vld [vmem:[%s6801 + $0x118] sm:$0xff]
  %v6838 = vld [vmem:[%s6801 + $0x120] sm:$0xff]
  %v6839 = vld [vmem:[%s6801 + $0x128] sm:$0xff]
  %v6840 = vld [vmem:[%s6801 + $0x130] sm:$0xff]
  %v6841 = vld [vmem:[%s6801 + $0x138] sm:$0xff]
  %v6842 = vld [vmem:[%s6801 + $0x140] sm:$0xff]
  %v6843 = vld [vmem:[%s6801 + $0x148] sm:$0xff]
  %v6845 = vsel %vm473, %v6738, 0
  %v6848 = vsel %vm473, %v6740, 0
  %v6851 = vsel %vm473, %v6742, 0
  %v6854 = vsel %vm473, %v6744, 0
  %v6857 = vsel %vm473, %v6746, 0
  %v6860 = vsel %vm473, %v6748, 0
  %v6863 = vsel %vm473, %v6750, 0
  %v6866 = vsel %vm473, %v6752, 0
  %v6869 = vsel %vm473, %v6754, 0
  %v6872 = vsel %vm473, %v6756, 0
  %v6875 = vsel %vm473, %v6758, 0
  %v6878 = vsel %vm473, %v6760, 0
  %v6881 = vsel %vm473, %v6762, 0
  %v6884 = vsel %vm473, %v6764, 0
  %v6887 = vsel %vm473, %v6766, 0
  %v6890 = vsel %vm473, %v6768, 0
  %v6893 = vsel %vm473, %v6770, 0
  %v6896 = vsel %vm473, %v6772, 0
  %v6899 = vsel %vm473, %v6774, 0
  %v6902 = vsel %vm473, %v6776, 0
  %v6905 = vsel %vm473, %v6778, 0
  %v6908 = vsel %vm473, %v6780, 0
  %v6911 = vsel %vm473, %v6782, 0
  %v6914 = vsel %vm473, %v6784, 0
  %v6917 = vsel %vm473, %v6786, 0
  %v6920 = vsel %vm473, %v6788, 0
  %v6923 = vsel %vm473, %v6790, 0
  %v6926 = vsel %vm473, %v6792, 0
  %v6929 = vsel %vm473, %v6794, 0
  %v6932 = vsel %vm473, %v6796, 0
  %v6935 = vsel %vm473, %v6798, 0
  %v6938 = vsel %vm473, %v6800, 0
  %6940 = vmatpush.msra.mxu0 %v6832
  %6941 = vmatpush.msra.mxu0 %v6830
  %6942 = vmatpush.msra.mxu0 %v6828
  %6943 = vmatpush.msra.mxu0 %v6826
  %6944 = vmatpush.msra.mxu0 %v6824
  %6945 = vmatpush.msra.mxu0 %v6822
  %6946 = vmatpush.msra.mxu0 %v6820
  %6947 = vmatpush.msra.mxu0 %v6818
  %6948 = vmatpush.msra.mxu0 %v6816
  %6949 = vmatpush.msra.mxu0 %v6814
  %6950 = vmatpush.msra.mxu0 %v6812
  %6951 = vmatpush.msra.mxu0 %v6810
  %6952 = vmatpush.msra.mxu0 %v6808
  %6953 = vmatpush.msra.mxu0 %v6806
  %6954 = vmatpush.msra.mxu0 %v6804
  %6955 = vmatpush.msra.mxu0 %v6802
  %6956 = vmatmul.f32.gmra.mxu0 %v6737
  %v6957 = vpop.f32.mrf.mxu0
  %v6958 = vadd.f32 0.0, %v6957
  %6959 = vmatmul.f32.gmra.mxu0 %v6739
  %v6960 = vpop.f32.mrf.mxu0
  %v6961 = vadd.f32 0.0, %v6960
  %6962 = vmatmul.f32.gmra.mxu0 %v6741
  %v6963 = vpop.f32.mrf.mxu0
  %v6964 = vadd.f32 0.0, %v6963
  %6965 = vmatmul.f32.gmra.mxu0 %v6743
  %v6966 = vpop.f32.mrf.mxu0
  %v6967 = vadd.f32 0.0, %v6966
  %6968 = vmatmul.f32.gmra.mxu0 %v6745
  %v6969 = vpop.f32.mrf.mxu0
  %v6970 = vadd.f32 0.0, %v6969
  %6971 = vmatmul.f32.gmra.mxu0 %v6747
  %v6972 = vpop.f32.mrf.mxu0
  %v6973 = vadd.f32 0.0, %v6972
  %6974 = vmatmul.f32.gmra.mxu0 %v6749
  %v6975 = vpop.f32.mrf.mxu0
  %v6976 = vadd.f32 0.0, %v6975
  %6977 = vmatmul.f32.gmra.mxu0 %v6751
  %v6978 = vpop.f32.mrf.mxu0
  %v6979 = vadd.f32 0.0, %v6978
  %6980 = vmatmul.f32.gmra.mxu0 %v6753
  %v6981 = vpop.f32.mrf.mxu0
  %v6982 = vadd.f32 0.0, %v6981
  %6983 = vmatmul.f32.gmra.mxu0 %v6755
  %v6984 = vpop.f32.mrf.mxu0
  %v6985 = vadd.f32 0.0, %v6984
  %6986 = vmatmul.f32.gmra.mxu0 %v6757
  %v6987 = vpop.f32.mrf.mxu0
  %v6988 = vadd.f32 0.0, %v6987
  %6989 = vmatmul.f32.gmra.mxu0 %v6759
  %v6990 = vpop.f32.mrf.mxu0
  %v6991 = vadd.f32 0.0, %v6990
  %6992 = vmatmul.f32.gmra.mxu0 %v6761
  %v6993 = vpop.f32.mrf.mxu0
  %v6994 = vadd.f32 0.0, %v6993
  %6995 = vmatmul.f32.gmra.mxu0 %v6763
  %v6996 = vpop.f32.mrf.mxu0
  %v6997 = vadd.f32 0.0, %v6996
  %6998 = vmatmul.f32.gmra.mxu0 %v6765
  %v6999 = vpop.f32.mrf.mxu0
  %v7000 = vadd.f32 0.0, %v6999
  %7001 = vmatmul.f32.gmra.mxu0 %v6767
  %v7002 = vpop.f32.mrf.mxu0
  %v7003 = vadd.f32 0.0, %v7002
  %7004 = vmatmul.f32.gmra.mxu0 %v6769
  %v7005 = vpop.f32.mrf.mxu0
  %v7006 = vadd.f32 0.0, %v7005
  %7007 = vmatmul.f32.gmra.mxu0 %v6771
  %v7008 = vpop.f32.mrf.mxu0
  %v7009 = vadd.f32 0.0, %v7008
  %7010 = vmatmul.f32.gmra.mxu0 %v6773
  %v7011 = vpop.f32.mrf.mxu0
  %v7012 = vadd.f32 0.0, %v7011
  %7013 = vmatmul.f32.gmra.mxu0 %v6775
  %v7014 = vpop.f32.mrf.mxu0
  %v7015 = vadd.f32 0.0, %v7014
  %7016 = vmatmul.f32.gmra.mxu0 %v6777
  %v7017 = vpop.f32.mrf.mxu0
  %v7018 = vadd.f32 0.0, %v7017
  %7019 = vmatmul.f32.gmra.mxu0 %v6779
  %v7020 = vpop.f32.mrf.mxu0
  %v7021 = vadd.f32 0.0, %v7020
  %7022 = vmatmul.f32.gmra.mxu0 %v6781
  %v7023 = vpop.f32.mrf.mxu0
  %v7024 = vadd.f32 0.0, %v7023
  %7025 = vmatmul.f32.gmra.mxu0 %v6783
  %v7026 = vpop.f32.mrf.mxu0
  %v7027 = vadd.f32 0.0, %v7026
  %7028 = vmatmul.f32.gmra.mxu0 %v6785
  %v7029 = vpop.f32.mrf.mxu0
  %v7030 = vadd.f32 0.0, %v7029
  %7031 = vmatmul.f32.gmra.mxu0 %v6787
  %v7032 = vpop.f32.mrf.mxu0
  %v7033 = vadd.f32 0.0, %v7032
  %7034 = vmatmul.f32.gmra.mxu0 %v6789
  %v7035 = vpop.f32.mrf.mxu0
  %v7036 = vadd.f32 0.0, %v7035
  %7037 = vmatmul.f32.gmra.mxu0 %v6791
  %v7038 = vpop.f32.mrf.mxu0
  %v7039 = vadd.f32 0.0, %v7038
  %7040 = vmatmul.f32.gmra.mxu0 %v6793
  %v7041 = vpop.f32.mrf.mxu0
  %v7042 = vadd.f32 0.0, %v7041
  %7043 = vmatmul.f32.gmra.mxu0 %v6795
  %v7044 = vpop.f32.mrf.mxu0
  %v7045 = vadd.f32 0.0, %v7044
  %7046 = vmatmul.f32.gmra.mxu0 %v6797
  %v7047 = vpop.f32.mrf.mxu0
  %v7048 = vadd.f32 0.0, %v7047
  %7049 = vmatmul.f32.gmra.mxu0 %v6799
  %v7050 = vpop.f32.mrf.mxu0
  %v7051 = vadd.f32 0.0, %v7050
  %7052 = vdwg.mxu0
  %7053 = vmatpush.msra.mxu0 0.0
  %7054 = vmatpush.msra.mxu0 0.0
  %7055 = vmatpush.msra.mxu0 0.0
  %7056 = vmatpush.msra.mxu0 0.0
  %7057 = vmatpush.msra.mxu0 0.0
  %7058 = vmatpush.msra.mxu0 0.0
  %7059 = vmatpush.msra.mxu0 0.0
  %7060 = vmatpush.msra.mxu0 0.0
  %7061 = vmatpush.msra.mxu0 0.0
  %7062 = vmatpush.msra.mxu0 0.0
  %7063 = vmatpush.msra.mxu0 0.0
  %7064 = vmatpush.msra.mxu0 %v6842
  %7065 = vmatpush.msra.mxu0 %v6840
  %7066 = vmatpush.msra.mxu0 %v6838
  %7067 = vmatpush.msra.mxu0 %v6836
  %7068 = vmatpush.msra.mxu0 %v6834
  %7069 = vmatmul.f32.gmra.mxu0 %v6845
  %v7070 = vpop.f32.mrf.mxu0
  %v7071 = vadd.f32 %v6958, %v7070
  %7072 = vmatmul.f32.gmra.mxu0 %v6848
  %v7073 = vpop.f32.mrf.mxu0
  %v7074 = vadd.f32 %v6961, %v7073
  %7075 = vmatmul.f32.gmra.mxu0 %v6851
  %v7076 = vpop.f32.mrf.mxu0
  %v7077 = vadd.f32 %v6964, %v7076
  %7078 = vmatmul.f32.gmra.mxu0 %v6854
  %v7079 = vpop.f32.mrf.mxu0
  %v7080 = vadd.f32 %v6967, %v7079
  %7081 = vmatmul.f32.gmra.mxu0 %v6857
  %v7082 = vpop.f32.mrf.mxu0
  %v7083 = vadd.f32 %v6970, %v7082
  %7084 = vmatmul.f32.gmra.mxu0 %v6860
  %v7085 = vpop.f32.mrf.mxu0
  %v7086 = vadd.f32 %v6973, %v7085
  %7087 = vmatmul.f32.gmra.mxu0 %v6863
  %v7088 = vpop.f32.mrf.mxu0
  %v7089 = vadd.f32 %v6976, %v7088
  %7090 = vmatmul.f32.gmra.mxu0 %v6866
  %v7091 = vpop.f32.mrf.mxu0
  %v7092 = vadd.f32 %v6979, %v7091
  %7093 = vmatmul.f32.gmra.mxu0 %v6869
  %v7094 = vpop.f32.mrf.mxu0
  %v7095 = vadd.f32 %v6982, %v7094
  %7096 = vmatmul.f32.gmra.mxu0 %v6872
  %v7097 = vpop.f32.mrf.mxu0
  %v7098 = vadd.f32 %v6985, %v7097
  %7099 = vmatmul.f32.gmra.mxu0 %v6875
  %v7100 = vpop.f32.mrf.mxu0
  %v7101 = vadd.f32 %v6988, %v7100
  %7102 = vmatmul.f32.gmra.mxu0 %v6878
  %v7103 = vpop.f32.mrf.mxu0
  %v7104 = vadd.f32 %v6991, %v7103
  %7105 = vmatmul.f32.gmra.mxu0 %v6881
  %v7106 = vpop.f32.mrf.mxu0
  %v7107 = vadd.f32 %v6994, %v7106
  %7108 = vmatmul.f32.gmra.mxu0 %v6884
  %v7109 = vpop.f32.mrf.mxu0
  %v7110 = vadd.f32 %v6997, %v7109
  %7111 = vmatmul.f32.gmra.mxu0 %v6887
  %v7112 = vpop.f32.mrf.mxu0
  %v7113 = vadd.f32 %v7000, %v7112
  %7114 = vmatmul.f32.gmra.mxu0 %v6890
  %v7115 = vpop.f32.mrf.mxu0
  %v7116 = vadd.f32 %v7003, %v7115
  %7117 = vmatmul.f32.gmra.mxu0 %v6893
  %v7118 = vpop.f32.mrf.mxu0
  %v7119 = vadd.f32 %v7006, %v7118
  %7120 = vmatmul.f32.gmra.mxu0 %v6896
  %v7121 = vpop.f32.mrf.mxu0
  %v7122 = vadd.f32 %v7009, %v7121
  %7123 = vmatmul.f32.gmra.mxu0 %v6899
  %v7124 = vpop.f32.mrf.mxu0
  %v7125 = vadd.f32 %v7012, %v7124
  %7126 = vmatmul.f32.gmra.mxu0 %v6902
  %v7127 = vpop.f32.mrf.mxu0
  %v7128 = vadd.f32 %v7015, %v7127
  %7129 = vmatmul.f32.gmra.mxu0 %v6905
  %v7130 = vpop.f32.mrf.mxu0
  %v7131 = vadd.f32 %v7018, %v7130
  %7132 = vmatmul.f32.gmra.mxu0 %v6908
  %v7133 = vpop.f32.mrf.mxu0
  %v7134 = vadd.f32 %v7021, %v7133
  %7135 = vmatmul.f32.gmra.mxu0 %v6911
  %v7136 = vpop.f32.mrf.mxu0
  %v7137 = vadd.f32 %v7024, %v7136
  %7138 = vmatmul.f32.gmra.mxu0 %v6914
  %v7139 = vpop.f32.mrf.mxu0
  %v7140 = vadd.f32 %v7027, %v7139
  %7141 = vmatmul.f32.gmra.mxu0 %v6917
  %v7142 = vpop.f32.mrf.mxu0
  %v7143 = vadd.f32 %v7030, %v7142
  %7144 = vmatmul.f32.gmra.mxu0 %v6920
  %v7145 = vpop.f32.mrf.mxu0
  %v7146 = vadd.f32 %v7033, %v7145
  %7147 = vmatmul.f32.gmra.mxu0 %v6923
  %v7148 = vpop.f32.mrf.mxu0
  %v7149 = vadd.f32 %v7036, %v7148
  %7150 = vmatmul.f32.gmra.mxu0 %v6926
  %v7151 = vpop.f32.mrf.mxu0
  %v7152 = vadd.f32 %v7039, %v7151
  %7153 = vmatmul.f32.gmra.mxu0 %v6929
  %v7154 = vpop.f32.mrf.mxu0
  %v7155 = vadd.f32 %v7042, %v7154
  %7156 = vmatmul.f32.gmra.mxu0 %v6932
  %v7157 = vpop.f32.mrf.mxu0
  %v7158 = vadd.f32 %v7045, %v7157
  %7159 = vmatmul.f32.gmra.mxu0 %v6935
  %v7160 = vpop.f32.mrf.mxu0
  %v7161 = vadd.f32 %v7048, %v7160
  %7162 = vmatmul.f32.gmra.mxu0 %v6938
  %v7163 = vpop.f32.mrf.mxu0
  %v7164 = vadd.f32 %v7051, %v7163
  %7165 = vdwg.mxu0
  %7166 = vmatpush.msra.mxu0 %v6833
  %7167 = vmatpush.msra.mxu0 %v6831
  %7168 = vmatpush.msra.mxu0 %v6829
  %7169 = vmatpush.msra.mxu0 %v6827
  %7170 = vmatpush.msra.mxu0 %v6825
  %7171 = vmatpush.msra.mxu0 %v6823
  %7172 = vmatpush.msra.mxu0 %v6821
  %7173 = vmatpush.msra.mxu0 %v6819
  %7174 = vmatpush.msra.mxu0 %v6817
  %7175 = vmatpush.msra.mxu0 %v6815
  %7176 = vmatpush.msra.mxu0 %v6813
  %7177 = vmatpush.msra.mxu0 %v6811
  %7178 = vmatpush.msra.mxu0 %v6809
  %7179 = vmatpush.msra.mxu0 %v6807
  %7180 = vmatpush.msra.mxu0 %v6805
  %7181 = vmatpush.msra.mxu0 %v6803
  %7182 = vmatmul.f32.gmra.mxu0 %v6737
  %v7183 = vpop.f32.mrf.mxu0
  %v7184 = vadd.f32 0.0, %v7183
  %7185 = vmatmul.f32.gmra.mxu0 %v6739
  %v7186 = vpop.f32.mrf.mxu0
  %v7187 = vadd.f32 0.0, %v7186
  %7188 = vmatmul.f32.gmra.mxu0 %v6741
  %v7189 = vpop.f32.mrf.mxu0
  %v7190 = vadd.f32 0.0, %v7189
  %7191 = vmatmul.f32.gmra.mxu0 %v6743
  %v7192 = vpop.f32.mrf.mxu0
  %v7193 = vadd.f32 0.0, %v7192
  %7194 = vmatmul.f32.gmra.mxu0 %v6745
  %v7195 = vpop.f32.mrf.mxu0
  %v7196 = vadd.f32 0.0, %v7195
  %7197 = vmatmul.f32.gmra.mxu0 %v6747
  %v7198 = vpop.f32.mrf.mxu0
  %v7199 = vadd.f32 0.0, %v7198
  %7200 = vmatmul.f32.gmra.mxu0 %v6749
  %v7201 = vpop.f32.mrf.mxu0
  %v7202 = vadd.f32 0.0, %v7201
  %7203 = vmatmul.f32.gmra.mxu0 %v6751
  %v7204 = vpop.f32.mrf.mxu0
  %v7205 = vadd.f32 0.0, %v7204
  %7206 = vmatmul.f32.gmra.mxu0 %v6753
  %v7207 = vpop.f32.mrf.mxu0
  %v7208 = vadd.f32 0.0, %v7207
  %7209 = vmatmul.f32.gmra.mxu0 %v6755
  %v7210 = vpop.f32.mrf.mxu0
  %v7211 = vadd.f32 0.0, %v7210
  %7212 = vmatmul.f32.gmra.mxu0 %v6757
  %v7213 = vpop.f32.mrf.mxu0
  %v7214 = vadd.f32 0.0, %v7213
  %7215 = vmatmul.f32.gmra.mxu0 %v6759
  %v7216 = vpop.f32.mrf.mxu0
  %v7217 = vadd.f32 0.0, %v7216
  %7218 = vmatmul.f32.gmra.mxu0 %v6761
  %v7219 = vpop.f32.mrf.mxu0
  %v7220 = vadd.f32 0.0, %v7219
  %7221 = vmatmul.f32.gmra.mxu0 %v6763
  %v7222 = vpop.f32.mrf.mxu0
  %v7223 = vadd.f32 0.0, %v7222
  %7224 = vmatmul.f32.gmra.mxu0 %v6765
  %v7225 = vpop.f32.mrf.mxu0
  %v7226 = vadd.f32 0.0, %v7225
  %7227 = vmatmul.f32.gmra.mxu0 %v6767
  %v7228 = vpop.f32.mrf.mxu0
  %v7229 = vadd.f32 0.0, %v7228
  %7230 = vmatmul.f32.gmra.mxu0 %v6769
  %v7231 = vpop.f32.mrf.mxu0
  %v7232 = vadd.f32 0.0, %v7231
  %7233 = vmatmul.f32.gmra.mxu0 %v6771
  %v7234 = vpop.f32.mrf.mxu0
  %v7235 = vadd.f32 0.0, %v7234
  %7236 = vmatmul.f32.gmra.mxu0 %v6773
  %v7237 = vpop.f32.mrf.mxu0
  %v7238 = vadd.f32 0.0, %v7237
  %7239 = vmatmul.f32.gmra.mxu0 %v6775
  %v7240 = vpop.f32.mrf.mxu0
  %v7241 = vadd.f32 0.0, %v7240
  %7242 = vmatmul.f32.gmra.mxu0 %v6777
  %v7243 = vpop.f32.mrf.mxu0
  %v7244 = vadd.f32 0.0, %v7243
  %7245 = vmatmul.f32.gmra.mxu0 %v6779
  %v7246 = vpop.f32.mrf.mxu0
  %v7247 = vadd.f32 0.0, %v7246
  %7248 = vmatmul.f32.gmra.mxu0 %v6781
  %v7249 = vpop.f32.mrf.mxu0
  %v7250 = vadd.f32 0.0, %v7249
  %7251 = vmatmul.f32.gmra.mxu0 %v6783
  %v7252 = vpop.f32.mrf.mxu0
  %v7253 = vadd.f32 0.0, %v7252
  %7254 = vmatmul.f32.gmra.mxu0 %v6785
  %v7255 = vpop.f32.mrf.mxu0
  %v7256 = vadd.f32 0.0, %v7255
  %7257 = vmatmul.f32.gmra.mxu0 %v6787
  %v7258 = vpop.f32.mrf.mxu0
  %v7259 = vadd.f32 0.0, %v7258
  %7260 = vmatmul.f32.gmra.mxu0 %v6789
  %v7261 = vpop.f32.mrf.mxu0
  %v7262 = vadd.f32 0.0, %v7261
  %7263 = vmatmul.f32.gmra.mxu0 %v6791
  %v7264 = vpop.f32.mrf.mxu0
  %v7265 = vadd.f32 0.0, %v7264
  %7266 = vmatmul.f32.gmra.mxu0 %v6793
  %v7267 = vpop.f32.mrf.mxu0
  %v7268 = vadd.f32 0.0, %v7267
  %7269 = vmatmul.f32.gmra.mxu0 %v6795
  %v7270 = vpop.f32.mrf.mxu0
  %v7271 = vadd.f32 0.0, %v7270
  %7272 = vmatmul.f32.gmra.mxu0 %v6797
  %v7273 = vpop.f32.mrf.mxu0
  %v7274 = vadd.f32 0.0, %v7273
  %7275 = vmatmul.f32.gmra.mxu0 %v6799
  %v7276 = vpop.f32.mrf.mxu0
  %v7277 = vadd.f32 0.0, %v7276
  %7278 = vdwg.mxu0
  %7279 = vmatpush.msra.mxu0 0.0
  %7280 = vmatpush.msra.mxu0 0.0
  %7281 = vmatpush.msra.mxu0 0.0
  %7282 = vmatpush.msra.mxu0 0.0
  %7283 = vmatpush.msra.mxu0 0.0
  %7284 = vmatpush.msra.mxu0 0.0
  %7285 = vmatpush.msra.mxu0 0.0
  %7286 = vmatpush.msra.mxu0 0.0
  %7287 = vmatpush.msra.mxu0 0.0
  %7288 = vmatpush.msra.mxu0 0.0
  %7289 = vmatpush.msra.mxu0 0.0
  %7290 = vmatpush.msra.mxu0 %v6843
  %7291 = vmatpush.msra.mxu0 %v6841
  %7292 = vmatpush.msra.mxu0 %v6839
  %7293 = vmatpush.msra.mxu0 %v6837
  %7294 = vmatpush.msra.mxu0 %v6835
  %7295 = vmatmul.f32.gmra.mxu0 %v6845
  %v7296 = vpop.f32.mrf.mxu0
  %v7297 = vadd.f32 %v7184, %v7296
  %7298 = vmatmul.f32.gmra.mxu0 %v6848
  %v7299 = vpop.f32.mrf.mxu0
  %v7300 = vadd.f32 %v7187, %v7299
  %7301 = vmatmul.f32.gmra.mxu0 %v6851
  %v7302 = vpop.f32.mrf.mxu0
  %v7303 = vadd.f32 %v7190, %v7302
  %7304 = vmatmul.f32.gmra.mxu0 %v6854
  %v7305 = vpop.f32.mrf.mxu0
  %v7306 = vadd.f32 %v7193, %v7305
  %7307 = vmatmul.f32.gmra.mxu0 %v6857
  %v7308 = vpop.f32.mrf.mxu0
  %v7309 = vadd.f32 %v7196, %v7308
  %7310 = vmatmul.f32.gmra.mxu0 %v6860
  %v7311 = vpop.f32.mrf.mxu0
  %v7312 = vadd.f32 %v7199, %v7311
  %7313 = vmatmul.f32.gmra.mxu0 %v6863
  %v7314 = vpop.f32.mrf.mxu0
  %v7315 = vadd.f32 %v7202, %v7314
  %7316 = vmatmul.f32.gmra.mxu0 %v6866
  %v7317 = vpop.f32.mrf.mxu0
  %v7318 = vadd.f32 %v7205, %v7317
  %7319 = vmatmul.f32.gmra.mxu0 %v6869
  %v7320 = vpop.f32.mrf.mxu0
  %v7321 = vadd.f32 %v7208, %v7320
  %7322 = vmatmul.f32.gmra.mxu0 %v6872
  %v7323 = vpop.f32.mrf.mxu0
  %v7324 = vadd.f32 %v7211, %v7323
  %7325 = vmatmul.f32.gmra.mxu0 %v6875
  %v7326 = vpop.f32.mrf.mxu0
  %v7327 = vadd.f32 %v7214, %v7326
  %7328 = vmatmul.f32.gmra.mxu0 %v6878
  %v7329 = vpop.f32.mrf.mxu0
  %v7330 = vadd.f32 %v7217, %v7329
  %7331 = vmatmul.f32.gmra.mxu0 %v6881
  %v7332 = vpop.f32.mrf.mxu0
  %v7333 = vadd.f32 %v7220, %v7332
  %7334 = vmatmul.f32.gmra.mxu0 %v6884
  %v7335 = vpop.f32.mrf.mxu0
  %v7336 = vadd.f32 %v7223, %v7335
  %7337 = vmatmul.f32.gmra.mxu0 %v6887
  %v7338 = vpop.f32.mrf.mxu0
  %v7339 = vadd.f32 %v7226, %v7338
  %7340 = vmatmul.f32.gmra.mxu0 %v6890
  %v7341 = vpop.f32.mrf.mxu0
  %v7342 = vadd.f32 %v7229, %v7341
  %7343 = vmatmul.f32.gmra.mxu0 %v6893
  %v7344 = vpop.f32.mrf.mxu0
  %v7345 = vadd.f32 %v7232, %v7344
  %7346 = vmatmul.f32.gmra.mxu0 %v6896
  %v7347 = vpop.f32.mrf.mxu0
  %v7348 = vadd.f32 %v7235, %v7347
  %7349 = vmatmul.f32.gmra.mxu0 %v6899
  %v7350 = vpop.f32.mrf.mxu0
  %v7351 = vadd.f32 %v7238, %v7350
  %7352 = vmatmul.f32.gmra.mxu0 %v6902
  %v7353 = vpop.f32.mrf.mxu0
  %v7354 = vadd.f32 %v7241, %v7353
  %7355 = vmatmul.f32.gmra.mxu0 %v6905
  %v7356 = vpop.f32.mrf.mxu0
  %v7357 = vadd.f32 %v7244, %v7356
  %7358 = vmatmul.f32.gmra.mxu0 %v6908
  %v7359 = vpop.f32.mrf.mxu0
  %v7360 = vadd.f32 %v7247, %v7359
  %7361 = vmatmul.f32.gmra.mxu0 %v6911
  %v7362 = vpop.f32.mrf.mxu0
  %v7363 = vadd.f32 %v7250, %v7362
  %7364 = vmatmul.f32.gmra.mxu0 %v6914
  %v7365 = vpop.f32.mrf.mxu0
  %v7366 = vadd.f32 %v7253, %v7365
  %7367 = vmatmul.f32.gmra.mxu0 %v6917
  %v7368 = vpop.f32.mrf.mxu0
  %v7369 = vadd.f32 %v7256, %v7368
  %7370 = vmatmul.f32.gmra.mxu0 %v6920
  %v7371 = vpop.f32.mrf.mxu0
  %v7372 = vadd.f32 %v7259, %v7371
  %7373 = vmatmul.f32.gmra.mxu0 %v6923
  %v7374 = vpop.f32.mrf.mxu0
  %v7375 = vadd.f32 %v7262, %v7374
  %7376 = vmatmul.f32.gmra.mxu0 %v6926
  %v7377 = vpop.f32.mrf.mxu0
  %v7378 = vadd.f32 %v7265, %v7377
  %7379 = vmatmul.f32.gmra.mxu0 %v6929
  %v7380 = vpop.f32.mrf.mxu0
  %v7381 = vadd.f32 %v7268, %v7380
  %7382 = vmatmul.f32.gmra.mxu0 %v6932
  %v7383 = vpop.f32.mrf.mxu0
  %v7384 = vadd.f32 %v7271, %v7383
  %7385 = vmatmul.f32.gmra.mxu0 %v6935
  %v7386 = vpop.f32.mrf.mxu0
  %v7387 = vadd.f32 %v7274, %v7386
  %7388 = vmatmul.f32.gmra.mxu0 %v6938
  %v7389 = vpop.f32.mrf.mxu0
  %v7390 = vadd.f32 %v7277, %v7389
  %7391 = vdwg.mxu0
  %v7392 = vld [vmem:[#allocation2] sm:$0xff]
  %v7393 = vld [vmem:[#allocation2 + $0x8] sm:$0xff]
  %v7394 = vld [vmem:[#allocation2 + $0x10] sm:$0xff]
  %v7395 = vld [vmem:[#allocation2 + $0x18] sm:$0xff]
  %v7396 = vld [vmem:[#allocation2 + $0x20] sm:$0xff]
  %v7397 = vld [vmem:[#allocation2 + $0x28] sm:$0xff]
  %v7398 = vld [vmem:[#allocation2 + $0x30] sm:$0xff]
  %v7399 = vld [vmem:[#allocation2 + $0x38] sm:$0xff]
  %v7400 = vld [vmem:[#allocation2 + $0x40] sm:$0xff]
  %v7401 = vld [vmem:[#allocation2 + $0x48] sm:$0xff]
  %v7402 = vld [vmem:[#allocation2 + $0x50] sm:$0xff]
  %v7403 = vld [vmem:[#allocation2 + $0x58] sm:$0xff]
  %v7404 = vld [vmem:[#allocation2 + $0x60] sm:$0xff]
  %v7405 = vld [vmem:[#allocation2 + $0x68] sm:$0xff]
  %v7406 = vld [vmem:[#allocation2 + $0x70] sm:$0xff]
  %v7407 = vld [vmem:[#allocation2 + $0x78] sm:$0xff]
  %v7408 = vld [vmem:[#allocation2 + $0x80] sm:$0xff]
  %v7409 = vld [vmem:[#allocation2 + $0x88] sm:$0xff]
  %v7410 = vld [vmem:[#allocation2 + $0x90] sm:$0xff]
  %v7411 = vld [vmem:[#allocation2 + $0x98] sm:$0xff]
  %v7412 = vld [vmem:[#allocation2 + $0xa0] sm:$0xff]
  %v7413 = vld [vmem:[#allocation2 + $0xa8] sm:$0xff]
  %v7414 = vld [vmem:[#allocation2 + $0xb0] sm:$0xff]
  %v7415 = vld [vmem:[#allocation2 + $0xb8] sm:$0xff]
  %v7416 = vld [vmem:[#allocation2 + $0xc0] sm:$0xff]
  %v7417 = vld [vmem:[#allocation2 + $0xc8] sm:$0xff]
  %v7418 = vld [vmem:[#allocation2 + $0xd0] sm:$0xff]
  %v7419 = vld [vmem:[#allocation2 + $0xd8] sm:$0xff]
  %v7420 = vld [vmem:[#allocation2 + $0xe0] sm:$0xff]
  %v7421 = vld [vmem:[#allocation2 + $0xe8] sm:$0xff]
  %v7422 = vld [vmem:[#allocation2 + $0xf0] sm:$0xff]
  %v7423 = vld [vmem:[#allocation2 + $0xf8] sm:$0xff]
  %v7424 = vld [vmem:[#allocation2 + $0x100] sm:$0xff]
  %v7425 = vld [vmem:[#allocation2 + $0x108] sm:$0xff]
  %v7426 = vld [vmem:[#allocation2 + $0x110] sm:$0xff]
  %v7427 = vld [vmem:[#allocation2 + $0x118] sm:$0xff]
  %v7428 = vld [vmem:[#allocation2 + $0x120] sm:$0xff]
  %v7429 = vld [vmem:[#allocation2 + $0x128] sm:$0xff]
  %v7430 = vld [vmem:[#allocation2 + $0x130] sm:$0xff]
  %v7431 = vld [vmem:[#allocation2 + $0x138] sm:$0xff]
  %v7432 = vld [vmem:[#allocation2 + $0x140] sm:$0xff]
  %v7433 = vld [vmem:[#allocation2 + $0x148] sm:$0xff]
  %v7434 = vld [vmem:[#allocation2 + $0x150] sm:$0xff]
  %v7435 = vld [vmem:[#allocation2 + $0x158] sm:$0xff]
  %v7436 = vld [vmem:[#allocation2 + $0x160] sm:$0xff]
  %v7437 = vld [vmem:[#allocation2 + $0x168] sm:$0xff]
  %v7438 = vld [vmem:[#allocation2 + $0x170] sm:$0xff]
  %v7439 = vld [vmem:[#allocation2 + $0x178] sm:$0xff]
  %v7440 = vld [vmem:[#allocation2 + $0x180] sm:$0xff]
  %v7441 = vld [vmem:[#allocation2 + $0x188] sm:$0xff]
  %v7442 = vld [vmem:[#allocation2 + $0x190] sm:$0xff]
  %v7443 = vld [vmem:[#allocation2 + $0x198] sm:$0xff]
  %v7444 = vld [vmem:[#allocation2 + $0x1a0] sm:$0xff]
  %v7445 = vld [vmem:[#allocation2 + $0x1a8] sm:$0xff]
  %v7446 = vld [vmem:[#allocation2 + $0x1b0] sm:$0xff]
  %v7447 = vld [vmem:[#allocation2 + $0x1b8] sm:$0xff]
  %v7448 = vld [vmem:[#allocation2 + $0x1c0] sm:$0xff]
  %v7449 = vld [vmem:[#allocation2 + $0x1c8] sm:$0xff]
  %v7450 = vld [vmem:[#allocation2 + $0x1d0] sm:$0xff]
  %v7451 = vld [vmem:[#allocation2 + $0x1d8] sm:$0xff]
  %v7452 = vld [vmem:[#allocation2 + $0x1e0] sm:$0xff]
  %v7453 = vld [vmem:[#allocation2 + $0x1e8] sm:$0xff]
  %v7454 = vld [vmem:[#allocation2 + $0x1f0] sm:$0xf]
  %v7455 = vld [vmem:[#allocation2 + $0x1f8] sm:$0xf]
  %v7520 = vrot.slane %v7071, 4
  %v7521 = vrot.slane %v7074, 4
  %v7522 = vsel %vm3525, %v7520, %v7521
  %v7523 = vrot.slane %v7297, 4
  %v7524 = vrot.slane %v7300, 4
  %v7525 = vsel %vm3525, %v7523, %v7524
  %v7526 = vrot.slane %v7077, 4
  %v7527 = vsel %vm3525, %v7521, %v7526
  %v7528 = vrot.slane %v7303, 4
  %v7529 = vsel %vm3525, %v7524, %v7528
  %v7530 = vrot.slane %v7080, 4
  %v7531 = vsel %vm3525, %v7526, %v7530
  %v7532 = vrot.slane %v7306, 4
  %v7533 = vsel %vm3525, %v7528, %v7532
  %v7534 = vrot.slane %v7083, 4
  %v7535 = vsel %vm3525, %v7530, %v7534
  %v7536 = vrot.slane %v7309, 4
  %v7537 = vsel %vm3525, %v7532, %v7536
  %v7538 = vrot.slane %v7086, 4
  %v7539 = vsel %vm3525, %v7534, %v7538
  %v7540 = vrot.slane %v7312, 4
  %v7541 = vsel %vm3525, %v7536, %v7540
  %v7542 = vrot.slane %v7089, 4
  %v7543 = vsel %vm3525, %v7538, %v7542
  %v7544 = vrot.slane %v7315, 4
  %v7545 = vsel %vm3525, %v7540, %v7544
  %v7546 = vrot.slane %v7092, 4
  %v7547 = vsel %vm3525, %v7542, %v7546
  %v7548 = vrot.slane %v7318, 4
  %v7549 = vsel %vm3525, %v7544, %v7548
  %v7550 = vrot.slane %v7095, 4
  %v7551 = vsel %vm3525, %v7546, %v7550
  %v7552 = vrot.slane %v7321, 4
  %v7553 = vsel %vm3525, %v7548, %v7552
  %v7554 = vrot.slane %v7098, 4
  %v7555 = vsel %vm3525, %v7550, %v7554
  %v7556 = vrot.slane %v7324, 4
  %v7557 = vsel %vm3525, %v7552, %v7556
  %v7558 = vrot.slane %v7101, 4
  %v7559 = vsel %vm3525, %v7554, %v7558
  %v7560 = vrot.slane %v7327, 4
  %v7561 = vsel %vm3525, %v7556, %v7560
  %v7562 = vrot.slane %v7104, 4
  %v7563 = vsel %vm3525, %v7558, %v7562
  %v7564 = vrot.slane %v7330, 4
  %v7565 = vsel %vm3525, %v7560, %v7564
  %v7566 = vrot.slane %v7107, 4
  %v7567 = vsel %vm3525, %v7562, %v7566
  %v7568 = vrot.slane %v7333, 4
  %v7569 = vsel %vm3525, %v7564, %v7568
  %v7570 = vrot.slane %v7110, 4
  %v7571 = vsel %vm3525, %v7566, %v7570
  %v7572 = vrot.slane %v7336, 4
  %v7573 = vsel %vm3525, %v7568, %v7572
  %v7574 = vrot.slane %v7113, 4
  %v7575 = vsel %vm3525, %v7570, %v7574
  %v7576 = vrot.slane %v7339, 4
  %v7577 = vsel %vm3525, %v7572, %v7576
  %v7578 = vrot.slane %v7116, 4
  %v7579 = vsel %vm3525, %v7574, %v7578
  %v7580 = vrot.slane %v7342, 4
  %v7581 = vsel %vm3525, %v7576, %v7580
  %v7582 = vrot.slane %v7119, 4
  %v7583 = vsel %vm3525, %v7578, %v7582
  %v7584 = vrot.slane %v7345, 4
  %v7585 = vsel %vm3525, %v7580, %v7584
  %v7586 = vrot.slane %v7122, 4
  %v7587 = vsel %vm3525, %v7582, %v7586
  %v7588 = vrot.slane %v7348, 4
  %v7589 = vsel %vm3525, %v7584, %v7588
  %v7590 = vrot.slane %v7125, 4
  %v7591 = vsel %vm3525, %v7586, %v7590
  %v7592 = vrot.slane %v7351, 4
  %v7593 = vsel %vm3525, %v7588, %v7592
  %v7594 = vrot.slane %v7128, 4
  %v7595 = vsel %vm3525, %v7590, %v7594
  %v7596 = vrot.slane %v7354, 4
  %v7597 = vsel %vm3525, %v7592, %v7596
  %v7598 = vrot.slane %v7131, 4
  %v7599 = vsel %vm3525, %v7594, %v7598
  %v7600 = vrot.slane %v7357, 4
  %v7601 = vsel %vm3525, %v7596, %v7600
  %v7602 = vrot.slane %v7134, 4
  %v7603 = vsel %vm3525, %v7598, %v7602
  %v7604 = vrot.slane %v7360, 4
  %v7605 = vsel %vm3525, %v7600, %v7604
  %v7606 = vrot.slane %v7137, 4
  %v7607 = vsel %vm3525, %v7602, %v7606
  %v7608 = vrot.slane %v7363, 4
  %v7609 = vsel %vm3525, %v7604, %v7608
  %v7610 = vrot.slane %v7140, 4
  %v7611 = vsel %vm3525, %v7606, %v7610
  %v7612 = vrot.slane %v7366, 4
  %v7613 = vsel %vm3525, %v7608, %v7612
  %v7614 = vrot.slane %v7143, 4
  %v7615 = vsel %vm3525, %v7610, %v7614
  %v7616 = vrot.slane %v7369, 4
  %v7617 = vsel %vm3525, %v7612, %v7616
  %v7618 = vrot.slane %v7146, 4
  %v7619 = vsel %vm3525, %v7614, %v7618
  %v7620 = vrot.slane %v7372, 4
  %v7621 = vsel %vm3525, %v7616, %v7620
  %v7622 = vrot.slane %v7149, 4
  %v7623 = vsel %vm3525, %v7618, %v7622
  %v7624 = vrot.slane %v7375, 4
  %v7625 = vsel %vm3525, %v7620, %v7624
  %v7626 = vrot.slane %v7152, 4
  %v7627 = vsel %vm3525, %v7622, %v7626
  %v7628 = vrot.slane %v7378, 4
  %v7629 = vsel %vm3525, %v7624, %v7628
  %v7630 = vrot.slane %v7155, 4
  %v7631 = vsel %vm3525, %v7626, %v7630
  %v7632 = vrot.slane %v7381, 4
  %v7633 = vsel %vm3525, %v7628, %v7632
  %v7634 = vrot.slane %v7158, 4
  %v7635 = vsel %vm3525, %v7630, %v7634
  %v7636 = vrot.slane %v7384, 4
  %v7637 = vsel %vm3525, %v7632, %v7636
  %v7638 = vrot.slane %v7161, 4
  %v7639 = vsel %vm3525, %v7634, %v7638
  %v7640 = vrot.slane %v7387, 4
  %v7641 = vsel %vm3525, %v7636, %v7640
  %v7642 = vrot.slane %v7164, 4
  %v7643 = vsel %vm3525, %v7638, %v7642
  %v7644 = vrot.slane %v7390, 4
  %v7645 = vsel %vm3525, %v7640, %v7644
  %v7710 = vadd.f32 %v7392, %v7522
  %v7711 = vadd.f32 %v7393, %v7525
  %v7712 = vadd.f32 %v7394, %v7527
  %v7713 = vadd.f32 %v7395, %v7529
  %v7714 = vadd.f32 %v7396, %v7531
  %v7715 = vadd.f32 %v7397, %v7533
  %v7716 = vadd.f32 %v7398, %v7535
  %v7717 = vadd.f32 %v7399, %v7537
  %v7718 = vadd.f32 %v7400, %v7539
  %v7719 = vadd.f32 %v7401, %v7541
  %v7720 = vadd.f32 %v7402, %v7543
  %v7721 = vadd.f32 %v7403, %v7545
  %v7722 = vadd.f32 %v7404, %v7547
  %v7723 = vadd.f32 %v7405, %v7549
  %v7724 = vadd.f32 %v7406, %v7551
  %v7725 = vadd.f32 %v7407, %v7553
  %v7726 = vadd.f32 %v7408, %v7555
  %v7727 = vadd.f32 %v7409, %v7557
  %v7728 = vadd.f32 %v7410, %v7559
  %v7729 = vadd.f32 %v7411, %v7561
  %v7730 = vadd.f32 %v7412, %v7563
  %v7731 = vadd.f32 %v7413, %v7565
  %v7732 = vadd.f32 %v7414, %v7567
  %v7733 = vadd.f32 %v7415, %v7569
  %v7734 = vadd.f32 %v7416, %v7571
  %v7735 = vadd.f32 %v7417, %v7573
  %v7736 = vadd.f32 %v7418, %v7575
  %v7737 = vadd.f32 %v7419, %v7577
  %v7738 = vadd.f32 %v7420, %v7579
  %v7739 = vadd.f32 %v7421, %v7581
  %v7740 = vadd.f32 %v7422, %v7583
  %v7741 = vadd.f32 %v7423, %v7585
  %v7742 = vadd.f32 %v7424, %v7587
  %v7743 = vadd.f32 %v7425, %v7589
  %v7744 = vadd.f32 %v7426, %v7591
  %v7745 = vadd.f32 %v7427, %v7593
  %v7746 = vadd.f32 %v7428, %v7595
  %v7747 = vadd.f32 %v7429, %v7597
  %v7748 = vadd.f32 %v7430, %v7599
  %v7749 = vadd.f32 %v7431, %v7601
  %v7750 = vadd.f32 %v7432, %v7603
  %v7751 = vadd.f32 %v7433, %v7605
  %v7752 = vadd.f32 %v7434, %v7607
  %v7753 = vadd.f32 %v7435, %v7609
  %v7754 = vadd.f32 %v7436, %v7611
  %v7755 = vadd.f32 %v7437, %v7613
  %v7756 = vadd.f32 %v7438, %v7615
  %v7757 = vadd.f32 %v7439, %v7617
  %v7758 = vadd.f32 %v7440, %v7619
  %v7759 = vadd.f32 %v7441, %v7621
  %v7760 = vadd.f32 %v7442, %v7623
  %v7761 = vadd.f32 %v7443, %v7625
  %v7762 = vadd.f32 %v7444, %v7627
  %v7763 = vadd.f32 %v7445, %v7629
  %v7764 = vadd.f32 %v7446, %v7631
  %v7765 = vadd.f32 %v7447, %v7633
  %v7766 = vadd.f32 %v7448, %v7635
  %v7767 = vadd.f32 %v7449, %v7637
  %v7768 = vadd.f32 %v7450, %v7639
  %v7769 = vadd.f32 %v7451, %v7641
  %v7770 = vadd.f32 %v7452, %v7643
  %v7771 = vadd.f32 %v7453, %v7645
  %v7772 = vadd.f32 %v7454, %v7642
  %v7773 = vadd.f32 %v7455, %v7644
  %7774 = vst [vmem:[#allocation2] sm:$0xff] %v7710
  %7775 = vst.msk [vmem:[#allocation2 + $0x8] sm:$0xff] %vm5571, %v7711
  %7776 = vst [vmem:[#allocation2 + $0x10] sm:$0xff] %v7712
  %7777 = vst.msk [vmem:[#allocation2 + $0x18] sm:$0xff] %vm5571, %v7713
  %7778 = vst [vmem:[#allocation2 + $0x20] sm:$0xff] %v7714
  %7779 = vst.msk [vmem:[#allocation2 + $0x28] sm:$0xff] %vm5571, %v7715
  %7780 = vst [vmem:[#allocation2 + $0x30] sm:$0xff] %v7716
  %7781 = vst.msk [vmem:[#allocation2 + $0x38] sm:$0xff] %vm5571, %v7717
  %7782 = vst [vmem:[#allocation2 + $0x40] sm:$0xff] %v7718
  %7783 = vst.msk [vmem:[#allocation2 + $0x48] sm:$0xff] %vm5571, %v7719
  %7784 = vst [vmem:[#allocation2 + $0x50] sm:$0xff] %v7720
  %7785 = vst.msk [vmem:[#allocation2 + $0x58] sm:$0xff] %vm5571, %v7721
  %7786 = vst [vmem:[#allocation2 + $0x60] sm:$0xff] %v7722
  %7787 = vst.msk [vmem:[#allocation2 + $0x68] sm:$0xff] %vm5571, %v7723
  %7788 = vst [vmem:[#allocation2 + $0x70] sm:$0xff] %v7724
  %7789 = vst.msk [vmem:[#allocation2 + $0x78] sm:$0xff] %vm5571, %v7725
  %7790 = vst [vmem:[#allocation2 + $0x80] sm:$0xff] %v7726
  %7791 = vst.msk [vmem:[#allocation2 + $0x88] sm:$0xff] %vm5571, %v7727
  %7792 = vst [vmem:[#allocation2 + $0x90] sm:$0xff] %v7728
  %7793 = vst.msk [vmem:[#allocation2 + $0x98] sm:$0xff] %vm5571, %v7729
  %7794 = vst [vmem:[#allocation2 + $0xa0] sm:$0xff] %v7730
  %7795 = vst.msk [vmem:[#allocation2 + $0xa8] sm:$0xff] %vm5571, %v7731
  %7796 = vst [vmem:[#allocation2 + $0xb0] sm:$0xff] %v7732
  %7797 = vst.msk [vmem:[#allocation2 + $0xb8] sm:$0xff] %vm5571, %v7733
  %7798 = vst [vmem:[#allocation2 + $0xc0] sm:$0xff] %v7734
  %7799 = vst.msk [vmem:[#allocation2 + $0xc8] sm:$0xff] %vm5571, %v7735
  %7800 = vst [vmem:[#allocation2 + $0xd0] sm:$0xff] %v7736
  %7801 = vst.msk [vmem:[#allocation2 + $0xd8] sm:$0xff] %vm5571, %v7737
  %7802 = vst [vmem:[#allocation2 + $0xe0] sm:$0xff] %v7738
  %7803 = vst.msk [vmem:[#allocation2 + $0xe8] sm:$0xff] %vm5571, %v7739
  %7804 = vst [vmem:[#allocation2 + $0xf0] sm:$0xff] %v7740
  %7805 = vst.msk [vmem:[#allocation2 + $0xf8] sm:$0xff] %vm5571, %v7741
  %7806 = vst [vmem:[#allocation2 + $0x100] sm:$0xff] %v7742
  %7807 = vst.msk [vmem:[#allocation2 + $0x108] sm:$0xff] %vm5571, %v7743
  %7808 = vst [vmem:[#allocation2 + $0x110] sm:$0xff] %v7744
  %7809 = vst.msk [vmem:[#allocation2 + $0x118] sm:$0xff] %vm5571, %v7745
  %7810 = vst [vmem:[#allocation2 + $0x120] sm:$0xff] %v7746
  %7811 = vst.msk [vmem:[#allocation2 + $0x128] sm:$0xff] %vm5571, %v7747
  %7812 = vst [vmem:[#allocation2 + $0x130] sm:$0xff] %v7748
  %7813 = vst.msk [vmem:[#allocation2 + $0x138] sm:$0xff] %vm5571, %v7749
  %7814 = vst [vmem:[#allocation2 + $0x140] sm:$0xff] %v7750
  %7815 = vst.msk [vmem:[#allocation2 + $0x148] sm:$0xff] %vm5571, %v7751
  %7816 = vst [vmem:[#allocation2 + $0x150] sm:$0xff] %v7752
  %7817 = vst.msk [vmem:[#allocation2 + $0x158] sm:$0xff] %vm5571, %v7753
  %7818 = vst [vmem:[#allocation2 + $0x160] sm:$0xff] %v7754
  %7819 = vst.msk [vmem:[#allocation2 + $0x168] sm:$0xff] %vm5571, %v7755
  %7820 = vst [vmem:[#allocation2 + $0x170] sm:$0xff] %v7756
  %7821 = vst.msk [vmem:[#allocation2 + $0x178] sm:$0xff] %vm5571, %v7757
  %7822 = vst [vmem:[#allocation2 + $0x180] sm:$0xff] %v7758
  %7823 = vst.msk [vmem:[#allocation2 + $0x188] sm:$0xff] %vm5571, %v7759
  %7824 = vst [vmem:[#allocation2 + $0x190] sm:$0xff] %v7760
  %7825 = vst.msk [vmem:[#allocation2 + $0x198] sm:$0xff] %vm5571, %v7761
  %7826 = vst [vmem:[#allocation2 + $0x1a0] sm:$0xff] %v7762
  %7827 = vst.msk [vmem:[#allocation2 + $0x1a8] sm:$0xff] %vm5571, %v7763
  %7828 = vst [vmem:[#allocation2 + $0x1b0] sm:$0xff] %v7764
  %7829 = vst.msk [vmem:[#allocation2 + $0x1b8] sm:$0xff] %vm5571, %v7765
  %7830 = vst [vmem:[#allocation2 + $0x1c0] sm:$0xff] %v7766
  %7831 = vst.msk [vmem:[#allocation2 + $0x1c8] sm:$0xff] %vm5571, %v7767
  %7832 = vst [vmem:[#allocation2 + $0x1d0] sm:$0xff] %v7768
  %7833 = vst.msk [vmem:[#allocation2 + $0x1d8] sm:$0xff] %vm5571, %v7769
  %7834 = vst [vmem:[#allocation2 + $0x1e0] sm:$0xff] %v7770
  %7835 = vst.msk [vmem:[#allocation2 + $0x1e8] sm:$0xff] %vm5571, %v7771
  %7836 = vst [vmem:[#allocation2 + $0x1f0] sm:$0xf] %v7772
  %vm7837 = vcmask 257024
  %7838 = vst.msk [vmem:[#allocation2 + $0x1f8] sm:$0xf] %vm7837, %v7773
  %v7839 = vld [vmem:[#allocation4] sm:$0xff]
  %v7840 = vld [vmem:[#allocation4 + $0x8] sm:$0xff]
  %v7841 = vld [vmem:[#allocation4 + $0x10] sm:$0xff]
  %v7842 = vld [vmem:[#allocation4 + $0x18] sm:$0xff]
  %v7843 = vld [vmem:[#allocation4 + $0x20] sm:$0xff]
  %v7844 = vld [vmem:[#allocation4 + $0x28] sm:$0xff]
  %v7845 = vld [vmem:[#allocation4 + $0x30] sm:$0xff]
  %v7846 = vld [vmem:[#allocation4 + $0x38] sm:$0xff]
  %v7847 = vld [vmem:[#allocation4 + $0x40] sm:$0xff]
  %v7848 = vld [vmem:[#allocation4 + $0x48] sm:$0xff]
  %v7849 = vld [vmem:[#allocation4 + $0x50] sm:$0xff]
  %v7850 = vld [vmem:[#allocation4 + $0x58] sm:$0xff]
  %v7851 = vld [vmem:[#allocation4 + $0x60] sm:$0xff]
  %v7852 = vld [vmem:[#allocation4 + $0x68] sm:$0xff]
  %v7853 = vld [vmem:[#allocation4 + $0x70] sm:$0xff]
  %v7854 = vld [vmem:[#allocation4 + $0x78] sm:$0xff]
  %v7855 = vld [vmem:[#allocation4 + $0x80] sm:$0xff]
  %v7856 = vld [vmem:[#allocation4 + $0x88] sm:$0xff]
  %v7857 = vld [vmem:[#allocation4 + $0x90] sm:$0xff]
  %v7858 = vld [vmem:[#allocation4 + $0x98] sm:$0xff]
  %v7859 = vld [vmem:[#allocation4 + $0xa0] sm:$0xff]
  %v7860 = vld [vmem:[#allocation4 + $0xa8] sm:$0xff]
  %v7861 = vld [vmem:[#allocation4 + $0xb0] sm:$0xff]
  %v7862 = vld [vmem:[#allocation4 + $0xb8] sm:$0xff]
  %v7863 = vld [vmem:[#allocation4 + $0xc0] sm:$0xff]
  %v7864 = vld [vmem:[#allocation4 + $0xc8] sm:$0xff]
  %v7865 = vld [vmem:[#allocation4 + $0xd0] sm:$0xff]
  %v7866 = vld [vmem:[#allocation4 + $0xd8] sm:$0xff]
  %v7867 = vld [vmem:[#allocation4 + $0xe0] sm:$0xff]
  %v7868 = vld [vmem:[#allocation4 + $0xe8] sm:$0xff]
  %v7869 = vld [vmem:[#allocation4 + $0xf0] sm:$0xff]
  %v7870 = vld [vmem:[#allocation4 + $0xf8] sm:$0xff]
  %v7871 = vld [vmem:[#allocation4 + $0x100] sm:$0xff]
  %v7872 = vld [vmem:[#allocation4 + $0x108] sm:$0xff]
  %v7873 = vld [vmem:[#allocation4 + $0x110] sm:$0xff]
  %v7874 = vld [vmem:[#allocation4 + $0x118] sm:$0xff]
  %v7875 = vld [vmem:[#allocation4 + $0x120] sm:$0xff]
  %v7876 = vld [vmem:[#allocation4 + $0x128] sm:$0xff]
  %v7877 = vld [vmem:[#allocation4 + $0x130] sm:$0xff]
  %v7878 = vld [vmem:[#allocation4 + $0x138] sm:$0xff]
  %v7879 = vld [vmem:[#allocation4 + $0x140] sm:$0xff]
  %v7880 = vld [vmem:[#allocation4 + $0x148] sm:$0xff]
  %v7881 = vld [vmem:[#allocation4 + $0x150] sm:$0xff]
  %v7882 = vld [vmem:[#allocation4 + $0x158] sm:$0xff]
  %v7883 = vld [vmem:[#allocation4 + $0x160] sm:$0xff]
  %v7884 = vld [vmem:[#allocation4 + $0x168] sm:$0xff]
  %v7885 = vld [vmem:[#allocation4 + $0x170] sm:$0xff]
  %v7886 = vld [vmem:[#allocation4 + $0x178] sm:$0xff]
  %v7887 = vld [vmem:[#allocation4 + $0x180] sm:$0xff]
  %v7888 = vld [vmem:[#allocation4 + $0x188] sm:$0xff]
  %v7889 = vld [vmem:[#allocation4 + $0x190] sm:$0xff]
  %v7890 = vld [vmem:[#allocation4 + $0x198] sm:$0xff]
  %v7891 = vld [vmem:[#allocation4 + $0x1a0] sm:$0xff]
  %v7892 = vld [vmem:[#allocation4 + $0x1a8] sm:$0xff]
  %v7893 = vld [vmem:[#allocation4 + $0x1b0] sm:$0xff]
  %v7894 = vld [vmem:[#allocation4 + $0x1b8] sm:$0xff]
  %v7895 = vld [vmem:[#allocation4 + $0x1c0] sm:$0xff]
  %v7896 = vld [vmem:[#allocation4 + $0x1c8] sm:$0xff]
  %v7897 = vld [vmem:[#allocation4 + $0x1d0] sm:$0xff]
  %v7898 = vld [vmem:[#allocation4 + $0x1d8] sm:$0xff]
  %v7899 = vld [vmem:[#allocation4 + $0x1e0] sm:$0xff]
  %v7900 = vld [vmem:[#allocation4 + $0x1e8] sm:$0xff]
  %v7901 = vld [vmem:[#allocation4 + $0x1f0] sm:$0xff]
  %v7902 = vld [vmem:[#allocation4 + $0x1f8] sm:$0xff]
  %s7903 = scalar_lea.vmem %s3, 1008
  %v7904 = vld [vmem:[%s7903] sm:$0xff]
  %v7905 = vld [vmem:[%s7903 + $0x8] sm:$0xff]
  %v7906 = vld [vmem:[%s7903 + $0x10] sm:$0xff]
  %v7907 = vld [vmem:[%s7903 + $0x18] sm:$0xff]
  %v7908 = vld [vmem:[%s7903 + $0x20] sm:$0xff]
  %v7909 = vld [vmem:[%s7903 + $0x28] sm:$0xff]
  %v7910 = vld [vmem:[%s7903 + $0x30] sm:$0xff]
  %v7911 = vld [vmem:[%s7903 + $0x38] sm:$0xff]
  %v7912 = vld [vmem:[%s7903 + $0x40] sm:$0xff]
  %v7913 = vld [vmem:[%s7903 + $0x48] sm:$0xff]
  %v7914 = vld [vmem:[%s7903 + $0x50] sm:$0xff]
  %v7915 = vld [vmem:[%s7903 + $0x58] sm:$0xff]
  %v7916 = vld [vmem:[%s7903 + $0x60] sm:$0xff]
  %v7917 = vld [vmem:[%s7903 + $0x68] sm:$0xff]
  %v7918 = vld [vmem:[%s7903 + $0x70] sm:$0xff]
  %v7919 = vld [vmem:[%s7903 + $0x78] sm:$0xff]
  %v7920 = vld [vmem:[%s7903 + $0x80] sm:$0xff]
  %v7921 = vld [vmem:[%s7903 + $0x88] sm:$0xff]
  %v7922 = vld [vmem:[%s7903 + $0x90] sm:$0xff]
  %v7923 = vld [vmem:[%s7903 + $0x98] sm:$0xff]
  %v7924 = vld [vmem:[%s7903 + $0xa0] sm:$0xff]
  %v7925 = vld [vmem:[%s7903 + $0xa8] sm:$0xff]
  %v7926 = vld [vmem:[%s7903 + $0xb0] sm:$0xff]
  %v7927 = vld [vmem:[%s7903 + $0xb8] sm:$0xff]
  %v7928 = vld [vmem:[%s7903 + $0xc0] sm:$0xff]
  %v7929 = vld [vmem:[%s7903 + $0xc8] sm:$0xff]
  %v7930 = vld [vmem:[%s7903 + $0xd0] sm:$0xff]
  %v7931 = vld [vmem:[%s7903 + $0xd8] sm:$0xff]
  %v7932 = vld [vmem:[%s7903 + $0xe0] sm:$0xff]
  %v7933 = vld [vmem:[%s7903 + $0xe8] sm:$0xff]
  %v7934 = vld [vmem:[%s7903 + $0xf0] sm:$0xff]
  %v7935 = vld [vmem:[%s7903 + $0xf8] sm:$0xff]
  %v7936 = vld [vmem:[%s7903 + $0x100] sm:$0xff]
  %v7937 = vld [vmem:[%s7903 + $0x108] sm:$0xff]
  %v7938 = vld [vmem:[%s7903 + $0x110] sm:$0xff]
  %v7939 = vld [vmem:[%s7903 + $0x118] sm:$0xff]
  %v7940 = vld [vmem:[%s7903 + $0x120] sm:$0xff]
  %v7941 = vld [vmem:[%s7903 + $0x128] sm:$0xff]
  %v7942 = vld [vmem:[%s7903 + $0x130] sm:$0xff]
  %v7943 = vld [vmem:[%s7903 + $0x138] sm:$0xff]
  %v7944 = vld [vmem:[%s7903 + $0x140] sm:$0xff]
  %v7945 = vld [vmem:[%s7903 + $0x148] sm:$0xff]
  %v7947 = vsel %vm473, %v7840, 0
  %v7950 = vsel %vm473, %v7842, 0
  %v7953 = vsel %vm473, %v7844, 0
  %v7956 = vsel %vm473, %v7846, 0
  %v7959 = vsel %vm473, %v7848, 0
  %v7962 = vsel %vm473, %v7850, 0
  %v7965 = vsel %vm473, %v7852, 0
  %v7968 = vsel %vm473, %v7854, 0
  %v7971 = vsel %vm473, %v7856, 0
  %v7974 = vsel %vm473, %v7858, 0
  %v7977 = vsel %vm473, %v7860, 0
  %v7980 = vsel %vm473, %v7862, 0
  %v7983 = vsel %vm473, %v7864, 0
  %v7986 = vsel %vm473, %v7866, 0
  %v7989 = vsel %vm473, %v7868, 0
  %v7992 = vsel %vm473, %v7870, 0
  %v7995 = vsel %vm473, %v7872, 0
  %v7998 = vsel %vm473, %v7874, 0
  %v8001 = vsel %vm473, %v7876, 0
  %v8004 = vsel %vm473, %v7878, 0
  %v8007 = vsel %vm473, %v7880, 0
  %v8010 = vsel %vm473, %v7882, 0
  %v8013 = vsel %vm473, %v7884, 0
  %v8016 = vsel %vm473, %v7886, 0
  %v8019 = vsel %vm473, %v7888, 0
  %v8022 = vsel %vm473, %v7890, 0
  %v8025 = vsel %vm473, %v7892, 0
  %v8028 = vsel %vm473, %v7894, 0
  %v8031 = vsel %vm473, %v7896, 0
  %v8034 = vsel %vm473, %v7898, 0
  %v8037 = vsel %vm473, %v7900, 0
  %v8040 = vsel %vm473, %v7902, 0
  %8042 = vmatpush.msra.mxu0 %v7934
  %8043 = vmatpush.msra.mxu0 %v7932
  %8044 = vmatpush.msra.mxu0 %v7930
  %8045 = vmatpush.msra.mxu0 %v7928
  %8046 = vmatpush.msra.mxu0 %v7926
  %8047 = vmatpush.msra.mxu0 %v7924
  %8048 = vmatpush.msra.mxu0 %v7922
  %8049 = vmatpush.msra.mxu0 %v7920
  %8050 = vmatpush.msra.mxu0 %v7918
  %8051 = vmatpush.msra.mxu0 %v7916
  %8052 = vmatpush.msra.mxu0 %v7914
  %8053 = vmatpush.msra.mxu0 %v7912
  %8054 = vmatpush.msra.mxu0 %v7910
  %8055 = vmatpush.msra.mxu0 %v7908
  %8056 = vmatpush.msra.mxu0 %v7906
  %8057 = vmatpush.msra.mxu0 %v7904
  %8058 = vmatmul.f32.gmra.mxu0 %v7839
  %v8059 = vpop.f32.mrf.mxu0
  %v8060 = vadd.f32 0.0, %v8059
  %8061 = vmatmul.f32.gmra.mxu0 %v7841
  %v8062 = vpop.f32.mrf.mxu0
  %v8063 = vadd.f32 0.0, %v8062
  %8064 = vmatmul.f32.gmra.mxu0 %v7843
  %v8065 = vpop.f32.mrf.mxu0
  %v8066 = vadd.f32 0.0, %v8065
  %8067 = vmatmul.f32.gmra.mxu0 %v7845
  %v8068 = vpop.f32.mrf.mxu0
  %v8069 = vadd.f32 0.0, %v8068
  %8070 = vmatmul.f32.gmra.mxu0 %v7847
  %v8071 = vpop.f32.mrf.mxu0
  %v8072 = vadd.f32 0.0, %v8071
  %8073 = vmatmul.f32.gmra.mxu0 %v7849
  %v8074 = vpop.f32.mrf.mxu0
  %v8075 = vadd.f32 0.0, %v8074
  %8076 = vmatmul.f32.gmra.mxu0 %v7851
  %v8077 = vpop.f32.mrf.mxu0
  %v8078 = vadd.f32 0.0, %v8077
  %8079 = vmatmul.f32.gmra.mxu0 %v7853
  %v8080 = vpop.f32.mrf.mxu0
  %v8081 = vadd.f32 0.0, %v8080
  %8082 = vmatmul.f32.gmra.mxu0 %v7855
  %v8083 = vpop.f32.mrf.mxu0
  %v8084 = vadd.f32 0.0, %v8083
  %8085 = vmatmul.f32.gmra.mxu0 %v7857
  %v8086 = vpop.f32.mrf.mxu0
  %v8087 = vadd.f32 0.0, %v8086
  %8088 = vmatmul.f32.gmra.mxu0 %v7859
  %v8089 = vpop.f32.mrf.mxu0
  %v8090 = vadd.f32 0.0, %v8089
  %8091 = vmatmul.f32.gmra.mxu0 %v7861
  %v8092 = vpop.f32.mrf.mxu0
  %v8093 = vadd.f32 0.0, %v8092
  %8094 = vmatmul.f32.gmra.mxu0 %v7863
  %v8095 = vpop.f32.mrf.mxu0
  %v8096 = vadd.f32 0.0, %v8095
  %8097 = vmatmul.f32.gmra.mxu0 %v7865
  %v8098 = vpop.f32.mrf.mxu0
  %v8099 = vadd.f32 0.0, %v8098
  %8100 = vmatmul.f32.gmra.mxu0 %v7867
  %v8101 = vpop.f32.mrf.mxu0
  %v8102 = vadd.f32 0.0, %v8101
  %8103 = vmatmul.f32.gmra.mxu0 %v7869
  %v8104 = vpop.f32.mrf.mxu0
  %v8105 = vadd.f32 0.0, %v8104
  %8106 = vmatmul.f32.gmra.mxu0 %v7871
  %v8107 = vpop.f32.mrf.mxu0
  %v8108 = vadd.f32 0.0, %v8107
  %8109 = vmatmul.f32.gmra.mxu0 %v7873
  %v8110 = vpop.f32.mrf.mxu0
  %v8111 = vadd.f32 0.0, %v8110
  %8112 = vmatmul.f32.gmra.mxu0 %v7875
  %v8113 = vpop.f32.mrf.mxu0
  %v8114 = vadd.f32 0.0, %v8113
  %8115 = vmatmul.f32.gmra.mxu0 %v7877
  %v8116 = vpop.f32.mrf.mxu0
  %v8117 = vadd.f32 0.0, %v8116
  %8118 = vmatmul.f32.gmra.mxu0 %v7879
  %v8119 = vpop.f32.mrf.mxu0
  %v8120 = vadd.f32 0.0, %v8119
  %8121 = vmatmul.f32.gmra.mxu0 %v7881
  %v8122 = vpop.f32.mrf.mxu0
  %v8123 = vadd.f32 0.0, %v8122
  %8124 = vmatmul.f32.gmra.mxu0 %v7883
  %v8125 = vpop.f32.mrf.mxu0
  %v8126 = vadd.f32 0.0, %v8125
  %8127 = vmatmul.f32.gmra.mxu0 %v7885
  %v8128 = vpop.f32.mrf.mxu0
  %v8129 = vadd.f32 0.0, %v8128
  %8130 = vmatmul.f32.gmra.mxu0 %v7887
  %v8131 = vpop.f32.mrf.mxu0
  %v8132 = vadd.f32 0.0, %v8131
  %8133 = vmatmul.f32.gmra.mxu0 %v7889
  %v8134 = vpop.f32.mrf.mxu0
  %v8135 = vadd.f32 0.0, %v8134
  %8136 = vmatmul.f32.gmra.mxu0 %v7891
  %v8137 = vpop.f32.mrf.mxu0
  %v8138 = vadd.f32 0.0, %v8137
  %8139 = vmatmul.f32.gmra.mxu0 %v7893
  %v8140 = vpop.f32.mrf.mxu0
  %v8141 = vadd.f32 0.0, %v8140
  %8142 = vmatmul.f32.gmra.mxu0 %v7895
  %v8143 = vpop.f32.mrf.mxu0
  %v8144 = vadd.f32 0.0, %v8143
  %8145 = vmatmul.f32.gmra.mxu0 %v7897
  %v8146 = vpop.f32.mrf.mxu0
  %v8147 = vadd.f32 0.0, %v8146
  %8148 = vmatmul.f32.gmra.mxu0 %v7899
  %v8149 = vpop.f32.mrf.mxu0
  %v8150 = vadd.f32 0.0, %v8149
  %8151 = vmatmul.f32.gmra.mxu0 %v7901
  %v8152 = vpop.f32.mrf.mxu0
  %v8153 = vadd.f32 0.0, %v8152
  %8154 = vdwg.mxu0
  %8155 = vmatpush.msra.mxu0 0.0
  %8156 = vmatpush.msra.mxu0 0.0
  %8157 = vmatpush.msra.mxu0 0.0
  %8158 = vmatpush.msra.mxu0 0.0
  %8159 = vmatpush.msra.mxu0 0.0
  %8160 = vmatpush.msra.mxu0 0.0
  %8161 = vmatpush.msra.mxu0 0.0
  %8162 = vmatpush.msra.mxu0 0.0
  %8163 = vmatpush.msra.mxu0 0.0
  %8164 = vmatpush.msra.mxu0 0.0
  %8165 = vmatpush.msra.mxu0 0.0
  %8166 = vmatpush.msra.mxu0 %v7944
  %8167 = vmatpush.msra.mxu0 %v7942
  %8168 = vmatpush.msra.mxu0 %v7940
  %8169 = vmatpush.msra.mxu0 %v7938
  %8170 = vmatpush.msra.mxu0 %v7936
  %8171 = vmatmul.f32.gmra.mxu0 %v7947
  %v8172 = vpop.f32.mrf.mxu0
  %v8173 = vadd.f32 %v8060, %v8172
  %8174 = vmatmul.f32.gmra.mxu0 %v7950
  %v8175 = vpop.f32.mrf.mxu0
  %v8176 = vadd.f32 %v8063, %v8175
  %8177 = vmatmul.f32.gmra.mxu0 %v7953
  %v8178 = vpop.f32.mrf.mxu0
  %v8179 = vadd.f32 %v8066, %v8178
  %8180 = vmatmul.f32.gmra.mxu0 %v7956
  %v8181 = vpop.f32.mrf.mxu0
  %v8182 = vadd.f32 %v8069, %v8181
  %8183 = vmatmul.f32.gmra.mxu0 %v7959
  %v8184 = vpop.f32.mrf.mxu0
  %v8185 = vadd.f32 %v8072, %v8184
  %8186 = vmatmul.f32.gmra.mxu0 %v7962
  %v8187 = vpop.f32.mrf.mxu0
  %v8188 = vadd.f32 %v8075, %v8187
  %8189 = vmatmul.f32.gmra.mxu0 %v7965
  %v8190 = vpop.f32.mrf.mxu0
  %v8191 = vadd.f32 %v8078, %v8190
  %8192 = vmatmul.f32.gmra.mxu0 %v7968
  %v8193 = vpop.f32.mrf.mxu0
  %v8194 = vadd.f32 %v8081, %v8193
  %8195 = vmatmul.f32.gmra.mxu0 %v7971
  %v8196 = vpop.f32.mrf.mxu0
  %v8197 = vadd.f32 %v8084, %v8196
  %8198 = vmatmul.f32.gmra.mxu0 %v7974
  %v8199 = vpop.f32.mrf.mxu0
  %v8200 = vadd.f32 %v8087, %v8199
  %8201 = vmatmul.f32.gmra.mxu0 %v7977
  %v8202 = vpop.f32.mrf.mxu0
  %v8203 = vadd.f32 %v8090, %v8202
  %8204 = vmatmul.f32.gmra.mxu0 %v7980
  %v8205 = vpop.f32.mrf.mxu0
  %v8206 = vadd.f32 %v8093, %v8205
  %8207 = vmatmul.f32.gmra.mxu0 %v7983
  %v8208 = vpop.f32.mrf.mxu0
  %v8209 = vadd.f32 %v8096, %v8208
  %8210 = vmatmul.f32.gmra.mxu0 %v7986
  %v8211 = vpop.f32.mrf.mxu0
  %v8212 = vadd.f32 %v8099, %v8211
  %8213 = vmatmul.f32.gmra.mxu0 %v7989
  %v8214 = vpop.f32.mrf.mxu0
  %v8215 = vadd.f32 %v8102, %v8214
  %8216 = vmatmul.f32.gmra.mxu0 %v7992
  %v8217 = vpop.f32.mrf.mxu0
  %v8218 = vadd.f32 %v8105, %v8217
  %8219 = vmatmul.f32.gmra.mxu0 %v7995
  %v8220 = vpop.f32.mrf.mxu0
  %v8221 = vadd.f32 %v8108, %v8220
  %8222 = vmatmul.f32.gmra.mxu0 %v7998
  %v8223 = vpop.f32.mrf.mxu0
  %v8224 = vadd.f32 %v8111, %v8223
  %8225 = vmatmul.f32.gmra.mxu0 %v8001
  %v8226 = vpop.f32.mrf.mxu0
  %v8227 = vadd.f32 %v8114, %v8226
  %8228 = vmatmul.f32.gmra.mxu0 %v8004
  %v8229 = vpop.f32.mrf.mxu0
  %v8230 = vadd.f32 %v8117, %v8229
  %8231 = vmatmul.f32.gmra.mxu0 %v8007
  %v8232 = vpop.f32.mrf.mxu0
  %v8233 = vadd.f32 %v8120, %v8232
  %8234 = vmatmul.f32.gmra.mxu0 %v8010
  %v8235 = vpop.f32.mrf.mxu0
  %v8236 = vadd.f32 %v8123, %v8235
  %8237 = vmatmul.f32.gmra.mxu0 %v8013
  %v8238 = vpop.f32.mrf.mxu0
  %v8239 = vadd.f32 %v8126, %v8238
  %8240 = vmatmul.f32.gmra.mxu0 %v8016
  %v8241 = vpop.f32.mrf.mxu0
  %v8242 = vadd.f32 %v8129, %v8241
  %8243 = vmatmul.f32.gmra.mxu0 %v8019
  %v8244 = vpop.f32.mrf.mxu0
  %v8245 = vadd.f32 %v8132, %v8244
  %8246 = vmatmul.f32.gmra.mxu0 %v8022
  %v8247 = vpop.f32.mrf.mxu0
  %v8248 = vadd.f32 %v8135, %v8247
  %8249 = vmatmul.f32.gmra.mxu0 %v8025
  %v8250 = vpop.f32.mrf.mxu0
  %v8251 = vadd.f32 %v8138, %v8250
  %8252 = vmatmul.f32.gmra.mxu0 %v8028
  %v8253 = vpop.f32.mrf.mxu0
  %v8254 = vadd.f32 %v8141, %v8253
  %8255 = vmatmul.f32.gmra.mxu0 %v8031
  %v8256 = vpop.f32.mrf.mxu0
  %v8257 = vadd.f32 %v8144, %v8256
  %8258 = vmatmul.f32.gmra.mxu0 %v8034
  %v8259 = vpop.f32.mrf.mxu0
  %v8260 = vadd.f32 %v8147, %v8259
  %8261 = vmatmul.f32.gmra.mxu0 %v8037
  %v8262 = vpop.f32.mrf.mxu0
  %v8263 = vadd.f32 %v8150, %v8262
  %8264 = vmatmul.f32.gmra.mxu0 %v8040
  %v8265 = vpop.f32.mrf.mxu0
  %v8266 = vadd.f32 %v8153, %v8265
  %8267 = vdwg.mxu0
  %8268 = vmatpush.msra.mxu0 %v7935
  %8269 = vmatpush.msra.mxu0 %v7933
  %8270 = vmatpush.msra.mxu0 %v7931
  %8271 = vmatpush.msra.mxu0 %v7929
  %8272 = vmatpush.msra.mxu0 %v7927
  %8273 = vmatpush.msra.mxu0 %v7925
  %8274 = vmatpush.msra.mxu0 %v7923
  %8275 = vmatpush.msra.mxu0 %v7921
  %8276 = vmatpush.msra.mxu0 %v7919
  %8277 = vmatpush.msra.mxu0 %v7917
  %8278 = vmatpush.msra.mxu0 %v7915
  %8279 = vmatpush.msra.mxu0 %v7913
  %8280 = vmatpush.msra.mxu0 %v7911
  %8281 = vmatpush.msra.mxu0 %v7909
  %8282 = vmatpush.msra.mxu0 %v7907
  %8283 = vmatpush.msra.mxu0 %v7905
  %8284 = vmatmul.f32.gmra.mxu0 %v7839
  %v8285 = vpop.f32.mrf.mxu0
  %v8286 = vadd.f32 0.0, %v8285
  %8287 = vmatmul.f32.gmra.mxu0 %v7841
  %v8288 = vpop.f32.mrf.mxu0
  %v8289 = vadd.f32 0.0, %v8288
  %8290 = vmatmul.f32.gmra.mxu0 %v7843
  %v8291 = vpop.f32.mrf.mxu0
  %v8292 = vadd.f32 0.0, %v8291
  %8293 = vmatmul.f32.gmra.mxu0 %v7845
  %v8294 = vpop.f32.mrf.mxu0
  %v8295 = vadd.f32 0.0, %v8294
  %8296 = vmatmul.f32.gmra.mxu0 %v7847
  %v8297 = vpop.f32.mrf.mxu0
  %v8298 = vadd.f32 0.0, %v8297
  %8299 = vmatmul.f32.gmra.mxu0 %v7849
  %v8300 = vpop.f32.mrf.mxu0
  %v8301 = vadd.f32 0.0, %v8300
  %8302 = vmatmul.f32.gmra.mxu0 %v7851
  %v8303 = vpop.f32.mrf.mxu0
  %v8304 = vadd.f32 0.0, %v8303
  %8305 = vmatmul.f32.gmra.mxu0 %v7853
  %v8306 = vpop.f32.mrf.mxu0
  %v8307 = vadd.f32 0.0, %v8306
  %8308 = vmatmul.f32.gmra.mxu0 %v7855
  %v8309 = vpop.f32.mrf.mxu0
  %v8310 = vadd.f32 0.0, %v8309
  %8311 = vmatmul.f32.gmra.mxu0 %v7857
  %v8312 = vpop.f32.mrf.mxu0
  %v8313 = vadd.f32 0.0, %v8312
  %8314 = vmatmul.f32.gmra.mxu0 %v7859
  %v8315 = vpop.f32.mrf.mxu0
  %v8316 = vadd.f32 0.0, %v8315
  %8317 = vmatmul.f32.gmra.mxu0 %v7861
  %v8318 = vpop.f32.mrf.mxu0
  %v8319 = vadd.f32 0.0, %v8318
  %8320 = vmatmul.f32.gmra.mxu0 %v7863
  %v8321 = vpop.f32.mrf.mxu0
  %v8322 = vadd.f32 0.0, %v8321
  %8323 = vmatmul.f32.gmra.mxu0 %v7865
  %v8324 = vpop.f32.mrf.mxu0
  %v8325 = vadd.f32 0.0, %v8324
  %8326 = vmatmul.f32.gmra.mxu0 %v7867
  %v8327 = vpop.f32.mrf.mxu0
  %v8328 = vadd.f32 0.0, %v8327
  %8329 = vmatmul.f32.gmra.mxu0 %v7869
  %v8330 = vpop.f32.mrf.mxu0
  %v8331 = vadd.f32 0.0, %v8330
  %8332 = vmatmul.f32.gmra.mxu0 %v7871
  %v8333 = vpop.f32.mrf.mxu0
  %v8334 = vadd.f32 0.0, %v8333
  %8335 = vmatmul.f32.gmra.mxu0 %v7873
  %v8336 = vpop.f32.mrf.mxu0
  %v8337 = vadd.f32 0.0, %v8336
  %8338 = vmatmul.f32.gmra.mxu0 %v7875
  %v8339 = vpop.f32.mrf.mxu0
  %v8340 = vadd.f32 0.0, %v8339
  %8341 = vmatmul.f32.gmra.mxu0 %v7877
  %v8342 = vpop.f32.mrf.mxu0
  %v8343 = vadd.f32 0.0, %v8342
  %8344 = vmatmul.f32.gmra.mxu0 %v7879
  %v8345 = vpop.f32.mrf.mxu0
  %v8346 = vadd.f32 0.0, %v8345
  %8347 = vmatmul.f32.gmra.mxu0 %v7881
  %v8348 = vpop.f32.mrf.mxu0
  %v8349 = vadd.f32 0.0, %v8348
  %8350 = vmatmul.f32.gmra.mxu0 %v7883
  %v8351 = vpop.f32.mrf.mxu0
  %v8352 = vadd.f32 0.0, %v8351
  %8353 = vmatmul.f32.gmra.mxu0 %v7885
  %v8354 = vpop.f32.mrf.mxu0
  %v8355 = vadd.f32 0.0, %v8354
  %8356 = vmatmul.f32.gmra.mxu0 %v7887
  %v8357 = vpop.f32.mrf.mxu0
  %v8358 = vadd.f32 0.0, %v8357
  %8359 = vmatmul.f32.gmra.mxu0 %v7889
  %v8360 = vpop.f32.mrf.mxu0
  %v8361 = vadd.f32 0.0, %v8360
  %8362 = vmatmul.f32.gmra.mxu0 %v7891
  %v8363 = vpop.f32.mrf.mxu0
  %v8364 = vadd.f32 0.0, %v8363
  %8365 = vmatmul.f32.gmra.mxu0 %v7893
  %v8366 = vpop.f32.mrf.mxu0
  %v8367 = vadd.f32 0.0, %v8366
  %8368 = vmatmul.f32.gmra.mxu0 %v7895
  %v8369 = vpop.f32.mrf.mxu0
  %v8370 = vadd.f32 0.0, %v8369
  %8371 = vmatmul.f32.gmra.mxu0 %v7897
  %v8372 = vpop.f32.mrf.mxu0
  %v8373 = vadd.f32 0.0, %v8372
  %8374 = vmatmul.f32.gmra.mxu0 %v7899
  %v8375 = vpop.f32.mrf.mxu0
  %v8376 = vadd.f32 0.0, %v8375
  %8377 = vmatmul.f32.gmra.mxu0 %v7901
  %v8378 = vpop.f32.mrf.mxu0
  %v8379 = vadd.f32 0.0, %v8378
  %8380 = vdwg.mxu0
  %8381 = vmatpush.msra.mxu0 0.0
  %8382 = vmatpush.msra.mxu0 0.0
  %8383 = vmatpush.msra.mxu0 0.0
  %8384 = vmatpush.msra.mxu0 0.0
  %8385 = vmatpush.msra.mxu0 0.0
  %8386 = vmatpush.msra.mxu0 0.0
  %8387 = vmatpush.msra.mxu0 0.0
  %8388 = vmatpush.msra.mxu0 0.0
  %8389 = vmatpush.msra.mxu0 0.0
  %8390 = vmatpush.msra.mxu0 0.0
  %8391 = vmatpush.msra.mxu0 0.0
  %8392 = vmatpush.msra.mxu0 %v7945
  %8393 = vmatpush.msra.mxu0 %v7943
  %8394 = vmatpush.msra.mxu0 %v7941
  %8395 = vmatpush.msra.mxu0 %v7939
  %8396 = vmatpush.msra.mxu0 %v7937
  %8397 = vmatmul.f32.gmra.mxu0 %v7947
  %v8398 = vpop.f32.mrf.mxu0
  %v8399 = vadd.f32 %v8286, %v8398
  %8400 = vmatmul.f32.gmra.mxu0 %v7950
  %v8401 = vpop.f32.mrf.mxu0
  %v8402 = vadd.f32 %v8289, %v8401
  %8403 = vmatmul.f32.gmra.mxu0 %v7953
  %v8404 = vpop.f32.mrf.mxu0
  %v8405 = vadd.f32 %v8292, %v8404
  %8406 = vmatmul.f32.gmra.mxu0 %v7956
  %v8407 = vpop.f32.mrf.mxu0
  %v8408 = vadd.f32 %v8295, %v8407
  %8409 = vmatmul.f32.gmra.mxu0 %v7959
  %v8410 = vpop.f32.mrf.mxu0
  %v8411 = vadd.f32 %v8298, %v8410
  %8412 = vmatmul.f32.gmra.mxu0 %v7962
  %v8413 = vpop.f32.mrf.mxu0
  %v8414 = vadd.f32 %v8301, %v8413
  %8415 = vmatmul.f32.gmra.mxu0 %v7965
  %v8416 = vpop.f32.mrf.mxu0
  %v8417 = vadd.f32 %v8304, %v8416
  %8418 = vmatmul.f32.gmra.mxu0 %v7968
  %v8419 = vpop.f32.mrf.mxu0
  %v8420 = vadd.f32 %v8307, %v8419
  %8421 = vmatmul.f32.gmra.mxu0 %v7971
  %v8422 = vpop.f32.mrf.mxu0
  %v8423 = vadd.f32 %v8310, %v8422
  %8424 = vmatmul.f32.gmra.mxu0 %v7974
  %v8425 = vpop.f32.mrf.mxu0
  %v8426 = vadd.f32 %v8313, %v8425
  %8427 = vmatmul.f32.gmra.mxu0 %v7977
  %v8428 = vpop.f32.mrf.mxu0
  %v8429 = vadd.f32 %v8316, %v8428
  %8430 = vmatmul.f32.gmra.mxu0 %v7980
  %v8431 = vpop.f32.mrf.mxu0
  %v8432 = vadd.f32 %v8319, %v8431
  %8433 = vmatmul.f32.gmra.mxu0 %v7983
  %v8434 = vpop.f32.mrf.mxu0
  %v8435 = vadd.f32 %v8322, %v8434
  %8436 = vmatmul.f32.gmra.mxu0 %v7986
  %v8437 = vpop.f32.mrf.mxu0
  %v8438 = vadd.f32 %v8325, %v8437
  %8439 = vmatmul.f32.gmra.mxu0 %v7989
  %v8440 = vpop.f32.mrf.mxu0
  %v8441 = vadd.f32 %v8328, %v8440
  %8442 = vmatmul.f32.gmra.mxu0 %v7992
  %v8443 = vpop.f32.mrf.mxu0
  %v8444 = vadd.f32 %v8331, %v8443
  %8445 = vmatmul.f32.gmra.mxu0 %v7995
  %v8446 = vpop.f32.mrf.mxu0
  %v8447 = vadd.f32 %v8334, %v8446
  %8448 = vmatmul.f32.gmra.mxu0 %v7998
  %v8449 = vpop.f32.mrf.mxu0
  %v8450 = vadd.f32 %v8337, %v8449
  %8451 = vmatmul.f32.gmra.mxu0 %v8001
  %v8452 = vpop.f32.mrf.mxu0
  %v8453 = vadd.f32 %v8340, %v8452
  %8454 = vmatmul.f32.gmra.mxu0 %v8004
  %v8455 = vpop.f32.mrf.mxu0
  %v8456 = vadd.f32 %v8343, %v8455
  %8457 = vmatmul.f32.gmra.mxu0 %v8007
  %v8458 = vpop.f32.mrf.mxu0
  %v8459 = vadd.f32 %v8346, %v8458
  %8460 = vmatmul.f32.gmra.mxu0 %v8010
  %v8461 = vpop.f32.mrf.mxu0
  %v8462 = vadd.f32 %v8349, %v8461
  %8463 = vmatmul.f32.gmra.mxu0 %v8013
  %v8464 = vpop.f32.mrf.mxu0
  %v8465 = vadd.f32 %v8352, %v8464
  %8466 = vmatmul.f32.gmra.mxu0 %v8016
  %v8467 = vpop.f32.mrf.mxu0
  %v8468 = vadd.f32 %v8355, %v8467
  %8469 = vmatmul.f32.gmra.mxu0 %v8019
  %v8470 = vpop.f32.mrf.mxu0
  %v8471 = vadd.f32 %v8358, %v8470
  %8472 = vmatmul.f32.gmra.mxu0 %v8022
  %v8473 = vpop.f32.mrf.mxu0
  %v8474 = vadd.f32 %v8361, %v8473
  %8475 = vmatmul.f32.gmra.mxu0 %v8025
  %v8476 = vpop.f32.mrf.mxu0
  %v8477 = vadd.f32 %v8364, %v8476
  %8478 = vmatmul.f32.gmra.mxu0 %v8028
  %v8479 = vpop.f32.mrf.mxu0
  %v8480 = vadd.f32 %v8367, %v8479
  %8481 = vmatmul.f32.gmra.mxu0 %v8031
  %v8482 = vpop.f32.mrf.mxu0
  %v8483 = vadd.f32 %v8370, %v8482
  %8484 = vmatmul.f32.gmra.mxu0 %v8034
  %v8485 = vpop.f32.mrf.mxu0
  %v8486 = vadd.f32 %v8373, %v8485
  %8487 = vmatmul.f32.gmra.mxu0 %v8037
  %v8488 = vpop.f32.mrf.mxu0
  %v8489 = vadd.f32 %v8376, %v8488
  %8490 = vmatmul.f32.gmra.mxu0 %v8040
  %v8491 = vpop.f32.mrf.mxu0
  %v8492 = vadd.f32 %v8379, %v8491
  %8493 = vdwg.mxu0
  %v8494 = vld [vmem:[#allocation2] sm:$0xff]
  %v8495 = vld [vmem:[#allocation2 + $0x8] sm:$0xff]
  %v8496 = vld [vmem:[#allocation2 + $0x10] sm:$0xff]
  %v8497 = vld [vmem:[#allocation2 + $0x18] sm:$0xff]
  %v8498 = vld [vmem:[#allocation2 + $0x20] sm:$0xff]
  %v8499 = vld [vmem:[#allocation2 + $0x28] sm:$0xff]
  %v8500 = vld [vmem:[#allocation2 + $0x30] sm:$0xff]
  %v8501 = vld [vmem:[#allocation2 + $0x38] sm:$0xff]
  %v8502 = vld [vmem:[#allocation2 + $0x40] sm:$0xff]
  %v8503 = vld [vmem:[#allocation2 + $0x48] sm:$0xff]
  %v8504 = vld [vmem:[#allocation2 + $0x50] sm:$0xff]
  %v8505 = vld [vmem:[#allocation2 + $0x58] sm:$0xff]
  %v8506 = vld [vmem:[#allocation2 + $0x60] sm:$0xff]
  %v8507 = vld [vmem:[#allocation2 + $0x68] sm:$0xff]
  %v8508 = vld [vmem:[#allocation2 + $0x70] sm:$0xff]
  %v8509 = vld [vmem:[#allocation2 + $0x78] sm:$0xff]
  %v8510 = vld [vmem:[#allocation2 + $0x80] sm:$0xff]
  %v8511 = vld [vmem:[#allocation2 + $0x88] sm:$0xff]
  %v8512 = vld [vmem:[#allocation2 + $0x90] sm:$0xff]
  %v8513 = vld [vmem:[#allocation2 + $0x98] sm:$0xff]
  %v8514 = vld [vmem:[#allocation2 + $0xa0] sm:$0xff]
  %v8515 = vld [vmem:[#allocation2 + $0xa8] sm:$0xff]
  %v8516 = vld [vmem:[#allocation2 + $0xb0] sm:$0xff]
  %v8517 = vld [vmem:[#allocation2 + $0xb8] sm:$0xff]
  %v8518 = vld [vmem:[#allocation2 + $0xc0] sm:$0xff]
  %v8519 = vld [vmem:[#allocation2 + $0xc8] sm:$0xff]
  %v8520 = vld [vmem:[#allocation2 + $0xd0] sm:$0xff]
  %v8521 = vld [vmem:[#allocation2 + $0xd8] sm:$0xff]
  %v8522 = vld [vmem:[#allocation2 + $0xe0] sm:$0xff]
  %v8523 = vld [vmem:[#allocation2 + $0xe8] sm:$0xff]
  %v8524 = vld [vmem:[#allocation2 + $0xf0] sm:$0xff]
  %v8525 = vld [vmem:[#allocation2 + $0xf8] sm:$0xff]
  %v8526 = vld [vmem:[#allocation2 + $0x100] sm:$0xff]
  %v8527 = vld [vmem:[#allocation2 + $0x108] sm:$0xff]
  %v8528 = vld [vmem:[#allocation2 + $0x110] sm:$0xff]
  %v8529 = vld [vmem:[#allocation2 + $0x118] sm:$0xff]
  %v8530 = vld [vmem:[#allocation2 + $0x120] sm:$0xff]
  %v8531 = vld [vmem:[#allocation2 + $0x128] sm:$0xff]
  %v8532 = vld [vmem:[#allocation2 + $0x130] sm:$0xff]
  %v8533 = vld [vmem:[#allocation2 + $0x138] sm:$0xff]
  %v8534 = vld [vmem:[#allocation2 + $0x140] sm:$0xff]
  %v8535 = vld [vmem:[#allocation2 + $0x148] sm:$0xff]
  %v8536 = vld [vmem:[#allocation2 + $0x150] sm:$0xff]
  %v8537 = vld [vmem:[#allocation2 + $0x158] sm:$0xff]
  %v8538 = vld [vmem:[#allocation2 + $0x160] sm:$0xff]
  %v8539 = vld [vmem:[#allocation2 + $0x168] sm:$0xff]
  %v8540 = vld [vmem:[#allocation2 + $0x170] sm:$0xff]
  %v8541 = vld [vmem:[#allocation2 + $0x178] sm:$0xff]
  %v8542 = vld [vmem:[#allocation2 + $0x180] sm:$0xff]
  %v8543 = vld [vmem:[#allocation2 + $0x188] sm:$0xff]
  %v8544 = vld [vmem:[#allocation2 + $0x190] sm:$0xff]
  %v8545 = vld [vmem:[#allocation2 + $0x198] sm:$0xff]
  %v8546 = vld [vmem:[#allocation2 + $0x1a0] sm:$0xff]
  %v8547 = vld [vmem:[#allocation2 + $0x1a8] sm:$0xff]
  %v8548 = vld [vmem:[#allocation2 + $0x1b0] sm:$0xff]
  %v8549 = vld [vmem:[#allocation2 + $0x1b8] sm:$0xff]
  %v8550 = vld [vmem:[#allocation2 + $0x1c0] sm:$0xff]
  %v8551 = vld [vmem:[#allocation2 + $0x1c8] sm:$0xff]
  %v8552 = vld [vmem:[#allocation2 + $0x1d0] sm:$0xff]
  %v8553 = vld [vmem:[#allocation2 + $0x1d8] sm:$0xff]
  %v8554 = vld [vmem:[#allocation2 + $0x1e0] sm:$0xff]
  %v8555 = vld [vmem:[#allocation2 + $0x1e8] sm:$0xff]
  %v8556 = vld [vmem:[#allocation2 + $0x1f0] sm:$0x3]
  %v8557 = vld [vmem:[#allocation2 + $0x1f8] sm:$0x3]
  %vm8622 = vcmask 1041408
  %v8623 = vrot.slane %v8173, 6
  %v8624 = vrot.slane %v8176, 6
  %v8625 = vsel %vm8622, %v8623, %v8624
  %v8626 = vrot.slane %v8399, 6
  %v8627 = vrot.slane %v8402, 6
  %v8628 = vsel %vm8622, %v8626, %v8627
  %v8629 = vrot.slane %v8179, 6
  %v8630 = vsel %vm8622, %v8624, %v8629
  %v8631 = vrot.slane %v8405, 6
  %v8632 = vsel %vm8622, %v8627, %v8631
  %v8633 = vrot.slane %v8182, 6
  %v8634 = vsel %vm8622, %v8629, %v8633
  %v8635 = vrot.slane %v8408, 6
  %v8636 = vsel %vm8622, %v8631, %v8635
  %v8637 = vrot.slane %v8185, 6
  %v8638 = vsel %vm8622, %v8633, %v8637
  %v8639 = vrot.slane %v8411, 6
  %v8640 = vsel %vm8622, %v8635, %v8639
  %v8641 = vrot.slane %v8188, 6
  %v8642 = vsel %vm8622, %v8637, %v8641
  %v8643 = vrot.slane %v8414, 6
  %v8644 = vsel %vm8622, %v8639, %v8643
  %v8645 = vrot.slane %v8191, 6
  %v8646 = vsel %vm8622, %v8641, %v8645
  %v8647 = vrot.slane %v8417, 6
  %v8648 = vsel %vm8622, %v8643, %v8647
  %v8649 = vrot.slane %v8194, 6
  %v8650 = vsel %vm8622, %v8645, %v8649
  %v8651 = vrot.slane %v8420, 6
  %v8652 = vsel %vm8622, %v8647, %v8651
  %v8653 = vrot.slane %v8197, 6
  %v8654 = vsel %vm8622, %v8649, %v8653
  %v8655 = vrot.slane %v8423, 6
  %v8656 = vsel %vm8622, %v8651, %v8655
  %v8657 = vrot.slane %v8200, 6
  %v8658 = vsel %vm8622, %v8653, %v8657
  %v8659 = vrot.slane %v8426, 6
  %v8660 = vsel %vm8622, %v8655, %v8659
  %v8661 = vrot.slane %v8203, 6
  %v8662 = vsel %vm8622, %v8657, %v8661
  %v8663 = vrot.slane %v8429, 6
  %v8664 = vsel %vm8622, %v8659, %v8663
  %v8665 = vrot.slane %v8206, 6
  %v8666 = vsel %vm8622, %v8661, %v8665
  %v8667 = vrot.slane %v8432, 6
  %v8668 = vsel %vm8622, %v8663, %v8667
  %v8669 = vrot.slane %v8209, 6
  %v8670 = vsel %vm8622, %v8665, %v8669
  %v8671 = vrot.slane %v8435, 6
  %v8672 = vsel %vm8622, %v8667, %v8671
  %v8673 = vrot.slane %v8212, 6
  %v8674 = vsel %vm8622, %v8669, %v8673
  %v8675 = vrot.slane %v8438, 6
  %v8676 = vsel %vm8622, %v8671, %v8675
  %v8677 = vrot.slane %v8215, 6
  %v8678 = vsel %vm8622, %v8673, %v8677
  %v8679 = vrot.slane %v8441, 6
  %v8680 = vsel %vm8622, %v8675, %v8679
  %v8681 = vrot.slane %v8218, 6
  %v8682 = vsel %vm8622, %v8677, %v8681
  %v8683 = vrot.slane %v8444, 6
  %v8684 = vsel %vm8622, %v8679, %v8683
  %v8685 = vrot.slane %v8221, 6
  %v8686 = vsel %vm8622, %v8681, %v8685
  %v8687 = vrot.slane %v8447, 6
  %v8688 = vsel %vm8622, %v8683, %v8687
  %v8689 = vrot.slane %v8224, 6
  %v8690 = vsel %vm8622, %v8685, %v8689
  %v8691 = vrot.slane %v8450, 6
  %v8692 = vsel %vm8622, %v8687, %v8691
  %v8693 = vrot.slane %v8227, 6
  %v8694 = vsel %vm8622, %v8689, %v8693
  %v8695 = vrot.slane %v8453, 6
  %v8696 = vsel %vm8622, %v8691, %v8695
  %v8697 = vrot.slane %v8230, 6
  %v8698 = vsel %vm8622, %v8693, %v8697
  %v8699 = vrot.slane %v8456, 6
  %v8700 = vsel %vm8622, %v8695, %v8699
  %v8701 = vrot.slane %v8233, 6
  %v8702 = vsel %vm8622, %v8697, %v8701
  %v8703 = vrot.slane %v8459, 6
  %v8704 = vsel %vm8622, %v8699, %v8703
  %v8705 = vrot.slane %v8236, 6
  %v8706 = vsel %vm8622, %v8701, %v8705
  %v8707 = vrot.slane %v8462, 6
  %v8708 = vsel %vm8622, %v8703, %v8707
  %v8709 = vrot.slane %v8239, 6
  %v8710 = vsel %vm8622, %v8705, %v8709
  %v8711 = vrot.slane %v8465, 6
  %v8712 = vsel %vm8622, %v8707, %v8711
  %v8713 = vrot.slane %v8242, 6
  %v8714 = vsel %vm8622, %v8709, %v8713
  %v8715 = vrot.slane %v8468, 6
  %v8716 = vsel %vm8622, %v8711, %v8715
  %v8717 = vrot.slane %v8245, 6
  %v8718 = vsel %vm8622, %v8713, %v8717
  %v8719 = vrot.slane %v8471, 6
  %v8720 = vsel %vm8622, %v8715, %v8719
  %v8721 = vrot.slane %v8248, 6
  %v8722 = vsel %vm8622, %v8717, %v8721
  %v8723 = vrot.slane %v8474, 6
  %v8724 = vsel %vm8622, %v8719, %v8723
  %v8725 = vrot.slane %v8251, 6
  %v8726 = vsel %vm8622, %v8721, %v8725
  %v8727 = vrot.slane %v8477, 6
  %v8728 = vsel %vm8622, %v8723, %v8727
  %v8729 = vrot.slane %v8254, 6
  %v8730 = vsel %vm8622, %v8725, %v8729
  %v8731 = vrot.slane %v8480, 6
  %v8732 = vsel %vm8622, %v8727, %v8731
  %v8733 = vrot.slane %v8257, 6
  %v8734 = vsel %vm8622, %v8729, %v8733
  %v8735 = vrot.slane %v8483, 6
  %v8736 = vsel %vm8622, %v8731, %v8735
  %v8737 = vrot.slane %v8260, 6
  %v8738 = vsel %vm8622, %v8733, %v8737
  %v8739 = vrot.slane %v8486, 6
  %v8740 = vsel %vm8622, %v8735, %v8739
  %v8741 = vrot.slane %v8263, 6
  %v8742 = vsel %vm8622, %v8737, %v8741
  %v8743 = vrot.slane %v8489, 6
  %v8744 = vsel %vm8622, %v8739, %v8743
  %v8745 = vrot.slane %v8266, 6
  %v8746 = vsel %vm8622, %v8741, %v8745
  %v8747 = vrot.slane %v8492, 6
  %v8748 = vsel %vm8622, %v8743, %v8747
  %v8813 = vadd.f32 %v8494, %v8625
  %v8814 = vadd.f32 %v8495, %v8628
  %v8815 = vadd.f32 %v8496, %v8630
  %v8816 = vadd.f32 %v8497, %v8632
  %v8817 = vadd.f32 %v8498, %v8634
  %v8818 = vadd.f32 %v8499, %v8636
  %v8819 = vadd.f32 %v8500, %v8638
  %v8820 = vadd.f32 %v8501, %v8640
  %v8821 = vadd.f32 %v8502, %v8642
  %v8822 = vadd.f32 %v8503, %v8644
  %v8823 = vadd.f32 %v8504, %v8646
  %v8824 = vadd.f32 %v8505, %v8648
  %v8825 = vadd.f32 %v8506, %v8650
  %v8826 = vadd.f32 %v8507, %v8652
  %v8827 = vadd.f32 %v8508, %v8654
  %v8828 = vadd.f32 %v8509, %v8656
  %v8829 = vadd.f32 %v8510, %v8658
  %v8830 = vadd.f32 %v8511, %v8660
  %v8831 = vadd.f32 %v8512, %v8662
  %v8832 = vadd.f32 %v8513, %v8664
  %v8833 = vadd.f32 %v8514, %v8666
  %v8834 = vadd.f32 %v8515, %v8668
  %v8835 = vadd.f32 %v8516, %v8670
  %v8836 = vadd.f32 %v8517, %v8672
  %v8837 = vadd.f32 %v8518, %v8674
  %v8838 = vadd.f32 %v8519, %v8676
  %v8839 = vadd.f32 %v8520, %v8678
  %v8840 = vadd.f32 %v8521, %v8680
  %v8841 = vadd.f32 %v8522, %v8682
  %v8842 = vadd.f32 %v8523, %v8684
  %v8843 = vadd.f32 %v8524, %v8686
  %v8844 = vadd.f32 %v8525, %v8688
  %v8845 = vadd.f32 %v8526, %v8690
  %v8846 = vadd.f32 %v8527, %v8692
  %v8847 = vadd.f32 %v8528, %v8694
  %v8848 = vadd.f32 %v8529, %v8696
  %v8849 = vadd.f32 %v8530, %v8698
  %v8850 = vadd.f32 %v8531, %v8700
  %v8851 = vadd.f32 %v8532, %v8702
  %v8852 = vadd.f32 %v8533, %v8704
  %v8853 = vadd.f32 %v8534, %v8706
  %v8854 = vadd.f32 %v8535, %v8708
  %v8855 = vadd.f32 %v8536, %v8710
  %v8856 = vadd.f32 %v8537, %v8712
  %v8857 = vadd.f32 %v8538, %v8714
  %v8858 = vadd.f32 %v8539, %v8716
  %v8859 = vadd.f32 %v8540, %v8718
  %v8860 = vadd.f32 %v8541, %v8720
  %v8861 = vadd.f32 %v8542, %v8722
  %v8862 = vadd.f32 %v8543, %v8724
  %v8863 = vadd.f32 %v8544, %v8726
  %v8864 = vadd.f32 %v8545, %v8728
  %v8865 = vadd.f32 %v8546, %v8730
  %v8866 = vadd.f32 %v8547, %v8732
  %v8867 = vadd.f32 %v8548, %v8734
  %v8868 = vadd.f32 %v8549, %v8736
  %v8869 = vadd.f32 %v8550, %v8738
  %v8870 = vadd.f32 %v8551, %v8740
  %v8871 = vadd.f32 %v8552, %v8742
  %v8872 = vadd.f32 %v8553, %v8744
  %v8873 = vadd.f32 %v8554, %v8746
  %v8874 = vadd.f32 %v8555, %v8748
  %v8875 = vadd.f32 %v8556, %v8745
  %v8876 = vadd.f32 %v8557, %v8747
  %8877 = vst [vmem:[#allocation2] sm:$0xff] %v8813
  %8878 = vst.msk [vmem:[#allocation2 + $0x8] sm:$0xff] %vm5571, %v8814
  %8879 = vst [vmem:[#allocation2 + $0x10] sm:$0xff] %v8815
  %8880 = vst.msk [vmem:[#allocation2 + $0x18] sm:$0xff] %vm5571, %v8816
  %8881 = vst [vmem:[#allocation2 + $0x20] sm:$0xff] %v8817
  %8882 = vst.msk [vmem:[#allocation2 + $0x28] sm:$0xff] %vm5571, %v8818
  %8883 = vst [vmem:[#allocation2 + $0x30] sm:$0xff] %v8819
  %8884 = vst.msk [vmem:[#allocation2 + $0x38] sm:$0xff] %vm5571, %v8820
  %8885 = vst [vmem:[#allocation2 + $0x40] sm:$0xff] %v8821
  %8886 = vst.msk [vmem:[#allocation2 + $0x48] sm:$0xff] %vm5571, %v8822
  %8887 = vst [vmem:[#allocation2 + $0x50] sm:$0xff] %v8823
  %8888 = vst.msk [vmem:[#allocation2 + $0x58] sm:$0xff] %vm5571, %v8824
  %8889 = vst [vmem:[#allocation2 + $0x60] sm:$0xff] %v8825
  %8890 = vst.msk [vmem:[#allocation2 + $0x68] sm:$0xff] %vm5571, %v8826
  %8891 = vst [vmem:[#allocation2 + $0x70] sm:$0xff] %v8827
  %8892 = vst.msk [vmem:[#allocation2 + $0x78] sm:$0xff] %vm5571, %v8828
  %8893 = vst [vmem:[#allocation2 + $0x80] sm:$0xff] %v8829
  %8894 = vst.msk [vmem:[#allocation2 + $0x88] sm:$0xff] %vm5571, %v8830
  %8895 = vst [vmem:[#allocation2 + $0x90] sm:$0xff] %v8831
  %8896 = vst.msk [vmem:[#allocation2 + $0x98] sm:$0xff] %vm5571, %v8832
  %8897 = vst [vmem:[#allocation2 + $0xa0] sm:$0xff] %v8833
  %8898 = vst.msk [vmem:[#allocation2 + $0xa8] sm:$0xff] %vm5571, %v8834
  %8899 = vst [vmem:[#allocation2 + $0xb0] sm:$0xff] %v8835
  %8900 = vst.msk [vmem:[#allocation2 + $0xb8] sm:$0xff] %vm5571, %v8836
  %8901 = vst [vmem:[#allocation2 + $0xc0] sm:$0xff] %v8837
  %8902 = vst.msk [vmem:[#allocation2 + $0xc8] sm:$0xff] %vm5571, %v8838
  %8903 = vst [vmem:[#allocation2 + $0xd0] sm:$0xff] %v8839
  %8904 = vst.msk [vmem:[#allocation2 + $0xd8] sm:$0xff] %vm5571, %v8840
  %8905 = vst [vmem:[#allocation2 + $0xe0] sm:$0xff] %v8841
  %8906 = vst.msk [vmem:[#allocation2 + $0xe8] sm:$0xff] %vm5571, %v8842
  %8907 = vst [vmem:[#allocation2 + $0xf0] sm:$0xff] %v8843
  %8908 = vst.msk [vmem:[#allocation2 + $0xf8] sm:$0xff] %vm5571, %v8844
  %8909 = vst [vmem:[#allocation2 + $0x100] sm:$0xff] %v8845
  %8910 = vst.msk [vmem:[#allocation2 + $0x108] sm:$0xff] %vm5571, %v8846
  %8911 = vst [vmem:[#allocation2 + $0x110] sm:$0xff] %v8847
  %8912 = vst.msk [vmem:[#allocation2 + $0x118] sm:$0xff] %vm5571, %v8848
  %8913 = vst [vmem:[#allocation2 + $0x120] sm:$0xff] %v8849
  %8914 = vst.msk [vmem:[#allocation2 + $0x128] sm:$0xff] %vm5571, %v8850
  %8915 = vst [vmem:[#allocation2 + $0x130] sm:$0xff] %v8851
  %8916 = vst.msk [vmem:[#allocation2 + $0x138] sm:$0xff] %vm5571, %v8852
  %8917 = vst [vmem:[#allocation2 + $0x140] sm:$0xff] %v8853
  %8918 = vst.msk [vmem:[#allocation2 + $0x148] sm:$0xff] %vm5571, %v8854
  %8919 = vst [vmem:[#allocation2 + $0x150] sm:$0xff] %v8855
  %8920 = vst.msk [vmem:[#allocation2 + $0x158] sm:$0xff] %vm5571, %v8856
  %8921 = vst [vmem:[#allocation2 + $0x160] sm:$0xff] %v8857
  %8922 = vst.msk [vmem:[#allocation2 + $0x168] sm:$0xff] %vm5571, %v8858
  %8923 = vst [vmem:[#allocation2 + $0x170] sm:$0xff] %v8859
  %8924 = vst.msk [vmem:[#allocation2 + $0x178] sm:$0xff] %vm5571, %v8860
  %8925 = vst [vmem:[#allocation2 + $0x180] sm:$0xff] %v8861
  %8926 = vst.msk [vmem:[#allocation2 + $0x188] sm:$0xff] %vm5571, %v8862
  %8927 = vst [vmem:[#allocation2 + $0x190] sm:$0xff] %v8863
  %8928 = vst.msk [vmem:[#allocation2 + $0x198] sm:$0xff] %vm5571, %v8864
  %8929 = vst [vmem:[#allocation2 + $0x1a0] sm:$0xff] %v8865
  %8930 = vst.msk [vmem:[#allocation2 + $0x1a8] sm:$0xff] %vm5571, %v8866
  %8931 = vst [vmem:[#allocation2 + $0x1b0] sm:$0xff] %v8867
  %8932 = vst.msk [vmem:[#allocation2 + $0x1b8] sm:$0xff] %vm5571, %v8868
  %8933 = vst [vmem:[#allocation2 + $0x1c0] sm:$0xff] %v8869
  %8934 = vst.msk [vmem:[#allocation2 + $0x1c8] sm:$0xff] %vm5571, %v8870
  %8935 = vst [vmem:[#allocation2 + $0x1d0] sm:$0xff] %v8871
  %8936 = vst.msk [vmem:[#allocation2 + $0x1d8] sm:$0xff] %vm5571, %v8872
  %8937 = vst [vmem:[#allocation2 + $0x1e0] sm:$0xff] %v8873
  %8938 = vst.msk [vmem:[#allocation2 + $0x1e8] sm:$0xff] %vm5571, %v8874
  %8939 = vst [vmem:[#allocation2 + $0x1f0] sm:$0x3] %v8875
  %vm8940 = vcmask 254976
  %8941 = vst.msk [vmem:[#allocation2 + $0x1f8] sm:$0x3] %vm8940, %v8876
  %v8942 = vld [vmem:[#allocation4] sm:$0xff]
  %v8943 = vld [vmem:[#allocation4 + $0x8] sm:$0xff]
  %v8944 = vld [vmem:[#allocation4 + $0x10] sm:$0xff]
  %v8945 = vld [vmem:[#allocation4 + $0x18] sm:$0xff]
  %v8946 = vld [vmem:[#allocation4 + $0x20] sm:$0xff]
  %v8947 = vld [vmem:[#allocation4 + $0x28] sm:$0xff]
  %v8948 = vld [vmem:[#allocation4 + $0x30] sm:$0xff]
  %v8949 = vld [vmem:[#allocation4 + $0x38] sm:$0xff]
  %v8950 = vld [vmem:[#allocation4 + $0x40] sm:$0xff]
  %v8951 = vld [vmem:[#allocation4 + $0x48] sm:$0xff]
  %v8952 = vld [vmem:[#allocation4 + $0x50] sm:$0xff]
  %v8953 = vld [vmem:[#allocation4 + $0x58] sm:$0xff]
  %v8954 = vld [vmem:[#allocation4 + $0x60] sm:$0xff]
  %v8955 = vld [vmem:[#allocation4 + $0x68] sm:$0xff]
  %v8956 = vld [vmem:[#allocation4 + $0x70] sm:$0xff]
  %v8957 = vld [vmem:[#allocation4 + $0x78] sm:$0xff]
  %v8958 = vld [vmem:[#allocation4 + $0x80] sm:$0xff]
  %v8959 = vld [vmem:[#allocation4 + $0x88] sm:$0xff]
  %v8960 = vld [vmem:[#allocation4 + $0x90] sm:$0xff]
  %v8961 = vld [vmem:[#allocation4 + $0x98] sm:$0xff]
  %v8962 = vld [vmem:[#allocation4 + $0xa0] sm:$0xff]
  %v8963 = vld [vmem:[#allocation4 + $0xa8] sm:$0xff]
  %v8964 = vld [vmem:[#allocation4 + $0xb0] sm:$0xff]
  %v8965 = vld [vmem:[#allocation4 + $0xb8] sm:$0xff]
  %v8966 = vld [vmem:[#allocation4 + $0xc0] sm:$0xff]
  %v8967 = vld [vmem:[#allocation4 + $0xc8] sm:$0xff]
  %v8968 = vld [vmem:[#allocation4 + $0xd0] sm:$0xff]
  %v8969 = vld [vmem:[#allocation4 + $0xd8] sm:$0xff]
  %v8970 = vld [vmem:[#allocation4 + $0xe0] sm:$0xff]
  %v8971 = vld [vmem:[#allocation4 + $0xe8] sm:$0xff]
  %v8972 = vld [vmem:[#allocation4 + $0xf0] sm:$0xff]
  %v8973 = vld [vmem:[#allocation4 + $0xf8] sm:$0xff]
  %v8974 = vld [vmem:[#allocation4 + $0x100] sm:$0xff]
  %v8975 = vld [vmem:[#allocation4 + $0x108] sm:$0xff]
  %v8976 = vld [vmem:[#allocation4 + $0x110] sm:$0xff]
  %v8977 = vld [vmem:[#allocation4 + $0x118] sm:$0xff]
  %v8978 = vld [vmem:[#allocation4 + $0x120] sm:$0xff]
  %v8979 = vld [vmem:[#allocation4 + $0x128] sm:$0xff]
  %v8980 = vld [vmem:[#allocation4 + $0x130] sm:$0xff]
  %v8981 = vld [vmem:[#allocation4 + $0x138] sm:$0xff]
  %v8982 = vld [vmem:[#allocation4 + $0x140] sm:$0xff]
  %v8983 = vld [vmem:[#allocation4 + $0x148] sm:$0xff]
  %v8984 = vld [vmem:[#allocation4 + $0x150] sm:$0xff]
  %v8985 = vld [vmem:[#allocation4 + $0x158] sm:$0xff]
  %v8986 = vld [vmem:[#allocation4 + $0x160] sm:$0xff]
  %v8987 = vld [vmem:[#allocation4 + $0x168] sm:$0xff]
  %v8988 = vld [vmem:[#allocation4 + $0x170] sm:$0xff]
  %v8989 = vld [vmem:[#allocation4 + $0x178] sm:$0xff]
  %v8990 = vld [vmem:[#allocation4 + $0x180] sm:$0xff]
  %v8991 = vld [vmem:[#allocation4 + $0x188] sm:$0xff]
  %v8992 = vld [vmem:[#allocation4 + $0x190] sm:$0xff]
  %v8993 = vld [vmem:[#allocation4 + $0x198] sm:$0xff]
  %v8994 = vld [vmem:[#allocation4 + $0x1a0] sm:$0xff]
  %v8995 = vld [vmem:[#allocation4 + $0x1a8] sm:$0xff]
  %v8996 = vld [vmem:[#allocation4 + $0x1b0] sm:$0xff]
  %v8997 = vld [vmem:[#allocation4 + $0x1b8] sm:$0xff]
  %v8998 = vld [vmem:[#allocation4 + $0x1c0] sm:$0xff]
  %v8999 = vld [vmem:[#allocation4 + $0x1c8] sm:$0xff]
  %v9000 = vld [vmem:[#allocation4 + $0x1d0] sm:$0xff]
  %v9001 = vld [vmem:[#allocation4 + $0x1d8] sm:$0xff]
  %v9002 = vld [vmem:[#allocation4 + $0x1e0] sm:$0xff]
  %v9003 = vld [vmem:[#allocation4 + $0x1e8] sm:$0xff]
  %v9004 = vld [vmem:[#allocation4 + $0x1f0] sm:$0xff]
  %v9005 = vld [vmem:[#allocation4 + $0x1f8] sm:$0xff]
  %s9006 = scalar_lea.vmem %s3, 1344
  %v9007 = vld [vmem:[%s9006] sm:$0xff]
  %v9008 = vld [vmem:[%s9006 + $0x8] sm:$0xff]
  %v9009 = vld [vmem:[%s9006 + $0x10] sm:$0xff]
  %v9010 = vld [vmem:[%s9006 + $0x18] sm:$0xff]
  %v9011 = vld [vmem:[%s9006 + $0x20] sm:$0xff]
  %v9012 = vld [vmem:[%s9006 + $0x28] sm:$0xff]
  %v9013 = vld [vmem:[%s9006 + $0x30] sm:$0xff]
  %v9014 = vld [vmem:[%s9006 + $0x38] sm:$0xff]
  %v9015 = vld [vmem:[%s9006 + $0x40] sm:$0xff]
  %v9016 = vld [vmem:[%s9006 + $0x48] sm:$0xff]
  %v9017 = vld [vmem:[%s9006 + $0x50] sm:$0xff]
  %v9018 = vld [vmem:[%s9006 + $0x58] sm:$0xff]
  %v9019 = vld [vmem:[%s9006 + $0x60] sm:$0xff]
  %v9020 = vld [vmem:[%s9006 + $0x68] sm:$0xff]
  %v9021 = vld [vmem:[%s9006 + $0x70] sm:$0xff]
  %v9022 = vld [vmem:[%s9006 + $0x78] sm:$0xff]
  %v9023 = vld [vmem:[%s9006 + $0x80] sm:$0xff]
  %v9024 = vld [vmem:[%s9006 + $0x88] sm:$0xff]
  %v9025 = vld [vmem:[%s9006 + $0x90] sm:$0xff]
  %v9026 = vld [vmem:[%s9006 + $0x98] sm:$0xff]
  %v9027 = vld [vmem:[%s9006 + $0xa0] sm:$0xff]
  %v9028 = vld [vmem:[%s9006 + $0xa8] sm:$0xff]
  %v9029 = vld [vmem:[%s9006 + $0xb0] sm:$0xff]
  %v9030 = vld [vmem:[%s9006 + $0xb8] sm:$0xff]
  %v9031 = vld [vmem:[%s9006 + $0xc0] sm:$0xff]
  %v9032 = vld [vmem:[%s9006 + $0xc8] sm:$0xff]
  %v9033 = vld [vmem:[%s9006 + $0xd0] sm:$0xff]
  %v9034 = vld [vmem:[%s9006 + $0xd8] sm:$0xff]
  %v9035 = vld [vmem:[%s9006 + $0xe0] sm:$0xff]
  %v9036 = vld [vmem:[%s9006 + $0xe8] sm:$0xff]
  %v9037 = vld [vmem:[%s9006 + $0xf0] sm:$0xff]
  %v9038 = vld [vmem:[%s9006 + $0xf8] sm:$0xff]
  %v9039 = vld [vmem:[%s9006 + $0x100] sm:$0xff]
  %v9040 = vld [vmem:[%s9006 + $0x108] sm:$0xff]
  %v9041 = vld [vmem:[%s9006 + $0x110] sm:$0xff]
  %v9042 = vld [vmem:[%s9006 + $0x118] sm:$0xff]
  %v9043 = vld [vmem:[%s9006 + $0x120] sm:$0xff]
  %v9044 = vld [vmem:[%s9006 + $0x128] sm:$0xff]
  %v9045 = vld [vmem:[%s9006 + $0x130] sm:$0xff]
  %v9046 = vld [vmem:[%s9006 + $0x138] sm:$0xff]
  %v9047 = vld [vmem:[%s9006 + $0x140] sm:$0xff]
  %v9048 = vld [vmem:[%s9006 + $0x148] sm:$0xff]
  %v9050 = vsel %vm473, %v8943, 0
  %v9053 = vsel %vm473, %v8945, 0
  %v9056 = vsel %vm473, %v8947, 0
  %v9059 = vsel %vm473, %v8949, 0
  %v9062 = vsel %vm473, %v8951, 0
  %v9065 = vsel %vm473, %v8953, 0
  %v9068 = vsel %vm473, %v8955, 0
  %v9071 = vsel %vm473, %v8957, 0
  %v9074 = vsel %vm473, %v8959, 0
  %v9077 = vsel %vm473, %v8961, 0
  %v9080 = vsel %vm473, %v8963, 0
  %v9083 = vsel %vm473, %v8965, 0
  %v9086 = vsel %vm473, %v8967, 0
  %v9089 = vsel %vm473, %v8969, 0
  %v9092 = vsel %vm473, %v8971, 0
  %v9095 = vsel %vm473, %v8973, 0
  %v9098 = vsel %vm473, %v8975, 0
  %v9101 = vsel %vm473, %v8977, 0
  %v9104 = vsel %vm473, %v8979, 0
  %v9107 = vsel %vm473, %v8981, 0
  %v9110 = vsel %vm473, %v8983, 0
  %v9113 = vsel %vm473, %v8985, 0
  %v9116 = vsel %vm473, %v8987, 0
  %v9119 = vsel %vm473, %v8989, 0
  %v9122 = vsel %vm473, %v8991, 0
  %v9125 = vsel %vm473, %v8993, 0
  %v9128 = vsel %vm473, %v8995, 0
  %v9131 = vsel %vm473, %v8997, 0
  %v9134 = vsel %vm473, %v8999, 0
  %v9137 = vsel %vm473, %v9001, 0
  %v9140 = vsel %vm473, %v9003, 0
  %v9143 = vsel %vm473, %v9005, 0
  %9145 = vmatpush.msra.mxu0 %v9037
  %9146 = vmatpush.msra.mxu0 %v9035
  %9147 = vmatpush.msra.mxu0 %v9033
  %9148 = vmatpush.msra.mxu0 %v9031
  %9149 = vmatpush.msra.mxu0 %v9029
  %9150 = vmatpush.msra.mxu0 %v9027
  %9151 = vmatpush.msra.mxu0 %v9025
  %9152 = vmatpush.msra.mxu0 %v9023
  %9153 = vmatpush.msra.mxu0 %v9021
  %9154 = vmatpush.msra.mxu0 %v9019
  %9155 = vmatpush.msra.mxu0 %v9017
  %9156 = vmatpush.msra.mxu0 %v9015
  %9157 = vmatpush.msra.mxu0 %v9013
  %9158 = vmatpush.msra.mxu0 %v9011
  %9159 = vmatpush.msra.mxu0 %v9009
  %9160 = vmatpush.msra.mxu0 %v9007
  %9161 = vmatmul.f32.gmra.mxu0 %v8942
  %v9162 = vpop.f32.mrf.mxu0
  %9163 = vmatmul.f32.gmra.mxu0 %v8944
  %v9164 = vpop.f32.mrf.mxu0
  %v9165 = vadd.f32 0.0, %v9164
  %9166 = vmatmul.f32.gmra.mxu0 %v8946
  %v9167 = vpop.f32.mrf.mxu0
  %v9168 = vadd.f32 0.0, %v9167
  %9169 = vmatmul.f32.gmra.mxu0 %v8948
  %v9170 = vpop.f32.mrf.mxu0
  %v9171 = vadd.f32 0.0, %v9170
  %9172 = vmatmul.f32.gmra.mxu0 %v8950
  %v9173 = vpop.f32.mrf.mxu0
  %v9174 = vadd.f32 0.0, %v9173
  %9175 = vmatmul.f32.gmra.mxu0 %v8952
  %v9176 = vpop.f32.mrf.mxu0
  %v9177 = vadd.f32 0.0, %v9176
  %9178 = vmatmul.f32.gmra.mxu0 %v8954
  %v9179 = vpop.f32.mrf.mxu0
  %v9180 = vadd.f32 0.0, %v9179
  %9181 = vmatmul.f32.gmra.mxu0 %v8956
  %v9182 = vpop.f32.mrf.mxu0
  %v9183 = vadd.f32 0.0, %v9182
  %9184 = vmatmul.f32.gmra.mxu0 %v8958
  %v9185 = vpop.f32.mrf.mxu0
  %v9186 = vadd.f32 0.0, %v9185
  %9187 = vmatmul.f32.gmra.mxu0 %v8960
  %v9188 = vpop.f32.mrf.mxu0
  %v9189 = vadd.f32 0.0, %v9188
  %9190 = vmatmul.f32.gmra.mxu0 %v8962
  %v9191 = vpop.f32.mrf.mxu0
  %v9192 = vadd.f32 0.0, %v9191
  %9193 = vmatmul.f32.gmra.mxu0 %v8964
  %v9194 = vpop.f32.mrf.mxu0
  %v9195 = vadd.f32 0.0, %v9194
  %9196 = vmatmul.f32.gmra.mxu0 %v8966
  %v9197 = vpop.f32.mrf.mxu0
  %v9198 = vadd.f32 0.0, %v9197
  %9199 = vmatmul.f32.gmra.mxu0 %v8968
  %v9200 = vpop.f32.mrf.mxu0
  %v9201 = vadd.f32 0.0, %v9200
  %9202 = vmatmul.f32.gmra.mxu0 %v8970
  %v9203 = vpop.f32.mrf.mxu0
  %v9204 = vadd.f32 0.0, %v9203
  %9205 = vmatmul.f32.gmra.mxu0 %v8972
  %v9206 = vpop.f32.mrf.mxu0
  %v9207 = vadd.f32 0.0, %v9206
  %9208 = vmatmul.f32.gmra.mxu0 %v8974
  %v9209 = vpop.f32.mrf.mxu0
  %v9210 = vadd.f32 0.0, %v9209
  %9211 = vmatmul.f32.gmra.mxu0 %v8976
  %v9212 = vpop.f32.mrf.mxu0
  %v9213 = vadd.f32 0.0, %v9212
  %9214 = vmatmul.f32.gmra.mxu0 %v8978
  %v9215 = vpop.f32.mrf.mxu0
  %v9216 = vadd.f32 0.0, %v9215
  %9217 = vmatmul.f32.gmra.mxu0 %v8980
  %v9218 = vpop.f32.mrf.mxu0
  %v9219 = vadd.f32 0.0, %v9218
  %9220 = vmatmul.f32.gmra.mxu0 %v8982
  %v9221 = vpop.f32.mrf.mxu0
  %v9222 = vadd.f32 0.0, %v9221
  %9223 = vmatmul.f32.gmra.mxu0 %v8984
  %v9224 = vpop.f32.mrf.mxu0
  %v9225 = vadd.f32 0.0, %v9224
  %9226 = vmatmul.f32.gmra.mxu0 %v8986
  %v9227 = vpop.f32.mrf.mxu0
  %v9228 = vadd.f32 0.0, %v9227
  %9229 = vmatmul.f32.gmra.mxu0 %v8988
  %v9230 = vpop.f32.mrf.mxu0
  %v9231 = vadd.f32 0.0, %v9230
  %9232 = vmatmul.f32.gmra.mxu0 %v8990
  %v9233 = vpop.f32.mrf.mxu0
  %v9234 = vadd.f32 0.0, %v9233
  %9235 = vmatmul.f32.gmra.mxu0 %v8992
  %v9236 = vpop.f32.mrf.mxu0
  %v9237 = vadd.f32 0.0, %v9236
  %9238 = vmatmul.f32.gmra.mxu0 %v8994
  %v9239 = vpop.f32.mrf.mxu0
  %v9240 = vadd.f32 0.0, %v9239
  %9241 = vmatmul.f32.gmra.mxu0 %v8996
  %v9242 = vpop.f32.mrf.mxu0
  %v9243 = vadd.f32 0.0, %v9242
  %9244 = vmatmul.f32.gmra.mxu0 %v8998
  %v9245 = vpop.f32.mrf.mxu0
  %v9246 = vadd.f32 0.0, %v9245
  %9247 = vmatmul.f32.gmra.mxu0 %v9000
  %v9248 = vpop.f32.mrf.mxu0
  %v9249 = vadd.f32 0.0, %v9248
  %9250 = vmatmul.f32.gmra.mxu0 %v9002
  %v9251 = vpop.f32.mrf.mxu0
  %v9252 = vadd.f32 0.0, %v9251
  %9253 = vmatmul.f32.gmra.mxu0 %v9004
  %v9254 = vpop.f32.mrf.mxu0
  %v9255 = vadd.f32 0.0, %v9254
  %9256 = vdwg.mxu0
  %9257 = vmatpush.msra.mxu0 0.0
  %9258 = vmatpush.msra.mxu0 0.0
  %9259 = vmatpush.msra.mxu0 0.0
  %9260 = vmatpush.msra.mxu0 0.0
  %9261 = vmatpush.msra.mxu0 0.0
  %9262 = vmatpush.msra.mxu0 0.0
  %9263 = vmatpush.msra.mxu0 0.0
  %9264 = vmatpush.msra.mxu0 0.0
  %9265 = vmatpush.msra.mxu0 0.0
  %9266 = vmatpush.msra.mxu0 0.0
  %9267 = vmatpush.msra.mxu0 0.0
  %9268 = vmatpush.msra.mxu0 %v9047
  %9269 = vmatpush.msra.mxu0 %v9045
  %9270 = vmatpush.msra.mxu0 %v9043
  %9271 = vmatpush.msra.mxu0 %v9041
  %9272 = vmatpush.msra.mxu0 %v9039
  %9273 = vmatmul.f32.gmra.mxu0 %v9050
  %v9274 = vpop.f32.mrf.mxu0
  %9275 = vmatmul.f32.gmra.mxu0 %v9053
  %v9276 = vpop.f32.mrf.mxu0
  %v9277 = vadd.f32 %v9165, %v9276
  %9278 = vmatmul.f32.gmra.mxu0 %v9056
  %v9279 = vpop.f32.mrf.mxu0
  %v9280 = vadd.f32 %v9168, %v9279
  %9281 = vmatmul.f32.gmra.mxu0 %v9059
  %v9282 = vpop.f32.mrf.mxu0
  %v9283 = vadd.f32 %v9171, %v9282
  %9284 = vmatmul.f32.gmra.mxu0 %v9062
  %v9285 = vpop.f32.mrf.mxu0
  %v9286 = vadd.f32 %v9174, %v9285
  %9287 = vmatmul.f32.gmra.mxu0 %v9065
  %v9288 = vpop.f32.mrf.mxu0
  %v9289 = vadd.f32 %v9177, %v9288
  %9290 = vmatmul.f32.gmra.mxu0 %v9068
  %v9291 = vpop.f32.mrf.mxu0
  %v9292 = vadd.f32 %v9180, %v9291
  %9293 = vmatmul.f32.gmra.mxu0 %v9071
  %v9294 = vpop.f32.mrf.mxu0
  %v9295 = vadd.f32 %v9183, %v9294
  %9296 = vmatmul.f32.gmra.mxu0 %v9074
  %v9297 = vpop.f32.mrf.mxu0
  %v9298 = vadd.f32 %v9186, %v9297
  %9299 = vmatmul.f32.gmra.mxu0 %v9077
  %v9300 = vpop.f32.mrf.mxu0
  %v9301 = vadd.f32 %v9189, %v9300
  %9302 = vmatmul.f32.gmra.mxu0 %v9080
  %v9303 = vpop.f32.mrf.mxu0
  %v9304 = vadd.f32 %v9192, %v9303
  %9305 = vmatmul.f32.gmra.mxu0 %v9083
  %v9306 = vpop.f32.mrf.mxu0
  %v9307 = vadd.f32 %v9195, %v9306
  %9308 = vmatmul.f32.gmra.mxu0 %v9086
  %v9309 = vpop.f32.mrf.mxu0
  %v9310 = vadd.f32 %v9198, %v9309
  %9311 = vmatmul.f32.gmra.mxu0 %v9089
  %v9312 = vpop.f32.mrf.mxu0
  %v9313 = vadd.f32 %v9201, %v9312
  %9314 = vmatmul.f32.gmra.mxu0 %v9092
  %v9315 = vpop.f32.mrf.mxu0
  %v9316 = vadd.f32 %v9204, %v9315
  %9317 = vmatmul.f32.gmra.mxu0 %v9095
  %v9318 = vpop.f32.mrf.mxu0
  %v9319 = vadd.f32 %v9207, %v9318
  %9320 = vmatmul.f32.gmra.mxu0 %v9098
  %v9321 = vpop.f32.mrf.mxu0
  %v9322 = vadd.f32 %v9210, %v9321
  %9323 = vmatmul.f32.gmra.mxu0 %v9101
  %v9324 = vpop.f32.mrf.mxu0
  %v9325 = vadd.f32 %v9213, %v9324
  %9326 = vmatmul.f32.gmra.mxu0 %v9104
  %v9327 = vpop.f32.mrf.mxu0
  %v9328 = vadd.f32 %v9216, %v9327
  %9329 = vmatmul.f32.gmra.mxu0 %v9107
  %v9330 = vpop.f32.mrf.mxu0
  %v9331 = vadd.f32 %v9219, %v9330
  %9332 = vmatmul.f32.gmra.mxu0 %v9110
  %v9333 = vpop.f32.mrf.mxu0
  %v9334 = vadd.f32 %v9222, %v9333
  %9335 = vmatmul.f32.gmra.mxu0 %v9113
  %v9336 = vpop.f32.mrf.mxu0
  %v9337 = vadd.f32 %v9225, %v9336
  %9338 = vmatmul.f32.gmra.mxu0 %v9116
  %v9339 = vpop.f32.mrf.mxu0
  %v9340 = vadd.f32 %v9228, %v9339
  %9341 = vmatmul.f32.gmra.mxu0 %v9119
  %v9342 = vpop.f32.mrf.mxu0
  %v9343 = vadd.f32 %v9231, %v9342
  %9344 = vmatmul.f32.gmra.mxu0 %v9122
  %v9345 = vpop.f32.mrf.mxu0
  %v9346 = vadd.f32 %v9234, %v9345
  %9347 = vmatmul.f32.gmra.mxu0 %v9125
  %v9348 = vpop.f32.mrf.mxu0
  %v9349 = vadd.f32 %v9237, %v9348
  %9350 = vmatmul.f32.gmra.mxu0 %v9128
  %v9351 = vpop.f32.mrf.mxu0
  %v9352 = vadd.f32 %v9240, %v9351
  %9353 = vmatmul.f32.gmra.mxu0 %v9131
  %v9354 = vpop.f32.mrf.mxu0
  %v9355 = vadd.f32 %v9243, %v9354
  %9356 = vmatmul.f32.gmra.mxu0 %v9134
  %v9357 = vpop.f32.mrf.mxu0
  %v9358 = vadd.f32 %v9246, %v9357
  %9359 = vmatmul.f32.gmra.mxu0 %v9137
  %v9360 = vpop.f32.mrf.mxu0
  %v9361 = vadd.f32 %v9249, %v9360
  %9362 = vmatmul.f32.gmra.mxu0 %v9140
  %v9363 = vpop.f32.mrf.mxu0
  %v9364 = vadd.f32 %v9252, %v9363
  %9365 = vmatmul.f32.gmra.mxu0 %v9143
  %v9366 = vpop.f32.mrf.mxu0
  %v9367 = vadd.f32 %v9255, %v9366
  %9368 = vdwg.mxu0
  %9369 = vmatpush.msra.mxu0 %v9038
  %9370 = vmatpush.msra.mxu0 %v9036
  %9371 = vmatpush.msra.mxu0 %v9034
  %9372 = vmatpush.msra.mxu0 %v9032
  %9373 = vmatpush.msra.mxu0 %v9030
  %9374 = vmatpush.msra.mxu0 %v9028
  %9375 = vmatpush.msra.mxu0 %v9026
  %9376 = vmatpush.msra.mxu0 %v9024
  %9377 = vmatpush.msra.mxu0 %v9022
  %9378 = vmatpush.msra.mxu0 %v9020
  %9379 = vmatpush.msra.mxu0 %v9018
  %9380 = vmatpush.msra.mxu0 %v9016
  %9381 = vmatpush.msra.mxu0 %v9014
  %9382 = vmatpush.msra.mxu0 %v9012
  %9383 = vmatpush.msra.mxu0 %v9010
  %9384 = vmatpush.msra.mxu0 %v9008
  %9385 = vmatmul.f32.gmra.mxu0 %v8942
  %v9386 = vpop.f32.mrf.mxu0
  %9387 = vmatmul.f32.gmra.mxu0 %v8944
  %v9388 = vpop.f32.mrf.mxu0
  %v9389 = vadd.f32 0.0, %v9388
  %9390 = vmatmul.f32.gmra.mxu0 %v8946
  %v9391 = vpop.f32.mrf.mxu0
  %v9392 = vadd.f32 0.0, %v9391
  %9393 = vmatmul.f32.gmra.mxu0 %v8948
  %v9394 = vpop.f32.mrf.mxu0
  %v9395 = vadd.f32 0.0, %v9394
  %9396 = vmatmul.f32.gmra.mxu0 %v8950
  %v9397 = vpop.f32.mrf.mxu0
  %v9398 = vadd.f32 0.0, %v9397
  %9399 = vmatmul.f32.gmra.mxu0 %v8952
  %v9400 = vpop.f32.mrf.mxu0
  %v9401 = vadd.f32 0.0, %v9400
  %9402 = vmatmul.f32.gmra.mxu0 %v8954
  %v9403 = vpop.f32.mrf.mxu0
  %v9404 = vadd.f32 0.0, %v9403
  %9405 = vmatmul.f32.gmra.mxu0 %v8956
  %v9406 = vpop.f32.mrf.mxu0
  %v9407 = vadd.f32 0.0, %v9406
  %9408 = vmatmul.f32.gmra.mxu0 %v8958
  %v9409 = vpop.f32.mrf.mxu0
  %v9410 = vadd.f32 0.0, %v9409
  %9411 = vmatmul.f32.gmra.mxu0 %v8960
  %v9412 = vpop.f32.mrf.mxu0
  %v9413 = vadd.f32 0.0, %v9412
  %9414 = vmatmul.f32.gmra.mxu0 %v8962
  %v9415 = vpop.f32.mrf.mxu0
  %v9416 = vadd.f32 0.0, %v9415
  %9417 = vmatmul.f32.gmra.mxu0 %v8964
  %v9418 = vpop.f32.mrf.mxu0
  %v9419 = vadd.f32 0.0, %v9418
  %9420 = vmatmul.f32.gmra.mxu0 %v8966
  %v9421 = vpop.f32.mrf.mxu0
  %v9422 = vadd.f32 0.0, %v9421
  %9423 = vmatmul.f32.gmra.mxu0 %v8968
  %v9424 = vpop.f32.mrf.mxu0
  %v9425 = vadd.f32 0.0, %v9424
  %9426 = vmatmul.f32.gmra.mxu0 %v8970
  %v9427 = vpop.f32.mrf.mxu0
  %v9428 = vadd.f32 0.0, %v9427
  %9429 = vmatmul.f32.gmra.mxu0 %v8972
  %v9430 = vpop.f32.mrf.mxu0
  %v9431 = vadd.f32 0.0, %v9430
  %9432 = vmatmul.f32.gmra.mxu0 %v8974
  %v9433 = vpop.f32.mrf.mxu0
  %v9434 = vadd.f32 0.0, %v9433
  %9435 = vmatmul.f32.gmra.mxu0 %v8976
  %v9436 = vpop.f32.mrf.mxu0
  %v9437 = vadd.f32 0.0, %v9436
  %9438 = vmatmul.f32.gmra.mxu0 %v8978
  %v9439 = vpop.f32.mrf.mxu0
  %v9440 = vadd.f32 0.0, %v9439
  %9441 = vmatmul.f32.gmra.mxu0 %v8980
  %v9442 = vpop.f32.mrf.mxu0
  %v9443 = vadd.f32 0.0, %v9442
  %9444 = vmatmul.f32.gmra.mxu0 %v8982
  %v9445 = vpop.f32.mrf.mxu0
  %v9446 = vadd.f32 0.0, %v9445
  %9447 = vmatmul.f32.gmra.mxu0 %v8984
  %v9448 = vpop.f32.mrf.mxu0
  %v9449 = vadd.f32 0.0, %v9448
  %9450 = vmatmul.f32.gmra.mxu0 %v8986
  %v9451 = vpop.f32.mrf.mxu0
  %v9452 = vadd.f32 0.0, %v9451
  %9453 = vmatmul.f32.gmra.mxu0 %v8988
  %v9454 = vpop.f32.mrf.mxu0
  %v9455 = vadd.f32 0.0, %v9454
  %9456 = vmatmul.f32.gmra.mxu0 %v8990
  %v9457 = vpop.f32.mrf.mxu0
  %v9458 = vadd.f32 0.0, %v9457
  %9459 = vmatmul.f32.gmra.mxu0 %v8992
  %v9460 = vpop.f32.mrf.mxu0
  %v9461 = vadd.f32 0.0, %v9460
  %9462 = vmatmul.f32.gmra.mxu0 %v8994
  %v9463 = vpop.f32.mrf.mxu0
  %v9464 = vadd.f32 0.0, %v9463
  %9465 = vmatmul.f32.gmra.mxu0 %v8996
  %v9466 = vpop.f32.mrf.mxu0
  %v9467 = vadd.f32 0.0, %v9466
  %9468 = vmatmul.f32.gmra.mxu0 %v8998
  %v9469 = vpop.f32.mrf.mxu0
  %v9470 = vadd.f32 0.0, %v9469
  %9471 = vmatmul.f32.gmra.mxu0 %v9000
  %v9472 = vpop.f32.mrf.mxu0
  %v9473 = vadd.f32 0.0, %v9472
  %9474 = vmatmul.f32.gmra.mxu0 %v9002
  %v9475 = vpop.f32.mrf.mxu0
  %v9476 = vadd.f32 0.0, %v9475
  %9477 = vmatmul.f32.gmra.mxu0 %v9004
  %v9478 = vpop.f32.mrf.mxu0
  %v9479 = vadd.f32 0.0, %v9478
  %9480 = vdwg.mxu0
  %9481 = vmatpush.msra.mxu0 0.0
  %9482 = vmatpush.msra.mxu0 0.0
  %9483 = vmatpush.msra.mxu0 0.0
  %9484 = vmatpush.msra.mxu0 0.0
  %9485 = vmatpush.msra.mxu0 0.0
  %9486 = vmatpush.msra.mxu0 0.0
  %9487 = vmatpush.msra.mxu0 0.0
  %9488 = vmatpush.msra.mxu0 0.0
  %9489 = vmatpush.msra.mxu0 0.0
  %9490 = vmatpush.msra.mxu0 0.0
  %9491 = vmatpush.msra.mxu0 0.0
  %9492 = vmatpush.msra.mxu0 %v9048
  %9493 = vmatpush.msra.mxu0 %v9046
  %9494 = vmatpush.msra.mxu0 %v9044
  %9495 = vmatpush.msra.mxu0 %v9042
  %9496 = vmatpush.msra.mxu0 %v9040
  %9497 = vmatmul.f32.gmra.mxu0 %v9050
  %v9498 = vpop.f32.mrf.mxu0
  %9499 = vmatmul.f32.gmra.mxu0 %v9053
  %v9500 = vpop.f32.mrf.mxu0
  %v9501 = vadd.f32 %v9389, %v9500
  %9502 = vmatmul.f32.gmra.mxu0 %v9056
  %v9503 = vpop.f32.mrf.mxu0
  %v9504 = vadd.f32 %v9392, %v9503
  %9505 = vmatmul.f32.gmra.mxu0 %v9059
  %v9506 = vpop.f32.mrf.mxu0
  %v9507 = vadd.f32 %v9395, %v9506
  %9508 = vmatmul.f32.gmra.mxu0 %v9062
  %v9509 = vpop.f32.mrf.mxu0
  %v9510 = vadd.f32 %v9398, %v9509
  %9511 = vmatmul.f32.gmra.mxu0 %v9065
  %v9512 = vpop.f32.mrf.mxu0
  %v9513 = vadd.f32 %v9401, %v9512
  %9514 = vmatmul.f32.gmra.mxu0 %v9068
  %v9515 = vpop.f32.mrf.mxu0
  %v9516 = vadd.f32 %v9404, %v9515
  %9517 = vmatmul.f32.gmra.mxu0 %v9071
  %v9518 = vpop.f32.mrf.mxu0
  %v9519 = vadd.f32 %v9407, %v9518
  %9520 = vmatmul.f32.gmra.mxu0 %v9074
  %v9521 = vpop.f32.mrf.mxu0
  %v9522 = vadd.f32 %v9410, %v9521
  %9523 = vmatmul.f32.gmra.mxu0 %v9077
  %v9524 = vpop.f32.mrf.mxu0
  %v9525 = vadd.f32 %v9413, %v9524
  %9526 = vmatmul.f32.gmra.mxu0 %v9080
  %v9527 = vpop.f32.mrf.mxu0
  %v9528 = vadd.f32 %v9416, %v9527
  %9529 = vmatmul.f32.gmra.mxu0 %v9083
  %v9530 = vpop.f32.mrf.mxu0
  %v9531 = vadd.f32 %v9419, %v9530
  %9532 = vmatmul.f32.gmra.mxu0 %v9086
  %v9533 = vpop.f32.mrf.mxu0
  %v9534 = vadd.f32 %v9422, %v9533
  %9535 = vmatmul.f32.gmra.mxu0 %v9089
  %v9536 = vpop.f32.mrf.mxu0
  %v9537 = vadd.f32 %v9425, %v9536
  %9538 = vmatmul.f32.gmra.mxu0 %v9092
  %v9539 = vpop.f32.mrf.mxu0
  %v9540 = vadd.f32 %v9428, %v9539
  %9541 = vmatmul.f32.gmra.mxu0 %v9095
  %v9542 = vpop.f32.mrf.mxu0
  %v9543 = vadd.f32 %v9431, %v9542
  %9544 = vmatmul.f32.gmra.mxu0 %v9098
  %v9545 = vpop.f32.mrf.mxu0
  %v9546 = vadd.f32 %v9434, %v9545
  %9547 = vmatmul.f32.gmra.mxu0 %v9101
  %v9548 = vpop.f32.mrf.mxu0
  %v9549 = vadd.f32 %v9437, %v9548
  %9550 = vmatmul.f32.gmra.mxu0 %v9104
  %v9551 = vpop.f32.mrf.mxu0
  %v9552 = vadd.f32 %v9440, %v9551
  %9553 = vmatmul.f32.gmra.mxu0 %v9107
  %v9554 = vpop.f32.mrf.mxu0
  %v9555 = vadd.f32 %v9443, %v9554
  %9556 = vmatmul.f32.gmra.mxu0 %v9110
  %v9557 = vpop.f32.mrf.mxu0
  %v9558 = vadd.f32 %v9446, %v9557
  %9559 = vmatmul.f32.gmra.mxu0 %v9113
  %v9560 = vpop.f32.mrf.mxu0
  %v9561 = vadd.f32 %v9449, %v9560
  %9562 = vmatmul.f32.gmra.mxu0 %v9116
  %v9563 = vpop.f32.mrf.mxu0
  %v9564 = vadd.f32 %v9452, %v9563
  %9565 = vmatmul.f32.gmra.mxu0 %v9119
  %v9566 = vpop.f32.mrf.mxu0
  %v9567 = vadd.f32 %v9455, %v9566
  %9568 = vmatmul.f32.gmra.mxu0 %v9122
  %v9569 = vpop.f32.mrf.mxu0
  %v9570 = vadd.f32 %v9458, %v9569
  %9571 = vmatmul.f32.gmra.mxu0 %v9125
  %v9572 = vpop.f32.mrf.mxu0
  %v9573 = vadd.f32 %v9461, %v9572
  %9574 = vmatmul.f32.gmra.mxu0 %v9128
  %v9575 = vpop.f32.mrf.mxu0
  %v9576 = vadd.f32 %v9464, %v9575
  %9577 = vmatmul.f32.gmra.mxu0 %v9131
  %v9578 = vpop.f32.mrf.mxu0
  %v9579 = vadd.f32 %v9467, %v9578
  %9580 = vmatmul.f32.gmra.mxu0 %v9134
  %v9581 = vpop.f32.mrf.mxu0
  %v9582 = vadd.f32 %v9470, %v9581
  %9583 = vmatmul.f32.gmra.mxu0 %v9137
  %v9584 = vpop.f32.mrf.mxu0
  %v9585 = vadd.f32 %v9473, %v9584
  %9586 = vmatmul.f32.gmra.mxu0 %v9140
  %v9587 = vpop.f32.mrf.mxu0
  %v9588 = vadd.f32 %v9476, %v9587
  %9589 = vmatmul.f32.gmra.mxu0 %v9143
  %v9590 = vpop.f32.mrf.mxu0
  %v9591 = vadd.f32 %v9479, %v9590
  %9592 = vdwg.mxu0
  %v9593 = vld [vmem:[#allocation2] sm:$0xff]
  %v9594 = vld [vmem:[#allocation2 + $0x8] sm:$0xff]
  %v9595 = vld [vmem:[#allocation2 + $0x10] sm:$0xff]
  %v9596 = vld [vmem:[#allocation2 + $0x18] sm:$0xff]
  %v9597 = vld [vmem:[#allocation2 + $0x20] sm:$0xff]
  %v9598 = vld [vmem:[#allocation2 + $0x28] sm:$0xff]
  %v9599 = vld [vmem:[#allocation2 + $0x30] sm:$0xff]
  %v9600 = vld [vmem:[#allocation2 + $0x38] sm:$0xff]
  %v9601 = vld [vmem:[#allocation2 + $0x40] sm:$0xff]
  %v9602 = vld [vmem:[#allocation2 + $0x48] sm:$0xff]
  %v9603 = vld [vmem:[#allocation2 + $0x50] sm:$0xff]
  %v9604 = vld [vmem:[#allocation2 + $0x58] sm:$0xff]
  %v9605 = vld [vmem:[#allocation2 + $0x60] sm:$0xff]
  %v9606 = vld [vmem:[#allocation2 + $0x68] sm:$0xff]
  %v9607 = vld [vmem:[#allocation2 + $0x70] sm:$0xff]
  %v9608 = vld [vmem:[#allocation2 + $0x78] sm:$0xff]
  %v9609 = vld [vmem:[#allocation2 + $0x80] sm:$0xff]
  %v9610 = vld [vmem:[#allocation2 + $0x88] sm:$0xff]
  %v9611 = vld [vmem:[#allocation2 + $0x90] sm:$0xff]
  %v9612 = vld [vmem:[#allocation2 + $0x98] sm:$0xff]
  %v9613 = vld [vmem:[#allocation2 + $0xa0] sm:$0xff]
  %v9614 = vld [vmem:[#allocation2 + $0xa8] sm:$0xff]
  %v9615 = vld [vmem:[#allocation2 + $0xb0] sm:$0xff]
  %v9616 = vld [vmem:[#allocation2 + $0xb8] sm:$0xff]
  %v9617 = vld [vmem:[#allocation2 + $0xc0] sm:$0xff]
  %v9618 = vld [vmem:[#allocation2 + $0xc8] sm:$0xff]
  %v9619 = vld [vmem:[#allocation2 + $0xd0] sm:$0xff]
  %v9620 = vld [vmem:[#allocation2 + $0xd8] sm:$0xff]
  %v9621 = vld [vmem:[#allocation2 + $0xe0] sm:$0xff]
  %v9622 = vld [vmem:[#allocation2 + $0xe8] sm:$0xff]
  %v9623 = vld [vmem:[#allocation2 + $0xf0] sm:$0xff]
  %v9624 = vld [vmem:[#allocation2 + $0xf8] sm:$0xff]
  %v9625 = vld [vmem:[#allocation2 + $0x100] sm:$0xff]
  %v9626 = vld [vmem:[#allocation2 + $0x108] sm:$0xff]
  %v9627 = vld [vmem:[#allocation2 + $0x110] sm:$0xff]
  %v9628 = vld [vmem:[#allocation2 + $0x118] sm:$0xff]
  %v9629 = vld [vmem:[#allocation2 + $0x120] sm:$0xff]
  %v9630 = vld [vmem:[#allocation2 + $0x128] sm:$0xff]
  %v9631 = vld [vmem:[#allocation2 + $0x130] sm:$0xff]
  %v9632 = vld [vmem:[#allocation2 + $0x138] sm:$0xff]
  %v9633 = vld [vmem:[#allocation2 + $0x140] sm:$0xff]
  %v9634 = vld [vmem:[#allocation2 + $0x148] sm:$0xff]
  %v9635 = vld [vmem:[#allocation2 + $0x150] sm:$0xff]
  %v9636 = vld [vmem:[#allocation2 + $0x158] sm:$0xff]
  %v9637 = vld [vmem:[#allocation2 + $0x160] sm:$0xff]
  %v9638 = vld [vmem:[#allocation2 + $0x168] sm:$0xff]
  %v9639 = vld [vmem:[#allocation2 + $0x170] sm:$0xff]
  %v9640 = vld [vmem:[#allocation2 + $0x178] sm:$0xff]
  %v9641 = vld [vmem:[#allocation2 + $0x180] sm:$0xff]
  %v9642 = vld [vmem:[#allocation2 + $0x188] sm:$0xff]
  %v9643 = vld [vmem:[#allocation2 + $0x190] sm:$0xff]
  %v9644 = vld [vmem:[#allocation2 + $0x198] sm:$0xff]
  %v9645 = vld [vmem:[#allocation2 + $0x1a0] sm:$0xff]
  %v9646 = vld [vmem:[#allocation2 + $0x1a8] sm:$0xff]
  %v9647 = vld [vmem:[#allocation2 + $0x1b0] sm:$0xff]
  %v9648 = vld [vmem:[#allocation2 + $0x1b8] sm:$0xff]
  %v9649 = vld [vmem:[#allocation2 + $0x1c0] sm:$0xff]
  %v9650 = vld [vmem:[#allocation2 + $0x1c8] sm:$0xff]
  %v9651 = vld [vmem:[#allocation2 + $0x1d0] sm:$0xff]
  %v9652 = vld [vmem:[#allocation2 + $0x1d8] sm:$0xff]
  %v9653 = vld [vmem:[#allocation2 + $0x1e0] sm:$0xff]
  %v9654 = vld [vmem:[#allocation2 + $0x1e8] sm:$0xff]
  %v9655 = vadd.f32 %v9593, %v9277
  %v9656 = vadd.f32 %v9594, %v9501
  %v9657 = vadd.f32 %v9595, %v9280
  %v9658 = vadd.f32 %v9596, %v9504
  %v9659 = vadd.f32 %v9597, %v9283
  %v9660 = vadd.f32 %v9598, %v9507
  %v9661 = vadd.f32 %v9599, %v9286
  %v9662 = vadd.f32 %v9600, %v9510
  %v9663 = vadd.f32 %v9601, %v9289
  %v9664 = vadd.f32 %v9602, %v9513
  %v9665 = vadd.f32 %v9603, %v9292
  %v9666 = vadd.f32 %v9604, %v9516
  %v9667 = vadd.f32 %v9605, %v9295
  %v9668 = vadd.f32 %v9606, %v9519
  %v9669 = vadd.f32 %v9607, %v9298
  %v9670 = vadd.f32 %v9608, %v9522
  %v9671 = vadd.f32 %v9609, %v9301
  %v9672 = vadd.f32 %v9610, %v9525
  %v9673 = vadd.f32 %v9611, %v9304
  %v9674 = vadd.f32 %v9612, %v9528
  %v9675 = vadd.f32 %v9613, %v9307
  %v9676 = vadd.f32 %v9614, %v9531
  %v9677 = vadd.f32 %v9615, %v9310
  %v9678 = vadd.f32 %v9616, %v9534
  %v9679 = vadd.f32 %v9617, %v9313
  %v9680 = vadd.f32 %v9618, %v9537
  %v9681 = vadd.f32 %v9619, %v9316
  %v9682 = vadd.f32 %v9620, %v9540
  %v9683 = vadd.f32 %v9621, %v9319
  %v9684 = vadd.f32 %v9622, %v9543
  %v9685 = vadd.f32 %v9623, %v9322
  %v9686 = vadd.f32 %v9624, %v9546
  %v9687 = vadd.f32 %v9625, %v9325
  %v9688 = vadd.f32 %v9626, %v9549
  %v9689 = vadd.f32 %v9627, %v9328
  %v9690 = vadd.f32 %v9628, %v9552
  %v9691 = vadd.f32 %v9629, %v9331
  %v9692 = vadd.f32 %v9630, %v9555
  %v9693 = vadd.f32 %v9631, %v9334
  %v9694 = vadd.f32 %v9632, %v9558
  %v9695 = vadd.f32 %v9633, %v9337
  %v9696 = vadd.f32 %v9634, %v9561
  %v9697 = vadd.f32 %v9635, %v9340
  %v9698 = vadd.f32 %v9636, %v9564
  %v9699 = vadd.f32 %v9637, %v9343
  %v9700 = vadd.f32 %v9638, %v9567
  %v9701 = vadd.f32 %v9639, %v9346
  %v9702 = vadd.f32 %v9640, %v9570
  %v9703 = vadd.f32 %v9641, %v9349
  %v9704 = vadd.f32 %v9642, %v9573
  %v9705 = vadd.f32 %v9643, %v9352
  %v9706 = vadd.f32 %v9644, %v9576
  %v9707 = vadd.f32 %v9645, %v9355
  %v9708 = vadd.f32 %v9646, %v9579
  %v9709 = vadd.f32 %v9647, %v9358
  %v9710 = vadd.f32 %v9648, %v9582
  %v9711 = vadd.f32 %v9649, %v9361
  %v9712 = vadd.f32 %v9650, %v9585
  %v9713 = vadd.f32 %v9651, %v9364
  %v9714 = vadd.f32 %v9652, %v9588
  %v9715 = vadd.f32 %v9653, %v9367
  %v9716 = vadd.f32 %v9654, %v9591
  %9717 = vst [vmem:[#allocation2] sm:$0xff] %v9655
  %9718 = vst.msk [vmem:[#allocation2 + $0x8] sm:$0xff] %vm5571, %v9656
  %9719 = vst [vmem:[#allocation2 + $0x10] sm:$0xff] %v9657
  %9720 = vst.msk [vmem:[#allocation2 + $0x18] sm:$0xff] %vm5571, %v9658
  %9721 = vst [vmem:[#allocation2 + $0x20] sm:$0xff] %v9659
  %9722 = vst.msk [vmem:[#allocation2 + $0x28] sm:$0xff] %vm5571, %v9660
  %9723 = vst [vmem:[#allocation2 + $0x30] sm:$0xff] %v9661
  %9724 = vst.msk [vmem:[#allocation2 + $0x38] sm:$0xff] %vm5571, %v9662
  %9725 = vst [vmem:[#allocation2 + $0x40] sm:$0xff] %v9663
  %9726 = vst.msk [vmem:[#allocation2 + $0x48] sm:$0xff] %vm5571, %v9664
  %9727 = vst [vmem:[#allocation2 + $0x50] sm:$0xff] %v9665
  %9728 = vst.msk [vmem:[#allocation2 + $0x58] sm:$0xff] %vm5571, %v9666
  %9729 = vst [vmem:[#allocation2 + $0x60] sm:$0xff] %v9667
  %9730 = vst.msk [vmem:[#allocation2 + $0x68] sm:$0xff] %vm5571, %v9668
  %9731 = vst [vmem:[#allocation2 + $0x70] sm:$0xff] %v9669
  %9732 = vst.msk [vmem:[#allocation2 + $0x78] sm:$0xff] %vm5571, %v9670
  %9733 = vst [vmem:[#allocation2 + $0x80] sm:$0xff] %v9671
  %9734 = vst.msk [vmem:[#allocation2 + $0x88] sm:$0xff] %vm5571, %v9672
  %9735 = vst [vmem:[#allocation2 + $0x90] sm:$0xff] %v9673
  %9736 = vst.msk [vmem:[#allocation2 + $0x98] sm:$0xff] %vm5571, %v9674
  %9737 = vst [vmem:[#allocation2 + $0xa0] sm:$0xff] %v9675
  %9738 = vst.msk [vmem:[#allocation2 + $0xa8] sm:$0xff] %vm5571, %v9676
  %9739 = vst [vmem:[#allocation2 + $0xb0] sm:$0xff] %v9677
  %9740 = vst.msk [vmem:[#allocation2 + $0xb8] sm:$0xff] %vm5571, %v9678
  %9741 = vst [vmem:[#allocation2 + $0xc0] sm:$0xff] %v9679
  %9742 = vst.msk [vmem:[#allocation2 + $0xc8] sm:$0xff] %vm5571, %v9680
  %9743 = vst [vmem:[#allocation2 + $0xd0] sm:$0xff] %v9681
  %9744 = vst.msk [vmem:[#allocation2 + $0xd8] sm:$0xff] %vm5571, %v9682
  %9745 = vst [vmem:[#allocation2 + $0xe0] sm:$0xff] %v9683
  %9746 = vst.msk [vmem:[#allocation2 + $0xe8] sm:$0xff] %vm5571, %v9684
  %9747 = vst [vmem:[#allocation2 + $0xf0] sm:$0xff] %v9685
  %9748 = vst.msk [vmem:[#allocation2 + $0xf8] sm:$0xff] %vm5571, %v9686
  %9749 = vst [vmem:[#allocation2 + $0x100] sm:$0xff] %v9687
  %9750 = vst.msk [vmem:[#allocation2 + $0x108] sm:$0xff] %vm5571, %v9688
  %9751 = vst [vmem:[#allocation2 + $0x110] sm:$0xff] %v9689
  %9752 = vst.msk [vmem:[#allocation2 + $0x118] sm:$0xff] %vm5571, %v9690
  %9753 = vst [vmem:[#allocation2 + $0x120] sm:$0xff] %v9691
  %9754 = vst.msk [vmem:[#allocation2 + $0x128] sm:$0xff] %vm5571, %v9692
  %9755 = vst [vmem:[#allocation2 + $0x130] sm:$0xff] %v9693
  %9756 = vst.msk [vmem:[#allocation2 + $0x138] sm:$0xff] %vm5571, %v9694
  %9757 = vst [vmem:[#allocation2 + $0x140] sm:$0xff] %v9695
  %9758 = vst.msk [vmem:[#allocation2 + $0x148] sm:$0xff] %vm5571, %v9696
  %9759 = vst [vmem:[#allocation2 + $0x150] sm:$0xff] %v9697
  %9760 = vst.msk [vmem:[#allocation2 + $0x158] sm:$0xff] %vm5571, %v9698
  %9761 = vst [vmem:[#allocation2 + $0x160] sm:$0xff] %v9699
  %9762 = vst.msk [vmem:[#allocation2 + $0x168] sm:$0xff] %vm5571, %v9700
  %9763 = vst [vmem:[#allocation2 + $0x170] sm:$0xff] %v9701
  %9764 = vst.msk [vmem:[#allocation2 + $0x178] sm:$0xff] %vm5571, %v9702
  %9765 = vst [vmem:[#allocation2 + $0x180] sm:$0xff] %v9703
  %9766 = vst.msk [vmem:[#allocation2 + $0x188] sm:$0xff] %vm5571, %v9704
  %9767 = vst [vmem:[#allocation2 + $0x190] sm:$0xff] %v9705
  %9768 = vst.msk [vmem:[#allocation2 + $0x198] sm:$0xff] %vm5571, %v9706
  %9769 = vst [vmem:[#allocation2 + $0x1a0] sm:$0xff] %v9707
  %9770 = vst.msk [vmem:[#allocation2 + $0x1a8] sm:$0xff] %vm5571, %v9708
  %9771 = vst [vmem:[#allocation2 + $0x1b0] sm:$0xff] %v9709
  %9772 = vst.msk [vmem:[#allocation2 + $0x1b8] sm:$0xff] %vm5571, %v9710
  %9773 = vst [vmem:[#allocation2 + $0x1c0] sm:$0xff] %v9711
  %9774 = vst.msk [vmem:[#allocation2 + $0x1c8] sm:$0xff] %vm5571, %v9712
  %9775 = vst [vmem:[#allocation2 + $0x1d0] sm:$0xff] %v9713
  %9776 = vst.msk [vmem:[#allocation2 + $0x1d8] sm:$0xff] %vm5571, %v9714
  %9777 = vst [vmem:[#allocation2 + $0x1e0] sm:$0xff] %v9715
  %9778 = vst.msk [vmem:[#allocation2 + $0x1e8] sm:$0xff] %vm5571, %v9716
  %v9779 = vld [vmem:[#allocation2] sm:$0xff]
  %v9780 = vld [vmem:[#allocation2 + $0x8] sm:$0xff]
  %v9781 = vld [vmem:[#allocation2 + $0x10] sm:$0xff]
  %v9782 = vld [vmem:[#allocation2 + $0x18] sm:$0xff]
  %v9783 = vld [vmem:[#allocation2 + $0x20] sm:$0xff]
  %v9784 = vld [vmem:[#allocation2 + $0x28] sm:$0xff]
  %v9785 = vld [vmem:[#allocation2 + $0x30] sm:$0xff]
  %v9786 = vld [vmem:[#allocation2 + $0x38] sm:$0xff]
  %v9787 = vld [vmem:[#allocation2 + $0x40] sm:$0xff]
  %v9788 = vld [vmem:[#allocation2 + $0x48] sm:$0xff]
  %v9789 = vld [vmem:[#allocation2 + $0x50] sm:$0xff]
  %v9790 = vld [vmem:[#allocation2 + $0x58] sm:$0xff]
  %v9791 = vld [vmem:[#allocation2 + $0x60] sm:$0xff]
  %v9792 = vld [vmem:[#allocation2 + $0x68] sm:$0xff]
  %v9793 = vld [vmem:[#allocation2 + $0x70] sm:$0xff]
  %v9794 = vld [vmem:[#allocation2 + $0x78] sm:$0xff]
  %v9795 = vld [vmem:[#allocation2 + $0x80] sm:$0xff]
  %v9796 = vld [vmem:[#allocation2 + $0x88] sm:$0xff]
  %v9797 = vld [vmem:[#allocation2 + $0x90] sm:$0xff]
  %v9798 = vld [vmem:[#allocation2 + $0x98] sm:$0xff]
  %v9799 = vld [vmem:[#allocation2 + $0xa0] sm:$0xff]
  %v9800 = vld [vmem:[#allocation2 + $0xa8] sm:$0xff]
  %v9801 = vld [vmem:[#allocation2 + $0xb0] sm:$0xff]
  %v9802 = vld [vmem:[#allocation2 + $0xb8] sm:$0xff]
  %v9803 = vld [vmem:[#allocation2 + $0xc0] sm:$0xff]
  %v9804 = vld [vmem:[#allocation2 + $0xc8] sm:$0xff]
  %v9805 = vld [vmem:[#allocation2 + $0xd0] sm:$0xff]
  %v9806 = vld [vmem:[#allocation2 + $0xd8] sm:$0xff]
  %v9807 = vld [vmem:[#allocation2 + $0xe0] sm:$0xff]
  %v9808 = vld [vmem:[#allocation2 + $0xe8] sm:$0xff]
  %v9809 = vld [vmem:[#allocation2 + $0xf0] sm:$0xff]
  %v9810 = vld [vmem:[#allocation2 + $0xf8] sm:$0xff]
  %v9811 = vld [vmem:[#allocation2 + $0x100] sm:$0xff]
  %v9812 = vld [vmem:[#allocation2 + $0x108] sm:$0xff]
  %v9813 = vld [vmem:[#allocation2 + $0x110] sm:$0xff]
  %v9814 = vld [vmem:[#allocation2 + $0x118] sm:$0xff]
  %v9815 = vld [vmem:[#allocation2 + $0x120] sm:$0xff]
  %v9816 = vld [vmem:[#allocation2 + $0x128] sm:$0xff]
  %v9817 = vld [vmem:[#allocation2 + $0x130] sm:$0xff]
  %v9818 = vld [vmem:[#allocation2 + $0x138] sm:$0xff]
  %v9819 = vld [vmem:[#allocation2 + $0x140] sm:$0xff]
  %v9820 = vld [vmem:[#allocation2 + $0x148] sm:$0xff]
  %v9821 = vld [vmem:[#allocation2 + $0x150] sm:$0xff]
  %v9822 = vld [vmem:[#allocation2 + $0x158] sm:$0xff]
  %v9823 = vld [vmem:[#allocation2 + $0x160] sm:$0xff]
  %v9824 = vld [vmem:[#allocation2 + $0x168] sm:$0xff]
  %v9825 = vld [vmem:[#allocation2 + $0x170] sm:$0xff]
  %v9826 = vld [vmem:[#allocation2 + $0x178] sm:$0xff]
  %v9827 = vld [vmem:[#allocation2 + $0x180] sm:$0xff]
  %v9828 = vld [vmem:[#allocation2 + $0x188] sm:$0xff]
  %v9829 = vld [vmem:[#allocation2 + $0x190] sm:$0xff]
  %v9830 = vld [vmem:[#allocation2 + $0x198] sm:$0xff]
  %v9831 = vld [vmem:[#allocation2 + $0x1a0] sm:$0xff]
  %v9832 = vld [vmem:[#allocation2 + $0x1a8] sm:$0xff]
  %v9833 = vld [vmem:[#allocation2 + $0x1b0] sm:$0xff]
  %v9834 = vld [vmem:[#allocation2 + $0x1b8] sm:$0xff]
  %v9835 = vld [vmem:[#allocation2 + $0x1c0] sm:$0xff]
  %v9836 = vld [vmem:[#allocation2 + $0x1c8] sm:$0xff]
  %v9837 = vld [vmem:[#allocation2 + $0x1d0] sm:$0xff]
  %v9838 = vld [vmem:[#allocation2 + $0x1d8] sm:$0xff]
  %v9839 = vld [vmem:[#allocation2 + $0x1e0] sm:$0xff]
  %v9840 = vld [vmem:[#allocation2 + $0x1e8] sm:$0xff]
  %v9841 = vld [vmem:[#allocation2 + $0x1f0] sm:$0xff]
  %v9842 = vld [vmem:[#allocation2 + $0x1f8] sm:$0xff]
  %v9843 = vld [vmem:[%s4] sm:$0x3]
  %v9845 = vperm.slane %v9843, 0
  %v9846 = vperm.slane %v9843, 1
  %v9849 = vadd.f32 %v9779, %v9845
  %v9850 = vadd.f32 %v9780, %v9846
  %v9851 = vadd.f32 %v9781, %v9845
  %v9852 = vadd.f32 %v9782, %v9846
  %v9853 = vadd.f32 %v9783, %v9845
  %v9854 = vadd.f32 %v9784, %v9846
  %v9855 = vadd.f32 %v9785, %v9845
  %v9856 = vadd.f32 %v9786, %v9846
  %v9857 = vadd.f32 %v9787, %v9845
  %v9858 = vadd.f32 %v9788, %v9846
  %v9859 = vadd.f32 %v9789, %v9845
  %v9860 = vadd.f32 %v9790, %v9846
  %v9861 = vadd.f32 %v9791, %v9845
  %v9862 = vadd.f32 %v9792, %v9846
  %v9863 = vadd.f32 %v9793, %v9845
  %v9864 = vadd.f32 %v9794, %v9846
  %v9865 = vadd.f32 %v9795, %v9845
  %v9866 = vadd.f32 %v9796, %v9846
  %v9867 = vadd.f32 %v9797, %v9845
  %v9868 = vadd.f32 %v9798, %v9846
  %v9869 = vadd.f32 %v9799, %v9845
  %v9870 = vadd.f32 %v9800, %v9846
  %v9871 = vadd.f32 %v9801, %v9845
  %v9872 = vadd.f32 %v9802, %v9846
  %v9873 = vadd.f32 %v9803, %v9845
  %v9874 = vadd.f32 %v9804, %v9846
  %v9875 = vadd.f32 %v9805, %v9845
  %v9876 = vadd.f32 %v9806, %v9846
  %v9877 = vadd.f32 %v9807, %v9845
  %v9878 = vadd.f32 %v9808, %v9846
  %v9879 = vadd.f32 %v9809, %v9845
  %v9880 = vadd.f32 %v9810, %v9846
  %v9881 = vadd.f32 %v9811, %v9845
  %v9882 = vadd.f32 %v9812, %v9846
  %v9883 = vadd.f32 %v9813, %v9845
  %v9884 = vadd.f32 %v9814, %v9846
  %v9885 = vadd.f32 %v9815, %v9845
  %v9886 = vadd.f32 %v9816, %v9846
  %v9887 = vadd.f32 %v9817, %v9845
  %v9888 = vadd.f32 %v9818, %v9846
  %v9889 = vadd.f32 %v9819, %v9845
  %v9890 = vadd.f32 %v9820, %v9846
  %v9891 = vadd.f32 %v9821, %v9845
  %v9892 = vadd.f32 %v9822, %v9846
  %v9893 = vadd.f32 %v9823, %v9845
  %v9894 = vadd.f32 %v9824, %v9846
  %v9895 = vadd.f32 %v9825, %v9845
  %v9896 = vadd.f32 %v9826, %v9846
  %v9897 = vadd.f32 %v9827, %v9845
  %v9898 = vadd.f32 %v9828, %v9846
  %v9899 = vadd.f32 %v9829, %v9845
  %v9900 = vadd.f32 %v9830, %v9846
  %v9901 = vadd.f32 %v9831, %v9845
  %v9902 = vadd.f32 %v9832, %v9846
  %v9903 = vadd.f32 %v9833, %v9845
  %v9904 = vadd.f32 %v9834, %v9846
  %v9905 = vadd.f32 %v9835, %v9845
  %v9906 = vadd.f32 %v9836, %v9846
  %v9907 = vadd.f32 %v9837, %v9845
  %v9908 = vadd.f32 %v9838, %v9846
  %v9909 = vadd.f32 %v9839, %v9845
  %v9910 = vadd.f32 %v9840, %v9846
  %v9911 = vadd.f32 %v9841, %v9845
  %v9912 = vadd.f32 %v9842, %v9846
  %v9913 = vmax.f32 %v9849, 0.0
  %v9914 = vmax.f32 %v9850, 0.0
  %v9915 = vmax.f32 %v9851, 0.0
  %v9916 = vmax.f32 %v9852, 0.0
  %v9917 = vmax.f32 %v9853, 0.0
  %v9918 = vmax.f32 %v9854, 0.0
  %v9919 = vmax.f32 %v9855, 0.0
  %v9920 = vmax.f32 %v9856, 0.0
  %v9921 = vmax.f32 %v9857, 0.0
  %v9922 = vmax.f32 %v9858, 0.0
  %v9923 = vmax.f32 %v9859, 0.0
  %v9924 = vmax.f32 %v9860, 0.0
  %v9925 = vmax.f32 %v9861, 0.0
  %v9926 = vmax.f32 %v9862, 0.0
  %v9927 = vmax.f32 %v9863, 0.0
  %v9928 = vmax.f32 %v9864, 0.0
  %v9929 = vmax.f32 %v9865, 0.0
  %v9930 = vmax.f32 %v9866, 0.0
  %v9931 = vmax.f32 %v9867, 0.0
  %v9932 = vmax.f32 %v9868, 0.0
  %v9933 = vmax.f32 %v9869, 0.0
  %v9934 = vmax.f32 %v9870, 0.0
  %v9935 = vmax.f32 %v9871, 0.0
  %v9936 = vmax.f32 %v9872, 0.0
  %v9937 = vmax.f32 %v9873, 0.0
  %v9938 = vmax.f32 %v9874, 0.0
  %v9939 = vmax.f32 %v9875, 0.0
  %v9940 = vmax.f32 %v9876, 0.0
  %v9941 = vmax.f32 %v9877, 0.0
  %v9942 = vmax.f32 %v9878, 0.0
  %v9943 = vmax.f32 %v9879, 0.0
  %v9944 = vmax.f32 %v9880, 0.0
  %v9945 = vmax.f32 %v9881, 0.0
  %v9946 = vmax.f32 %v9882, 0.0
  %v9947 = vmax.f32 %v9883, 0.0
  %v9948 = vmax.f32 %v9884, 0.0
  %v9949 = vmax.f32 %v9885, 0.0
  %v9950 = vmax.f32 %v9886, 0.0
  %v9951 = vmax.f32 %v9887, 0.0
  %v9952 = vmax.f32 %v9888, 0.0
  %v9953 = vmax.f32 %v9889, 0.0
  %v9954 = vmax.f32 %v9890, 0.0
  %v9955 = vmax.f32 %v9891, 0.0
  %v9956 = vmax.f32 %v9892, 0.0
  %v9957 = vmax.f32 %v9893, 0.0
  %v9958 = vmax.f32 %v9894, 0.0
  %v9959 = vmax.f32 %v9895, 0.0
  %v9960 = vmax.f32 %v9896, 0.0
  %v9961 = vmax.f32 %v9897, 0.0
  %v9962 = vmax.f32 %v9898, 0.0
  %v9963 = vmax.f32 %v9899, 0.0
  %v9964 = vmax.f32 %v9900, 0.0
  %v9965 = vmax.f32 %v9901, 0.0
  %v9966 = vmax.f32 %v9902, 0.0
  %v9967 = vmax.f32 %v9903, 0.0
  %v9968 = vmax.f32 %v9904, 0.0
  %v9969 = vmax.f32 %v9905, 0.0
  %v9970 = vmax.f32 %v9906, 0.0
  %v9971 = vmax.f32 %v9907, 0.0
  %v9972 = vmax.f32 %v9908, 0.0
  %v9973 = vmax.f32 %v9909, 0.0
  %v9974 = vmax.f32 %v9910, 0.0
  %v9975 = vmax.f32 %v9911, 0.0
  %v9976 = vmax.f32 %v9912, 0.0
  %9977 = vst [vmem:[#allocation3] sm:$0xff] %v9913
  %9978 = vst.msk [vmem:[#allocation3 + $0x8] sm:$0xff] %vm5571, %v9914
  %9979 = vst [vmem:[#allocation3 + $0x10] sm:$0xff] %v9915
  %9980 = vst.msk [vmem:[#allocation3 + $0x18] sm:$0xff] %vm5571, %v9916
  %9981 = vst [vmem:[#allocation3 + $0x20] sm:$0xff] %v9917
  %9982 = vst.msk [vmem:[#allocation3 + $0x28] sm:$0xff] %vm5571, %v9918
  %9983 = vst [vmem:[#allocation3 + $0x30] sm:$0xff] %v9919
  %9984 = vst.msk [vmem:[#allocation3 + $0x38] sm:$0xff] %vm5571, %v9920
  %9985 = vst [vmem:[#allocation3 + $0x40] sm:$0xff] %v9921
  %9986 = vst.msk [vmem:[#allocation3 + $0x48] sm:$0xff] %vm5571, %v9922
  %9987 = vst [vmem:[#allocation3 + $0x50] sm:$0xff] %v9923
  %9988 = vst.msk [vmem:[#allocation3 + $0x58] sm:$0xff] %vm5571, %v9924
  %9989 = vst [vmem:[#allocation3 + $0x60] sm:$0xff] %v9925
  %9990 = vst.msk [vmem:[#allocation3 + $0x68] sm:$0xff] %vm5571, %v9926
  %9991 = vst [vmem:[#allocation3 + $0x70] sm:$0xff] %v9927
  %9992 = vst.msk [vmem:[#allocation3 + $0x78] sm:$0xff] %vm5571, %v9928
  %9993 = vst [vmem:[#allocation3 + $0x80] sm:$0xff] %v9929
  %9994 = vst.msk [vmem:[#allocation3 + $0x88] sm:$0xff] %vm5571, %v9930
  %9995 = vst [vmem:[#allocation3 + $0x90] sm:$0xff] %v9931
  %9996 = vst.msk [vmem:[#allocation3 + $0x98] sm:$0xff] %vm5571, %v9932
  %9997 = vst [vmem:[#allocation3 + $0xa0] sm:$0xff] %v9933
  %9998 = vst.msk [vmem:[#allocation3 + $0xa8] sm:$0xff] %vm5571, %v9934
  %9999 = vst [vmem:[#allocation3 + $0xb0] sm:$0xff] %v9935
  %10000 = vst.msk [vmem:[#allocation3 + $0xb8] sm:$0xff] %vm5571, %v9936
  %10001 = vst [vmem:[#allocation3 + $0xc0] sm:$0xff] %v9937
  %10002 = vst.msk [vmem:[#allocation3 + $0xc8] sm:$0xff] %vm5571, %v9938
  %10003 = vst [vmem:[#allocation3 + $0xd0] sm:$0xff] %v9939
  %10004 = vst.msk [vmem:[#allocation3 + $0xd8] sm:$0xff] %vm5571, %v9940
  %10005 = vst [vmem:[#allocation3 + $0xe0] sm:$0xff] %v9941
  %10006 = vst.msk [vmem:[#allocation3 + $0xe8] sm:$0xff] %vm5571, %v9942
  %10007 = vst [vmem:[#allocation3 + $0xf0] sm:$0xff] %v9943
  %10008 = vst.msk [vmem:[#allocation3 + $0xf8] sm:$0xff] %vm5571, %v9944
  %10009 = vst [vmem:[#allocation3 + $0x100] sm:$0xff] %v9945
  %10010 = vst.msk [vmem:[#allocation3 + $0x108] sm:$0xff] %vm5571, %v9946
  %10011 = vst [vmem:[#allocation3 + $0x110] sm:$0xff] %v9947
  %10012 = vst.msk [vmem:[#allocation3 + $0x118] sm:$0xff] %vm5571, %v9948
  %10013 = vst [vmem:[#allocation3 + $0x120] sm:$0xff] %v9949
  %10014 = vst.msk [vmem:[#allocation3 + $0x128] sm:$0xff] %vm5571, %v9950
  %10015 = vst [vmem:[#allocation3 + $0x130] sm:$0xff] %v9951
  %10016 = vst.msk [vmem:[#allocation3 + $0x138] sm:$0xff] %vm5571, %v9952
  %10017 = vst [vmem:[#allocation3 + $0x140] sm:$0xff] %v9953
  %10018 = vst.msk [vmem:[#allocation3 + $0x148] sm:$0xff] %vm5571, %v9954
  %10019 = vst [vmem:[#allocation3 + $0x150] sm:$0xff] %v9955
  %10020 = vst.msk [vmem:[#allocation3 + $0x158] sm:$0xff] %vm5571, %v9956
  %10021 = vst [vmem:[#allocation3 + $0x160] sm:$0xff] %v9957
  %10022 = vst.msk [vmem:[#allocation3 + $0x168] sm:$0xff] %vm5571, %v9958
  %10023 = vst [vmem:[#allocation3 + $0x170] sm:$0xff] %v9959
  %10024 = vst.msk [vmem:[#allocation3 + $0x178] sm:$0xff] %vm5571, %v9960
  %10025 = vst [vmem:[#allocation3 + $0x180] sm:$0xff] %v9961
  %10026 = vst.msk [vmem:[#allocation3 + $0x188] sm:$0xff] %vm5571, %v9962
  %10027 = vst [vmem:[#allocation3 + $0x190] sm:$0xff] %v9963
  %10028 = vst.msk [vmem:[#allocation3 + $0x198] sm:$0xff] %vm5571, %v9964
  %10029 = vst [vmem:[#allocation3 + $0x1a0] sm:$0xff] %v9965
  %10030 = vst.msk [vmem:[#allocation3 + $0x1a8] sm:$0xff] %vm5571, %v9966
  %10031 = vst [vmem:[#allocation3 + $0x1b0] sm:$0xff] %v9967
  %10032 = vst.msk [vmem:[#allocation3 + $0x1b8] sm:$0xff] %vm5571, %v9968
  %10033 = vst [vmem:[#allocation3 + $0x1c0] sm:$0xff] %v9969
  %10034 = vst.msk [vmem:[#allocation3 + $0x1c8] sm:$0xff] %vm5571, %v9970
  %10035 = vst [vmem:[#allocation3 + $0x1d0] sm:$0xff] %v9971
  %10036 = vst.msk [vmem:[#allocation3 + $0x1d8] sm:$0xff] %vm5571, %v9972
  %10037 = vst [vmem:[#allocation3 + $0x1e0] sm:$0xff] %v9973
  %10038 = vst.msk [vmem:[#allocation3 + $0x1e8] sm:$0xff] %vm5571, %v9974
  %10039 = vst [vmem:[#allocation3 + $0x1f0] sm:$0xff] %v9975
  %10040 = vst.msk [vmem:[#allocation3 + $0x1f8] sm:$0xff] %vm5571, %v9976
  %v10041 = vld [vmem:[#allocation3] sm:$0xff]
  %v10042 = vld [vmem:[#allocation3 + $0x8] sm:$0xff]
  %v10043 = vld [vmem:[#allocation3 + $0x10] sm:$0xff]
  %v10044 = vld [vmem:[#allocation3 + $0x18] sm:$0xff]
  %v10045 = vld [vmem:[#allocation3 + $0x20] sm:$0xff]
  %v10046 = vld [vmem:[#allocation3 + $0x28] sm:$0xff]
  %v10047 = vld [vmem:[#allocation3 + $0x30] sm:$0xff]
  %v10048 = vld [vmem:[#allocation3 + $0x38] sm:$0xff]
  %v10049 = vld [vmem:[#allocation3 + $0x40] sm:$0xff]
  %v10050 = vld [vmem:[#allocation3 + $0x48] sm:$0xff]
  %v10051 = vld [vmem:[#allocation3 + $0x50] sm:$0xff]
  %v10052 = vld [vmem:[#allocation3 + $0x58] sm:$0xff]
  %v10053 = vld [vmem:[#allocation3 + $0x60] sm:$0xff]
  %v10054 = vld [vmem:[#allocation3 + $0x68] sm:$0xff]
  %v10055 = vld [vmem:[#allocation3 + $0x70] sm:$0xff]
  %v10056 = vld [vmem:[#allocation3 + $0x78] sm:$0xff]
  %v10057 = vld [vmem:[#allocation3 + $0x80] sm:$0xff]
  %v10058 = vld [vmem:[#allocation3 + $0x88] sm:$0xff]
  %v10059 = vld [vmem:[#allocation3 + $0x90] sm:$0xff]
  %v10060 = vld [vmem:[#allocation3 + $0x98] sm:$0xff]
  %v10061 = vld [vmem:[#allocation3 + $0xa0] sm:$0xff]
  %v10062 = vld [vmem:[#allocation3 + $0xa8] sm:$0xff]
  %v10063 = vld [vmem:[#allocation3 + $0xb0] sm:$0xff]
  %v10064 = vld [vmem:[#allocation3 + $0xb8] sm:$0xff]
  %v10065 = vld [vmem:[#allocation3 + $0xc0] sm:$0xff]
  %v10066 = vld [vmem:[#allocation3 + $0xc8] sm:$0xff]
  %v10067 = vld [vmem:[#allocation3 + $0xd0] sm:$0xff]
  %v10068 = vld [vmem:[#allocation3 + $0xd8] sm:$0xff]
  %v10069 = vld [vmem:[#allocation3 + $0xe0] sm:$0xff]
  %v10070 = vld [vmem:[#allocation3 + $0xe8] sm:$0xff]
  %v10071 = vld [vmem:[#allocation3 + $0xf0] sm:$0xff]
  %v10072 = vld [vmem:[#allocation3 + $0xf8] sm:$0xff]
  %v10073 = vld [vmem:[#allocation3 + $0x100] sm:$0xff]
  %v10074 = vld [vmem:[#allocation3 + $0x108] sm:$0xff]
  %v10075 = vld [vmem:[#allocation3 + $0x110] sm:$0xff]
  %v10076 = vld [vmem:[#allocation3 + $0x118] sm:$0xff]
  %v10077 = vld [vmem:[#allocation3 + $0x120] sm:$0xff]
  %v10078 = vld [vmem:[#allocation3 + $0x128] sm:$0xff]
  %v10079 = vld [vmem:[#allocation3 + $0x130] sm:$0xff]
  %v10080 = vld [vmem:[#allocation3 + $0x138] sm:$0xff]
  %v10081 = vld [vmem:[#allocation3 + $0x140] sm:$0xff]
  %v10082 = vld [vmem:[#allocation3 + $0x148] sm:$0xff]
  %v10083 = vld [vmem:[#allocation3 + $0x150] sm:$0xff]
  %v10084 = vld [vmem:[#allocation3 + $0x158] sm:$0xff]
  %v10085 = vld [vmem:[#allocation3 + $0x160] sm:$0xff]
  %v10086 = vld [vmem:[#allocation3 + $0x168] sm:$0xff]
  %v10087 = vld [vmem:[#allocation3 + $0x170] sm:$0xff]
  %v10088 = vld [vmem:[#allocation3 + $0x178] sm:$0xff]
  %v10089 = vld [vmem:[#allocation3 + $0x180] sm:$0xff]
  %v10090 = vld [vmem:[#allocation3 + $0x188] sm:$0xff]
  %v10091 = vld [vmem:[#allocation3 + $0x190] sm:$0xff]
  %v10092 = vld [vmem:[#allocation3 + $0x198] sm:$0xff]
  %v10093 = vld [vmem:[#allocation3 + $0x1a0] sm:$0xff]
  %v10094 = vld [vmem:[#allocation3 + $0x1a8] sm:$0xff]
  %v10095 = vld [vmem:[#allocation3 + $0x1b0] sm:$0xff]
  %v10096 = vld [vmem:[#allocation3 + $0x1b8] sm:$0xff]
  %v10097 = vld [vmem:[#allocation3 + $0x1c0] sm:$0xff]
  %v10098 = vld [vmem:[#allocation3 + $0x1c8] sm:$0xff]
  %v10099 = vld [vmem:[#allocation3 + $0x1d0] sm:$0xff]
  %v10100 = vld [vmem:[#allocation3 + $0x1d8] sm:$0xff]
  %v10101 = vld [vmem:[#allocation3 + $0x1e0] sm:$0xff]
  %v10102 = vld [vmem:[#allocation3 + $0x1e8] sm:$0xff]
  %v10103 = vld [vmem:[#allocation3 + $0x1f0] sm:$0xff]
  %v10104 = vld [vmem:[#allocation3 + $0x1f8] sm:$0xff]
  %v10105 = vld [vmem:[#allocation3] sm:$0xfc]
  %v10106 = vld [vmem:[#allocation3 + $0x8] sm:$0xfc]
  %v10107 = vld [vmem:[#allocation3 + $0x200] sm:$0x3]
  %v10108 = vld [vmem:[#allocation3 + $0x208] sm:$0x3]
  %v10175 = vrot.slane %v10105, 2
  %v10176 = vrot.slane %v10043, 2
  %v10177 = vsel %vm1871, %v10175, %v10176
  %v10178 = vrot.slane %v10106, 2
  %v10179 = vrot.slane %v10044, 2
  %v10180 = vsel %vm1871, %v10178, %v10179
  %v10181 = vrot.slane %v10045, 2
  %v10182 = vsel %vm1871, %v10176, %v10181
  %v10183 = vrot.slane %v10046, 2
  %v10184 = vsel %vm1871, %v10179, %v10183
  %v10185 = vrot.slane %v10047, 2
  %v10186 = vsel %vm1871, %v10181, %v10185
  %v10187 = vrot.slane %v10048, 2
  %v10188 = vsel %vm1871, %v10183, %v10187
  %v10189 = vrot.slane %v10049, 2
  %v10190 = vsel %vm1871, %v10185, %v10189
  %v10191 = vrot.slane %v10050, 2
  %v10192 = vsel %vm1871, %v10187, %v10191
  %v10193 = vrot.slane %v10051, 2
  %v10194 = vsel %vm1871, %v10189, %v10193
  %v10195 = vrot.slane %v10052, 2
  %v10196 = vsel %vm1871, %v10191, %v10195
  %v10197 = vrot.slane %v10053, 2
  %v10198 = vsel %vm1871, %v10193, %v10197
  %v10199 = vrot.slane %v10054, 2
  %v10200 = vsel %vm1871, %v10195, %v10199
  %v10201 = vrot.slane %v10055, 2
  %v10202 = vsel %vm1871, %v10197, %v10201
  %v10203 = vrot.slane %v10056, 2
  %v10204 = vsel %vm1871, %v10199, %v10203
  %v10205 = vrot.slane %v10057, 2
  %v10206 = vsel %vm1871, %v10201, %v10205
  %v10207 = vrot.slane %v10058, 2
  %v10208 = vsel %vm1871, %v10203, %v10207
  %v10209 = vrot.slane %v10059, 2
  %v10210 = vsel %vm1871, %v10205, %v10209
  %v10211 = vrot.slane %v10060, 2
  %v10212 = vsel %vm1871, %v10207, %v10211
  %v10213 = vrot.slane %v10061, 2
  %v10214 = vsel %vm1871, %v10209, %v10213
  %v10215 = vrot.slane %v10062, 2
  %v10216 = vsel %vm1871, %v10211, %v10215
  %v10217 = vrot.slane %v10063, 2
  %v10218 = vsel %vm1871, %v10213, %v10217
  %v10219 = vrot.slane %v10064, 2
  %v10220 = vsel %vm1871, %v10215, %v10219
  %v10221 = vrot.slane %v10065, 2
  %v10222 = vsel %vm1871, %v10217, %v10221
  %v10223 = vrot.slane %v10066, 2
  %v10224 = vsel %vm1871, %v10219, %v10223
  %v10225 = vrot.slane %v10067, 2
  %v10226 = vsel %vm1871, %v10221, %v10225
  %v10227 = vrot.slane %v10068, 2
  %v10228 = vsel %vm1871, %v10223, %v10227
  %v10229 = vrot.slane %v10069, 2
  %v10230 = vsel %vm1871, %v10225, %v10229
  %v10231 = vrot.slane %v10070, 2
  %v10232 = vsel %vm1871, %v10227, %v10231
  %v10233 = vrot.slane %v10071, 2
  %v10234 = vsel %vm1871, %v10229, %v10233
  %v10235 = vrot.slane %v10072, 2
  %v10236 = vsel %vm1871, %v10231, %v10235
  %v10237 = vrot.slane %v10073, 2
  %v10238 = vsel %vm1871, %v10233, %v10237
  %v10239 = vrot.slane %v10074, 2
  %v10240 = vsel %vm1871, %v10235, %v10239
  %v10241 = vrot.slane %v10075, 2
  %v10242 = vsel %vm1871, %v10237, %v10241
  %v10243 = vrot.slane %v10076, 2
  %v10244 = vsel %vm1871, %v10239, %v10243
  %v10245 = vrot.slane %v10077, 2
  %v10246 = vsel %vm1871, %v10241, %v10245
  %v10247 = vrot.slane %v10078, 2
  %v10248 = vsel %vm1871, %v10243, %v10247
  %v10249 = vrot.slane %v10079, 2
  %v10250 = vsel %vm1871, %v10245, %v10249
  %v10251 = vrot.slane %v10080, 2
  %v10252 = vsel %vm1871, %v10247, %v10251
  %v10253 = vrot.slane %v10081, 2
  %v10254 = vsel %vm1871, %v10249, %v10253
  %v10255 = vrot.slane %v10082, 2
  %v10256 = vsel %vm1871, %v10251, %v10255
  %v10257 = vrot.slane %v10083, 2
  %v10258 = vsel %vm1871, %v10253, %v10257
  %v10259 = vrot.slane %v10084, 2
  %v10260 = vsel %vm1871, %v10255, %v10259
  %v10261 = vrot.slane %v10085, 2
  %v10262 = vsel %vm1871, %v10257, %v10261
  %v10263 = vrot.slane %v10086, 2
  %v10264 = vsel %vm1871, %v10259, %v10263
  %v10265 = vrot.slane %v10087, 2
  %v10266 = vsel %vm1871, %v10261, %v10265
  %v10267 = vrot.slane %v10088, 2
  %v10268 = vsel %vm1871, %v10263, %v10267
  %v10269 = vrot.slane %v10089, 2
  %v10270 = vsel %vm1871, %v10265, %v10269
  %v10271 = vrot.slane %v10090, 2
  %v10272 = vsel %vm1871, %v10267, %v10271
  %v10273 = vrot.slane %v10091, 2
  %v10274 = vsel %vm1871, %v10269, %v10273
  %v10275 = vrot.slane %v10092, 2
  %v10276 = vsel %vm1871, %v10271, %v10275
  %v10277 = vrot.slane %v10093, 2
  %v10278 = vsel %vm1871, %v10273, %v10277
  %v10279 = vrot.slane %v10094, 2
  %v10280 = vsel %vm1871, %v10275, %v10279
  %v10281 = vrot.slane %v10095, 2
  %v10282 = vsel %vm1871, %v10277, %v10281
  %v10283 = vrot.slane %v10096, 2
  %v10284 = vsel %vm1871, %v10279, %v10283
  %v10285 = vrot.slane %v10097, 2
  %v10286 = vsel %vm1871, %v10281, %v10285
  %v10287 = vrot.slane %v10098, 2
  %v10288 = vsel %vm1871, %v10283, %v10287
  %v10289 = vrot.slane %v10099, 2
  %v10290 = vsel %vm1871, %v10285, %v10289
  %v10291 = vrot.slane %v10100, 2
  %v10292 = vsel %vm1871, %v10287, %v10291
  %v10293 = vrot.slane %v10101, 2
  %v10294 = vsel %vm1871, %v10289, %v10293
  %v10295 = vrot.slane %v10102, 2
  %v10296 = vsel %vm1871, %v10291, %v10295
  %v10297 = vrot.slane %v10103, 2
  %v10298 = vsel %vm1871, %v10293, %v10297
  %v10299 = vrot.slane %v10104, 2
  %v10300 = vsel %vm1871, %v10295, %v10299
  %v10301 = vrot.slane %v10107, 2
  %v10302 = vsel %vm1871, %v10297, %v10301
  %v10303 = vrot.slane %v10108, 2
  %v10304 = vsel %vm1871, %v10299, %v10303
  %v10369 = vmax.f32 %v10041, %v10177
  %v10370 = vmax.f32 %v10042, %v10180
  %v10371 = vmax.f32 %v10043, %v10182
  %v10372 = vmax.f32 %v10044, %v10184
  %v10373 = vmax.f32 %v10045, %v10186
  %v10374 = vmax.f32 %v10046, %v10188
  %v10375 = vmax.f32 %v10047, %v10190
  %v10376 = vmax.f32 %v10048, %v10192
  %v10377 = vmax.f32 %v10049, %v10194
  %v10378 = vmax.f32 %v10050, %v10196
  %v10379 = vmax.f32 %v10051, %v10198
  %v10380 = vmax.f32 %v10052, %v10200
  %v10381 = vmax.f32 %v10053, %v10202
  %v10382 = vmax.f32 %v10054, %v10204
  %v10383 = vmax.f32 %v10055, %v10206
  %v10384 = vmax.f32 %v10056, %v10208
  %v10385 = vmax.f32 %v10057, %v10210
  %v10386 = vmax.f32 %v10058, %v10212
  %v10387 = vmax.f32 %v10059, %v10214
  %v10388 = vmax.f32 %v10060, %v10216
  %v10389 = vmax.f32 %v10061, %v10218
  %v10390 = vmax.f32 %v10062, %v10220
  %v10391 = vmax.f32 %v10063, %v10222
  %v10392 = vmax.f32 %v10064, %v10224
  %v10393 = vmax.f32 %v10065, %v10226
  %v10394 = vmax.f32 %v10066, %v10228
  %v10395 = vmax.f32 %v10067, %v10230
  %v10396 = vmax.f32 %v10068, %v10232
  %v10397 = vmax.f32 %v10069, %v10234
  %v10398 = vmax.f32 %v10070, %v10236
  %v10399 = vmax.f32 %v10071, %v10238
  %v10400 = vmax.f32 %v10072, %v10240
  %v10401 = vmax.f32 %v10073, %v10242
  %v10402 = vmax.f32 %v10074, %v10244
  %v10403 = vmax.f32 %v10075, %v10246
  %v10404 = vmax.f32 %v10076, %v10248
  %v10405 = vmax.f32 %v10077, %v10250
  %v10406 = vmax.f32 %v10078, %v10252
  %v10407 = vmax.f32 %v10079, %v10254
  %v10408 = vmax.f32 %v10080, %v10256
  %v10409 = vmax.f32 %v10081, %v10258
  %v10410 = vmax.f32 %v10082, %v10260
  %v10411 = vmax.f32 %v10083, %v10262
  %v10412 = vmax.f32 %v10084, %v10264
  %v10413 = vmax.f32 %v10085, %v10266
  %v10414 = vmax.f32 %v10086, %v10268
  %v10415 = vmax.f32 %v10087, %v10270
  %v10416 = vmax.f32 %v10088, %v10272
  %v10417 = vmax.f32 %v10089, %v10274
  %v10418 = vmax.f32 %v10090, %v10276
  %v10419 = vmax.f32 %v10091, %v10278
  %v10420 = vmax.f32 %v10092, %v10280
  %v10421 = vmax.f32 %v10093, %v10282
  %v10422 = vmax.f32 %v10094, %v10284
  %v10423 = vmax.f32 %v10095, %v10286
  %v10424 = vmax.f32 %v10096, %v10288
  %v10425 = vmax.f32 %v10097, %v10290
  %v10426 = vmax.f32 %v10098, %v10292
  %v10427 = vmax.f32 %v10099, %v10294
  %v10428 = vmax.f32 %v10100, %v10296
  %v10429 = vmax.f32 %v10101, %v10298
  %v10430 = vmax.f32 %v10102, %v10300
  %v10431 = vmax.f32 %v10103, %v10302
  %v10432 = vmax.f32 %v10104, %v10304
  %10497 = vrot.lane.b32.xlu0 %v10369, 112
  %v10498 = vpop.permute.xlu0 %10497
  %10499 = vrot.lane.b32.xlu0 %v10370, 112
  %v10500 = vpop.permute.xlu0 %10499
  %10501 = vrot.lane.b32.xlu0 %v10371, 112
  %v10502 = vpop.permute.xlu0 %10501
  %10503 = vrot.lane.b32.xlu0 %v10372, 112
  %v10504 = vpop.permute.xlu0 %10503
  %10505 = vrot.lane.b32.xlu0 %v10373, 112
  %v10506 = vpop.permute.xlu0 %10505
  %10507 = vrot.lane.b32.xlu0 %v10374, 112
  %v10508 = vpop.permute.xlu0 %10507
  %10509 = vrot.lane.b32.xlu0 %v10375, 112
  %v10510 = vpop.permute.xlu0 %10509
  %10511 = vrot.lane.b32.xlu0 %v10376, 112
  %v10512 = vpop.permute.xlu0 %10511
  %10513 = vrot.lane.b32.xlu0 %v10377, 112
  %v10514 = vpop.permute.xlu0 %10513
  %10515 = vrot.lane.b32.xlu0 %v10378, 112
  %v10516 = vpop.permute.xlu0 %10515
  %10517 = vrot.lane.b32.xlu0 %v10379, 112
  %v10518 = vpop.permute.xlu0 %10517
  %10519 = vrot.lane.b32.xlu0 %v10380, 112
  %v10520 = vpop.permute.xlu0 %10519
  %10521 = vrot.lane.b32.xlu0 %v10381, 112
  %v10522 = vpop.permute.xlu0 %10521
  %10523 = vrot.lane.b32.xlu0 %v10382, 112
  %v10524 = vpop.permute.xlu0 %10523
  %10525 = vrot.lane.b32.xlu0 %v10383, 112
  %v10526 = vpop.permute.xlu0 %10525
  %10527 = vrot.lane.b32.xlu0 %v10384, 112
  %v10528 = vpop.permute.xlu0 %10527
  %10529 = vrot.lane.b32.xlu0 %v10385, 112
  %v10530 = vpop.permute.xlu0 %10529
  %10531 = vrot.lane.b32.xlu0 %v10386, 112
  %v10532 = vpop.permute.xlu0 %10531
  %10533 = vrot.lane.b32.xlu0 %v10387, 112
  %v10534 = vpop.permute.xlu0 %10533
  %10535 = vrot.lane.b32.xlu0 %v10388, 112
  %v10536 = vpop.permute.xlu0 %10535
  %10537 = vrot.lane.b32.xlu0 %v10389, 112
  %v10538 = vpop.permute.xlu0 %10537
  %10539 = vrot.lane.b32.xlu0 %v10390, 112
  %v10540 = vpop.permute.xlu0 %10539
  %10541 = vrot.lane.b32.xlu0 %v10391, 112
  %v10542 = vpop.permute.xlu0 %10541
  %10543 = vrot.lane.b32.xlu0 %v10392, 112
  %v10544 = vpop.permute.xlu0 %10543
  %10545 = vrot.lane.b32.xlu0 %v10393, 112
  %v10546 = vpop.permute.xlu0 %10545
  %10547 = vrot.lane.b32.xlu0 %v10394, 112
  %v10548 = vpop.permute.xlu0 %10547
  %10549 = vrot.lane.b32.xlu0 %v10395, 112
  %v10550 = vpop.permute.xlu0 %10549
  %10551 = vrot.lane.b32.xlu0 %v10396, 112
  %v10552 = vpop.permute.xlu0 %10551
  %10553 = vrot.lane.b32.xlu0 %v10397, 112
  %v10554 = vpop.permute.xlu0 %10553
  %10555 = vrot.lane.b32.xlu0 %v10398, 112
  %v10556 = vpop.permute.xlu0 %10555
  %10557 = vrot.lane.b32.xlu0 %v10399, 112
  %v10558 = vpop.permute.xlu0 %10557
  %10559 = vrot.lane.b32.xlu0 %v10400, 112
  %v10560 = vpop.permute.xlu0 %10559
  %10561 = vrot.lane.b32.xlu0 %v10401, 112
  %v10562 = vpop.permute.xlu0 %10561
  %10563 = vrot.lane.b32.xlu0 %v10402, 112
  %v10564 = vpop.permute.xlu0 %10563
  %10565 = vrot.lane.b32.xlu0 %v10403, 112
  %v10566 = vpop.permute.xlu0 %10565
  %10567 = vrot.lane.b32.xlu0 %v10404, 112
  %v10568 = vpop.permute.xlu0 %10567
  %10569 = vrot.lane.b32.xlu0 %v10405, 112
  %v10570 = vpop.permute.xlu0 %10569
  %10571 = vrot.lane.b32.xlu0 %v10406, 112
  %v10572 = vpop.permute.xlu0 %10571
  %10573 = vrot.lane.b32.xlu0 %v10407, 112
  %v10574 = vpop.permute.xlu0 %10573
  %10575 = vrot.lane.b32.xlu0 %v10408, 112
  %v10576 = vpop.permute.xlu0 %10575
  %10577 = vrot.lane.b32.xlu0 %v10409, 112
  %v10578 = vpop.permute.xlu0 %10577
  %10579 = vrot.lane.b32.xlu0 %v10410, 112
  %v10580 = vpop.permute.xlu0 %10579
  %10581 = vrot.lane.b32.xlu0 %v10411, 112
  %v10582 = vpop.permute.xlu0 %10581
  %10583 = vrot.lane.b32.xlu0 %v10412, 112
  %v10584 = vpop.permute.xlu0 %10583
  %10585 = vrot.lane.b32.xlu0 %v10413, 112
  %v10586 = vpop.permute.xlu0 %10585
  %10587 = vrot.lane.b32.xlu0 %v10414, 112
  %v10588 = vpop.permute.xlu0 %10587
  %10589 = vrot.lane.b32.xlu0 %v10415, 112
  %v10590 = vpop.permute.xlu0 %10589
  %10591 = vrot.lane.b32.xlu0 %v10416, 112
  %v10592 = vpop.permute.xlu0 %10591
  %10593 = vrot.lane.b32.xlu0 %v10417, 112
  %v10594 = vpop.permute.xlu0 %10593
  %10595 = vrot.lane.b32.xlu0 %v10418, 112
  %v10596 = vpop.permute.xlu0 %10595
  %10597 = vrot.lane.b32.xlu0 %v10419, 112
  %v10598 = vpop.permute.xlu0 %10597
  %10599 = vrot.lane.b32.xlu0 %v10420, 112
  %v10600 = vpop.permute.xlu0 %10599
  %10601 = vrot.lane.b32.xlu0 %v10421, 112
  %v10602 = vpop.permute.xlu0 %10601
  %10603 = vrot.lane.b32.xlu0 %v10422, 112
  %v10604 = vpop.permute.xlu0 %10603
  %10605 = vrot.lane.b32.xlu0 %v10423, 112
  %v10606 = vpop.permute.xlu0 %10605
  %10607 = vrot.lane.b32.xlu0 %v10424, 112
  %v10608 = vpop.permute.xlu0 %10607
  %10609 = vrot.lane.b32.xlu0 %v10425, 112
  %v10610 = vpop.permute.xlu0 %10609
  %10611 = vrot.lane.b32.xlu0 %v10426, 112
  %v10612 = vpop.permute.xlu0 %10611
  %10613 = vrot.lane.b32.xlu0 %v10427, 112
  %v10614 = vpop.permute.xlu0 %10613
  %10615 = vrot.lane.b32.xlu0 %v10428, 112
  %v10616 = vpop.permute.xlu0 %10615
  %10617 = vrot.lane.b32.xlu0 %v10429, 112
  %v10618 = vpop.permute.xlu0 %10617
  %10619 = vrot.lane.b32.xlu0 %v10430, 112
  %v10620 = vpop.permute.xlu0 %10619
  %10621 = vrot.lane.b32.xlu0 %v10431, 112
  %v10622 = vpop.permute.xlu0 %10621
  %10623 = vrot.lane.b32.xlu0 %v10432, 112
  %v10624 = vpop.permute.xlu0 %10623
  %vm10625 = vcmask 916480
  %v10626 = vsel %vm10625, %v10498, %v10500
  %v10627 = vsel %vm10625, %v10502, %v10504
  %v10628 = vsel %vm10625, %v10506, %v10508
  %v10629 = vsel %vm10625, %v10510, %v10512
  %v10630 = vsel %vm10625, %v10514, %v10516
  %v10631 = vsel %vm10625, %v10518, %v10520
  %v10632 = vsel %vm10625, %v10522, %v10524
  %v10633 = vsel %vm10625, %v10526, %v10528
  %v10634 = vsel %vm10625, %v10530, %v10532
  %v10635 = vsel %vm10625, %v10534, %v10536
  %v10636 = vsel %vm10625, %v10538, %v10540
  %v10637 = vsel %vm10625, %v10542, %v10544
  %v10638 = vsel %vm10625, %v10546, %v10548
  %v10639 = vsel %vm10625, %v10550, %v10552
  %v10640 = vsel %vm10625, %v10554, %v10556
  %v10641 = vsel %vm10625, %v10558, %v10560
  %v10642 = vsel %vm10625, %v10562, %v10564
  %v10643 = vsel %vm10625, %v10566, %v10568
  %v10644 = vsel %vm10625, %v10570, %v10572
  %v10645 = vsel %vm10625, %v10574, %v10576
  %v10646 = vsel %vm10625, %v10578, %v10580
  %v10647 = vsel %vm10625, %v10582, %v10584
  %v10648 = vsel %vm10625, %v10586, %v10588
  %v10649 = vsel %vm10625, %v10590, %v10592
  %v10650 = vsel %vm10625, %v10594, %v10596
  %v10651 = vsel %vm10625, %v10598, %v10600
  %v10652 = vsel %vm10625, %v10602, %v10604
  %v10653 = vsel %vm10625, %v10606, %v10608
  %v10654 = vsel %vm10625, %v10610, %v10612
  %v10655 = vsel %vm10625, %v10614, %v10616
  %v10656 = vsel %vm10625, %v10618, %v10620
  %v10657 = vsel %vm10625, %v10622, %v10624
  %v10722 = vmax.f32 %v10369, %v10626
  %v10723 = vmax.f32 %v10370, %v10500
  %v10724 = vmax.f32 %v10371, %v10627
  %v10725 = vmax.f32 %v10372, %v10504
  %v10726 = vmax.f32 %v10373, %v10628
  %v10727 = vmax.f32 %v10374, %v10508
  %v10728 = vmax.f32 %v10375, %v10629
  %v10729 = vmax.f32 %v10376, %v10512
  %v10730 = vmax.f32 %v10377, %v10630
  %v10731 = vmax.f32 %v10378, %v10516
  %v10732 = vmax.f32 %v10379, %v10631
  %v10733 = vmax.f32 %v10380, %v10520
  %v10734 = vmax.f32 %v10381, %v10632
  %v10735 = vmax.f32 %v10382, %v10524
  %v10736 = vmax.f32 %v10383, %v10633
  %v10737 = vmax.f32 %v10384, %v10528
  %v10738 = vmax.f32 %v10385, %v10634
  %v10739 = vmax.f32 %v10386, %v10532
  %v10740 = vmax.f32 %v10387, %v10635
  %v10741 = vmax.f32 %v10388, %v10536
  %v10742 = vmax.f32 %v10389, %v10636
  %v10743 = vmax.f32 %v10390, %v10540
  %v10744 = vmax.f32 %v10391, %v10637
  %v10745 = vmax.f32 %v10392, %v10544
  %v10746 = vmax.f32 %v10393, %v10638
  %v10747 = vmax.f32 %v10394, %v10548
  %v10748 = vmax.f32 %v10395, %v10639
  %v10749 = vmax.f32 %v10396, %v10552
  %v10750 = vmax.f32 %v10397, %v10640
  %v10751 = vmax.f32 %v10398, %v10556
  %v10752 = vmax.f32 %v10399, %v10641
  %v10753 = vmax.f32 %v10400, %v10560
  %v10754 = vmax.f32 %v10401, %v10642
  %v10755 = vmax.f32 %v10402, %v10564
  %v10756 = vmax.f32 %v10403, %v10643
  %v10757 = vmax.f32 %v10404, %v10568
  %v10758 = vmax.f32 %v10405, %v10644
  %v10759 = vmax.f32 %v10406, %v10572
  %v10760 = vmax.f32 %v10407, %v10645
  %v10761 = vmax.f32 %v10408, %v10576
  %v10762 = vmax.f32 %v10409, %v10646
  %v10763 = vmax.f32 %v10410, %v10580
  %v10764 = vmax.f32 %v10411, %v10647
  %v10765 = vmax.f32 %v10412, %v10584
  %v10766 = vmax.f32 %v10413, %v10648
  %v10767 = vmax.f32 %v10414, %v10588
  %v10768 = vmax.f32 %v10415, %v10649
  %v10769 = vmax.f32 %v10416, %v10592
  %v10770 = vmax.f32 %v10417, %v10650
  %v10771 = vmax.f32 %v10418, %v10596
  %v10772 = vmax.f32 %v10419, %v10651
  %v10773 = vmax.f32 %v10420, %v10600
  %v10774 = vmax.f32 %v10421, %v10652
  %v10775 = vmax.f32 %v10422, %v10604
  %v10776 = vmax.f32 %v10423, %v10653
  %v10777 = vmax.f32 %v10424, %v10608
  %v10778 = vmax.f32 %v10425, %v10654
  %v10779 = vmax.f32 %v10426, %v10612
  %v10780 = vmax.f32 %v10427, %v10655
  %v10781 = vmax.f32 %v10428, %v10616
  %v10782 = vmax.f32 %v10429, %v10656
  %v10783 = vmax.f32 %v10430, %v10620
  %v10784 = vmax.f32 %v10431, %v10657
  %v10785 = vmax.f32 %v10432, %v10624
  %10786 = vst [vmem:[#allocation3] sm:$0xff] %v10722
  %10787 = vst.msk [vmem:[#allocation3 + $0x8] sm:$0xff] %vm5571, %v10723
  %10788 = vst [vmem:[#allocation3 + $0x10] sm:$0xff] %v10724
  %10789 = vst.msk [vmem:[#allocation3 + $0x18] sm:$0xff] %vm5571, %v10725
  %10790 = vst [vmem:[#allocation3 + $0x20] sm:$0xff] %v10726
  %10791 = vst.msk [vmem:[#allocation3 + $0x28] sm:$0xff] %vm5571, %v10727
  %10792 = vst [vmem:[#allocation3 + $0x30] sm:$0xff] %v10728
  %10793 = vst.msk [vmem:[#allocation3 + $0x38] sm:$0xff] %vm5571, %v10729
  %10794 = vst [vmem:[#allocation3 + $0x40] sm:$0xff] %v10730
  %10795 = vst.msk [vmem:[#allocation3 + $0x48] sm:$0xff] %vm5571, %v10731
  %10796 = vst [vmem:[#allocation3 + $0x50] sm:$0xff] %v10732
  %10797 = vst.msk [vmem:[#allocation3 + $0x58] sm:$0xff] %vm5571, %v10733
  %10798 = vst [vmem:[#allocation3 + $0x60] sm:$0xff] %v10734
  %10799 = vst.msk [vmem:[#allocation3 + $0x68] sm:$0xff] %vm5571, %v10735
  %10800 = vst [vmem:[#allocation3 + $0x70] sm:$0xff] %v10736
  %10801 = vst.msk [vmem:[#allocation3 + $0x78] sm:$0xff] %vm5571, %v10737
  %10802 = vst [vmem:[#allocation3 + $0x80] sm:$0xff] %v10738
  %10803 = vst.msk [vmem:[#allocation3 + $0x88] sm:$0xff] %vm5571, %v10739
  %10804 = vst [vmem:[#allocation3 + $0x90] sm:$0xff] %v10740
  %10805 = vst.msk [vmem:[#allocation3 + $0x98] sm:$0xff] %vm5571, %v10741
  %10806 = vst [vmem:[#allocation3 + $0xa0] sm:$0xff] %v10742
  %10807 = vst.msk [vmem:[#allocation3 + $0xa8] sm:$0xff] %vm5571, %v10743
  %10808 = vst [vmem:[#allocation3 + $0xb0] sm:$0xff] %v10744
  %10809 = vst.msk [vmem:[#allocation3 + $0xb8] sm:$0xff] %vm5571, %v10745
  %10810 = vst [vmem:[#allocation3 + $0xc0] sm:$0xff] %v10746
  %10811 = vst.msk [vmem:[#allocation3 + $0xc8] sm:$0xff] %vm5571, %v10747
  %10812 = vst [vmem:[#allocation3 + $0xd0] sm:$0xff] %v10748
  %10813 = vst.msk [vmem:[#allocation3 + $0xd8] sm:$0xff] %vm5571, %v10749
  %10814 = vst [vmem:[#allocation3 + $0xe0] sm:$0xff] %v10750
  %10815 = vst.msk [vmem:[#allocation3 + $0xe8] sm:$0xff] %vm5571, %v10751
  %10816 = vst [vmem:[#allocation3 + $0xf0] sm:$0xff] %v10752
  %10817 = vst.msk [vmem:[#allocation3 + $0xf8] sm:$0xff] %vm5571, %v10753
  %10818 = vst [vmem:[#allocation3 + $0x100] sm:$0xff] %v10754
  %10819 = vst.msk [vmem:[#allocation3 + $0x108] sm:$0xff] %vm5571, %v10755
  %10820 = vst [vmem:[#allocation3 + $0x110] sm:$0xff] %v10756
  %10821 = vst.msk [vmem:[#allocation3 + $0x118] sm:$0xff] %vm5571, %v10757
  %10822 = vst [vmem:[#allocation3 + $0x120] sm:$0xff] %v10758
  %10823 = vst.msk [vmem:[#allocation3 + $0x128] sm:$0xff] %vm5571, %v10759
  %10824 = vst [vmem:[#allocation3 + $0x130] sm:$0xff] %v10760
  %10825 = vst.msk [vmem:[#allocation3 + $0x138] sm:$0xff] %vm5571, %v10761
  %10826 = vst [vmem:[#allocation3 + $0x140] sm:$0xff] %v10762
  %10827 = vst.msk [vmem:[#allocation3 + $0x148] sm:$0xff] %vm5571, %v10763
  %10828 = vst [vmem:[#allocation3 + $0x150] sm:$0xff] %v10764
  %10829 = vst.msk [vmem:[#allocation3 + $0x158] sm:$0xff] %vm5571, %v10765
  %10830 = vst [vmem:[#allocation3 + $0x160] sm:$0xff] %v10766
  %10831 = vst.msk [vmem:[#allocation3 + $0x168] sm:$0xff] %vm5571, %v10767
  %10832 = vst [vmem:[#allocation3 + $0x170] sm:$0xff] %v10768
  %10833 = vst.msk [vmem:[#allocation3 + $0x178] sm:$0xff] %vm5571, %v10769
  %10834 = vst [vmem:[#allocation3 + $0x180] sm:$0xff] %v10770
  %10835 = vst.msk [vmem:[#allocation3 + $0x188] sm:$0xff] %vm5571, %v10771
  %10836 = vst [vmem:[#allocation3 + $0x190] sm:$0xff] %v10772
  %10837 = vst.msk [vmem:[#allocation3 + $0x198] sm:$0xff] %vm5571, %v10773
  %10838 = vst [vmem:[#allocation3 + $0x1a0] sm:$0xff] %v10774
  %10839 = vst.msk [vmem:[#allocation3 + $0x1a8] sm:$0xff] %vm5571, %v10775
  %10840 = vst [vmem:[#allocation3 + $0x1b0] sm:$0xff] %v10776
  %10841 = vst.msk [vmem:[#allocation3 + $0x1b8] sm:$0xff] %vm5571, %v10777
  %10842 = vst [vmem:[#allocation3 + $0x1c0] sm:$0xff] %v10778
  %10843 = vst.msk [vmem:[#allocation3 + $0x1c8] sm:$0xff] %vm5571, %v10779
  %10844 = vst [vmem:[#allocation3 + $0x1d0] sm:$0xff] %v10780
  %10845 = vst.msk [vmem:[#allocation3 + $0x1d8] sm:$0xff] %vm5571, %v10781
  %10846 = vst [vmem:[#allocation3 + $0x1e0] sm:$0xff] %v10782
  %10847 = vst.msk [vmem:[#allocation3 + $0x1e8] sm:$0xff] %vm5571, %v10783
  %10848 = vst [vmem:[#allocation3 + $0x1f0] sm:$0xff] %v10784
  %10849 = vst.msk [vmem:[#allocation3 + $0x1f8] sm:$0xff] %vm5571, %v10785
  %v10850 = vld [vmem:[#allocation3] ss:$8 sm:$0x3]
  %s10851 = scalar_lea.vmem [#allocation3], 4
  %v10852 = vld [vmem:[%s10851] ss:$8 sm:$0x3]
  %s10853 = scalar_lea.vmem [#allocation3], 16
  %v10854 = vld [vmem:[%s10853] ss:$8 sm:$0x3]
  %s10855 = scalar_lea.vmem [#allocation3], 20
  %v10856 = vld [vmem:[%s10855] ss:$8 sm:$0x3]
  %s10857 = scalar_lea.vmem [#allocation3], 32
  %v10858 = vld [vmem:[%s10857] ss:$8 sm:$0x3]
  %v10860 = vperm.slane %v10850, 0
  %v10861 = vperm.slane %v10850, 1
  %v10864 = vperm.slane %v10852, 0
  %v10865 = vperm.slane %v10852, 1
  %10866 = vrot.lane.b32.xlu0 %v10864, 32
  %v10867 = vpop.permute.xlu0 %10866
  %10868 = vrot.lane.b32.xlu0 %v10865, 32
  %v10869 = vpop.permute.xlu0 %10868
  %v10870 = vsel %vm5571, %v10867, %v10869
  %v10874 = vperm.slane %v10854, 0
  %v10875 = vperm.slane %v10854, 1
  %10876 = vrot.lane.b32.xlu0 %v10874, 64
  %v10877 = vpop.permute.xlu0 %10876
  %10878 = vrot.lane.b32.xlu0 %v10875, 64
  %v10879 = vpop.permute.xlu0 %10878
  %vm10880 = vcmask 523264
  %v10881 = vsel %vm10880, %v10877, %v10879
  %v10885 = vperm.slane %v10856, 0
  %v10886 = vperm.slane %v10856, 1
  %10887 = vrot.lane.b32.xlu0 %v10885, 96
  %v10888 = vpop.permute.xlu0 %10887
  %10889 = vrot.lane.b32.xlu0 %v10886, 96
  %v10890 = vpop.permute.xlu0 %10889
  %v10891 = vsel %vm149, %v10888, %v10890
  %v10894 = vperm.slane %v10858, 0
  %v10895 = vperm.slane %v10858, 1
  %v10896 = vsel %vm5571, %v10861, %v10867
  %v10897 = vsel %vm10880, %v10870, %v10877
  %v10898 = vsel %vm149, %v10881, %v10888
  %v10902 = vrot.slane %v10896, 7
  %v10903 = vrot.slane %v10897, 6
  %v10904 = vrot.slane %v10898, 5
  %v10905 = vrot.slane %v10891, 4
  %v10906 = vrot.slane %v10894, 3
  %v10907 = vrot.slane %v10895, 2
  %vm10908 = vcmask 1040384
  %v10909 = vsel %vm10908, %v10860, %v10902
  %vm10910 = vcmask 1042434
  %v10911 = vsel %vm10910, %v10903, %v10904
  %v10912 = vsel %vm8622, %v10909, %v10911
  %vm10913 = vcmask 1044484
  %v10914 = vsel %vm10913, %v10905, %v10906
  %vm10915 = vcmask 1045508
  %v10916 = vsel %vm10915, %v10914, %v10907
  %v10917 = vsel %vm3525, %v10912, %v10916
  %v10919 = vlaneseq
  %vm10920 = vcmp.ge.s32.totalorder %v10919, 0
  %vm10921 = vcmp.lt.s32.totalorder %v10919, 800
  %vm10922 = vmand %vm10920, %vm10921
  %10923 = vst.msk [vmem:[#allocation5] ss:$8 sm:$0xf] %vm10922, %v10917
  %10924 = vst.msk [vmem:[#allocation5] ss:$8 sm:$0x70] %vm10922, %v10917
  %s10925 = scalar_lea.vmem [#allocation3], 64
  %v10926 = vld [vmem:[%s10925] ss:$8 sm:$0x3]
  %s10927 = scalar_lea.vmem [#allocation3], 68
  %v10928 = vld [vmem:[%s10927] ss:$8 sm:$0x3]
  %s10929 = scalar_lea.vmem [#allocation3], 80
  %v10930 = vld [vmem:[%s10929] ss:$8 sm:$0x3]
  %s10931 = scalar_lea.vmem [#allocation3], 84
  %v10932 = vld [vmem:[%s10931] ss:$8 sm:$0x3]
  %s10933 = scalar_lea.vmem [#allocation3], 96
  %v10934 = vld [vmem:[%s10933] ss:$8 sm:$0x3]
  %v10936 = vperm.slane %v10926, 0
  %v10937 = vperm.slane %v10926, 1
  %v10940 = vperm.slane %v10928, 0
  %v10941 = vperm.slane %v10928, 1
  %10942 = vrot.lane.b32.xlu0 %v10940, 32
  %v10943 = vpop.permute.xlu0 %10942
  %10944 = vrot.lane.b32.xlu0 %v10941, 32
  %v10945 = vpop.permute.xlu0 %10944
  %v10946 = vsel %vm5571, %v10943, %v10945
  %v10950 = vperm.slane %v10930, 0
  %v10951 = vperm.slane %v10930, 1
  %10952 = vrot.lane.b32.xlu0 %v10950, 64
  %v10953 = vpop.permute.xlu0 %10952
  %10954 = vrot.lane.b32.xlu0 %v10951, 64
  %v10955 = vpop.permute.xlu0 %10954
  %v10956 = vsel %vm10880, %v10953, %v10955
  %v10960 = vperm.slane %v10932, 0
  %v10961 = vperm.slane %v10932, 1
  %10962 = vrot.lane.b32.xlu0 %v10960, 96
  %v10963 = vpop.permute.xlu0 %10962
  %10964 = vrot.lane.b32.xlu0 %v10961, 96
  %v10965 = vpop.permute.xlu0 %10964
  %v10966 = vsel %vm149, %v10963, %v10965
  %v10969 = vperm.slane %v10934, 0
  %v10970 = vperm.slane %v10934, 1
  %v10971 = vsel %vm5571, %v10937, %v10943
  %v10972 = vsel %vm10880, %v10946, %v10953
  %v10973 = vsel %vm149, %v10956, %v10963
  %v10977 = vrot.slane %v10971, 7
  %v10978 = vrot.slane %v10972, 6
  %v10979 = vrot.slane %v10973, 5
  %v10980 = vrot.slane %v10966, 4
  %v10981 = vrot.slane %v10969, 3
  %v10982 = vrot.slane %v10970, 2
  %v10983 = vsel %vm10908, %v10936, %v10977
  %v10984 = vsel %vm10910, %v10978, %v10979
  %v10985 = vsel %vm8622, %v10983, %v10984
  %v10986 = vsel %vm10913, %v10980, %v10981
  %v10987 = vsel %vm10915, %v10986, %v10982
  %v10988 = vsel %vm3525, %v10985, %v10987
  %s10990 = scalar_lea.vmem [#allocation5], 1
  %10991 = vst.msk [vmem:[%s10990] ss:$8 sm:$0xf] %vm10922, %v10988
  %10992 = vst.msk [vmem:[%s10990] ss:$8 sm:$0x70] %vm10922, %v10988
  %s10993 = scalar_lea.vmem [#allocation3], 128
  %v10994 = vld [vmem:[%s10993] ss:$8 sm:$0x3]
  %s10995 = scalar_lea.vmem [#allocation3], 132
  %v10996 = vld [vmem:[%s10995] ss:$8 sm:$0x3]
  %s10997 = scalar_lea.vmem [#allocation3], 144
  %v10998 = vld [vmem:[%s10997] ss:$8 sm:$0x3]
  %s10999 = scalar_lea.vmem [#allocation3], 148
  %v11000 = vld [vmem:[%s10999] ss:$8 sm:$0x3]
  %s11001 = scalar_lea.vmem [#allocation3], 160
  %v11002 = vld [vmem:[%s11001] ss:$8 sm:$0x3]
  %v11004 = vperm.slane %v10994, 0
  %v11005 = vperm.slane %v10994, 1
  %v11008 = vperm.slane %v10996, 0
  %v11009 = vperm.slane %v10996, 1
  %11010 = vrot.lane.b32.xlu0 %v11008, 32
  %v11011 = vpop.permute.xlu0 %11010
  %11012 = vrot.lane.b32.xlu0 %v11009, 32
  %v11013 = vpop.permute.xlu0 %11012
  %v11014 = vsel %vm5571, %v11011, %v11013
  %v11018 = vperm.slane %v10998, 0
  %v11019 = vperm.slane %v10998, 1
  %11020 = vrot.lane.b32.xlu0 %v11018, 64
  %v11021 = vpop.permute.xlu0 %11020
  %11022 = vrot.lane.b32.xlu0 %v11019, 64
  %v11023 = vpop.permute.xlu0 %11022
  %v11024 = vsel %vm10880, %v11021, %v11023
  %v11028 = vperm.slane %v11000, 0
  %v11029 = vperm.slane %v11000, 1
  %11030 = vrot.lane.b32.xlu0 %v11028, 96
  %v11031 = vpop.permute.xlu0 %11030
  %11032 = vrot.lane.b32.xlu0 %v11029, 96
  %v11033 = vpop.permute.xlu0 %11032
  %v11034 = vsel %vm149, %v11031, %v11033
  %v11037 = vperm.slane %v11002, 0
  %v11038 = vperm.slane %v11002, 1
  %v11039 = vsel %vm5571, %v11005, %v11011
  %v11040 = vsel %vm10880, %v11014, %v11021
  %v11041 = vsel %vm149, %v11024, %v11031
  %v11045 = vrot.slane %v11039, 7
  %v11046 = vrot.slane %v11040, 6
  %v11047 = vrot.slane %v11041, 5
  %v11048 = vrot.slane %v11034, 4
  %v11049 = vrot.slane %v11037, 3
  %v11050 = vrot.slane %v11038, 2
  %v11051 = vsel %vm10908, %v11004, %v11045
  %v11052 = vsel %vm10910, %v11046, %v11047
  %v11053 = vsel %vm8622, %v11051, %v11052
  %v11054 = vsel %vm10913, %v11048, %v11049
  %v11055 = vsel %vm10915, %v11054, %v11050
  %v11056 = vsel %vm3525, %v11053, %v11055
  %s11058 = scalar_lea.vmem [#allocation5], 2
  %11059 = vst.msk [vmem:[%s11058] ss:$8 sm:$0xf] %vm10922, %v11056
  %11060 = vst.msk [vmem:[%s11058] ss:$8 sm:$0x70] %vm10922, %v11056
  %s11061 = scalar_lea.vmem [#allocation3], 192
  %v11062 = vld [vmem:[%s11061] ss:$8 sm:$0x3]
  %s11063 = scalar_lea.vmem [#allocation3], 196
  %v11064 = vld [vmem:[%s11063] ss:$8 sm:$0x3]
  %s11065 = scalar_lea.vmem [#allocation3], 208
  %v11066 = vld [vmem:[%s11065] ss:$8 sm:$0x3]
  %s11067 = scalar_lea.vmem [#allocation3], 212
  %v11068 = vld [vmem:[%s11067] ss:$8 sm:$0x3]
  %s11069 = scalar_lea.vmem [#allocation3], 224
  %v11070 = vld [vmem:[%s11069] ss:$8 sm:$0x3]
  %v11072 = vperm.slane %v11062, 0
  %v11073 = vperm.slane %v11062, 1
  %v11076 = vperm.slane %v11064, 0
  %v11077 = vperm.slane %v11064, 1
  %11078 = vrot.lane.b32.xlu0 %v11076, 32
  %v11079 = vpop.permute.xlu0 %11078
  %11080 = vrot.lane.b32.xlu0 %v11077, 32
  %v11081 = vpop.permute.xlu0 %11080
  %v11082 = vsel %vm5571, %v11079, %v11081
  %v11086 = vperm.slane %v11066, 0
  %v11087 = vperm.slane %v11066, 1
  %11088 = vrot.lane.b32.xlu0 %v11086, 64
  %v11089 = vpop.permute.xlu0 %11088
  %11090 = vrot.lane.b32.xlu0 %v11087, 64
  %v11091 = vpop.permute.xlu0 %11090
  %v11092 = vsel %vm10880, %v11089, %v11091
  %v11096 = vperm.slane %v11068, 0
  %v11097 = vperm.slane %v11068, 1
  %11098 = vrot.lane.b32.xlu0 %v11096, 96
  %v11099 = vpop.permute.xlu0 %11098
  %11100 = vrot.lane.b32.xlu0 %v11097, 96
  %v11101 = vpop.permute.xlu0 %11100
  %v11102 = vsel %vm149, %v11099, %v11101
  %v11105 = vperm.slane %v11070, 0
  %v11106 = vperm.slane %v11070, 1
  %v11107 = vsel %vm5571, %v11073, %v11079
  %v11108 = vsel %vm10880, %v11082, %v11089
  %v11109 = vsel %vm149, %v11092, %v11099
  %v11113 = vrot.slane %v11107, 7
  %v11114 = vrot.slane %v11108, 6
  %v11115 = vrot.slane %v11109, 5
  %v11116 = vrot.slane %v11102, 4
  %v11117 = vrot.slane %v11105, 3
  %v11118 = vrot.slane %v11106, 2
  %v11119 = vsel %vm10908, %v11072, %v11113
  %v11120 = vsel %vm10910, %v11114, %v11115
  %v11121 = vsel %vm8622, %v11119, %v11120
  %v11122 = vsel %vm10913, %v11116, %v11117
  %v11123 = vsel %vm10915, %v11122, %v11118
  %v11124 = vsel %vm3525, %v11121, %v11123
  %s11126 = scalar_lea.vmem [#allocation5], 3
  %11127 = vst.msk [vmem:[%s11126] ss:$8 sm:$0xf] %vm10922, %v11124
  %11128 = vst.msk [vmem:[%s11126] ss:$8 sm:$0x70] %vm10922, %v11124
  %s11129 = scalar_lea.vmem [#allocation3], 256
  %v11130 = vld [vmem:[%s11129] ss:$8 sm:$0x3]
  %s11131 = scalar_lea.vmem [#allocation3], 260
  %v11132 = vld [vmem:[%s11131] ss:$8 sm:$0x3]
  %s11133 = scalar_lea.vmem [#allocation3], 272
  %v11134 = vld [vmem:[%s11133] ss:$8 sm:$0x3]
  %s11135 = scalar_lea.vmem [#allocation3], 276
  %v11136 = vld [vmem:[%s11135] ss:$8 sm:$0x3]
  %s11137 = scalar_lea.vmem [#allocation3], 288
  %v11138 = vld [vmem:[%s11137] ss:$8 sm:$0x3]
  %v11140 = vperm.slane %v11130, 0
  %v11141 = vperm.slane %v11130, 1
  %v11144 = vperm.slane %v11132, 0
  %v11145 = vperm.slane %v11132, 1
  %11146 = vrot.lane.b32.xlu0 %v11144, 32
  %v11147 = vpop.permute.xlu0 %11146
  %11148 = vrot.lane.b32.xlu0 %v11145, 32
  %v11149 = vpop.permute.xlu0 %11148
  %v11150 = vsel %vm5571, %v11147, %v11149
  %v11154 = vperm.slane %v11134, 0
  %v11155 = vperm.slane %v11134, 1
  %11156 = vrot.lane.b32.xlu0 %v11154, 64
  %v11157 = vpop.permute.xlu0 %11156
  %11158 = vrot.lane.b32.xlu0 %v11155, 64
  %v11159 = vpop.permute.xlu0 %11158
  %v11160 = vsel %vm10880, %v11157, %v11159
  %v11164 = vperm.slane %v11136, 0
  %v11165 = vperm.slane %v11136, 1
  %11166 = vrot.lane.b32.xlu0 %v11164, 96
  %v11167 = vpop.permute.xlu0 %11166
  %11168 = vrot.lane.b32.xlu0 %v11165, 96
  %v11169 = vpop.permute.xlu0 %11168
  %v11170 = vsel %vm149, %v11167, %v11169
  %v11173 = vperm.slane %v11138, 0
  %v11174 = vperm.slane %v11138, 1
  %v11175 = vsel %vm5571, %v11141, %v11147
  %v11176 = vsel %vm10880, %v11150, %v11157
  %v11177 = vsel %vm149, %v11160, %v11167
  %v11181 = vrot.slane %v11175, 7
  %v11182 = vrot.slane %v11176, 6
  %v11183 = vrot.slane %v11177, 5
  %v11184 = vrot.slane %v11170, 4
  %v11185 = vrot.slane %v11173, 3
  %v11186 = vrot.slane %v11174, 2
  %v11187 = vsel %vm10908, %v11140, %v11181
  %v11188 = vsel %vm10910, %v11182, %v11183
  %v11189 = vsel %vm8622, %v11187, %v11188
  %v11190 = vsel %vm10913, %v11184, %v11185
  %v11191 = vsel %vm10915, %v11190, %v11186
  %v11192 = vsel %vm3525, %v11189, %v11191
  %s11194 = scalar_lea.vmem [#allocation5], 4
  %11195 = vst.msk [vmem:[%s11194] ss:$8 sm:$0xf] %vm10922, %v11192
  %11196 = vst.msk [vmem:[%s11194] ss:$8 sm:$0x70] %vm10922, %v11192
  %s11197 = scalar_lea.vmem [#allocation3], 320
  %v11198 = vld [vmem:[%s11197] ss:$8 sm:$0x3]
  %s11199 = scalar_lea.vmem [#allocation3], 324
  %v11200 = vld [vmem:[%s11199] ss:$8 sm:$0x3]
  %s11201 = scalar_lea.vmem [#allocation3], 336
  %v11202 = vld [vmem:[%s11201] ss:$8 sm:$0x3]
  %s11203 = scalar_lea.vmem [#allocation3], 340
  %v11204 = vld [vmem:[%s11203] ss:$8 sm:$0x3]
  %s11205 = scalar_lea.vmem [#allocation3], 352
  %v11206 = vld [vmem:[%s11205] ss:$8 sm:$0x3]
  %v11208 = vperm.slane %v11198, 0
  %v11209 = vperm.slane %v11198, 1
  %v11212 = vperm.slane %v11200, 0
  %v11213 = vperm.slane %v11200, 1
  %11214 = vrot.lane.b32.xlu0 %v11212, 32
  %v11215 = vpop.permute.xlu0 %11214
  %11216 = vrot.lane.b32.xlu0 %v11213, 32
  %v11217 = vpop.permute.xlu0 %11216
  %v11218 = vsel %vm5571, %v11215, %v11217
  %v11222 = vperm.slane %v11202, 0
  %v11223 = vperm.slane %v11202, 1
  %11224 = vrot.lane.b32.xlu0 %v11222, 64
  %v11225 = vpop.permute.xlu0 %11224
  %11226 = vrot.lane.b32.xlu0 %v11223, 64
  %v11227 = vpop.permute.xlu0 %11226
  %v11228 = vsel %vm10880, %v11225, %v11227
  %v11232 = vperm.slane %v11204, 0
  %v11233 = vperm.slane %v11204, 1
  %11234 = vrot.lane.b32.xlu0 %v11232, 96
  %v11235 = vpop.permute.xlu0 %11234
  %11236 = vrot.lane.b32.xlu0 %v11233, 96
  %v11237 = vpop.permute.xlu0 %11236
  %v11238 = vsel %vm149, %v11235, %v11237
  %v11241 = vperm.slane %v11206, 0
  %v11242 = vperm.slane %v11206, 1
  %v11243 = vsel %vm5571, %v11209, %v11215
  %v11244 = vsel %vm10880, %v11218, %v11225
  %v11245 = vsel %vm149, %v11228, %v11235
  %v11249 = vrot.slane %v11243, 7
  %v11250 = vrot.slane %v11244, 6
  %v11251 = vrot.slane %v11245, 5
  %v11252 = vrot.slane %v11238, 4
  %v11253 = vrot.slane %v11241, 3
  %v11254 = vrot.slane %v11242, 2
  %v11255 = vsel %vm10908, %v11208, %v11249
  %v11256 = vsel %vm10910, %v11250, %v11251
  %v11257 = vsel %vm8622, %v11255, %v11256
  %v11258 = vsel %vm10913, %v11252, %v11253
  %v11259 = vsel %vm10915, %v11258, %v11254
  %v11260 = vsel %vm3525, %v11257, %v11259
  %s11262 = scalar_lea.vmem [#allocation5], 5
  %11263 = vst.msk [vmem:[%s11262] ss:$8 sm:$0xf] %vm10922, %v11260
  %11264 = vst.msk [vmem:[%s11262] ss:$8 sm:$0x70] %vm10922, %v11260
  %s11265 = scalar_lea.vmem [#allocation3], 384
  %v11266 = vld [vmem:[%s11265] ss:$8 sm:$0x3]
  %s11267 = scalar_lea.vmem [#allocation3], 388
  %v11268 = vld [vmem:[%s11267] ss:$8 sm:$0x3]
  %s11269 = scalar_lea.vmem [#allocation3], 400
  %v11270 = vld [vmem:[%s11269] ss:$8 sm:$0x3]
  %s11271 = scalar_lea.vmem [#allocation3], 404
  %v11272 = vld [vmem:[%s11271] ss:$8 sm:$0x3]
  %s11273 = scalar_lea.vmem [#allocation3], 416
  %v11274 = vld [vmem:[%s11273] ss:$8 sm:$0x3]
  %v11276 = vperm.slane %v11266, 0
  %v11277 = vperm.slane %v11266, 1
  %v11280 = vperm.slane %v11268, 0
  %v11281 = vperm.slane %v11268, 1
  %11282 = vrot.lane.b32.xlu0 %v11280, 32
  %v11283 = vpop.permute.xlu0 %11282
  %11284 = vrot.lane.b32.xlu0 %v11281, 32
  %v11285 = vpop.permute.xlu0 %11284
  %v11286 = vsel %vm5571, %v11283, %v11285
  %v11290 = vperm.slane %v11270, 0
  %v11291 = vperm.slane %v11270, 1
  %11292 = vrot.lane.b32.xlu0 %v11290, 64
  %v11293 = vpop.permute.xlu0 %11292
  %11294 = vrot.lane.b32.xlu0 %v11291, 64
  %v11295 = vpop.permute.xlu0 %11294
  %v11296 = vsel %vm10880, %v11293, %v11295
  %v11300 = vperm.slane %v11272, 0
  %v11301 = vperm.slane %v11272, 1
  %11302 = vrot.lane.b32.xlu0 %v11300, 96
  %v11303 = vpop.permute.xlu0 %11302
  %11304 = vrot.lane.b32.xlu0 %v11301, 96
  %v11305 = vpop.permute.xlu0 %11304
  %v11306 = vsel %vm149, %v11303, %v11305
  %v11309 = vperm.slane %v11274, 0
  %v11310 = vperm.slane %v11274, 1
  %v11311 = vsel %vm5571, %v11277, %v11283
  %v11312 = vsel %vm10880, %v11286, %v11293
  %v11313 = vsel %vm149, %v11296, %v11303
  %v11317 = vrot.slane %v11311, 7
  %v11318 = vrot.slane %v11312, 6
  %v11319 = vrot.slane %v11313, 5
  %v11320 = vrot.slane %v11306, 4
  %v11321 = vrot.slane %v11309, 3
  %v11322 = vrot.slane %v11310, 2
  %v11323 = vsel %vm10908, %v11276, %v11317
  %v11324 = vsel %vm10910, %v11318, %v11319
  %v11325 = vsel %vm8622, %v11323, %v11324
  %v11326 = vsel %vm10913, %v11320, %v11321
  %v11327 = vsel %vm10915, %v11326, %v11322
  %v11328 = vsel %vm3525, %v11325, %v11327
  %s11330 = scalar_lea.vmem [#allocation5], 6
  %11331 = vst.msk [vmem:[%s11330] ss:$8 sm:$0xf] %vm10922, %v11328
  %11332 = vst.msk [vmem:[%s11330] ss:$8 sm:$0x70] %vm10922, %v11328
  %s11333 = scalar_lea.vmem [#allocation3], 448
  %v11334 = vld [vmem:[%s11333] ss:$8 sm:$0x3]
  %s11335 = scalar_lea.vmem [#allocation3], 452
  %v11336 = vld [vmem:[%s11335] ss:$8 sm:$0x3]
  %s11337 = scalar_lea.vmem [#allocation3], 464
  %v11338 = vld [vmem:[%s11337] ss:$8 sm:$0x3]
  %s11339 = scalar_lea.vmem [#allocation3], 468
  %v11340 = vld [vmem:[%s11339] ss:$8 sm:$0x3]
  %s11341 = scalar_lea.vmem [#allocation3], 480
  %v11342 = vld [vmem:[%s11341] ss:$8 sm:$0x3]
  %v11344 = vperm.slane %v11334, 0
  %v11345 = vperm.slane %v11334, 1
  %v11348 = vperm.slane %v11336, 0
  %v11349 = vperm.slane %v11336, 1
  %11350 = vrot.lane.b32.xlu0 %v11348, 32
  %v11351 = vpop.permute.xlu0 %11350
  %11352 = vrot.lane.b32.xlu0 %v11349, 32
  %v11353 = vpop.permute.xlu0 %11352
  %v11354 = vsel %vm5571, %v11351, %v11353
  %v11358 = vperm.slane %v11338, 0
  %v11359 = vperm.slane %v11338, 1
  %11360 = vrot.lane.b32.xlu0 %v11358, 64
  %v11361 = vpop.permute.xlu0 %11360
  %11362 = vrot.lane.b32.xlu0 %v11359, 64
  %v11363 = vpop.permute.xlu0 %11362
  %v11364 = vsel %vm10880, %v11361, %v11363
  %v11368 = vperm.slane %v11340, 0
  %v11369 = vperm.slane %v11340, 1
  %11370 = vrot.lane.b32.xlu0 %v11368, 96
  %v11371 = vpop.permute.xlu0 %11370
  %11372 = vrot.lane.b32.xlu0 %v11369, 96
  %v11373 = vpop.permute.xlu0 %11372
  %v11374 = vsel %vm149, %v11371, %v11373
  %v11377 = vperm.slane %v11342, 0
  %v11378 = vperm.slane %v11342, 1
  %v11379 = vsel %vm5571, %v11345, %v11351
  %v11380 = vsel %vm10880, %v11354, %v11361
  %v11381 = vsel %vm149, %v11364, %v11371
  %v11385 = vrot.slane %v11379, 7
  %v11386 = vrot.slane %v11380, 6
  %v11387 = vrot.slane %v11381, 5
  %v11388 = vrot.slane %v11374, 4
  %v11389 = vrot.slane %v11377, 3
  %v11390 = vrot.slane %v11378, 2
  %v11391 = vsel %vm10908, %v11344, %v11385
  %v11392 = vsel %vm10910, %v11386, %v11387
  %v11393 = vsel %vm8622, %v11391, %v11392
  %v11394 = vsel %vm10913, %v11388, %v11389
  %v11395 = vsel %vm10915, %v11394, %v11390
  %v11396 = vsel %vm3525, %v11393, %v11395
  %s11398 = scalar_lea.vmem [#allocation5], 7
  %11399 = vst.msk [vmem:[%s11398] ss:$8 sm:$0xf] %vm10922, %v11396
  %11400 = vst.msk [vmem:[%s11398] ss:$8 sm:$0x70] %vm10922, %v11396
  %v11401 = vld [vmem:[#allocation5] sm:$0xff]
  %v11402 = vld [vmem:[#allocation5 + $0x8] sm:$0xff]
  %v11403 = vld [vmem:[#allocation5 + $0x10] sm:$0xff]
  %v11404 = vld [vmem:[#allocation5 + $0x18] sm:$0xff]
  %v11405 = vld [vmem:[#allocation5 + $0x20] sm:$0xff]
  %v11406 = vld [vmem:[#allocation5 + $0x28] sm:$0xff]
  %v11407 = vld [vmem:[#allocation5 + $0x30] sm:$0xff]
  %v11408 = vld [vmem:[%s5] sm:$0xff]
  %v11409 = vld [vmem:[%s5 + $0x8] sm:$0xff]
  %v11410 = vld [vmem:[%s5 + $0x10] sm:$0xff]
  %v11411 = vld [vmem:[%s5 + $0x18] sm:$0xff]
  %v11412 = vld [vmem:[%s5 + $0x20] sm:$0xff]
  %v11413 = vld [vmem:[%s5 + $0x28] sm:$0xff]
  %v11414 = vld [vmem:[%s5 + $0x30] sm:$0xff]
  %v11415 = vld [vmem:[%s5 + $0x38] sm:$0xff]
  %v11416 = vld [vmem:[%s5 + $0x40] sm:$0xff]
  %v11417 = vld [vmem:[%s5 + $0x48] sm:$0xff]
  %v11418 = vld [vmem:[%s5 + $0x50] sm:$0xff]
  %v11419 = vld [vmem:[%s5 + $0x58] sm:$0xff]
  %v11420 = vld [vmem:[%s5 + $0x60] sm:$0xff]
  %v11421 = vld [vmem:[%s5 + $0x68] sm:$0xff]
  %v11422 = vld [vmem:[%s5 + $0x70] sm:$0xff]
  %v11423 = vld [vmem:[%s5 + $0x78] sm:$0xff]
  %v11424 = vld [vmem:[%s5 + $0x80] sm:$0xff]
  %v11425 = vld [vmem:[%s5 + $0x88] sm:$0xff]
  %v11426 = vld [vmem:[%s5 + $0x90] sm:$0xff]
  %v11427 = vld [vmem:[%s5 + $0x98] sm:$0xff]
  %v11428 = vld [vmem:[%s5 + $0xa0] sm:$0xff]
  %v11429 = vld [vmem:[%s5 + $0xa8] sm:$0xff]
  %v11430 = vld [vmem:[%s5 + $0xb0] sm:$0xff]
  %v11431 = vld [vmem:[%s5 + $0xb8] sm:$0xff]
  %v11432 = vld [vmem:[%s5 + $0xc0] sm:$0xff]
  %v11433 = vld [vmem:[%s5 + $0xc8] sm:$0xff]
  %v11434 = vld [vmem:[%s5 + $0xd0] sm:$0xff]
  %v11435 = vld [vmem:[%s5 + $0xd8] sm:$0xff]
  %v11436 = vld [vmem:[%s5 + $0xe0] sm:$0xff]
  %v11437 = vld [vmem:[%s5 + $0xe8] sm:$0xff]
  %v11438 = vld [vmem:[%s5 + $0xf0] sm:$0xff]
  %v11439 = vld [vmem:[%s5 + $0xf8] sm:$0xff]
  %v11440 = vld [vmem:[%s5 + $0x100] sm:$0xff]
  %v11441 = vld [vmem:[%s5 + $0x108] sm:$0xff]
  %v11442 = vld [vmem:[%s5 + $0x110] sm:$0xff]
  %v11443 = vld [vmem:[%s5 + $0x118] sm:$0xff]
  %v11444 = vld [vmem:[%s5 + $0x120] sm:$0xff]
  %v11445 = vld [vmem:[%s5 + $0x128] sm:$0xff]
  %v11446 = vld [vmem:[%s5 + $0x130] sm:$0xff]
  %v11447 = vld [vmem:[%s5 + $0x138] sm:$0xff]
  %v11448 = vld [vmem:[%s5 + $0x140] sm:$0xff]
  %v11449 = vld [vmem:[%s5 + $0x148] sm:$0xff]
  %v11450 = vld [vmem:[%s5 + $0x150] sm:$0xff]
  %v11451 = vld [vmem:[%s5 + $0x158] sm:$0xff]
  %v11452 = vld [vmem:[%s5 + $0x160] sm:$0xff]
  %v11453 = vld [vmem:[%s5 + $0x168] sm:$0xff]
  %v11454 = vld [vmem:[%s5 + $0x170] sm:$0xff]
  %v11455 = vld [vmem:[%s5 + $0x178] sm:$0xff]
  %v11456 = vld [vmem:[%s5 + $0x180] sm:$0xff]
  %v11457 = vld [vmem:[%s5 + $0x188] sm:$0xff]
  %v11458 = vld [vmem:[%s5 + $0x190] sm:$0xff]
  %v11459 = vld [vmem:[%s5 + $0x198] sm:$0xff]
  %v11460 = vld [vmem:[%s5 + $0x1a0] sm:$0xff]
  %v11461 = vld [vmem:[%s5 + $0x1a8] sm:$0xff]
  %v11462 = vld [vmem:[%s5 + $0x1b0] sm:$0xff]
  %v11463 = vld [vmem:[%s5 + $0x1b8] sm:$0xff]
  %v11464 = vld [vmem:[%s5 + $0x1c0] sm:$0xff]
  %v11465 = vld [vmem:[%s5 + $0x1c8] sm:$0xff]
  %v11466 = vld [vmem:[%s5 + $0x1d0] sm:$0xff]
  %v11467 = vld [vmem:[%s5 + $0x1d8] sm:$0xff]
  %v11468 = vld [vmem:[%s5 + $0x1e0] sm:$0xff]
  %v11469 = vld [vmem:[%s5 + $0x1e8] sm:$0xff]
  %v11470 = vld [vmem:[%s5 + $0x1f0] sm:$0xff]
  %v11471 = vld [vmem:[%s5 + $0x1f8] sm:$0xff]
  %v11472 = vld [vmem:[%s5 + $0x200] sm:$0xff]
  %v11473 = vld [vmem:[%s5 + $0x208] sm:$0xff]
  %v11474 = vld [vmem:[%s5 + $0x210] sm:$0xff]
  %v11475 = vld [vmem:[%s5 + $0x218] sm:$0xff]
  %v11476 = vld [vmem:[%s5 + $0x220] sm:$0xff]
  %v11477 = vld [vmem:[%s5 + $0x228] sm:$0xff]
  %v11478 = vld [vmem:[%s5 + $0x230] sm:$0xff]
  %v11479 = vld [vmem:[%s5 + $0x238] sm:$0xff]
  %v11480 = vld [vmem:[%s5 + $0x240] sm:$0xff]
  %v11481 = vld [vmem:[%s5 + $0x248] sm:$0xff]
  %v11482 = vld [vmem:[%s5 + $0x250] sm:$0xff]
  %v11483 = vld [vmem:[%s5 + $0x258] sm:$0xff]
  %v11484 = vld [vmem:[%s5 + $0x260] sm:$0xff]
  %v11485 = vld [vmem:[%s5 + $0x268] sm:$0xff]
  %v11486 = vld [vmem:[%s5 + $0x270] sm:$0xff]
  %v11487 = vld [vmem:[%s5 + $0x278] sm:$0xff]
  %v11488 = vld [vmem:[%s5 + $0x280] sm:$0xff]
  %v11489 = vld [vmem:[%s5 + $0x288] sm:$0xff]
  %v11490 = vld [vmem:[%s5 + $0x290] sm:$0xff]
  %v11491 = vld [vmem:[%s5 + $0x298] sm:$0xff]
  %v11492 = vld [vmem:[%s5 + $0x2a0] sm:$0xff]
  %v11493 = vld [vmem:[%s5 + $0x2a8] sm:$0xff]
  %v11494 = vld [vmem:[%s5 + $0x2b0] sm:$0xff]
  %v11495 = vld [vmem:[%s5 + $0x2b8] sm:$0xff]
  %v11496 = vld [vmem:[%s5 + $0x2c0] sm:$0xff]
  %v11497 = vld [vmem:[%s5 + $0x2c8] sm:$0xff]
  %v11498 = vld [vmem:[%s5 + $0x2d0] sm:$0xff]
  %v11499 = vld [vmem:[%s5 + $0x2d8] sm:$0xff]
  %v11500 = vld [vmem:[%s5 + $0x2e0] sm:$0xff]
  %v11501 = vld [vmem:[%s5 + $0x2e8] sm:$0xff]
  %v11502 = vld [vmem:[%s5 + $0x2f0] sm:$0xff]
  %v11503 = vld [vmem:[%s5 + $0x2f8] sm:$0xff]
  %v11504 = vld [vmem:[%s5 + $0x300] sm:$0xff]
  %v11505 = vld [vmem:[%s5 + $0x308] sm:$0xff]
  %v11506 = vld [vmem:[%s5 + $0x310] sm:$0xff]
  %v11507 = vld [vmem:[%s5 + $0x318] sm:$0xff]
  %v11508 = vld [vmem:[%s6] sm:$0x1]
  %v11510 = vperm.slane %v11508, 0
  %v11513 = vsel %vm5571, %v11407, 0
  %11515 = vmatpush.msra.mxu0 %v11423
  %11516 = vmatpush.msra.mxu0 %v11422
  %11517 = vmatpush.msra.mxu0 %v11421
  %11518 = vmatpush.msra.mxu0 %v11420
  %11519 = vmatpush.msra.mxu0 %v11419
  %11520 = vmatpush.msra.mxu0 %v11418
  %11521 = vmatpush.msra.mxu0 %v11417
  %11522 = vmatpush.msra.mxu0 %v11416
  %11523 = vmatpush.msra.mxu0 %v11415
  %11524 = vmatpush.msra.mxu0 %v11414
  %11525 = vmatpush.msra.mxu0 %v11413
  %11526 = vmatpush.msra.mxu0 %v11412
  %11527 = vmatpush.msra.mxu0 %v11411
  %11528 = vmatpush.msra.mxu0 %v11410
  %11529 = vmatpush.msra.mxu0 %v11409
  %11530 = vmatpush.msra.mxu0 %v11408
  %11531 = vmatmul.f32.gmra.mxu0 %v11401
  %v11532 = vpop.f32.mrf.mxu0
  %v11533 = vadd.f32 %v11510, %v11532
  %11534 = vdwg.mxu0
  %11535 = vmatpush.msra.mxu0 %v11439
  %11536 = vmatpush.msra.mxu0 %v11438
  %11537 = vmatpush.msra.mxu0 %v11437
  %11538 = vmatpush.msra.mxu0 %v11436
  %11539 = vmatpush.msra.mxu0 %v11435
  %11540 = vmatpush.msra.mxu0 %v11434
  %11541 = vmatpush.msra.mxu0 %v11433
  %11542 = vmatpush.msra.mxu0 %v11432
  %11543 = vmatpush.msra.mxu0 %v11431
  %11544 = vmatpush.msra.mxu0 %v11430
  %11545 = vmatpush.msra.mxu0 %v11429
  %11546 = vmatpush.msra.mxu0 %v11428
  %11547 = vmatpush.msra.mxu0 %v11427
  %11548 = vmatpush.msra.mxu0 %v11426
  %11549 = vmatpush.msra.mxu0 %v11425
  %11550 = vmatpush.msra.mxu0 %v11424
  %11551 = vmatmul.f32.gmra.mxu0 %v11402
  %v11552 = vpop.f32.mrf.mxu0
  %v11553 = vadd.f32 %v11533, %v11552
  %11554 = vdwg.mxu0
  %11555 = vmatpush.msra.mxu0 %v11455
  %11556 = vmatpush.msra.mxu0 %v11454
  %11557 = vmatpush.msra.mxu0 %v11453
  %11558 = vmatpush.msra.mxu0 %v11452
  %11559 = vmatpush.msra.mxu0 %v11451
  %11560 = vmatpush.msra.mxu0 %v11450
  %11561 = vmatpush.msra.mxu0 %v11449
  %11562 = vmatpush.msra.mxu0 %v11448
  %11563 = vmatpush.msra.mxu0 %v11447
  %11564 = vmatpush.msra.mxu0 %v11446
  %11565 = vmatpush.msra.mxu0 %v11445
  %11566 = vmatpush.msra.mxu0 %v11444
  %11567 = vmatpush.msra.mxu0 %v11443
  %11568 = vmatpush.msra.mxu0 %v11442
  %11569 = vmatpush.msra.mxu0 %v11441
  %11570 = vmatpush.msra.mxu0 %v11440
  %11571 = vmatmul.f32.gmra.mxu0 %v11403
  %v11572 = vpop.f32.mrf.mxu0
  %v11573 = vadd.f32 %v11553, %v11572
  %11574 = vdwg.mxu0
  %11575 = vmatpush.msra.mxu0 %v11471
  %11576 = vmatpush.msra.mxu0 %v11470
  %11577 = vmatpush.msra.mxu0 %v11469
  %11578 = vmatpush.msra.mxu0 %v11468
  %11579 = vmatpush.msra.mxu0 %v11467
  %11580 = vmatpush.msra.mxu0 %v11466
  %11581 = vmatpush.msra.mxu0 %v11465
  %11582 = vmatpush.msra.mxu0 %v11464
  %11583 = vmatpush.msra.mxu0 %v11463
  %11584 = vmatpush.msra.mxu0 %v11462
  %11585 = vmatpush.msra.mxu0 %v11461
  %11586 = vmatpush.msra.mxu0 %v11460
  %11587 = vmatpush.msra.mxu0 %v11459
  %11588 = vmatpush.msra.mxu0 %v11458
  %11589 = vmatpush.msra.mxu0 %v11457
  %11590 = vmatpush.msra.mxu0 %v11456
  %11591 = vmatmul.f32.gmra.mxu0 %v11404
  %v11592 = vpop.f32.mrf.mxu0
  %v11593 = vadd.f32 %v11573, %v11592
  %11594 = vdwg.mxu0
  %11595 = vmatpush.msra.mxu0 %v11487
  %11596 = vmatpush.msra.mxu0 %v11486
  %11597 = vmatpush.msra.mxu0 %v11485
  %11598 = vmatpush.msra.mxu0 %v11484
  %11599 = vmatpush.msra.mxu0 %v11483
  %11600 = vmatpush.msra.mxu0 %v11482
  %11601 = vmatpush.msra.mxu0 %v11481
  %11602 = vmatpush.msra.mxu0 %v11480
  %11603 = vmatpush.msra.mxu0 %v11479
  %11604 = vmatpush.msra.mxu0 %v11478
  %11605 = vmatpush.msra.mxu0 %v11477
  %11606 = vmatpush.msra.mxu0 %v11476
  %11607 = vmatpush.msra.mxu0 %v11475
  %11608 = vmatpush.msra.mxu0 %v11474
  %11609 = vmatpush.msra.mxu0 %v11473
  %11610 = vmatpush.msra.mxu0 %v11472
  %11611 = vmatmul.f32.gmra.mxu0 %v11405
  %v11612 = vpop.f32.mrf.mxu0
  %v11613 = vadd.f32 %v11593, %v11612
  %11614 = vdwg.mxu0
  %11615 = vmatpush.msra.mxu0 %v11503
  %11616 = vmatpush.msra.mxu0 %v11502
  %11617 = vmatpush.msra.mxu0 %v11501
  %11618 = vmatpush.msra.mxu0 %v11500
  %11619 = vmatpush.msra.mxu0 %v11499
  %11620 = vmatpush.msra.mxu0 %v11498
  %11621 = vmatpush.msra.mxu0 %v11497
  %11622 = vmatpush.msra.mxu0 %v11496
  %11623 = vmatpush.msra.mxu0 %v11495
  %11624 = vmatpush.msra.mxu0 %v11494
  %11625 = vmatpush.msra.mxu0 %v11493
  %11626 = vmatpush.msra.mxu0 %v11492
  %11627 = vmatpush.msra.mxu0 %v11491
  %11628 = vmatpush.msra.mxu0 %v11490
  %11629 = vmatpush.msra.mxu0 %v11489
  %11630 = vmatpush.msra.mxu0 %v11488
  %11631 = vmatmul.f32.gmra.mxu0 %v11406
  %v11632 = vpop.f32.mrf.mxu0
  %v11633 = vadd.f32 %v11613, %v11632
  %11634 = vdwg.mxu0
  %11635 = vmatpush.msra.mxu0 0.0
  %11636 = vmatpush.msra.mxu0 0.0
  %11637 = vmatpush.msra.mxu0 0.0
  %11638 = vmatpush.msra.mxu0 0.0
  %11639 = vmatpush.msra.mxu0 0.0
  %11640 = vmatpush.msra.mxu0 0.0
  %11641 = vmatpush.msra.mxu0 0.0
  %11642 = vmatpush.msra.mxu0 0.0
  %11643 = vmatpush.msra.mxu0 0.0
  %11644 = vmatpush.msra.mxu0 0.0
  %11645 = vmatpush.msra.mxu0 0.0
  %11646 = vmatpush.msra.mxu0 0.0
  %11647 = vmatpush.msra.mxu0 %v11507
  %11648 = vmatpush.msra.mxu0 %v11506
  %11649 = vmatpush.msra.mxu0 %v11505
  %11650 = vmatpush.msra.mxu0 %v11504
  %11651 = vmatmul.f32.gmra.mxu0 %v11513
  %v11652 = vpop.f32.mrf.mxu0
  %v11653 = vadd.f32 %v11633, %v11652
  %11654 = vdwg.mxu0
  %vm11655 = vcmask 80896
  %11656 = vst.msk [vmem:[%s7] sm:$0xff] %vm11655, %v11653
  // Predicated region
  $region30: #{cnn_forward.1} parent=0 // pred_check
    _
  $region31: #{cnn_forward.1} parent=0 // pred_check_branch
    %11658 = sbr.rel (0) target = $region33
  $region32: #{cnn_forward.1} parent=0 // pred_region
    _
  $region33: #{cnn_forward.1} parent=0 // pred_fallthru
    _
  // Predicated region
  $region34: #{cnn_forward.1} parent=0 // pred_check
    _
  $region35: #{cnn_forward.1} parent=0 // pred_check_branch
    %11660 = sbr.rel (0) target = $region37
  $region36: #{cnn_forward.1} parent=0 // pred_region
    _
  $region37: #{cnn_forward.1} parent=0 // pred_fallthru
    _

</llo_original>
